<compile_context>
chip_gen: v7x
topology: tpu7x:2x2x1
jax: 0.10.0
libtpu: 0.0.40
codegen_flags: <defaults>
</compile_context>

<pallas_src>
import jax
import jax.numpy as jnp
from jax.experimental import pallas as pl
from jax.experimental.pallas import tpu as pltpu

POINT_SIZE = 3
BN_EPS = 1e-5
VMEM_LIMIT = 32 * 1024 * 1024   # fits every TPU generation (v7x has 64 MiB/core)
FOLD = 128                      # lane width of the running-max scratch
NEG_INF = float("-inf")


def _round_up(x, m):
    return (x + m - 1) // m * m


# ----------------------------------------------------------------------------
# Fused kernel: conv1/conv2/conv3 trunk streamed over point chunks, global
# max-pool accumulated in a (1024, 128) scratch, FC head on the last chunk.
# ----------------------------------------------------------------------------
def make_stn3d_kernel(n_points, tn, n_chunks, has_pad):
    n_slices = tn // FOLD
    last = n_chunks - 1
    valid_tail = n_points - last * tn   # static Python int

    def kernel(x_ref,                  # (1, 3, TN)   one batch, one point chunk
               w1_ref, t1_ref,         # (64, 3)   f32 , (64, 1)   f32
               w2_ref, t2_ref,         # (128, 64) bf16, (128, 1)  f32
               w3_ref, t3_ref,         # (1024,128)bf16, (1024, 1) f32
               w4_ref, t4_ref,         # (512,1024)bf16, (512, 1)  f32
               w5_ref, t5_ref,         # (256,512) bf16, (256, 1)  f32
               w6_ref, b6_ref,         # (9, 256)  bf16, (9, 1)    f32
               out_ref,                # (1, 9, 1) f32  (written on last chunk)
               acc_ref):               # (1024, FOLD) f32 scratch running max
        n = pl.program_id(1)

        @pl.when(n == 0)
        def _():
            # raw (pre-shift/pre-ReLU) conv3 outputs are accumulated -> -inf init
            acc_ref[...] = jnp.full(acc_ref.shape, NEG_INF, acc_ref.dtype)

        x = x_ref[0]                   # (3, TN) f32
        w1 = w1_ref[...]               # (64, 3) f32

        # conv1 (k=1, Cin=3) + bn1 + relu as three VPU broadcast-FMAs -> (64, TN)
        h = (w1[:, 0:1] * x[0:1, :]
             + w1[:, 1:2] * x[1:2, :]
             + w1[:, 2:3] * x[2:3, :])
        h = jnp.maximum(h + t1_ref[...], 0.0)

        # conv2 (k=1) + bn2 + relu -> (128, TN)   (bf16 MXU, f32 accumulate)
        h = jnp.dot(w2_ref[...], h.astype(w2_ref.dtype),
                    preferred_element_type=jnp.float32)
        h = jnp.maximum(h + t2_ref[...], 0.0)

        # conv3 (k=1) RAW output -> (1024, TN); shift + ReLU deferred past pool
        z = jnp.dot(w3_ref[...], h.astype(w3_ref.dtype),
                    preferred_element_type=jnp.float32)

        def accumulate(zc):
            # fold TN lanes -> FOLD lanes with VPU element-wise maxes
            folded = zc[:, 0:FOLD]
            for s in range(1, n_slices):
                folded = jnp.maximum(folded, zc[:, s * FOLD:(s + 1) * FOLD])
            acc_ref[...] = jnp.maximum(acc_ref[...], folded)

        if has_pad:
            @pl.when(n != last)
            def _():
                accumulate(z)

            @pl.when(n == last)
            def _():
                # mask padded point columns to -inf (only on the tail chunk)
                lane = jax.lax.broadcasted_iota(jnp.int32, z.shape, 1)
                accumulate(jnp.where(lane < valid_tail, z, NEG_INF))
        else:
            accumulate(z)

        # -------- last chunk: finish pool + deferred epilogue + FC head ------
        @pl.when(n == last)
        def _():
            g = jnp.max(acc_ref[...], axis=1, keepdims=True)       # (1024, 1)
            g = jnp.maximum(g + t3_ref[...], 0.0)                  # deferred bn3+relu

            g = jnp.dot(w4_ref[...], g.astype(w4_ref.dtype),
                        preferred_element_type=jnp.float32)
            g = jnp.maximum(g + t4_ref[...], 0.0)                  # (512, 1)

            g = jnp.dot(w5_ref[...], g.astype(w5_ref.dtype),
                        preferred_element_type=jnp.float32)
            g = jnp.maximum(g + t5_ref[...], 0.0)                  # (256, 1)

            o = jnp.dot(w6_ref[...], g.astype(w6_ref.dtype),
                        preferred_element_type=jnp.float32)
            o = o + b6_ref[...]                                    # (9, 1)

            # flattened 3x3 identity (rows 0, 4, 8) without 1-D iota
            row = jax.lax.broadcasted_iota(jnp.int32, o.shape, 0)
            out_ref[0] = o + jnp.where(row % 4 == 0, 1.0, 0.0)

    return kernel


# ----------------------------------------------------------------------------
# Wrapper
# ----------------------------------------------------------------------------
def stn3d_forward(x_bcn, prep, tn=1024):
    """x_bcn: (B, 3, N) float32 (PyTorch NCW layout). Returns (B, 3, 3)."""
    B, C, N = x_bcn.shape
    assert C == POINT_SIZE
    x = x_bcn.astype(jnp.float32)

    # point-chunk size: multiple of 128, clamped to the (rounded-up) point count
    tn = max(FOLD, min(tn, _round_up(N, FOLD)))
    tn = _round_up(tn, FOLD)
    pad = (-N) % tn
    if pad:
        # small tail pad; padded columns are masked to -inf in-kernel
        x = jnp.pad(x, ((0, 0), (0, 0), (0, pad)))
    n_chunks = (N + pad) // tn

    def rep(arr):
        nd = arr.ndim
        return pl.BlockSpec(arr.shape, lambda b, n, nd=nd: (0,) * nd)

    out = pl.pallas_call(
        make_stn3d_kernel(N, tn, n_chunks, pad > 0),
        out_shape=jax.ShapeDtypeStruct((B, 9, 1), jnp.float32),
        grid=(B, n_chunks),
        in_specs=[
            pl.BlockSpec((1, POINT_SIZE, tn), lambda b, n: (b, 0, n)),
            rep(prep["w1"]), rep(prep["t1"]),
            rep(prep["w2"]), rep(prep["t2"]),
            rep(prep["w3"]), rep(prep["t3"]),
            rep(prep["w4"]), rep(prep["t4"]),
            rep(prep["w5"]), rep(prep["t5"]),
            rep(prep["w6"]), rep(prep["b6"]),
        ],
        out_specs=pl.BlockSpec((1, 9, 1), lambda b, n: (b, 0, 0)),
        scratch_shapes=[pltpu.VMEM((1024, FOLD), jnp.float32)],
        compiler_params=pltpu.CompilerParams(
            dimension_semantics=("parallel", "arbitrary"),
            vmem_limit_bytes=VMEM_LIMIT,
        ),
    )(x, prep["w1"], prep["t1"], prep["w2"], prep["t2"], prep["w3"],
      prep["t3"], prep["w4"], prep["t4"], prep["w5"], prep["t5"],
      prep["w6"], prep["b6"])

    return out.reshape(B, 3, 3)


# ----------------------------------------------------------------------------
# Parameters (torch-layout raw params -> folded kernel params)
# ----------------------------------------------------------------------------
def init_raw_params(key):
    """Deterministic synthetic parameters matching STN3d.__init__ shapes."""
    layer_dims = [("conv1", POINT_SIZE, 64), ("conv2", 64, 128),
                  ("conv3", 128, 1024), ("fc1", 1024, 512), ("fc2", 512, 256)]
    keys = list(jax.random.split(key, 6 * len(layer_dims) + 2))
    k = iter(keys)
    raw = {}
    for name, cin, cout in layer_dims:
        w = 0.05 * jax.random.normal(next(k), (cout, cin), jnp.float32)
        b = 0.01 * jax.random.normal(next(k), (cout,), jnp.float32)
        gamma = 1.0 + 0.1 * jax.random.normal(next(k), (cout,), jnp.float32)
        beta = 0.1 * jax.random.normal(next(k), (cout,), jnp.float32)
        mean = 0.05 * jax.random.normal(next(k), (cout,), jnp.float32)
        var = 0.5 + jnp.abs(0.2 * jax.random.normal(next(k), (cout,), jnp.float32))
        raw[name] = (w, b, gamma, beta, mean, var)
    w = 0.05 * jax.random.normal(next(k), (9, 256), jnp.float32)
    b = 0.01 * jax.random.normal(next(k), (9,), jnp.float32)
    raw["fc3"] = (w, b)
    return raw


def prepare_params(raw, matmul_dtype=jnp.bfloat16):
    """Fold bias + inference BatchNorm into the weights (scale) and a shift.

    All weights stay channel-major (Cout, Cin); shifts become (Cout, 1)."""
    def fold(w, b, gamma, beta, mean, var):
        scale = gamma * jax.lax.rsqrt(var + BN_EPS)          # (Cout,)
        shift = scale * (b - mean) + beta                    # (Cout,)
        return w * scale[:, None], shift

    w1, t1 = fold(*raw["conv1"])      # (64, 3)
    w2, t2 = fold(*raw["conv2"])      # (128, 64)
    w3, t3 = fold(*raw["conv3"])      # (1024, 128)
    w4, t4 = fold(*raw["fc1"])        # (512, 1024)
    w5, t5 = fold(*raw["fc2"])        # (256, 512)
    w6, b6 = raw["fc3"]               # (9, 256)

    def col(v):
        return v.reshape(-1, 1).astype(jnp.float32)

    return dict(
        w1=w1.astype(jnp.float32), t1=col(t1),   # conv1 stays f32 (VPU FMA path)
        w2=w2.astype(matmul_dtype), t2=col(t2),
        w3=w3.astype(matmul_dtype), t3=col(t3),
        w4=w4.astype(matmul_dtype), t4=col(t4),
        w5=w5.astype(matmul_dtype), t5=col(t5),
        w6=w6.astype(matmul_dtype), b6=col(b6),
    )


def reference_forward(x_bcn, raw):
    """Plain-JAX f32 reference implementing the PyTorch forward (spec)."""
    def bn(z, gamma, beta, mean, var):
        return gamma * (z - mean) * jax.lax.rsqrt(var + BN_EPS) + beta

    x = jnp.transpose(x_bcn, (0, 2, 1)).astype(jnp.float32)   # (B, N, 3)
    for name in ("conv1", "conv2", "conv3"):
        w, b, g, be, m, v = raw[name]
        x = jax.nn.relu(bn(x @ w.T + b, g, be, m, v))
    f = jnp.max(x, axis=1)                                    # (B, 1024)
    for name in ("fc1", "fc2"):
        w, b, g, be, m, v = raw[name]
        f = jax.nn.relu(bn(f @ w.T + b, g, be, m, v))
    w, b = raw["fc3"]
    o = f @ w.T + b
    iden = jnp.eye(3, dtype=jnp.float32).reshape(1, 9)
    return (o + iden).reshape(-1, 3, 3)


if __name__ == "__main__":
    key = jax.random.PRNGKey(0)
    kx, kp = jax.random.split(key)

    raw = init_raw_params(kp)
    prep = prepare_params(raw)

    # Small shapes consistent with the module: B=2, 3 channels, N=16 points.
    B, N = 2, 16
    x = jax.random.normal(kx, (B, POINT_SIZE, N), jnp.float32)  # PyTorch NCW
    out = jax.block_until_ready(stn3d_forward(x, prep))
    ref = reference_forward(x, raw)
    assert out.shape == (B, 3, 3)
    # tolerance absorbs bf16 matmul weights (reference is pure f32)
    assert jnp.allclose(out, ref, atol=3e-2, rtol=3e-2), "kernel mismatch (N=16)"

    # Multi-chunk streaming with a masked padded tail (N % tn != 0).
    N2 = 300
    x2 = jax.random.normal(jax.random.PRNGKey(1), (B, POINT_SIZE, N2), jnp.float32)
    out2 = jax.block_until_ready(stn3d_forward(x2, prep, tn=128))
    ref2 = reference_forward(x2, raw)
    assert jnp.allclose(out2, ref2, atol=3e-2, rtol=3e-2), "kernel mismatch (N=300)"

    # Multi-chunk streaming, exact division (exercises the no-mask path).
    N3 = 2048
    x3 = jax.random.normal(jax.random.PRNGKey(2), (B, POINT_SIZE, N3), jnp.float32)
    out3 = jax.block_until_ready(stn3d_forward(x3, prep))
    ref3 = reference_forward(x3, raw)
    assert jnp.allclose(out3, ref3, atol=3e-2, rtol=3e-2), "kernel mismatch (N=2048)"

    print("KERNEL_OK")
</pallas_src>

<mosaic_0001>
module attributes {stable_mosaic.version = 11 : i64} {
  func.func @kernel(%arg0: i32, %arg1: i32, %arg2: memref<1x3x128xf32, #tpu.memory_space<vmem>>, %arg3: memref<64x3xf32, #tpu.memory_space<vmem>>, %arg4: memref<64x1xf32, #tpu.memory_space<vmem>>, %arg5: memref<128x64xbf16, #tpu.memory_space<vmem>>, %arg6: memref<128x1xf32, #tpu.memory_space<vmem>>, %arg7: memref<1024x128xbf16, #tpu.memory_space<vmem>>, %arg8: memref<1024x1xf32, #tpu.memory_space<vmem>>, %arg9: memref<512x1024xbf16, #tpu.memory_space<vmem>>, %arg10: memref<512x1xf32, #tpu.memory_space<vmem>>, %arg11: memref<256x512xbf16, #tpu.memory_space<vmem>>, %arg12: memref<256x1xf32, #tpu.memory_space<vmem>>, %arg13: memref<9x256xbf16, #tpu.memory_space<vmem>>, %arg14: memref<9x1xf32, #tpu.memory_space<vmem>>, %arg15: memref<1x9x1xf32, #tpu.memory_space<vmem>>, %arg16: memref<1024x128xf32, #tpu.memory_space<vmem>>) attributes {dimension_semantics = [#tpu.dimension_semantics<parallel>, #tpu.dimension_semantics<arbitrary>], iteration_bounds = array<i64: 2, 1>, scalar_prefetch = 0 : i64, scratch_operands = 1 : i64, tpu.core_type = #tpu.core_type<tc>, window_params = [{transform_indices = @transform_0, window_bounds = array<i64: 1, 3, 128>}, {pipeline_mode = #tpu.pipeline_mode<synchronous>, transform_indices = @transform_1, window_bounds = array<i64: 64, 3>}, {pipeline_mode = #tpu.pipeline_mode<synchronous>, transform_indices = @transform_2, window_bounds = array<i64: 64, 1>}, {pipeline_mode = #tpu.pipeline_mode<synchronous>, transform_indices = @transform_3, window_bounds = array<i64: 128, 64>}, {pipeline_mode = #tpu.pipeline_mode<synchronous>, transform_indices = @transform_4, window_bounds = array<i64: 128, 1>}, {pipeline_mode = #tpu.pipeline_mode<synchronous>, transform_indices = @transform_5, window_bounds = array<i64: 1024, 128>}, {pipeline_mode = #tpu.pipeline_mode<synchronous>, transform_indices = @transform_6, window_bounds = array<i64: 1024, 1>}, {pipeline_mode = #tpu.pipeline_mode<synchronous>, transform_indices = @transform_7, window_bounds = array<i64: 512, 1024>}, {pipeline_mode = #tpu.pipeline_mode<synchronous>, transform_indices = @transform_8, window_bounds = array<i64: 512, 1>}, {pipeline_mode = #tpu.pipeline_mode<synchronous>, transform_indices = @transform_9, window_bounds = array<i64: 256, 512>}, {pipeline_mode = #tpu.pipeline_mode<synchronous>, transform_indices = @transform_10, window_bounds = array<i64: 256, 1>}, {pipeline_mode = #tpu.pipeline_mode<synchronous>, transform_indices = @transform_11, window_bounds = array<i64: 9, 256>}, {pipeline_mode = #tpu.pipeline_mode<synchronous>, transform_indices = @transform_12, window_bounds = array<i64: 9, 1>}, {transform_indices = @transform_13, window_bounds = array<i64: 1, 9, 1>}]} {
    %c0_i32 = arith.constant 0 : i32
    %0 = arith.cmpi eq, %arg1, %c0_i32 : i32
    %1 = arith.extui %0 : i1 to i32
    %c0_i32_0 = arith.constant 0 : i32
    %2 = arith.cmpi ne, %1, %c0_i32_0 : i32
    scf.if %2 {
      %cst_22 = arith.constant 0xFF800000 : f32
      %48 = vector.broadcast %cst_22 : f32 to vector<1024x128xf32>
      %c0_23 = arith.constant 0 : index
      %c0_24 = arith.constant 0 : index
      %49 = vector.load %arg16[%c0_23, %c0_24] : memref<1024x128xf32, #tpu.memory_space<vmem>>, vector<1024x128xf32>
      tpu.vector_store %arg16[%c0_23, %c0_24], %48 {strides = array<i32>} : memref<1024x128xf32, #tpu.memory_space<vmem>>, vector<1024x128xf32>,
    } else {
    }
    %c0 = arith.constant 0 : index
    %c0_1 = arith.constant 0 : index
    %c0_2 = arith.constant 0 : index
    %3 = vector.load %arg2[%c0, %c0_1, %c0_2] : memref<1x3x128xf32, #tpu.memory_space<vmem>>, vector<1x3x128xf32>
    %4 = vector.shape_cast %3 : vector<1x3x128xf32> to vector<3x128xf32>
    %c0_3 = arith.constant 0 : index
    %c0_4 = arith.constant 0 : index
    %5 = vector.load %arg3[%c0_3, %c0_4] : memref<64x3xf32, #tpu.memory_space<vmem>>, vector<64x3xf32>
    %6 = vector.extract_strided_slice %5 {offsets = [0, 0], sizes = [64, 1], strides = [1, 1]} : vector<64x3xf32> to vector<64x1xf32>
    %7 = vector.extract_strided_slice %4 {offsets = [0, 0], sizes = [1, 128], strides = [1, 1]} : vector<3x128xf32> to vector<1x128xf32>
    %8 = vector.broadcast %6 : vector<64x1xf32> to vector<64x128xf32>
    %9 = vector.broadcast %7 : vector<1x128xf32> to vector<64x128xf32>
    %10 = arith.mulf %8, %9 : vector<64x128xf32>
    %11 = vector.extract_strided_slice %5 {offsets = [0, 1], sizes = [64, 1], strides = [1, 1]} : vector<64x3xf32> to vector<64x1xf32>
    %12 = vector.extract_strided_slice %4 {offsets = [1, 0], sizes = [1, 128], strides = [1, 1]} : vector<3x128xf32> to vector<1x128xf32>
    %13 = vector.broadcast %11 : vector<64x1xf32> to vector<64x128xf32>
    %14 = vector.broadcast %12 : vector<1x128xf32> to vector<64x128xf32>
    %15 = arith.mulf %13, %14 : vector<64x128xf32>
    %16 = arith.addf %10, %15 : vector<64x128xf32>
    %17 = vector.extract_strided_slice %5 {offsets = [0, 2], sizes = [64, 1], strides = [1, 1]} : vector<64x3xf32> to vector<64x1xf32>
    %18 = vector.extract_strided_slice %4 {offsets = [2, 0], sizes = [1, 128], strides = [1, 1]} : vector<3x128xf32> to vector<1x128xf32>
    %19 = vector.broadcast %17 : vector<64x1xf32> to vector<64x128xf32>
    %20 = vector.broadcast %18 : vector<1x128xf32> to vector<64x128xf32>
    %21 = arith.mulf %19, %20 : vector<64x128xf32>
    %22 = arith.addf %16, %21 : vector<64x128xf32>
    %c0_5 = arith.constant 0 : index
    %c0_6 = arith.constant 0 : index
    %23 = vector.load %arg4[%c0_5, %c0_6] : memref<64x1xf32, #tpu.memory_space<vmem>>, vector<64x1xf32>
    %24 = vector.broadcast %23 : vector<64x1xf32> to vector<64x128xf32>
    %25 = arith.addf %22, %24 : vector<64x128xf32>
    %cst = arith.constant 0.000000e+00 : f32
    %26 = vector.broadcast %cst : f32 to vector<64x128xf32>
    %27 = arith.maximumf %25, %26 : vector<64x128xf32>
    %c0_7 = arith.constant 0 : index
    %c0_8 = arith.constant 0 : index
    %28 = vector.load %arg5[%c0_7, %c0_8] : memref<128x64xbf16, #tpu.memory_space<vmem>>, vector<128x64xbf16>
    %29 = arith.truncf %27 : vector<64x128xf32> to vector<64x128xbf16>
    %cst_9 = arith.constant dense<0.000000e+00> : vector<128x128xf32>
    %30 = tpu.matmul %28, %29, %cst_9 {dimension_numbers = #tpu.dot_dimension_numbers<[1], [0], [0], [1], [0, 0, 1, 1], [], []>} : vector<128x64xbf16>, vector<64x128xbf16>, vector<128x128xf32> -> vector<128x128xf32>
    %c0_10 = arith.constant 0 : index
    %c0_11 = arith.constant 0 : index
    %31 = vector.load %arg6[%c0_10, %c0_11] : memref<128x1xf32, #tpu.memory_space<vmem>>, vector<128x1xf32>
    %32 = vector.broadcast %31 : vector<128x1xf32> to vector<128x128xf32>
    %33 = arith.addf %30, %32 : vector<128x128xf32>
    %cst_12 = arith.constant 0.000000e+00 : f32
    %34 = vector.broadcast %cst_12 : f32 to vector<128x128xf32>
    %35 = arith.maximumf %33, %34 : vector<128x128xf32>
    %c0_13 = arith.constant 0 : index
    %c0_14 = arith.constant 0 : index
    %36 = vector.load %arg7[%c0_13, %c0_14] : memref<1024x128xbf16, #tpu.memory_space<vmem>>, vector<1024x128xbf16>
    %37 = arith.truncf %35 : vector<128x128xf32> to vector<128x128xbf16>
    %cst_15 = arith.constant dense<0.000000e+00> : vector<1024x128xf32>
    %38 = tpu.matmul %36, %37, %cst_15 {dimension_numbers = #tpu.dot_dimension_numbers<[1], [0], [0], [1], [0, 0, 1, 1], [], []>} : vector<1024x128xbf16>, vector<128x128xbf16>, vector<1024x128xf32> -> vector<1024x128xf32>
    %c0_i32_16 = arith.constant 0 : i32
    %39 = arith.cmpi ne, %arg1, %c0_i32_16 : i32
    %40 = arith.extui %39 : i1 to i32
    %c0_i32_17 = arith.constant 0 : i32
    %41 = arith.cmpi ne, %40, %c0_i32_17 : i32
    scf.if %41 {
      %c0_22 = arith.constant 0 : index
      %c0_23 = arith.constant 0 : index
      %48 = vector.load %arg16[%c0_22, %c0_23] : memref<1024x128xf32, #tpu.memory_space<vmem>>, vector<1024x128xf32>
      %49 = arith.maximumf %48, %38 : vector<1024x128xf32>
      %c0_24 = arith.constant 0 : index
      %c0_25 = arith.constant 0 : index
      %50 = vector.load %arg16[%c0_24, %c0_25] : memref<1024x128xf32, #tpu.memory_space<vmem>>, vector<1024x128xf32>
      tpu.vector_store %arg16[%c0_24, %c0_25], %49 {strides = array<i32>} : memref<1024x128xf32, #tpu.memory_space<vmem>>, vector<1024x128xf32>,
    } else {
    }
    %c0_i32_18 = arith.constant 0 : i32
    %42 = arith.cmpi eq, %arg1, %c0_i32_18 : i32
    %43 = arith.extui %42 : i1 to i32
    %c0_i32_19 = arith.constant 0 : i32
    %44 = arith.cmpi ne, %43, %c0_i32_19 : i32
    scf.if %44 {
      %48 = tpu.iota {dimensions = array<i32: 1>} : vector<1024x128xi32>
      %c16_i32 = arith.constant 16 : i32
      %49 = vector.broadcast %c16_i32 : i32 to vector<1024x128xi32>
      %50 = arith.cmpi slt, %48, %49 : vector<1024x128xi32>
      %cst_22 = arith.constant 0xFF800000 : f32
      %51 = vector.broadcast %cst_22 : f32 to vector<1024x128xf32>
      %52 = arith.select %50, %38, %51 : vector<1024x128xi1>, vector<1024x128xf32>
      %c0_23 = arith.constant 0 : index
      %c0_24 = arith.constant 0 : index
      %53 = vector.load %arg16[%c0_23, %c0_24] : memref<1024x128xf32, #tpu.memory_space<vmem>>, vector<1024x128xf32>
      %54 = arith.maximumf %53, %52 : vector<1024x128xf32>
      %c0_25 = arith.constant 0 : index
      %c0_26 = arith.constant 0 : index
      %55 = vector.load %arg16[%c0_25, %c0_26] : memref<1024x128xf32, #tpu.memory_space<vmem>>, vector<1024x128xf32>
      tpu.vector_store %arg16[%c0_25, %c0_26], %54 {strides = array<i32>} : memref<1024x128xf32, #tpu.memory_space<vmem>>, vector<1024x128xf32>,
    } else {
    }
    %c0_i32_20 = arith.constant 0 : i32
    %45 = arith.cmpi eq, %arg1, %c0_i32_20 : i32
    %46 = arith.extui %45 : i1 to i32
    %c0_i32_21 = arith.constant 0 : i32
    %47 = arith.cmpi ne, %46, %c0_i32_21 : i32
    scf.if %47 {
      %c0_22 = arith.constant 0 : index
      %c0_23 = arith.constant 0 : index
      %48 = vector.load %arg16[%c0_22, %c0_23] : memref<1024x128xf32, #tpu.memory_space<vmem>>, vector<1024x128xf32>
      %cst_24 = arith.constant dense<0xFF800000> : vector<1024xf32>
      %49 = vector.multi_reduction <maximumf>, %48, %cst_24 [1] : vector<1024x128xf32> to vector<1024xf32>
      %50 = vector.shape_cast %49 : vector<1024xf32> to vector<1024x1xf32>
      %c0_25 = arith.constant 0 : index
      %c0_26 = arith.constant 0 : index
      %51 = vector.load %arg8[%c0_25, %c0_26] : memref<1024x1xf32, #tpu.memory_space<vmem>>, vector<1024x1xf32>
      %52 = arith.addf %50, %51 : vector<1024x1xf32>
      %cst_27 = arith.constant 0.000000e+00 : f32
      %53 = vector.broadcast %cst_27 : f32 to vector<1024x1xf32>
      %54 = arith.maximumf %52, %53 : vector<1024x1xf32>
      %c0_28 = arith.constant 0 : index
      %c0_29 = arith.constant 0 : index
      %55 = vector.load %arg9[%c0_28, %c0_29] : memref<512x1024xbf16, #tpu.memory_space<vmem>>, vector<512x1024xbf16>
      %56 = arith.truncf %54 : vector<1024x1xf32> to vector<1024x1xbf16>
      %cst_30 = arith.constant dense<0.000000e+00> : vector<512x1xf32>
      %57 = tpu.matmul %55, %56, %cst_30 {dimension_numbers = #tpu.dot_dimension_numbers<[1], [0], [0], [1], [0, 0, 1, 1], [], []>} : vector<512x1024xbf16>, vector<1024x1xbf16>, vector<512x1xf32> -> vector<512x1xf32>
      %c0_31 = arith.constant 0 : index
      %c0_32 = arith.constant 0 : index
      %58 = vector.load %arg10[%c0_31, %c0_32] : memref<512x1xf32, #tpu.memory_space<vmem>>, vector<512x1xf32>
      %59 = arith.addf %57, %58 : vector<512x1xf32>
      %cst_33 = arith.constant 0.000000e+00 : f32
      %60 = vector.broadcast %cst_33 : f32 to vector<512x1xf32>
      %61 = arith.maximumf %59, %60 : vector<512x1xf32>
      %c0_34 = arith.constant 0 : index
      %c0_35 = arith.constant 0 : index
      %62 = vector.load %arg11[%c0_34, %c0_35] : memref<256x512xbf16, #tpu.memory_space<vmem>>, vector<256x512xbf16>
      %63 = arith.truncf %61 : vector<512x1xf32> to vector<512x1xbf16>
      %cst_36 = arith.constant dense<0.000000e+00> : vector<256x1xf32>
      %64 = tpu.matmul %62, %63, %cst_36 {dimension_numbers = #tpu.dot_dimension_numbers<[1], [0], [0], [1], [0, 0, 1, 1], [], []>} : vector<256x512xbf16>, vector<512x1xbf16>, vector<256x1xf32> -> vector<256x1xf32>
      %c0_37 = arith.constant 0 : index
      %c0_38 = arith.constant 0 : index
      %65 = vector.load %arg12[%c0_37, %c0_38] : memref<256x1xf32, #tpu.memory_space<vmem>>, vector<256x1xf32>
      %66 = arith.addf %64, %65 : vector<256x1xf32>
      %cst_39 = arith.constant 0.000000e+00 : f32
      %67 = vector.broadcast %cst_39 : f32 to vector<256x1xf32>
      %68 = arith.maximumf %66, %67 : vector<256x1xf32>
      %c0_40 = arith.constant 0 : index
      %c0_41 = arith.constant 0 : index
      %69 = vector.load %arg13[%c0_40, %c0_41] : memref<9x256xbf16, #tpu.memory_space<vmem>>, vector<9x256xbf16>
      %70 = arith.truncf %68 : vector<256x1xf32> to vector<256x1xbf16>
      %cst_42 = arith.constant dense<0.000000e+00> : vector<9x1xf32>
      %71 = tpu.matmul %69, %70, %cst_42 {dimension_numbers = #tpu.dot_dimension_numbers<[1], [0], [0], [1], [0, 0, 1, 1], [], []>} : vector<9x256xbf16>, vector<256x1xbf16>, vector<9x1xf32> -> vector<9x1xf32>
      %c0_43 = arith.constant 0 : index
      %c0_44 = arith.constant 0 : index
      %72 = vector.load %arg14[%c0_43, %c0_44] : memref<9x1xf32, #tpu.memory_space<vmem>>, vector<9x1xf32>
      %73 = arith.addf %71, %72 : vector<9x1xf32>
      %74 = tpu.iota {dimensions = array<i32: 0>} : vector<9x1xi32>
      %c4_i32 = arith.constant 4 : i32
      %c0_i32_45 = arith.constant 0 : i32
      %75 = arith.cmpi eq, %c4_i32, %c0_i32_45 : i32
      %c1_i32 = arith.constant 1 : i32
      %76 = arith.select %75, %c1_i32, %c4_i32 : i32
      %77 = vector.broadcast %76 : i32 to vector<9x1xi32>
      %78 = arith.remsi %74, %77 : vector<9x1xi32>
      %c0_i32_46 = arith.constant 0 : i32
      %79 = vector.broadcast %c0_i32_46 : i32 to vector<9x1xi32>
      %80 = arith.cmpi ne, %78, %79 : vector<9x1xi32>
      %c0_i32_47 = arith.constant 0 : i32
      %81 = vector.broadcast %c0_i32_47 : i32 to vector<9x1xi32>
      %82 = arith.cmpi slt, %78, %81 : vector<9x1xi32>
      %c0_i32_48 = arith.constant 0 : i32
      %83 = arith.cmpi slt, %76, %c0_i32_48 : i32
      %84 = vector.broadcast %83 : i1 to vector<9x1xi1>
      %85 = vector.broadcast %84 : vector<9x1xi1> to vector<9x1xi1>
      %86 = arith.xori %82, %85 : vector<9x1xi1>
      %87 = arith.andi %86, %80 : vector<9x1xi1>
      %88 = vector.broadcast %76 : i32 to vector<9x1xi32>
      %89 = arith.addi %78, %88 : vector<9x1xi32>
      %90 = arith.select %87, %89, %78 : vector<9x1xi1>, vector<9x1xi32>
      %c0_i32_49 = arith.constant 0 : i32
      %91 = vector.broadcast %c0_i32_49 : i32 to vector<9x1xi32>
      %92 = arith.cmpi eq, %90, %91 : vector<9x1xi32>
      %cst_50 = arith.constant 1.000000e+00 : f32
      %cst_51 = arith.constant 0.000000e+00 : f32
      %93 = vector.broadcast %cst_50 : f32 to vector<9x1xf32>
      %94 = vector.broadcast %cst_51 : f32 to vector<9x1xf32>
      %95 = arith.select %92, %93, %94 : vector<9x1xi1>, vector<9x1xf32>
      %96 = arith.addf %73, %95 : vector<9x1xf32>
      %c0_52 = arith.constant 0 : index
      %c0_53 = arith.constant 0 : index
      %c0_54 = arith.constant 0 : index
      %97 = vector.load %arg15[%c0_52, %c0_53, %c0_54] : memref<1x9x1xf32, #tpu.memory_space<vmem>>, vector<1x9x1xf32>
      %98 = vector.shape_cast %97 : vector<1x9x1xf32> to vector<9x1xf32>
      %99 = vector.shape_cast %96 : vector<9x1xf32> to vector<1x9x1xf32>
      tpu.vector_store %arg15[%c0_52, %c0_53, %c0_54], %99 {strides = array<i32>} : memref<1x9x1xf32, #tpu.memory_space<vmem>>, vector<1x9x1xf32>,
    } else {
    }
    return
  }
  func.func @transform_0(%arg0: i32, %arg1: i32) -> (i32, i32, i32) {
    %c0_i32 = arith.constant 0 : i32
    %c0_i32_0 = arith.constant 0 : i32
    return %arg0, %c0_i32, %arg1 : i32, i32, i32
  }
  func.func @transform_1(%arg0: i32, %arg1: i32) -> (i32, i32) {
    %c0_i32 = arith.constant 0 : i32
    %c0_i32_0 = arith.constant 0 : i32
    %c0_i32_1 = arith.constant 0 : i32
    return %c0_i32, %c0_i32_0 : i32, i32
  }
  func.func @transform_2(%arg0: i32, %arg1: i32) -> (i32, i32) {
    %c0_i32 = arith.constant 0 : i32
    %c0_i32_0 = arith.constant 0 : i32
    %c0_i32_1 = arith.constant 0 : i32
    return %c0_i32, %c0_i32_0 : i32, i32
  }
  func.func @transform_3(%arg0: i32, %arg1: i32) -> (i32, i32) {
    %c0_i32 = arith.constant 0 : i32
    %c0_i32_0 = arith.constant 0 : i32
    %c0_i32_1 = arith.constant 0 : i32
    return %c0_i32, %c0_i32_0 : i32, i32
  }
  func.func @transform_4(%arg0: i32, %arg1: i32) -> (i32, i32) {
    %c0_i32 = arith.constant 0 : i32
    %c0_i32_0 = arith.constant 0 : i32
    %c0_i32_1 = arith.constant 0 : i32
    return %c0_i32, %c0_i32_0 : i32, i32
  }
  func.func @transform_5(%arg0: i32, %arg1: i32) -> (i32, i32) {
    %c0_i32 = arith.constant 0 : i32
    %c0_i32_0 = arith.constant 0 : i32
    %c0_i32_1 = arith.constant 0 : i32
    return %c0_i32, %c0_i32_0 : i32, i32
  }
  func.func @transform_6(%arg0: i32, %arg1: i32) -> (i32, i32) {
    %c0_i32 = arith.constant 0 : i32
    %c0_i32_0 = arith.constant 0 : i32
    %c0_i32_1 = arith.constant 0 : i32
    return %c0_i32, %c0_i32_0 : i32, i32
  }
  func.func @transform_7(%arg0: i32, %arg1: i32) -> (i32, i32) {
    %c0_i32 = arith.constant 0 : i32
    %c0_i32_0 = arith.constant 0 : i32
    %c0_i32_1 = arith.constant 0 : i32
    return %c0_i32, %c0_i32_0 : i32, i32
  }
  func.func @transform_8(%arg0: i32, %arg1: i32) -> (i32, i32) {
    %c0_i32 = arith.constant 0 : i32
    %c0_i32_0 = arith.constant 0 : i32
    %c0_i32_1 = arith.constant 0 : i32
    return %c0_i32, %c0_i32_0 : i32, i32
  }
  func.func @transform_9(%arg0: i32, %arg1: i32) -> (i32, i32) {
    %c0_i32 = arith.constant 0 : i32
    %c0_i32_0 = arith.constant 0 : i32
    %c0_i32_1 = arith.constant 0 : i32
    return %c0_i32, %c0_i32_0 : i32, i32
  }
  func.func @transform_10(%arg0: i32, %arg1: i32) -> (i32, i32) {
    %c0_i32 = arith.constant 0 : i32
    %c0_i32_0 = arith.constant 0 : i32
    %c0_i32_1 = arith.constant 0 : i32
    return %c0_i32, %c0_i32_0 : i32, i32
  }
  func.func @transform_11(%arg0: i32, %arg1: i32) -> (i32, i32) {
    %c0_i32 = arith.constant 0 : i32
    %c0_i32_0 = arith.constant 0 : i32
    %c0_i32_1 = arith.constant 0 : i32
    return %c0_i32, %c0_i32_0 : i32, i32
  }
  func.func @transform_12(%arg0: i32, %arg1: i32) -> (i32, i32) {
    %c0_i32 = arith.constant 0 : i32
    %c0_i32_0 = arith.constant 0 : i32
    %c0_i32_1 = arith.constant 0 : i32
    return %c0_i32, %c0_i32_0 : i32, i32
  }
  func.func @transform_13(%arg0: i32, %arg1: i32) -> (i32, i32, i32) {
    %c0_i32 = arith.constant 0 : i32
    %c0_i32_0 = arith.constant 0 : i32
    %c0_i32_1 = arith.constant 0 : i32
    return %arg0, %c0_i32, %c0_i32_0 : i32, i32, i32
  }
}

</mosaic_0001>

<llo_original>
// kernel: tpu_custom_call.1
$region0: #{tpu_custom_call.1}
  #allocation0 [shape = 'u32[]', space=smem, size = 0x4, offset = 0x4, fixed_abs, tag = 'smem constant byte address 0x4 - core index']
  #allocation1 [shape = 'u32[144,128]{1,0:T(1,128)}', space=vmem, size = 0x12000, scoped, tag = 'internal scratch']
  #allocation2 [shape = 'f32[1024,128]{1,0:T(8,128)}', space=vmem, size = 0x80000, scoped, tag = 'scratch operand']
  %s0 = inlined_call_operand.vmem [shape: f32[2,3,128], index: 0, kind: input, shape index: {}]
  %s1 = inlined_call_operand.vmem [shape: f32[64,3], index: 1, kind: input, shape index: {}]
  %s2 = inlined_call_operand.vmem [shape: f32[64,1], index: 2, kind: input, shape index: {}]
  %s3 = inlined_call_operand.vmem [shape: bf16[128,64], index: 3, kind: input, shape index: {}]
  %s4 = inlined_call_operand.vmem [shape: f32[128,1], index: 4, kind: input, shape index: {}]
  %s5 = inlined_call_operand.hbm [shape: bf16[1024,128], index: 5, kind: input, shape index: {}]
  %s6 = inlined_call_operand.vmem [shape: f32[1024,1], index: 6, kind: input, shape index: {}]
  %s7 = inlined_call_operand.vmem [shape: bf16[512,1024], index: 7, kind: input, shape index: {}]
  %s8 = inlined_call_operand.vmem [shape: f32[512,1], index: 8, kind: input, shape index: {}]
  %s9 = inlined_call_operand.hbm [shape: bf16[256,512], index: 9, kind: input, shape index: {}]
  %s10 = inlined_call_operand.vmem [shape: f32[256,1], index: 10, kind: input, shape index: {}]
  %s11 = inlined_call_operand.vmem [shape: bf16[9,256], index: 11, kind: input, shape index: {}]
  %s12 = inlined_call_operand.vmem [shape: f32[9,1], index: 12, kind: input, shape index: {}]
  %s13 = inlined_call_operand.vmem [shape: f32[2,9,1], index: 13, kind: output, shape index: {}]
  %s14 = sld [smem:[#allocation0]]
  $region105: #{tpu_custom_call.1} parent=0
    _
  %s16 = ssub.s32 1, %s14
  %s17 = scalar_select 0, %s16, %s14
  $region1: #{tpu_custom_call.1} parent=0
    #allocation3 [shape = 'u8[262144]{0}', space=vmem, size = 0x40000, scoped, tag = 'input window, operand 5, single buffered']
    #allocation4 [shape = 's32[2]{0}', space=sflag, size = 0x8, scoped, tag = 'scoped memory for tpu_custom_call.1']
    #allocation5 [shape = 'u8[262144]{0}', space=vmem, size = 0x40000, scoped, tag = 'input window, operand 9, single buffered']
    #allocation6 [shape = 's32[1]{0}', space=sflag, size = 0x4, scoped, tag = 'scoped memory for tpu_custom_call.1']
    %18 = vsyncpa [#allocation4], 0
    %19 = vsyncpa [#allocation6], 0
    loop: start=0, step=1, limit=4
    $region2: #{tpu_custom_call.1} parent=1 // loop_pre_header
      _
    $region3: #{tpu_custom_call.1} parent=1 // loop_header
      %s21 = sphi 0, %s25
      %p22 = scmp.ge.s32.totalorder %s21, 4
      %s28 = sphi 0, %s40
      %s29 = sphi 0, %s36
      %s30 = sphi 0, %s28
      %s31 = sphi 0, %s29
      %s32 = sphi 0, %s30
      %s33 = sphi 0, %s31
      %s45 = sphi 0, %s47
      %s48 = sphi 0, %s45
      %s49 = sphi 0, %s48
      %s65 = sphi 0, %s49
      %s69 = sphi 0, %s69
      %s71 = sphi 0, %s69
      %s72 = sphi 0, %s71
      %s86 = sphi 0, %s72
      %s90 = sphi 0, %s90
      %s92 = sphi 0, %s90
      %s93 = sphi 0, %s92
      %s107 = sphi 0, %s93
      %s111 = sphi 0, %s111
      %s113 = sphi 0, %s111
      %s114 = sphi 0, %s113
      %s128 = sphi 0, %s114
      %s132 = sphi 0, %s132
      %s134 = sphi 0, %s132
      %s135 = sphi 0, %s134
      %s149 = sphi 0, %s135
      %s153 = sphi 0, %s153
      %s155 = sphi 0, %s153
      %s156 = sphi 0, %s155
      %s170 = sphi 0, %s156
      %s174 = sphi 0, %s174
      %s176 = sphi 0, %s174
      %s177 = sphi 0, %s176
      %s191 = sphi 0, %s177
      %s195 = sphi 0, %s195
      %s197 = sphi 0, %s195
      %s198 = sphi 0, %s197
      %s212 = sphi 0, %s198
      %s216 = sphi 0, %s216
      %s218 = sphi 0, %s216
      %s219 = sphi 0, %s218
      %s233 = sphi 0, %s219
      %s237 = sphi 0, %s237
      %s239 = sphi 0, %s237
      %s240 = sphi 0, %s239
      %s254 = sphi 0, %s240
      %s258 = sphi 0, %s258
      %s260 = sphi 0, %s258
      %s261 = sphi 0, %s260
      %s275 = sphi 0, %s261
      %s279 = sphi 0, %s279
      %s281 = sphi 0, %s279
      %s282 = sphi 0, %s281
      %s296 = sphi 0, %s282
      %s300 = sphi 0, %s300
      %s302 = sphi 0, %s300
      %s303 = sphi 0, %s302
      %s317 = sphi 0, %s303
      %s323 = sphi 0, %s325
      %s326 = sphi 0, %s323
      %s327 = sphi 0, %s326
      %s343 = sphi 0, %s327
    $region4: #{tpu_custom_call.1} parent=1 // loop_header_branch
      %24 = sbr.rel (%p22) target = $region8
    $region5: #{tpu_custom_call.1} parent=1 // loop_body
      %s26 = ssub.s32 %s21, 1
      %s27 = ssub.s32 %s21, 2
      %s34 = sadd.s32 1, %s29
      %p35 = scmp.ge.s32.totalorder %s34, 1
      %s36 = scalar_select %p35, 0, %s34
      %s37 = sadd.s32 1, %s28
      %s38 = scalar_select %p35, %s37, %s28
      %p39 = scmp.ge.s32.totalorder %s38, 2
      %s40 = scalar_select %p39, 0, %s38
      %s41 = ssub.s32 %s28, %s40
      %s42 = ssub.s32 %s29, %s36
      %s43 = sor.u32 %s41, %s42
      %p44 = scmp.eq.s32.totalorder %s43, 0
      %s46 = sadd.s32 %s45, 1
      %s47 = scalar_select %p44, %s45, %s46
      %p50 = pneg %p44
      %p51 = scmp.eq.s32.totalorder %s21, 1
      %p52 = por %p50, %p51
      %p53 = scmp.ne.s32.totalorder %s45, %s48
      %p54 = scmp.eq.s32.totalorder %s21, 0
      %p55 = por %p53, %p54
      %p56 = scmp.ne.s32.totalorder %s45, %s48
      %p57 = scmp.eq.s32.totalorder %s26, 1
      %p58 = por %p56, %p57
      %p59 = scmp.ne.s32.totalorder %s48, %s49
      %p60 = scmp.eq.s32.totalorder %s26, 0
      %p61 = por %p59, %p60
      %p62 = scmp.ne.s32.totalorder %s48, %s49
      %p63 = scmp.eq.s32.totalorder %s27, 1
      %p64 = por %p62, %p63
      %p66 = scmp.ne.s32.totalorder %s49, %s65
      %p67 = scmp.eq.s32.totalorder %s27, 0
      %p68 = por %p66, %p67
      %s70 = sadd.s32 %s69, 1
      %p73 = scmp.eq.s32.totalorder %s21, 1
      %p74 = scmp.ne.s32.totalorder %s69, %s71
      %p75 = scmp.eq.s32.totalorder %s21, 0
      %p76 = por %p74, %p75
      %p77 = scmp.ne.s32.totalorder %s69, %s71
      %p78 = scmp.eq.s32.totalorder %s26, 1
      %p79 = por %p77, %p78
      %p80 = scmp.ne.s32.totalorder %s71, %s72
      %p81 = scmp.eq.s32.totalorder %s26, 0
      %p82 = por %p80, %p81
      %p83 = scmp.ne.s32.totalorder %s71, %s72
      %p84 = scmp.eq.s32.totalorder %s27, 1
      %p85 = por %p83, %p84
      %p87 = scmp.ne.s32.totalorder %s72, %s86
      %p88 = scmp.eq.s32.totalorder %s27, 0
      %p89 = por %p87, %p88
      %s91 = sadd.s32 %s90, 1
      %p94 = scmp.eq.s32.totalorder %s21, 1
      %p95 = scmp.ne.s32.totalorder %s90, %s92
      %p96 = scmp.eq.s32.totalorder %s21, 0
      %p97 = por %p95, %p96
      %p98 = scmp.ne.s32.totalorder %s90, %s92
      %p99 = scmp.eq.s32.totalorder %s26, 1
      %p100 = por %p98, %p99
      %p101 = scmp.ne.s32.totalorder %s92, %s93
      %p102 = scmp.eq.s32.totalorder %s26, 0
      %p103 = por %p101, %p102
      %p104 = scmp.ne.s32.totalorder %s92, %s93
      %p105 = scmp.eq.s32.totalorder %s27, 1
      %p106 = por %p104, %p105
      %p108 = scmp.ne.s32.totalorder %s93, %s107
      %p109 = scmp.eq.s32.totalorder %s27, 0
      %p110 = por %p108, %p109
      %s112 = sadd.s32 %s111, 1
      %p115 = scmp.eq.s32.totalorder %s21, 1
      %p116 = scmp.ne.s32.totalorder %s111, %s113
      %p117 = scmp.eq.s32.totalorder %s21, 0
      %p118 = por %p116, %p117
      %p119 = scmp.ne.s32.totalorder %s111, %s113
      %p120 = scmp.eq.s32.totalorder %s26, 1
      %p121 = por %p119, %p120
      %p122 = scmp.ne.s32.totalorder %s113, %s114
      %p123 = scmp.eq.s32.totalorder %s26, 0
      %p124 = por %p122, %p123
      %p125 = scmp.ne.s32.totalorder %s113, %s114
      %p126 = scmp.eq.s32.totalorder %s27, 1
      %p127 = por %p125, %p126
      %p129 = scmp.ne.s32.totalorder %s114, %s128
      %p130 = scmp.eq.s32.totalorder %s27, 0
      %p131 = por %p129, %p130
      %s133 = sadd.s32 %s132, 1
      %p136 = scmp.eq.s32.totalorder %s21, 1
      %p137 = scmp.ne.s32.totalorder %s132, %s134
      %p138 = scmp.eq.s32.totalorder %s21, 0
      %p139 = por %p137, %p138
      %p140 = scmp.ne.s32.totalorder %s132, %s134
      %p141 = scmp.eq.s32.totalorder %s26, 1
      %p142 = por %p140, %p141
      %p143 = scmp.ne.s32.totalorder %s134, %s135
      %p144 = scmp.eq.s32.totalorder %s26, 0
      %p145 = por %p143, %p144
      %p146 = scmp.ne.s32.totalorder %s134, %s135
      %p147 = scmp.eq.s32.totalorder %s27, 1
      %p148 = por %p146, %p147
      %p150 = scmp.ne.s32.totalorder %s135, %s149
      %p151 = scmp.eq.s32.totalorder %s27, 0
      %p152 = por %p150, %p151
      %s154 = sadd.s32 %s153, 1
      %p157 = scmp.eq.s32.totalorder %s21, 1
      %p158 = scmp.ne.s32.totalorder %s153, %s155
      %p159 = scmp.eq.s32.totalorder %s21, 0
      %p160 = por %p158, %p159
      %p161 = scmp.ne.s32.totalorder %s153, %s155
      %p162 = scmp.eq.s32.totalorder %s26, 1
      %p163 = por %p161, %p162
      %p164 = scmp.ne.s32.totalorder %s155, %s156
      %p165 = scmp.eq.s32.totalorder %s26, 0
      %p166 = por %p164, %p165
      %p167 = scmp.ne.s32.totalorder %s155, %s156
      %p168 = scmp.eq.s32.totalorder %s27, 1
      %p169 = por %p167, %p168
      %p171 = scmp.ne.s32.totalorder %s156, %s170
      %p172 = scmp.eq.s32.totalorder %s27, 0
      %p173 = por %p171, %p172
      %s175 = sadd.s32 %s174, 1
      %p178 = scmp.eq.s32.totalorder %s21, 1
      %p179 = scmp.ne.s32.totalorder %s174, %s176
      %p180 = scmp.eq.s32.totalorder %s21, 0
      %p181 = por %p179, %p180
      %p182 = scmp.ne.s32.totalorder %s174, %s176
      %p183 = scmp.eq.s32.totalorder %s26, 1
      %p184 = por %p182, %p183
      %p185 = scmp.ne.s32.totalorder %s176, %s177
      %p186 = scmp.eq.s32.totalorder %s26, 0
      %p187 = por %p185, %p186
      %p188 = scmp.ne.s32.totalorder %s176, %s177
      %p189 = scmp.eq.s32.totalorder %s27, 1
      %p190 = por %p188, %p189
      %p192 = scmp.ne.s32.totalorder %s177, %s191
      %p193 = scmp.eq.s32.totalorder %s27, 0
      %p194 = por %p192, %p193
      %s196 = sadd.s32 %s195, 1
      %p199 = scmp.eq.s32.totalorder %s21, 1
      %p200 = scmp.ne.s32.totalorder %s195, %s197
      %p201 = scmp.eq.s32.totalorder %s21, 0
      %p202 = por %p200, %p201
      %p203 = scmp.ne.s32.totalorder %s195, %s197
      %p204 = scmp.eq.s32.totalorder %s26, 1
      %p205 = por %p203, %p204
      %p206 = scmp.ne.s32.totalorder %s197, %s198
      %p207 = scmp.eq.s32.totalorder %s26, 0
      %p208 = por %p206, %p207
      %p209 = scmp.ne.s32.totalorder %s197, %s198
      %p210 = scmp.eq.s32.totalorder %s27, 1
      %p211 = por %p209, %p210
      %p213 = scmp.ne.s32.totalorder %s198, %s212
      %p214 = scmp.eq.s32.totalorder %s27, 0
      %p215 = por %p213, %p214
      %s217 = sadd.s32 %s216, 1
      %p220 = scmp.eq.s32.totalorder %s21, 1
      %p221 = scmp.ne.s32.totalorder %s216, %s218
      %p222 = scmp.eq.s32.totalorder %s21, 0
      %p223 = por %p221, %p222
      %p224 = scmp.ne.s32.totalorder %s216, %s218
      %p225 = scmp.eq.s32.totalorder %s26, 1
      %p226 = por %p224, %p225
      %p227 = scmp.ne.s32.totalorder %s218, %s219
      %p228 = scmp.eq.s32.totalorder %s26, 0
      %p229 = por %p227, %p228
      %p230 = scmp.ne.s32.totalorder %s218, %s219
      %p231 = scmp.eq.s32.totalorder %s27, 1
      %p232 = por %p230, %p231
      %p234 = scmp.ne.s32.totalorder %s219, %s233
      %p235 = scmp.eq.s32.totalorder %s27, 0
      %p236 = por %p234, %p235
      %s238 = sadd.s32 %s237, 1
      %p241 = scmp.eq.s32.totalorder %s21, 1
      %p242 = scmp.ne.s32.totalorder %s237, %s239
      %p243 = scmp.eq.s32.totalorder %s21, 0
      %p244 = por %p242, %p243
      %p245 = scmp.ne.s32.totalorder %s237, %s239
      %p246 = scmp.eq.s32.totalorder %s26, 1
      %p247 = por %p245, %p246
      %p248 = scmp.ne.s32.totalorder %s239, %s240
      %p249 = scmp.eq.s32.totalorder %s26, 0
      %p250 = por %p248, %p249
      %p251 = scmp.ne.s32.totalorder %s239, %s240
      %p252 = scmp.eq.s32.totalorder %s27, 1
      %p253 = por %p251, %p252
      %p255 = scmp.ne.s32.totalorder %s240, %s254
      %p256 = scmp.eq.s32.totalorder %s27, 0
      %p257 = por %p255, %p256
      %s259 = sadd.s32 %s258, 1
      %p262 = scmp.eq.s32.totalorder %s21, 1
      %p263 = scmp.ne.s32.totalorder %s258, %s260
      %p264 = scmp.eq.s32.totalorder %s21, 0
      %p265 = por %p263, %p264
      %p266 = scmp.ne.s32.totalorder %s258, %s260
      %p267 = scmp.eq.s32.totalorder %s26, 1
      %p268 = por %p266, %p267
      %p269 = scmp.ne.s32.totalorder %s260, %s261
      %p270 = scmp.eq.s32.totalorder %s26, 0
      %p271 = por %p269, %p270
      %p272 = scmp.ne.s32.totalorder %s260, %s261
      %p273 = scmp.eq.s32.totalorder %s27, 1
      %p274 = por %p272, %p273
      %p276 = scmp.ne.s32.totalorder %s261, %s275
      %p277 = scmp.eq.s32.totalorder %s27, 0
      %p278 = por %p276, %p277
      %s280 = sadd.s32 %s279, 1
      %p283 = scmp.eq.s32.totalorder %s21, 1
      %p284 = scmp.ne.s32.totalorder %s279, %s281
      %p285 = scmp.eq.s32.totalorder %s21, 0
      %p286 = por %p284, %p285
      %p287 = scmp.ne.s32.totalorder %s279, %s281
      %p288 = scmp.eq.s32.totalorder %s26, 1
      %p289 = por %p287, %p288
      %p290 = scmp.ne.s32.totalorder %s281, %s282
      %p291 = scmp.eq.s32.totalorder %s26, 0
      %p292 = por %p290, %p291
      %p293 = scmp.ne.s32.totalorder %s281, %s282
      %p294 = scmp.eq.s32.totalorder %s27, 1
      %p295 = por %p293, %p294
      %p297 = scmp.ne.s32.totalorder %s282, %s296
      %p298 = scmp.eq.s32.totalorder %s27, 0
      %p299 = por %p297, %p298
      %s301 = sadd.s32 %s300, 1
      %p304 = scmp.eq.s32.totalorder %s21, 1
      %p305 = scmp.ne.s32.totalorder %s300, %s302
      %p306 = scmp.eq.s32.totalorder %s21, 0
      %p307 = por %p305, %p306
      %p308 = scmp.ne.s32.totalorder %s300, %s302
      %p309 = scmp.eq.s32.totalorder %s26, 1
      %p310 = por %p308, %p309
      %p311 = scmp.ne.s32.totalorder %s302, %s303
      %p312 = scmp.eq.s32.totalorder %s26, 0
      %p313 = por %p311, %p312
      %p314 = scmp.ne.s32.totalorder %s302, %s303
      %p315 = scmp.eq.s32.totalorder %s27, 1
      %p316 = por %p314, %p315
      %p318 = scmp.ne.s32.totalorder %s303, %s317
      %p319 = scmp.eq.s32.totalorder %s27, 0
      %p320 = por %p318, %p319
      %s321 = ssub.s32 %s28, %s40
      %p322 = scmp.eq.s32.totalorder %s321, 0
      %s324 = sadd.s32 %s323, 1
      %s325 = scalar_select %p322, %s323, %s324
      %p328 = pneg %p322
      %p329 = scmp.eq.s32.totalorder %s21, 1
      %p330 = por %p328, %p329
      %p331 = scmp.ne.s32.totalorder %s323, %s326
      %p332 = scmp.eq.s32.totalorder %s21, 0
      %p333 = por %p331, %p332
      %p334 = scmp.ne.s32.totalorder %s323, %s326
      %p335 = scmp.eq.s32.totalorder %s26, 1
      %p336 = por %p334, %p335
      %p337 = scmp.ne.s32.totalorder %s326, %s327
      %p338 = scmp.eq.s32.totalorder %s26, 0
      %p339 = por %p337, %p338
      %p340 = scmp.ne.s32.totalorder %s326, %s327
      %p341 = scmp.eq.s32.totalorder %s27, 1
      %p342 = por %p340, %p341
      %p344 = scmp.ne.s32.totalorder %s327, %s343
      %p345 = scmp.eq.s32.totalorder %s27, 0
      %p346 = por %p344, %p345
      %p347 = scmp.le.s32.totalorder 1, %s21
      %p348 = scmp.lt.s32.totalorder %s21, 3
      %p349 = pnand %p347, %p348
      %p350 = pneg %p349
      // Predicated region
      $region9: #{tpu_custom_call.1} parent=5 // pred_check
        _
      $region10: #{tpu_custom_call.1} parent=5 // pred_check_branch
        %352 = sbr.rel (%p349) target = $region12
      $region11: #{tpu_custom_call.1} parent=5 // pred_region
        %s353 = ssub.s32 %s21, 1
        // Predicated region
        $region13: #{tpu_custom_call.1} parent=11 // pred_check
          %p354 = pneg %p82
        $region14: #{tpu_custom_call.1} parent=11 // pred_check_branch
          %356 = sbr.rel (%p354) target = $region16
        $region15: #{tpu_custom_call.1} parent=11 // pred_region
          _
        $region16: #{tpu_custom_call.1} parent=11 // pred_fallthru
          _
        // Predicated region
        $region17: #{tpu_custom_call.1} parent=11 // pred_check
          %p357 = pneg %p103
        $region18: #{tpu_custom_call.1} parent=11 // pred_check_branch
          %359 = sbr.rel (%p357) target = $region20
        $region19: #{tpu_custom_call.1} parent=11 // pred_region
          _
        $region20: #{tpu_custom_call.1} parent=11 // pred_fallthru
          _
        // Predicated region
        $region21: #{tpu_custom_call.1} parent=11 // pred_check
          %p360 = pneg %p124
        $region22: #{tpu_custom_call.1} parent=11 // pred_check_branch
          %362 = sbr.rel (%p360) target = $region24
        $region23: #{tpu_custom_call.1} parent=11 // pred_region
          _
        $region24: #{tpu_custom_call.1} parent=11 // pred_fallthru
          _
        // Predicated region
        $region25: #{tpu_custom_call.1} parent=11 // pred_check
          %p363 = pneg %p145
        $region26: #{tpu_custom_call.1} parent=11 // pred_check_branch
          %365 = sbr.rel (%p363) target = $region28
        $region27: #{tpu_custom_call.1} parent=11 // pred_region
          _
        $region28: #{tpu_custom_call.1} parent=11 // pred_fallthru
          _
        // Predicated region
        $region29: #{tpu_custom_call.1} parent=11 // pred_check
          %p366 = pneg %p166
        $region30: #{tpu_custom_call.1} parent=11 // pred_check_branch
          %368 = sbr.rel (%p366) target = $region32
        $region31: #{tpu_custom_call.1} parent=11 // pred_region
          %s370 = ssub.s32 8192, 8192
          %371 = vsyncadd [#allocation4], %s370
          %s372 = sshll.u32 [#allocation3], 4
          %s373 = int_to_ptr.vmem [resolvable:$true] %s372
          %378 = dma.hbm_to_vmem [thread:$0]  %s5, 8192, %s373, [#allocation4], 64, 64, 4
        $region32: #{tpu_custom_call.1} parent=11 // pred_fallthru
          _
        // Predicated region
        $region33: #{tpu_custom_call.1} parent=11 // pred_check
          %p379 = pneg %p187
        $region34: #{tpu_custom_call.1} parent=11 // pred_check_branch
          %381 = sbr.rel (%p379) target = $region36
        $region35: #{tpu_custom_call.1} parent=11 // pred_region
          _
        $region36: #{tpu_custom_call.1} parent=11 // pred_fallthru
          _
        // Predicated region
        $region37: #{tpu_custom_call.1} parent=11 // pred_check
          %p382 = pneg %p208
        $region38: #{tpu_custom_call.1} parent=11 // pred_check_branch
          %384 = sbr.rel (%p382) target = $region40
        $region39: #{tpu_custom_call.1} parent=11 // pred_region
          _
        $region40: #{tpu_custom_call.1} parent=11 // pred_fallthru
          _
        // Predicated region
        $region41: #{tpu_custom_call.1} parent=11 // pred_check
          %p385 = pneg %p229
        $region42: #{tpu_custom_call.1} parent=11 // pred_check_branch
          %387 = sbr.rel (%p385) target = $region44
        $region43: #{tpu_custom_call.1} parent=11 // pred_region
          _
        $region44: #{tpu_custom_call.1} parent=11 // pred_fallthru
          _
        // Predicated region
        $region45: #{tpu_custom_call.1} parent=11 // pred_check
          %p388 = pneg %p250
        $region46: #{tpu_custom_call.1} parent=11 // pred_check_branch
          %390 = sbr.rel (%p388) target = $region48
        $region47: #{tpu_custom_call.1} parent=11 // pred_region
          %s392 = ssub.s32 8192, 8192
          %393 = vsyncadd [#allocation6], %s392
          %s394 = sshll.u32 [#allocation5], 4
          %s395 = int_to_ptr.vmem [resolvable:$true] %s394
          %400 = dma.hbm_to_vmem [thread:$0]  %s9, 8192, %s395, [#allocation6], 256, 256, 16
        $region48: #{tpu_custom_call.1} parent=11 // pred_fallthru
          _
        // Predicated region
        $region49: #{tpu_custom_call.1} parent=11 // pred_check
          %p401 = pneg %p271
        $region50: #{tpu_custom_call.1} parent=11 // pred_check_branch
          %403 = sbr.rel (%p401) target = $region52
        $region51: #{tpu_custom_call.1} parent=11 // pred_region
          _
        $region52: #{tpu_custom_call.1} parent=11 // pred_fallthru
          _
        // Predicated region
        $region53: #{tpu_custom_call.1} parent=11 // pred_check
          %p404 = pneg %p292
        $region54: #{tpu_custom_call.1} parent=11 // pred_check_branch
          %406 = sbr.rel (%p404) target = $region56
        $region55: #{tpu_custom_call.1} parent=11 // pred_region
          _
        $region56: #{tpu_custom_call.1} parent=11 // pred_fallthru
          _
        // Predicated region
        $region57: #{tpu_custom_call.1} parent=11 // pred_check
          %p407 = pneg %p313
        $region58: #{tpu_custom_call.1} parent=11 // pred_check_branch
          %409 = sbr.rel (%p407) target = $region60
        $region59: #{tpu_custom_call.1} parent=11 // pred_region
          _
        $region60: #{tpu_custom_call.1} parent=11 // pred_fallthru
          _
      $region12: #{tpu_custom_call.1} parent=5 // pred_fallthru
        _
      %p410 = scmp.lt.s32.totalorder %s21, 2
      // Predicated region
      $region61: #{tpu_custom_call.1} parent=5 // pred_check
        %p411 = pneg %p410
      $region62: #{tpu_custom_call.1} parent=5 // pred_check_branch
        %413 = sbr.rel (%p411) target = $region64
      $region63: #{tpu_custom_call.1} parent=5 // pred_region
        // Predicated region
        $region65: #{tpu_custom_call.1} parent=63 // pred_check
          %p414 = pneg %p55
        $region66: #{tpu_custom_call.1} parent=63 // pred_check_branch
          %416 = sbr.rel (%p414) target = $region68
        $region67: #{tpu_custom_call.1} parent=63 // pred_region
          %p417 = scmp.lt.s32.totalorder %s28, 1
          %s418 = scalar_select %p417, %s28, 1
          %p419 = scmp.lt.s32.totalorder %s29, 0
          %s420 = scalar_select %p419, %s29, 0
          %s421 = sadd.s32 %s420, %s418
          %s422 = smul.addr %s421, 4
          %s423 = scalar_lea.vmem %s0, %s422
        $region68: #{tpu_custom_call.1} parent=63 // pred_fallthru
          _
      $region64: #{tpu_custom_call.1} parent=5 // pred_fallthru
        _
      %p424 = scmp.le.s32.totalorder 1, %s21
      %p425 = scmp.lt.s32.totalorder %s21, 3
      %p426 = pnand %p424, %p425
      %p427 = pneg %p426
      // Predicated region
      $region69: #{tpu_custom_call.1} parent=5 // pred_check
        _
      $region70: #{tpu_custom_call.1} parent=5 // pred_check_branch
        %429 = sbr.rel (%p426) target = $region72
      $region71: #{tpu_custom_call.1} parent=5 // pred_region
        %s430 = ssub.s32 %s21, 1
        // Predicated region
        $region73: #{tpu_custom_call.1} parent=71 // pred_check
          %p431 = pneg %p166
        $region74: #{tpu_custom_call.1} parent=71 // pred_check_branch
          %433 = sbr.rel (%p431) target = $region76
        $region75: #{tpu_custom_call.1} parent=71 // pred_region
          %434 = dma.done [#allocation4], 8192
        $region76: #{tpu_custom_call.1} parent=71 // pred_fallthru
          _
        // Predicated region
        $region77: #{tpu_custom_call.1} parent=71 // pred_check
          %p435 = pneg %p250
        $region78: #{tpu_custom_call.1} parent=71 // pred_check_branch
          %437 = sbr.rel (%p435) target = $region80
        $region79: #{tpu_custom_call.1} parent=71 // pred_region
          %438 = dma.done [#allocation6], 8192
        $region80: #{tpu_custom_call.1} parent=71 // pred_fallthru
          _
        %p439 = scmp.lt.s32.totalorder %s30, 1
        %s440 = scalar_select %p439, %s30, 1
        %p441 = scmp.lt.s32.totalorder %s31, 0
        %s442 = scalar_select %p441, %s31, 0
        %s443 = sadd.s32 %s442, %s440
        %s444 = smul.addr %s443, 4
        %s445 = scalar_lea.vmem %s0, %s444
        %p446 = pneg %p61
        %p447 = pneg %p58
        %p448 = pneg %p82
        %p449 = pneg %p79
        %p450 = pneg %p103
        %p451 = pneg %p100
        %p452 = pneg %p124
        %p453 = pneg %p121
        %p454 = pneg %p145
        %p455 = pneg %p142
        %p456 = pneg %p166
        %p457 = pneg %p163
        %p458 = pneg %p187
        %p459 = pneg %p184
        %p460 = pneg %p208
        %p461 = pneg %p205
        %p462 = pneg %p229
        %p463 = pneg %p226
        %p464 = pneg %p250
        %p465 = pneg %p247
        %p466 = pneg %p271
        %p467 = pneg %p268
        %p468 = pneg %p292
        %p469 = pneg %p289
        %p470 = pneg %p313
        %p471 = pneg %p310
        %p472 = pneg %p339
        %p473 = pneg %p336
        %p474 = scmp.lt.s32.totalorder %s30, 1
        %s475 = scalar_select %p474, %s30, 1
        %s476 = smul.addr %s475, 2
        %s477 = smul.addr %s476, 8
        %s478 = scalar_lea.vmem %s13, %s477
        %p479 = scmp.lt.s32.totalorder %s30, 1
        %s480 = scalar_select %p479, %s30, 1
        %p481 = scmp.lt.s32.totalorder %s31, 0
        %s482 = scalar_select %p481, %s31, 0
        %s483 = sadd.s32 %s482, %s480
        %s484 = smul.addr %s483, 4
        %s485 = scalar_lea.vmem %s0, %s484
        %p486 = scmp.lt.s32.totalorder %s30, 1
        %s487 = scalar_select %p486, %s30, 1
        %s488 = smul.addr %s487, 2
        %s489 = smul.addr %s488, 8
        %s490 = scalar_lea.vmem %s13, %s489
        %p492 = scmp.eq.s32.totalorder %s31, 0
        // Predicated region
        $region81: #{tpu_custom_call.1} parent=71 // pred_check
          %p493 = pneg %p492
        $region82: #{tpu_custom_call.1} parent=71 // pred_check_branch
          %495 = sbr.rel (%p493) target = $region84
        $region83: #{tpu_custom_call.1} parent=71 // pred_region
          %496 = vst [vmem:[#allocation2] sm:$0xff] -inf
          %497 = vst [vmem:[#allocation2 + $0x8] sm:$0xff] -inf
          %498 = vst [vmem:[#allocation2 + $0x10] sm:$0xff] -inf
          %499 = vst [vmem:[#allocation2 + $0x18] sm:$0xff] -inf
          %500 = vst [vmem:[#allocation2 + $0x20] sm:$0xff] -inf
          %501 = vst [vmem:[#allocation2 + $0x28] sm:$0xff] -inf
          %502 = vst [vmem:[#allocation2 + $0x30] sm:$0xff] -inf
          %503 = vst [vmem:[#allocation2 + $0x38] sm:$0xff] -inf
          %504 = vst [vmem:[#allocation2 + $0x40] sm:$0xff] -inf
          %505 = vst [vmem:[#allocation2 + $0x48] sm:$0xff] -inf
          %506 = vst [vmem:[#allocation2 + $0x50] sm:$0xff] -inf
          %507 = vst [vmem:[#allocation2 + $0x58] sm:$0xff] -inf
          %508 = vst [vmem:[#allocation2 + $0x60] sm:$0xff] -inf
          %509 = vst [vmem:[#allocation2 + $0x68] sm:$0xff] -inf
          %510 = vst [vmem:[#allocation2 + $0x70] sm:$0xff] -inf
          %511 = vst [vmem:[#allocation2 + $0x78] sm:$0xff] -inf
          %512 = vst [vmem:[#allocation2 + $0x80] sm:$0xff] -inf
          %513 = vst [vmem:[#allocation2 + $0x88] sm:$0xff] -inf
          %514 = vst [vmem:[#allocation2 + $0x90] sm:$0xff] -inf
          %515 = vst [vmem:[#allocation2 + $0x98] sm:$0xff] -inf
          %516 = vst [vmem:[#allocation2 + $0xa0] sm:$0xff] -inf
          %517 = vst [vmem:[#allocation2 + $0xa8] sm:$0xff] -inf
          %518 = vst [vmem:[#allocation2 + $0xb0] sm:$0xff] -inf
          %519 = vst [vmem:[#allocation2 + $0xb8] sm:$0xff] -inf
          %520 = vst [vmem:[#allocation2 + $0xc0] sm:$0xff] -inf
          %521 = vst [vmem:[#allocation2 + $0xc8] sm:$0xff] -inf
          %522 = vst [vmem:[#allocation2 + $0xd0] sm:$0xff] -inf
          %523 = vst [vmem:[#allocation2 + $0xd8] sm:$0xff] -inf
          %524 = vst [vmem:[#allocation2 + $0xe0] sm:$0xff] -inf
          %525 = vst [vmem:[#allocation2 + $0xe8] sm:$0xff] -inf
          %526 = vst [vmem:[#allocation2 + $0xf0] sm:$0xff] -inf
          %527 = vst [vmem:[#allocation2 + $0xf8] sm:$0xff] -inf
          %528 = vst [vmem:[#allocation2 + $0x100] sm:$0xff] -inf
          %529 = vst [vmem:[#allocation2 + $0x108] sm:$0xff] -inf
          %530 = vst [vmem:[#allocation2 + $0x110] sm:$0xff] -inf
          %531 = vst [vmem:[#allocation2 + $0x118] sm:$0xff] -inf
          %532 = vst [vmem:[#allocation2 + $0x120] sm:$0xff] -inf
          %533 = vst [vmem:[#allocation2 + $0x128] sm:$0xff] -inf
          %534 = vst [vmem:[#allocation2 + $0x130] sm:$0xff] -inf
          %535 = vst [vmem:[#allocation2 + $0x138] sm:$0xff] -inf
          %536 = vst [vmem:[#allocation2 + $0x140] sm:$0xff] -inf
          %537 = vst [vmem:[#allocation2 + $0x148] sm:$0xff] -inf
          %538 = vst [vmem:[#allocation2 + $0x150] sm:$0xff] -inf
          %539 = vst [vmem:[#allocation2 + $0x158] sm:$0xff] -inf
          %540 = vst [vmem:[#allocation2 + $0x160] sm:$0xff] -inf
          %541 = vst [vmem:[#allocation2 + $0x168] sm:$0xff] -inf
          %542 = vst [vmem:[#allocation2 + $0x170] sm:$0xff] -inf
          %543 = vst [vmem:[#allocation2 + $0x178] sm:$0xff] -inf
          %544 = vst [vmem:[#allocation2 + $0x180] sm:$0xff] -inf
          %545 = vst [vmem:[#allocation2 + $0x188] sm:$0xff] -inf
          %546 = vst [vmem:[#allocation2 + $0x190] sm:$0xff] -inf
          %547 = vst [vmem:[#allocation2 + $0x198] sm:$0xff] -inf
          %548 = vst [vmem:[#allocation2 + $0x1a0] sm:$0xff] -inf
          %549 = vst [vmem:[#allocation2 + $0x1a8] sm:$0xff] -inf
          %550 = vst [vmem:[#allocation2 + $0x1b0] sm:$0xff] -inf
          %551 = vst [vmem:[#allocation2 + $0x1b8] sm:$0xff] -inf
          %552 = vst [vmem:[#allocation2 + $0x1c0] sm:$0xff] -inf
          %553 = vst [vmem:[#allocation2 + $0x1c8] sm:$0xff] -inf
          %554 = vst [vmem:[#allocation2 + $0x1d0] sm:$0xff] -inf
          %555 = vst [vmem:[#allocation2 + $0x1d8] sm:$0xff] -inf
          %556 = vst [vmem:[#allocation2 + $0x1e0] sm:$0xff] -inf
          %557 = vst [vmem:[#allocation2 + $0x1e8] sm:$0xff] -inf
          %558 = vst [vmem:[#allocation2 + $0x1f0] sm:$0xff] -inf
          %559 = vst [vmem:[#allocation2 + $0x1f8] sm:$0xff] -inf
          %560 = vst [vmem:[#allocation2 + $0x200] sm:$0xff] -inf
          %561 = vst [vmem:[#allocation2 + $0x208] sm:$0xff] -inf
          %562 = vst [vmem:[#allocation2 + $0x210] sm:$0xff] -inf
          %563 = vst [vmem:[#allocation2 + $0x218] sm:$0xff] -inf
          %564 = vst [vmem:[#allocation2 + $0x220] sm:$0xff] -inf
          %565 = vst [vmem:[#allocation2 + $0x228] sm:$0xff] -inf
          %566 = vst [vmem:[#allocation2 + $0x230] sm:$0xff] -inf
          %567 = vst [vmem:[#allocation2 + $0x238] sm:$0xff] -inf
          %568 = vst [vmem:[#allocation2 + $0x240] sm:$0xff] -inf
          %569 = vst [vmem:[#allocation2 + $0x248] sm:$0xff] -inf
          %570 = vst [vmem:[#allocation2 + $0x250] sm:$0xff] -inf
          %571 = vst [vmem:[#allocation2 + $0x258] sm:$0xff] -inf
          %572 = vst [vmem:[#allocation2 + $0x260] sm:$0xff] -inf
          %573 = vst [vmem:[#allocation2 + $0x268] sm:$0xff] -inf
          %574 = vst [vmem:[#allocation2 + $0x270] sm:$0xff] -inf
          %575 = vst [vmem:[#allocation2 + $0x278] sm:$0xff] -inf
          %576 = vst [vmem:[#allocation2 + $0x280] sm:$0xff] -inf
          %577 = vst [vmem:[#allocation2 + $0x288] sm:$0xff] -inf
          %578 = vst [vmem:[#allocation2 + $0x290] sm:$0xff] -inf
          %579 = vst [vmem:[#allocation2 + $0x298] sm:$0xff] -inf
          %580 = vst [vmem:[#allocation2 + $0x2a0] sm:$0xff] -inf
          %581 = vst [vmem:[#allocation2 + $0x2a8] sm:$0xff] -inf
          %582 = vst [vmem:[#allocation2 + $0x2b0] sm:$0xff] -inf
          %583 = vst [vmem:[#allocation2 + $0x2b8] sm:$0xff] -inf
          %584 = vst [vmem:[#allocation2 + $0x2c0] sm:$0xff] -inf
          %585 = vst [vmem:[#allocation2 + $0x2c8] sm:$0xff] -inf
          %586 = vst [vmem:[#allocation2 + $0x2d0] sm:$0xff] -inf
          %587 = vst [vmem:[#allocation2 + $0x2d8] sm:$0xff] -inf
          %588 = vst [vmem:[#allocation2 + $0x2e0] sm:$0xff] -inf
          %589 = vst [vmem:[#allocation2 + $0x2e8] sm:$0xff] -inf
          %590 = vst [vmem:[#allocation2 + $0x2f0] sm:$0xff] -inf
          %591 = vst [vmem:[#allocation2 + $0x2f8] sm:$0xff] -inf
          %592 = vst [vmem:[#allocation2 + $0x300] sm:$0xff] -inf
          %593 = vst [vmem:[#allocation2 + $0x308] sm:$0xff] -inf
          %594 = vst [vmem:[#allocation2 + $0x310] sm:$0xff] -inf
          %595 = vst [vmem:[#allocation2 + $0x318] sm:$0xff] -inf
          %596 = vst [vmem:[#allocation2 + $0x320] sm:$0xff] -inf
          %597 = vst [vmem:[#allocation2 + $0x328] sm:$0xff] -inf
          %598 = vst [vmem:[#allocation2 + $0x330] sm:$0xff] -inf
          %599 = vst [vmem:[#allocation2 + $0x338] sm:$0xff] -inf
          %600 = vst [vmem:[#allocation2 + $0x340] sm:$0xff] -inf
          %601 = vst [vmem:[#allocation2 + $0x348] sm:$0xff] -inf
          %602 = vst [vmem:[#allocation2 + $0x350] sm:$0xff] -inf
          %603 = vst [vmem:[#allocation2 + $0x358] sm:$0xff] -inf
          %604 = vst [vmem:[#allocation2 + $0x360] sm:$0xff] -inf
          %605 = vst [vmem:[#allocation2 + $0x368] sm:$0xff] -inf
          %606 = vst [vmem:[#allocation2 + $0x370] sm:$0xff] -inf
          %607 = vst [vmem:[#allocation2 + $0x378] sm:$0xff] -inf
          %608 = vst [vmem:[#allocation2 + $0x380] sm:$0xff] -inf
          %609 = vst [vmem:[#allocation2 + $0x388] sm:$0xff] -inf
          %610 = vst [vmem:[#allocation2 + $0x390] sm:$0xff] -inf
          %611 = vst [vmem:[#allocation2 + $0x398] sm:$0xff] -inf
          %612 = vst [vmem:[#allocation2 + $0x3a0] sm:$0xff] -inf
          %613 = vst [vmem:[#allocation2 + $0x3a8] sm:$0xff] -inf
          %614 = vst [vmem:[#allocation2 + $0x3b0] sm:$0xff] -inf
          %615 = vst [vmem:[#allocation2 + $0x3b8] sm:$0xff] -inf
          %616 = vst [vmem:[#allocation2 + $0x3c0] sm:$0xff] -inf
          %617 = vst [vmem:[#allocation2 + $0x3c8] sm:$0xff] -inf
          %618 = vst [vmem:[#allocation2 + $0x3d0] sm:$0xff] -inf
          %619 = vst [vmem:[#allocation2 + $0x3d8] sm:$0xff] -inf
          %620 = vst [vmem:[#allocation2 + $0x3e0] sm:$0xff] -inf
          %621 = vst [vmem:[#allocation2 + $0x3e8] sm:$0xff] -inf
          %622 = vst [vmem:[#allocation2 + $0x3f0] sm:$0xff] -inf
          %623 = vst [vmem:[#allocation2 + $0x3f8] sm:$0xff] -inf
        $region84: #{tpu_custom_call.1} parent=71 // pred_fallthru
          _
        %v624 = vld [vmem:[%s485] sm:$0x7]
        %v625 = vld [vmem:[%s1] sm:$0xff]
        %v626 = vld [vmem:[%s1 + $0x8] sm:$0xff]
        %v627 = vld [vmem:[%s1 + $0x10] sm:$0xff]
        %v628 = vld [vmem:[%s1 + $0x18] sm:$0xff]
        %v629 = vld [vmem:[%s1 + $0x20] sm:$0xff]
        %v630 = vld [vmem:[%s1 + $0x28] sm:$0xff]
        %v631 = vld [vmem:[%s1 + $0x30] sm:$0xff]
        %v632 = vld [vmem:[%s1 + $0x38] sm:$0xff]
        %634 = vset.pattern.permute.xlu0 0
        %635 = vperm.xlu0 %634, %v625
        %v636 = vpop.permute.xlu0 %635
        %639 = vset.pattern.permute.xlu0 0
        %640 = vperm.xlu0 %639, %v626
        %v641 = vpop.permute.xlu0 %640
        %644 = vset.pattern.permute.xlu0 0
        %645 = vperm.xlu0 %644, %v627
        %v646 = vpop.permute.xlu0 %645
        %649 = vset.pattern.permute.xlu0 0
        %650 = vperm.xlu0 %649, %v628
        %v651 = vpop.permute.xlu0 %650
        %654 = vset.pattern.permute.xlu0 0
        %655 = vperm.xlu0 %654, %v629
        %v656 = vpop.permute.xlu0 %655
        %659 = vset.pattern.permute.xlu0 0
        %660 = vperm.xlu0 %659, %v630
        %v661 = vpop.permute.xlu0 %660
        %664 = vset.pattern.permute.xlu0 0
        %665 = vperm.xlu0 %664, %v631
        %v666 = vpop.permute.xlu0 %665
        %669 = vset.pattern.permute.xlu0 0
        %670 = vperm.xlu0 %669, %v632
        %v671 = vpop.permute.xlu0 %670
        %v673 = vlaneseq
        %v674 = vshrl.u32 %v673, 7
        %v675 = vsub.s32 0, %v674
        %v676 = vrot.slane %v624, %v675
        %v677 = vmul.f32 %v636, %v676
        %v678 = vmul.f32 %v641, %v676
        %v679 = vmul.f32 %v646, %v676
        %v680 = vmul.f32 %v651, %v676
        %v681 = vmul.f32 %v656, %v676
        %v682 = vmul.f32 %v661, %v676
        %v683 = vmul.f32 %v666, %v676
        %v684 = vmul.f32 %v671, %v676
        %685 = vset.pattern.permute.xlu0 1
        %686 = vperm.xlu0 %685, %v625
        %v687 = vpop.permute.xlu0 %686
        %689 = vset.pattern.permute.xlu0 1
        %690 = vperm.xlu0 %689, %v626
        %v691 = vpop.permute.xlu0 %690
        %693 = vset.pattern.permute.xlu0 1
        %694 = vperm.xlu0 %693, %v627
        %v695 = vpop.permute.xlu0 %694
        %697 = vset.pattern.permute.xlu0 1
        %698 = vperm.xlu0 %697, %v628
        %v699 = vpop.permute.xlu0 %698
        %701 = vset.pattern.permute.xlu0 1
        %702 = vperm.xlu0 %701, %v629
        %v703 = vpop.permute.xlu0 %702
        %705 = vset.pattern.permute.xlu0 1
        %706 = vperm.xlu0 %705, %v630
        %v707 = vpop.permute.xlu0 %706
        %709 = vset.pattern.permute.xlu0 1
        %710 = vperm.xlu0 %709, %v631
        %v711 = vpop.permute.xlu0 %710
        %713 = vset.pattern.permute.xlu0 1
        %714 = vperm.xlu0 %713, %v632
        %v715 = vpop.permute.xlu0 %714
        %v717 = vlaneseq
        %v718 = vshrl.u32 %v717, 7
        %v719 = vsub.s32 1, %v718
        %v720 = vrot.slane %v624, %v719
        %v721 = vmul.f32 %v687, %v720
        %v722 = vmul.f32 %v691, %v720
        %v723 = vmul.f32 %v695, %v720
        %v724 = vmul.f32 %v699, %v720
        %v725 = vmul.f32 %v703, %v720
        %v726 = vmul.f32 %v707, %v720
        %v727 = vmul.f32 %v711, %v720
        %v728 = vmul.f32 %v715, %v720
        %v729 = vadd.f32 %v677, %v721
        %v730 = vadd.f32 %v678, %v722
        %v731 = vadd.f32 %v679, %v723
        %v732 = vadd.f32 %v680, %v724
        %v733 = vadd.f32 %v681, %v725
        %v734 = vadd.f32 %v682, %v726
        %v735 = vadd.f32 %v683, %v727
        %v736 = vadd.f32 %v684, %v728
        %737 = vset.pattern.permute.xlu0 2
        %738 = vperm.xlu0 %737, %v625
        %v739 = vpop.permute.xlu0 %738
        %741 = vset.pattern.permute.xlu0 2
        %742 = vperm.xlu0 %741, %v626
        %v743 = vpop.permute.xlu0 %742
        %745 = vset.pattern.permute.xlu0 2
        %746 = vperm.xlu0 %745, %v627
        %v747 = vpop.permute.xlu0 %746
        %749 = vset.pattern.permute.xlu0 2
        %750 = vperm.xlu0 %749, %v628
        %v751 = vpop.permute.xlu0 %750
        %753 = vset.pattern.permute.xlu0 2
        %754 = vperm.xlu0 %753, %v629
        %v755 = vpop.permute.xlu0 %754
        %757 = vset.pattern.permute.xlu0 2
        %758 = vperm.xlu0 %757, %v630
        %v759 = vpop.permute.xlu0 %758
        %761 = vset.pattern.permute.xlu0 2
        %762 = vperm.xlu0 %761, %v631
        %v763 = vpop.permute.xlu0 %762
        %765 = vset.pattern.permute.xlu0 2
        %766 = vperm.xlu0 %765, %v632
        %v767 = vpop.permute.xlu0 %766
        %v769 = vlaneseq
        %v770 = vshrl.u32 %v769, 7
        %v771 = vsub.s32 2, %v770
        %v772 = vrot.slane %v624, %v771
        %v773 = vmul.f32 %v739, %v772
        %v774 = vmul.f32 %v743, %v772
        %v775 = vmul.f32 %v747, %v772
        %v776 = vmul.f32 %v751, %v772
        %v777 = vmul.f32 %v755, %v772
        %v778 = vmul.f32 %v759, %v772
        %v779 = vmul.f32 %v763, %v772
        %v780 = vmul.f32 %v767, %v772
        %v781 = vadd.f32 %v729, %v773
        %v782 = vadd.f32 %v730, %v774
        %v783 = vadd.f32 %v731, %v775
        %v784 = vadd.f32 %v732, %v776
        %v785 = vadd.f32 %v733, %v777
        %v786 = vadd.f32 %v734, %v778
        %v787 = vadd.f32 %v735, %v779
        %v788 = vadd.f32 %v736, %v780
        %v789 = vld [vmem:[%s2] sm:$0xff]
        %v790 = vld [vmem:[%s2 + $0x8] sm:$0xff]
        %v791 = vld [vmem:[%s2 + $0x10] sm:$0xff]
        %v792 = vld [vmem:[%s2 + $0x18] sm:$0xff]
        %v793 = vld [vmem:[%s2 + $0x20] sm:$0xff]
        %v794 = vld [vmem:[%s2 + $0x28] sm:$0xff]
        %v795 = vld [vmem:[%s2 + $0x30] sm:$0xff]
        %v796 = vld [vmem:[%s2 + $0x38] sm:$0xff]
        %798 = vset.pattern.permute.xlu0 0
        %799 = vperm.xlu0 %798, %v789
        %v800 = vpop.permute.xlu0 %799
        %803 = vset.pattern.permute.xlu0 0
        %804 = vperm.xlu0 %803, %v790
        %v805 = vpop.permute.xlu0 %804
        %808 = vset.pattern.permute.xlu0 0
        %809 = vperm.xlu0 %808, %v791
        %v810 = vpop.permute.xlu0 %809
        %813 = vset.pattern.permute.xlu0 0
        %814 = vperm.xlu0 %813, %v792
        %v815 = vpop.permute.xlu0 %814
        %818 = vset.pattern.permute.xlu0 0
        %819 = vperm.xlu0 %818, %v793
        %v820 = vpop.permute.xlu0 %819
        %823 = vset.pattern.permute.xlu0 0
        %824 = vperm.xlu0 %823, %v794
        %v825 = vpop.permute.xlu0 %824
        %828 = vset.pattern.permute.xlu0 0
        %829 = vperm.xlu0 %828, %v795
        %v830 = vpop.permute.xlu0 %829
        %833 = vset.pattern.permute.xlu0 0
        %834 = vperm.xlu0 %833, %v796
        %v835 = vpop.permute.xlu0 %834
        %v837 = vadd.f32 %v781, %v800
        %v838 = vadd.f32 %v782, %v805
        %v839 = vadd.f32 %v783, %v810
        %v840 = vadd.f32 %v784, %v815
        %v841 = vadd.f32 %v785, %v820
        %v842 = vadd.f32 %v786, %v825
        %v843 = vadd.f32 %v787, %v830
        %v844 = vadd.f32 %v788, %v835
        %v845 = vmax.f32 %v837, 0.0
        %v846 = vmax.f32 %v838, 0.0
        %v847 = vmax.f32 %v839, 0.0
        %v848 = vmax.f32 %v840, 0.0
        %v849 = vmax.f32 %v841, 0.0
        %v850 = vmax.f32 %v842, 0.0
        %v851 = vmax.f32 %v843, 0.0
        %v852 = vmax.f32 %v844, 0.0
        %v853 = vld [vmem:[%s3] sm:$0xf]
        %v854 = vld [vmem:[%s3 + $0x4] sm:$0xf]
        %v855 = vld [vmem:[%s3 + $0x8] sm:$0xf]
        %v856 = vld [vmem:[%s3 + $0xc] sm:$0xf]
        %v857 = vld [vmem:[%s3 + $0x10] sm:$0xf]
        %v858 = vld [vmem:[%s3 + $0x14] sm:$0xf]
        %v859 = vld [vmem:[%s3 + $0x18] sm:$0xf]
        %v860 = vld [vmem:[%s3 + $0x1c] sm:$0xf]
        %v861 = vld [vmem:[%s3 + $0x20] sm:$0xf]
        %v862 = vld [vmem:[%s3 + $0x24] sm:$0xf]
        %v863 = vld [vmem:[%s3 + $0x28] sm:$0xf]
        %v864 = vld [vmem:[%s3 + $0x2c] sm:$0xf]
        %v865 = vld [vmem:[%s3 + $0x30] sm:$0xf]
        %v866 = vld [vmem:[%s3 + $0x34] sm:$0xf]
        %v867 = vld [vmem:[%s3 + $0x38] sm:$0xf]
        %v868 = vld [vmem:[%s3 + $0x3c] sm:$0xf]
        %v869 = vpack.c.bf16 %v846, %v845
        %v870 = vpack.c.bf16 %v848, %v847
        %v871 = vpack.c.bf16 %v850, %v849
        %v872 = vpack.c.bf16 %v852, %v851
        %v873 = vld [vmem:[%s4] sm:$0xff]
        %v874 = vld [vmem:[%s4 + $0x8] sm:$0xff]
        %v875 = vld [vmem:[%s4 + $0x10] sm:$0xff]
        %v876 = vld [vmem:[%s4 + $0x18] sm:$0xff]
        %v877 = vld [vmem:[%s4 + $0x20] sm:$0xff]
        %v878 = vld [vmem:[%s4 + $0x28] sm:$0xff]
        %v879 = vld [vmem:[%s4 + $0x30] sm:$0xff]
        %v880 = vld [vmem:[%s4 + $0x38] sm:$0xff]
        %v881 = vld [vmem:[%s4 + $0x40] sm:$0xff]
        %v882 = vld [vmem:[%s4 + $0x48] sm:$0xff]
        %v883 = vld [vmem:[%s4 + $0x50] sm:$0xff]
        %v884 = vld [vmem:[%s4 + $0x58] sm:$0xff]
        %v885 = vld [vmem:[%s4 + $0x60] sm:$0xff]
        %v886 = vld [vmem:[%s4 + $0x68] sm:$0xff]
        %v887 = vld [vmem:[%s4 + $0x70] sm:$0xff]
        %v888 = vld [vmem:[%s4 + $0x78] sm:$0xff]
        %890 = vset.pattern.permute.xlu0 0
        %891 = vperm.xlu0 %890, %v873
        %v892 = vpop.permute.xlu0 %891
        %895 = vset.pattern.permute.xlu0 0
        %896 = vperm.xlu0 %895, %v874
        %v897 = vpop.permute.xlu0 %896
        %900 = vset.pattern.permute.xlu0 0
        %901 = vperm.xlu0 %900, %v875
        %v902 = vpop.permute.xlu0 %901
        %905 = vset.pattern.permute.xlu0 0
        %906 = vperm.xlu0 %905, %v876
        %v907 = vpop.permute.xlu0 %906
        %910 = vset.pattern.permute.xlu0 0
        %911 = vperm.xlu0 %910, %v877
        %v912 = vpop.permute.xlu0 %911
        %915 = vset.pattern.permute.xlu0 0
        %916 = vperm.xlu0 %915, %v878
        %v917 = vpop.permute.xlu0 %916
        %920 = vset.pattern.permute.xlu0 0
        %921 = vperm.xlu0 %920, %v879
        %v922 = vpop.permute.xlu0 %921
        %925 = vset.pattern.permute.xlu0 0
        %926 = vperm.xlu0 %925, %v880
        %v927 = vpop.permute.xlu0 %926
        %930 = vset.pattern.permute.xlu0 0
        %931 = vperm.xlu0 %930, %v881
        %v932 = vpop.permute.xlu0 %931
        %935 = vset.pattern.permute.xlu0 0
        %936 = vperm.xlu0 %935, %v882
        %v937 = vpop.permute.xlu0 %936
        %940 = vset.pattern.permute.xlu0 0
        %941 = vperm.xlu0 %940, %v883
        %v942 = vpop.permute.xlu0 %941
        %945 = vset.pattern.permute.xlu0 0
        %946 = vperm.xlu0 %945, %v884
        %v947 = vpop.permute.xlu0 %946
        %950 = vset.pattern.permute.xlu0 0
        %951 = vperm.xlu0 %950, %v885
        %v952 = vpop.permute.xlu0 %951
        %955 = vset.pattern.permute.xlu0 0
        %956 = vperm.xlu0 %955, %v886
        %v957 = vpop.permute.xlu0 %956
        %960 = vset.pattern.permute.xlu0 0
        %961 = vperm.xlu0 %960, %v887
        %v962 = vpop.permute.xlu0 %961
        %965 = vset.pattern.permute.xlu0 0
        %966 = vperm.xlu0 %965, %v888
        %v967 = vpop.permute.xlu0 %966
        %v985 = vunpack.c.l.b16 %v853
        %v986 = vunpack.c.l.b16 %v854
        %v987 = vunpack.c.l.b16 %v855
        %v988 = vunpack.c.l.b16 %v856
        %v989 = vunpack.c.l.b16 %v857
        %v990 = vunpack.c.l.b16 %v858
        %v991 = vunpack.c.l.b16 %v859
        %v992 = vunpack.c.l.b16 %v860
        %v993 = vunpack.c.l.b16 %v861
        %v994 = vunpack.c.l.b16 %v862
        %v995 = vunpack.c.l.b16 %v863
        %v996 = vunpack.c.l.b16 %v864
        %v997 = vunpack.c.l.b16 %v865
        %v998 = vunpack.c.l.b16 %v866
        %v999 = vunpack.c.l.b16 %v867
        %v1000 = vunpack.c.l.b16 %v868
        %v1001 = vpack.c.b16 %v986, %v985
        %v1002 = vpack.c.b16 %v988, %v987
        %v1003 = vpack.c.b16 %v990, %v989
        %v1004 = vpack.c.b16 %v992, %v991
        %v1005 = vpack.c.b16 %v994, %v993
        %v1006 = vpack.c.b16 %v996, %v995
        %v1007 = vpack.c.b16 %v998, %v997
        %v1008 = vpack.c.b16 %v1000, %v999
        %vm1009 = vcmask 523264
        %v1011 = vsel %vm1009, %v1001, 0
        %v1014 = vsel %vm1009, %v1002, 0
        %v1017 = vsel %vm1009, %v1003, 0
        %v1020 = vsel %vm1009, %v1004, 0
        %v1023 = vsel %vm1009, %v1005, 0
        %v1026 = vsel %vm1009, %v1006, 0
        %v1029 = vsel %vm1009, %v1007, 0
        %v1032 = vsel %vm1009, %v1008, 0
        %1034 = vmatprep.subr.bf16.mxu0 0
        %1035 = vmatpush1.bf16.msra.mxu0 %v869
        %1036 = vmatprep.subr.bf16.mxu0 0
        %1037 = vmatpush1.bf16.msra.mxu0 %v870
        %1038 = vmatprep.subr.bf16.mxu0 0
        %1039 = vmatpush1.bf16.msra.mxu0 %v871
        %1040 = vmatprep.subr.bf16.mxu0 0
        %1041 = vmatpush1.bf16.msra.mxu0 %v872
        %1042 = vmatprep.subr.bf16.mxu0 0
        %1043 = vmatpush1.bf16.msra.mxu0 0
        %1044 = vmatprep.subr.bf16.mxu0 0
        %1045 = vmatpush1.bf16.msra.mxu0 0
        %1046 = vmatprep.subr.bf16.mxu0 0
        %1047 = vmatpush1.bf16.msra.mxu0 0
        %1048 = vmatprep.subr.bf16.mxu0 0
        %1049 = vmatpush1.bf16.msra.mxu0 0
        %1050 = vmatprep.subr.bf16.mxu0 0
        %1051 = vmatpush1.bf16.msra.mxu0 0
        %1052 = vmatprep.subr.bf16.mxu0 0
        %1053 = vmatpush1.bf16.msra.mxu0 0
        %1054 = vmatprep.subr.bf16.mxu0 0
        %1055 = vmatpush1.bf16.msra.mxu0 0
        %1056 = vmatprep.subr.bf16.mxu0 0
        %1057 = vmatpush1.bf16.msra.mxu0 0
        %1058 = vmatprep.subr.bf16.mxu0 0
        %1059 = vmatpush1.bf16.msra.mxu0 0
        %1060 = vmatprep.subr.bf16.mxu0 0
        %1061 = vmatpush1.bf16.msra.mxu0 0
        %1062 = vmatprep.subr.bf16.mxu0 0
        %1063 = vmatpush1.bf16.msra.mxu0 0
        %1064 = vmatprep.subr.bf16.mxu0 0
        %1065 = vmatpush1.bf16.msra.mxu0 0
        %1066 = vmatprep.mubr.bf16.mxu0 0
        %1067 = vmatmul.mubr.bf16.gmra.mrb[0].mxu0 %v1011
        %v1068 = vpop.f32.mrb[0].mxu0
        %v1069 = vadd.f32 %v892, %v1068
        %v1070 = vpop.f32.mrb[0].mxu0
        %v1071 = vpop.f32.mrb[0].mxu0
        %v1072 = vadd.f32 %v897, %v1071
        %v1073 = vpop.f32.mrb[0].mxu0
        %1074 = vmatprep.mubr.bf16.mxu0 0
        %1075 = vmatmul.mubr.bf16.gmra.mrb[0].mxu0 %v1014
        %v1076 = vpop.f32.mrb[0].mxu0
        %v1077 = vadd.f32 %v902, %v1076
        %v1078 = vpop.f32.mrb[0].mxu0
        %v1079 = vpop.f32.mrb[0].mxu0
        %v1080 = vadd.f32 %v907, %v1079
        %v1081 = vpop.f32.mrb[0].mxu0
        %1082 = vmatprep.mubr.bf16.mxu0 0
        %1083 = vmatmul.mubr.bf16.gmra.mrb[0].mxu0 %v1017
        %v1084 = vpop.f32.mrb[0].mxu0
        %v1085 = vadd.f32 %v912, %v1084
        %v1086 = vpop.f32.mrb[0].mxu0
        %v1087 = vpop.f32.mrb[0].mxu0
        %v1088 = vadd.f32 %v917, %v1087
        %v1089 = vpop.f32.mrb[0].mxu0
        %1090 = vmatprep.mubr.bf16.mxu0 0
        %1091 = vmatmul.mubr.bf16.gmra.mrb[0].mxu0 %v1020
        %v1092 = vpop.f32.mrb[0].mxu0
        %v1093 = vadd.f32 %v922, %v1092
        %v1094 = vpop.f32.mrb[0].mxu0
        %v1095 = vpop.f32.mrb[0].mxu0
        %v1096 = vadd.f32 %v927, %v1095
        %v1097 = vpop.f32.mrb[0].mxu0
        %1098 = vmatprep.mubr.bf16.mxu0 0
        %1099 = vmatmul.mubr.bf16.gmra.mrb[0].mxu0 %v1023
        %v1100 = vpop.f32.mrb[0].mxu0
        %v1101 = vadd.f32 %v932, %v1100
        %v1102 = vpop.f32.mrb[0].mxu0
        %v1103 = vpop.f32.mrb[0].mxu0
        %v1104 = vadd.f32 %v937, %v1103
        %v1105 = vpop.f32.mrb[0].mxu0
        %1106 = vmatprep.mubr.bf16.mxu0 0
        %1107 = vmatmul.mubr.bf16.gmra.mrb[0].mxu0 %v1026
        %v1108 = vpop.f32.mrb[0].mxu0
        %v1109 = vadd.f32 %v942, %v1108
        %v1110 = vpop.f32.mrb[0].mxu0
        %v1111 = vpop.f32.mrb[0].mxu0
        %v1112 = vadd.f32 %v947, %v1111
        %v1113 = vpop.f32.mrb[0].mxu0
        %1114 = vmatprep.mubr.bf16.mxu0 0
        %1115 = vmatmul.mubr.bf16.gmra.mrb[0].mxu0 %v1029
        %v1116 = vpop.f32.mrb[0].mxu0
        %v1117 = vadd.f32 %v952, %v1116
        %v1118 = vpop.f32.mrb[0].mxu0
        %v1119 = vpop.f32.mrb[0].mxu0
        %v1120 = vadd.f32 %v957, %v1119
        %v1121 = vpop.f32.mrb[0].mxu0
        %1122 = vmatprep.mubr.bf16.mxu0 0
        %1123 = vmatmul.mubr.bf16.gmra.mrb[0].mxu0 %v1032
        %v1124 = vpop.f32.mrb[0].mxu0
        %v1125 = vadd.f32 %v962, %v1124
        %v1126 = vpop.f32.mrb[0].mxu0
        %v1127 = vpop.f32.mrb[0].mxu0
        %v1128 = vadd.f32 %v967, %v1127
        %v1129 = vpop.f32.mrb[0].mxu0
        %1130 = vdwg.mxu0
        %v1131 = vmax.f32 %v1069, 0.0
        %v1132 = vmax.f32 %v1072, 0.0
        %v1133 = vmax.f32 %v1077, 0.0
        %v1134 = vmax.f32 %v1080, 0.0
        %v1135 = vmax.f32 %v1085, 0.0
        %v1136 = vmax.f32 %v1088, 0.0
        %v1137 = vmax.f32 %v1093, 0.0
        %v1138 = vmax.f32 %v1096, 0.0
        %v1139 = vmax.f32 %v1101, 0.0
        %v1140 = vmax.f32 %v1104, 0.0
        %v1141 = vmax.f32 %v1109, 0.0
        %v1142 = vmax.f32 %v1112, 0.0
        %v1143 = vmax.f32 %v1117, 0.0
        %v1144 = vmax.f32 %v1120, 0.0
        %v1145 = vmax.f32 %v1125, 0.0
        %v1146 = vmax.f32 %v1128, 0.0
        %v1147 = vld [vmem:[#allocation3] sm:$0xf]
        %v1148 = vld [vmem:[#allocation3 + $0x4] sm:$0xf]
        %v1149 = vld [vmem:[#allocation3 + $0x8] sm:$0xf]
        %v1150 = vld [vmem:[#allocation3 + $0xc] sm:$0xf]
        %v1151 = vld [vmem:[#allocation3 + $0x10] sm:$0xf]
        %v1152 = vld [vmem:[#allocation3 + $0x14] sm:$0xf]
        %v1153 = vld [vmem:[#allocation3 + $0x18] sm:$0xf]
        %v1154 = vld [vmem:[#allocation3 + $0x1c] sm:$0xf]
        %v1155 = vld [vmem:[#allocation3 + $0x20] sm:$0xf]
        %v1156 = vld [vmem:[#allocation3 + $0x24] sm:$0xf]
        %v1157 = vld [vmem:[#allocation3 + $0x28] sm:$0xf]
        %v1158 = vld [vmem:[#allocation3 + $0x2c] sm:$0xf]
        %v1159 = vld [vmem:[#allocation3 + $0x30] sm:$0xf]
        %v1160 = vld [vmem:[#allocation3 + $0x34] sm:$0xf]
        %v1161 = vld [vmem:[#allocation3 + $0x38] sm:$0xf]
        %v1162 = vld [vmem:[#allocation3 + $0x3c] sm:$0xf]
        %v1163 = vld [vmem:[#allocation3 + $0x40] sm:$0xf]
        %v1164 = vld [vmem:[#allocation3 + $0x44] sm:$0xf]
        %v1165 = vld [vmem:[#allocation3 + $0x48] sm:$0xf]
        %v1166 = vld [vmem:[#allocation3 + $0x4c] sm:$0xf]
        %v1167 = vld [vmem:[#allocation3 + $0x50] sm:$0xf]
        %v1168 = vld [vmem:[#allocation3 + $0x54] sm:$0xf]
        %v1169 = vld [vmem:[#allocation3 + $0x58] sm:$0xf]
        %v1170 = vld [vmem:[#allocation3 + $0x5c] sm:$0xf]
        %v1171 = vld [vmem:[#allocation3 + $0x60] sm:$0xf]
        %v1172 = vld [vmem:[#allocation3 + $0x64] sm:$0xf]
        %v1173 = vld [vmem:[#allocation3 + $0x68] sm:$0xf]
        %v1174 = vld [vmem:[#allocation3 + $0x6c] sm:$0xf]
        %v1175 = vld [vmem:[#allocation3 + $0x70] sm:$0xf]
        %v1176 = vld [vmem:[#allocation3 + $0x74] sm:$0xf]
        %v1177 = vld [vmem:[#allocation3 + $0x78] sm:$0xf]
        %v1178 = vld [vmem:[#allocation3 + $0x7c] sm:$0xf]
        %v1179 = vld [vmem:[#allocation3 + $0x80] sm:$0xf]
        %v1180 = vld [vmem:[#allocation3 + $0x84] sm:$0xf]
        %v1181 = vld [vmem:[#allocation3 + $0x88] sm:$0xf]
        %v1182 = vld [vmem:[#allocation3 + $0x8c] sm:$0xf]
        %v1183 = vld [vmem:[#allocation3 + $0x90] sm:$0xf]
        %v1184 = vld [vmem:[#allocation3 + $0x94] sm:$0xf]
        %v1185 = vld [vmem:[#allocation3 + $0x98] sm:$0xf]
        %v1186 = vld [vmem:[#allocation3 + $0x9c] sm:$0xf]
        %v1187 = vld [vmem:[#allocation3 + $0xa0] sm:$0xf]
        %v1188 = vld [vmem:[#allocation3 + $0xa4] sm:$0xf]
        %v1189 = vld [vmem:[#allocation3 + $0xa8] sm:$0xf]
        %v1190 = vld [vmem:[#allocation3 + $0xac] sm:$0xf]
        %v1191 = vld [vmem:[#allocation3 + $0xb0] sm:$0xf]
        %v1192 = vld [vmem:[#allocation3 + $0xb4] sm:$0xf]
        %v1193 = vld [vmem:[#allocation3 + $0xb8] sm:$0xf]
        %v1194 = vld [vmem:[#allocation3 + $0xbc] sm:$0xf]
        %v1195 = vld [vmem:[#allocation3 + $0xc0] sm:$0xf]
        %v1196 = vld [vmem:[#allocation3 + $0xc4] sm:$0xf]
        %v1197 = vld [vmem:[#allocation3 + $0xc8] sm:$0xf]
        %v1198 = vld [vmem:[#allocation3 + $0xcc] sm:$0xf]
        %v1199 = vld [vmem:[#allocation3 + $0xd0] sm:$0xf]
        %v1200 = vld [vmem:[#allocation3 + $0xd4] sm:$0xf]
        %v1201 = vld [vmem:[#allocation3 + $0xd8] sm:$0xf]
        %v1202 = vld [vmem:[#allocation3 + $0xdc] sm:$0xf]
        %v1203 = vld [vmem:[#allocation3 + $0xe0] sm:$0xf]
        %v1204 = vld [vmem:[#allocation3 + $0xe4] sm:$0xf]
        %v1205 = vld [vmem:[#allocation3 + $0xe8] sm:$0xf]
        %v1206 = vld [vmem:[#allocation3 + $0xec] sm:$0xf]
        %v1207 = vld [vmem:[#allocation3 + $0xf0] sm:$0xf]
        %v1208 = vld [vmem:[#allocation3 + $0xf4] sm:$0xf]
        %v1209 = vld [vmem:[#allocation3 + $0xf8] sm:$0xf]
        %v1210 = vld [vmem:[#allocation3 + $0xfc] sm:$0xf]
        %v1211 = vld [vmem:[#allocation3 + $0x100] sm:$0xf]
        %v1212 = vld [vmem:[#allocation3 + $0x104] sm:$0xf]
        %v1213 = vld [vmem:[#allocation3 + $0x108] sm:$0xf]
        %v1214 = vld [vmem:[#allocation3 + $0x10c] sm:$0xf]
        %v1215 = vld [vmem:[#allocation3 + $0x110] sm:$0xf]
        %v1216 = vld [vmem:[#allocation3 + $0x114] sm:$0xf]
        %v1217 = vld [vmem:[#allocation3 + $0x118] sm:$0xf]
        %v1218 = vld [vmem:[#allocation3 + $0x11c] sm:$0xf]
        %v1219 = vld [vmem:[#allocation3 + $0x120] sm:$0xf]
        %v1220 = vld [vmem:[#allocation3 + $0x124] sm:$0xf]
        %v1221 = vld [vmem:[#allocation3 + $0x128] sm:$0xf]
        %v1222 = vld [vmem:[#allocation3 + $0x12c] sm:$0xf]
        %v1223 = vld [vmem:[#allocation3 + $0x130] sm:$0xf]
        %v1224 = vld [vmem:[#allocation3 + $0x134] sm:$0xf]
        %v1225 = vld [vmem:[#allocation3 + $0x138] sm:$0xf]
        %v1226 = vld [vmem:[#allocation3 + $0x13c] sm:$0xf]
        %v1227 = vld [vmem:[#allocation3 + $0x140] sm:$0xf]
        %v1228 = vld [vmem:[#allocation3 + $0x144] sm:$0xf]
        %v1229 = vld [vmem:[#allocation3 + $0x148] sm:$0xf]
        %v1230 = vld [vmem:[#allocation3 + $0x14c] sm:$0xf]
        %v1231 = vld [vmem:[#allocation3 + $0x150] sm:$0xf]
        %v1232 = vld [vmem:[#allocation3 + $0x154] sm:$0xf]
        %v1233 = vld [vmem:[#allocation3 + $0x158] sm:$0xf]
        %v1234 = vld [vmem:[#allocation3 + $0x15c] sm:$0xf]
        %v1235 = vld [vmem:[#allocation3 + $0x160] sm:$0xf]
        %v1236 = vld [vmem:[#allocation3 + $0x164] sm:$0xf]
        %v1237 = vld [vmem:[#allocation3 + $0x168] sm:$0xf]
        %v1238 = vld [vmem:[#allocation3 + $0x16c] sm:$0xf]
        %v1239 = vld [vmem:[#allocation3 + $0x170] sm:$0xf]
        %v1240 = vld [vmem:[#allocation3 + $0x174] sm:$0xf]
        %v1241 = vld [vmem:[#allocation3 + $0x178] sm:$0xf]
        %v1242 = vld [vmem:[#allocation3 + $0x17c] sm:$0xf]
        %v1243 = vld [vmem:[#allocation3 + $0x180] sm:$0xf]
        %v1244 = vld [vmem:[#allocation3 + $0x184] sm:$0xf]
        %v1245 = vld [vmem:[#allocation3 + $0x188] sm:$0xf]
        %v1246 = vld [vmem:[#allocation3 + $0x18c] sm:$0xf]
        %v1247 = vld [vmem:[#allocation3 + $0x190] sm:$0xf]
        %v1248 = vld [vmem:[#allocation3 + $0x194] sm:$0xf]
        %v1249 = vld [vmem:[#allocation3 + $0x198] sm:$0xf]
        %v1250 = vld [vmem:[#allocation3 + $0x19c] sm:$0xf]
        %v1251 = vld [vmem:[#allocation3 + $0x1a0] sm:$0xf]
        %v1252 = vld [vmem:[#allocation3 + $0x1a4] sm:$0xf]
        %v1253 = vld [vmem:[#allocation3 + $0x1a8] sm:$0xf]
        %v1254 = vld [vmem:[#allocation3 + $0x1ac] sm:$0xf]
        %v1255 = vld [vmem:[#allocation3 + $0x1b0] sm:$0xf]
        %v1256 = vld [vmem:[#allocation3 + $0x1b4] sm:$0xf]
        %v1257 = vld [vmem:[#allocation3 + $0x1b8] sm:$0xf]
        %v1258 = vld [vmem:[#allocation3 + $0x1bc] sm:$0xf]
        %v1259 = vld [vmem:[#allocation3 + $0x1c0] sm:$0xf]
        %v1260 = vld [vmem:[#allocation3 + $0x1c4] sm:$0xf]
        %v1261 = vld [vmem:[#allocation3 + $0x1c8] sm:$0xf]
        %v1262 = vld [vmem:[#allocation3 + $0x1cc] sm:$0xf]
        %v1263 = vld [vmem:[#allocation3 + $0x1d0] sm:$0xf]
        %v1264 = vld [vmem:[#allocation3 + $0x1d4] sm:$0xf]
        %v1265 = vld [vmem:[#allocation3 + $0x1d8] sm:$0xf]
        %v1266 = vld [vmem:[#allocation3 + $0x1dc] sm:$0xf]
        %v1267 = vld [vmem:[#allocation3 + $0x1e0] sm:$0xf]
        %v1268 = vld [vmem:[#allocation3 + $0x1e4] sm:$0xf]
        %v1269 = vld [vmem:[#allocation3 + $0x1e8] sm:$0xf]
        %v1270 = vld [vmem:[#allocation3 + $0x1ec] sm:$0xf]
        %v1271 = vld [vmem:[#allocation3 + $0x1f0] sm:$0xf]
        %v1272 = vld [vmem:[#allocation3 + $0x1f4] sm:$0xf]
        %v1273 = vld [vmem:[#allocation3 + $0x1f8] sm:$0xf]
        %v1274 = vld [vmem:[#allocation3 + $0x1fc] sm:$0xf]
        %v1275 = vpack.c.bf16 %v1132, %v1131
        %v1276 = vpack.c.bf16 %v1134, %v1133
        %v1277 = vpack.c.bf16 %v1136, %v1135
        %v1278 = vpack.c.bf16 %v1138, %v1137
        %v1279 = vpack.c.bf16 %v1140, %v1139
        %v1280 = vpack.c.bf16 %v1142, %v1141
        %v1281 = vpack.c.bf16 %v1144, %v1143
        %v1282 = vpack.c.bf16 %v1146, %v1145
        %v1411 = vunpack.c.l.b16 %v1147
        %v1412 = vunpack.c.l.b16 %v1148
        %v1413 = vunpack.c.l.b16 %v1149
        %v1414 = vunpack.c.l.b16 %v1150
        %v1415 = vunpack.c.l.b16 %v1151
        %v1416 = vunpack.c.l.b16 %v1152
        %v1417 = vunpack.c.l.b16 %v1153
        %v1418 = vunpack.c.l.b16 %v1154
        %v1419 = vunpack.c.l.b16 %v1155
        %v1420 = vunpack.c.l.b16 %v1156
        %v1421 = vunpack.c.l.b16 %v1157
        %v1422 = vunpack.c.l.b16 %v1158
        %v1423 = vunpack.c.l.b16 %v1159
        %v1424 = vunpack.c.l.b16 %v1160
        %v1425 = vunpack.c.l.b16 %v1161
        %v1426 = vunpack.c.l.b16 %v1162
        %v1427 = vunpack.c.l.b16 %v1163
        %v1428 = vunpack.c.l.b16 %v1164
        %v1429 = vunpack.c.l.b16 %v1165
        %v1430 = vunpack.c.l.b16 %v1166
        %v1431 = vunpack.c.l.b16 %v1167
        %v1432 = vunpack.c.l.b16 %v1168
        %v1433 = vunpack.c.l.b16 %v1169
        %v1434 = vunpack.c.l.b16 %v1170
        %v1435 = vunpack.c.l.b16 %v1171
        %v1436 = vunpack.c.l.b16 %v1172
        %v1437 = vunpack.c.l.b16 %v1173
        %v1438 = vunpack.c.l.b16 %v1174
        %v1439 = vunpack.c.l.b16 %v1175
        %v1440 = vunpack.c.l.b16 %v1176
        %v1441 = vunpack.c.l.b16 %v1177
        %v1442 = vunpack.c.l.b16 %v1178
        %v1443 = vunpack.c.l.b16 %v1179
        %v1444 = vunpack.c.l.b16 %v1180
        %v1445 = vunpack.c.l.b16 %v1181
        %v1446 = vunpack.c.l.b16 %v1182
        %v1447 = vunpack.c.l.b16 %v1183
        %v1448 = vunpack.c.l.b16 %v1184
        %v1449 = vunpack.c.l.b16 %v1185
        %v1450 = vunpack.c.l.b16 %v1186
        %v1451 = vunpack.c.l.b16 %v1187
        %v1452 = vunpack.c.l.b16 %v1188
        %v1453 = vunpack.c.l.b16 %v1189
        %v1454 = vunpack.c.l.b16 %v1190
        %v1455 = vunpack.c.l.b16 %v1191
        %v1456 = vunpack.c.l.b16 %v1192
        %v1457 = vunpack.c.l.b16 %v1193
        %v1458 = vunpack.c.l.b16 %v1194
        %v1459 = vunpack.c.l.b16 %v1195
        %v1460 = vunpack.c.l.b16 %v1196
        %v1461 = vunpack.c.l.b16 %v1197
        %v1462 = vunpack.c.l.b16 %v1198
        %v1463 = vunpack.c.l.b16 %v1199
        %v1464 = vunpack.c.l.b16 %v1200
        %v1465 = vunpack.c.l.b16 %v1201
        %v1466 = vunpack.c.l.b16 %v1202
        %v1467 = vunpack.c.l.b16 %v1203
        %v1468 = vunpack.c.l.b16 %v1204
        %v1469 = vunpack.c.l.b16 %v1205
        %v1470 = vunpack.c.l.b16 %v1206
        %v1471 = vunpack.c.l.b16 %v1207
        %v1472 = vunpack.c.l.b16 %v1208
        %v1473 = vunpack.c.l.b16 %v1209
        %v1474 = vunpack.c.l.b16 %v1210
        %v1475 = vunpack.c.l.b16 %v1211
        %v1476 = vunpack.c.l.b16 %v1212
        %v1477 = vunpack.c.l.b16 %v1213
        %v1478 = vunpack.c.l.b16 %v1214
        %v1479 = vunpack.c.l.b16 %v1215
        %v1480 = vunpack.c.l.b16 %v1216
        %v1481 = vunpack.c.l.b16 %v1217
        %v1482 = vunpack.c.l.b16 %v1218
        %v1483 = vunpack.c.l.b16 %v1219
        %v1484 = vunpack.c.l.b16 %v1220
        %v1485 = vunpack.c.l.b16 %v1221
        %v1486 = vunpack.c.l.b16 %v1222
        %v1487 = vunpack.c.l.b16 %v1223
        %v1488 = vunpack.c.l.b16 %v1224
        %v1489 = vunpack.c.l.b16 %v1225
        %v1490 = vunpack.c.l.b16 %v1226
        %v1491 = vunpack.c.l.b16 %v1227
        %v1492 = vunpack.c.l.b16 %v1228
        %v1493 = vunpack.c.l.b16 %v1229
        %v1494 = vunpack.c.l.b16 %v1230
        %v1495 = vunpack.c.l.b16 %v1231
        %v1496 = vunpack.c.l.b16 %v1232
        %v1497 = vunpack.c.l.b16 %v1233
        %v1498 = vunpack.c.l.b16 %v1234
        %v1499 = vunpack.c.l.b16 %v1235
        %v1500 = vunpack.c.l.b16 %v1236
        %v1501 = vunpack.c.l.b16 %v1237
        %v1502 = vunpack.c.l.b16 %v1238
        %v1503 = vunpack.c.l.b16 %v1239
        %v1504 = vunpack.c.l.b16 %v1240
        %v1505 = vunpack.c.l.b16 %v1241
        %v1506 = vunpack.c.l.b16 %v1242
        %v1507 = vunpack.c.l.b16 %v1243
        %v1508 = vunpack.c.l.b16 %v1244
        %v1509 = vunpack.c.l.b16 %v1245
        %v1510 = vunpack.c.l.b16 %v1246
        %v1511 = vunpack.c.l.b16 %v1247
        %v1512 = vunpack.c.l.b16 %v1248
        %v1513 = vunpack.c.l.b16 %v1249
        %v1514 = vunpack.c.l.b16 %v1250
        %v1515 = vunpack.c.l.b16 %v1251
        %v1516 = vunpack.c.l.b16 %v1252
        %v1517 = vunpack.c.l.b16 %v1253
        %v1518 = vunpack.c.l.b16 %v1254
        %v1519 = vunpack.c.l.b16 %v1255
        %v1520 = vunpack.c.l.b16 %v1256
        %v1521 = vunpack.c.l.b16 %v1257
        %v1522 = vunpack.c.l.b16 %v1258
        %v1523 = vunpack.c.l.b16 %v1259
        %v1524 = vunpack.c.l.b16 %v1260
        %v1525 = vunpack.c.l.b16 %v1261
        %v1526 = vunpack.c.l.b16 %v1262
        %v1527 = vunpack.c.l.b16 %v1263
        %v1528 = vunpack.c.l.b16 %v1264
        %v1529 = vunpack.c.l.b16 %v1265
        %v1530 = vunpack.c.l.b16 %v1266
        %v1531 = vunpack.c.l.b16 %v1267
        %v1532 = vunpack.c.l.b16 %v1268
        %v1533 = vunpack.c.l.b16 %v1269
        %v1534 = vunpack.c.l.b16 %v1270
        %v1535 = vunpack.c.l.b16 %v1271
        %v1536 = vunpack.c.l.b16 %v1272
        %v1537 = vunpack.c.l.b16 %v1273
        %v1538 = vunpack.c.l.b16 %v1274
        %v1539 = vpack.c.b16 %v1412, %v1411
        %v1540 = vpack.c.b16 %v1414, %v1413
        %v1541 = vpack.c.b16 %v1416, %v1415
        %v1542 = vpack.c.b16 %v1418, %v1417
        %v1543 = vpack.c.b16 %v1420, %v1419
        %v1544 = vpack.c.b16 %v1422, %v1421
        %v1545 = vpack.c.b16 %v1424, %v1423
        %v1546 = vpack.c.b16 %v1426, %v1425
        %v1547 = vpack.c.b16 %v1428, %v1427
        %v1548 = vpack.c.b16 %v1430, %v1429
        %v1549 = vpack.c.b16 %v1432, %v1431
        %v1550 = vpack.c.b16 %v1434, %v1433
        %v1551 = vpack.c.b16 %v1436, %v1435
        %v1552 = vpack.c.b16 %v1438, %v1437
        %v1553 = vpack.c.b16 %v1440, %v1439
        %v1554 = vpack.c.b16 %v1442, %v1441
        %v1555 = vpack.c.b16 %v1444, %v1443
        %v1556 = vpack.c.b16 %v1446, %v1445
        %v1557 = vpack.c.b16 %v1448, %v1447
        %v1558 = vpack.c.b16 %v1450, %v1449
        %v1559 = vpack.c.b16 %v1452, %v1451
        %v1560 = vpack.c.b16 %v1454, %v1453
        %v1561 = vpack.c.b16 %v1456, %v1455
        %v1562 = vpack.c.b16 %v1458, %v1457
        %v1563 = vpack.c.b16 %v1460, %v1459
        %v1564 = vpack.c.b16 %v1462, %v1461
        %v1565 = vpack.c.b16 %v1464, %v1463
        %v1566 = vpack.c.b16 %v1466, %v1465
        %v1567 = vpack.c.b16 %v1468, %v1467
        %v1568 = vpack.c.b16 %v1470, %v1469
        %v1569 = vpack.c.b16 %v1472, %v1471
        %v1570 = vpack.c.b16 %v1474, %v1473
        %v1571 = vpack.c.b16 %v1476, %v1475
        %v1572 = vpack.c.b16 %v1478, %v1477
        %v1573 = vpack.c.b16 %v1480, %v1479
        %v1574 = vpack.c.b16 %v1482, %v1481
        %v1575 = vpack.c.b16 %v1484, %v1483
        %v1576 = vpack.c.b16 %v1486, %v1485
        %v1577 = vpack.c.b16 %v1488, %v1487
        %v1578 = vpack.c.b16 %v1490, %v1489
        %v1579 = vpack.c.b16 %v1492, %v1491
        %v1580 = vpack.c.b16 %v1494, %v1493
        %v1581 = vpack.c.b16 %v1496, %v1495
        %v1582 = vpack.c.b16 %v1498, %v1497
        %v1583 = vpack.c.b16 %v1500, %v1499
        %v1584 = vpack.c.b16 %v1502, %v1501
        %v1585 = vpack.c.b16 %v1504, %v1503
        %v1586 = vpack.c.b16 %v1506, %v1505
        %v1587 = vpack.c.b16 %v1508, %v1507
        %v1588 = vpack.c.b16 %v1510, %v1509
        %v1589 = vpack.c.b16 %v1512, %v1511
        %v1590 = vpack.c.b16 %v1514, %v1513
        %v1591 = vpack.c.b16 %v1516, %v1515
        %v1592 = vpack.c.b16 %v1518, %v1517
        %v1593 = vpack.c.b16 %v1520, %v1519
        %v1594 = vpack.c.b16 %v1522, %v1521
        %v1595 = vpack.c.b16 %v1524, %v1523
        %v1596 = vpack.c.b16 %v1526, %v1525
        %v1597 = vpack.c.b16 %v1528, %v1527
        %v1598 = vpack.c.b16 %v1530, %v1529
        %v1599 = vpack.c.b16 %v1532, %v1531
        %v1600 = vpack.c.b16 %v1534, %v1533
        %v1601 = vpack.c.b16 %v1536, %v1535
        %v1602 = vpack.c.b16 %v1538, %v1537
        %1667 = vmatprep.subr.bf16.mxu0 0
        %1668 = vmatpush1.bf16.msra.mxu0 %v1275
        %1669 = vmatprep.subr.bf16.mxu0 0
        %1670 = vmatpush1.bf16.msra.mxu0 %v1276
        %1671 = vmatprep.subr.bf16.mxu0 0
        %1672 = vmatpush1.bf16.msra.mxu0 %v1277
        %1673 = vmatprep.subr.bf16.mxu0 0
        %1674 = vmatpush1.bf16.msra.mxu0 %v1278
        %1675 = vmatprep.subr.bf16.mxu0 0
        %1676 = vmatpush1.bf16.msra.mxu0 %v1279
        %1677 = vmatprep.subr.bf16.mxu0 0
        %1678 = vmatpush1.bf16.msra.mxu0 %v1280
        %1679 = vmatprep.subr.bf16.mxu0 0
        %1680 = vmatpush1.bf16.msra.mxu0 %v1281
        %1681 = vmatprep.subr.bf16.mxu0 0
        %1682 = vmatpush1.bf16.msra.mxu0 %v1282
        %1683 = vmatprep.subr.bf16.mxu0 0
        %1684 = vmatpush1.bf16.msra.mxu0 0
        %1685 = vmatprep.subr.bf16.mxu0 0
        %1686 = vmatpush1.bf16.msra.mxu0 0
        %1687 = vmatprep.subr.bf16.mxu0 0
        %1688 = vmatpush1.bf16.msra.mxu0 0
        %1689 = vmatprep.subr.bf16.mxu0 0
        %1690 = vmatpush1.bf16.msra.mxu0 0
        %1691 = vmatprep.subr.bf16.mxu0 0
        %1692 = vmatpush1.bf16.msra.mxu0 0
        %1693 = vmatprep.subr.bf16.mxu0 0
        %1694 = vmatpush1.bf16.msra.mxu0 0
        %1695 = vmatprep.subr.bf16.mxu0 0
        %1696 = vmatpush1.bf16.msra.mxu0 0
        %1697 = vmatprep.subr.bf16.mxu0 0
        %1698 = vmatpush1.bf16.msra.mxu0 0
        %1699 = vmatprep.mubr.bf16.mxu0 0
        %1700 = vmatmul.mubr.bf16.gmra.mrb[0].mxu0 %v1539
        %v1701 = vpop.f32.mrb[0].mxu0
        %v1702 = vadd.f32 0.0, %v1701
        %v1703 = vpop.f32.mrb[0].mxu0
        %v1704 = vpop.f32.mrb[0].mxu0
        %v1705 = vadd.f32 0.0, %v1704
        %v1706 = vpop.f32.mrb[0].mxu0
        %1707 = vmatprep.mubr.bf16.mxu0 0
        %1708 = vmatmul.mubr.bf16.gmra.mrb[0].mxu0 %v1540
        %v1709 = vpop.f32.mrb[0].mxu0
        %v1710 = vadd.f32 0.0, %v1709
        %v1711 = vpop.f32.mrb[0].mxu0
        %v1712 = vpop.f32.mrb[0].mxu0
        %v1713 = vadd.f32 0.0, %v1712
        %v1714 = vpop.f32.mrb[0].mxu0
        %1715 = vmatprep.mubr.bf16.mxu0 0
        %1716 = vmatmul.mubr.bf16.gmra.mrb[0].mxu0 %v1541
        %v1717 = vpop.f32.mrb[0].mxu0
        %v1718 = vadd.f32 0.0, %v1717
        %v1719 = vpop.f32.mrb[0].mxu0
        %v1720 = vpop.f32.mrb[0].mxu0
        %v1721 = vadd.f32 0.0, %v1720
        %v1722 = vpop.f32.mrb[0].mxu0
        %1723 = vmatprep.mubr.bf16.mxu0 0
        %1724 = vmatmul.mubr.bf16.gmra.mrb[0].mxu0 %v1542
        %v1725 = vpop.f32.mrb[0].mxu0
        %v1726 = vadd.f32 0.0, %v1725
        %v1727 = vpop.f32.mrb[0].mxu0
        %v1728 = vpop.f32.mrb[0].mxu0
        %v1729 = vadd.f32 0.0, %v1728
        %v1730 = vpop.f32.mrb[0].mxu0
        %1731 = vmatprep.mubr.bf16.mxu0 0
        %1732 = vmatmul.mubr.bf16.gmra.mrb[0].mxu0 %v1543
        %v1733 = vpop.f32.mrb[0].mxu0
        %v1734 = vadd.f32 0.0, %v1733
        %v1735 = vpop.f32.mrb[0].mxu0
        %v1736 = vpop.f32.mrb[0].mxu0
        %v1737 = vadd.f32 0.0, %v1736
        %v1738 = vpop.f32.mrb[0].mxu0
        %1739 = vmatprep.mubr.bf16.mxu0 0
        %1740 = vmatmul.mubr.bf16.gmra.mrb[0].mxu0 %v1544
        %v1741 = vpop.f32.mrb[0].mxu0
        %v1742 = vadd.f32 0.0, %v1741
        %v1743 = vpop.f32.mrb[0].mxu0
        %v1744 = vpop.f32.mrb[0].mxu0
        %v1745 = vadd.f32 0.0, %v1744
        %v1746 = vpop.f32.mrb[0].mxu0
        %1747 = vmatprep.mubr.bf16.mxu0 0
        %1748 = vmatmul.mubr.bf16.gmra.mrb[0].mxu0 %v1545
        %v1749 = vpop.f32.mrb[0].mxu0
        %v1750 = vadd.f32 0.0, %v1749
        %v1751 = vpop.f32.mrb[0].mxu0
        %v1752 = vpop.f32.mrb[0].mxu0
        %v1753 = vadd.f32 0.0, %v1752
        %v1754 = vpop.f32.mrb[0].mxu0
        %1755 = vmatprep.mubr.bf16.mxu0 0
        %1756 = vmatmul.mubr.bf16.gmra.mrb[0].mxu0 %v1546
        %v1757 = vpop.f32.mrb[0].mxu0
        %v1758 = vadd.f32 0.0, %v1757
        %v1759 = vpop.f32.mrb[0].mxu0
        %v1760 = vpop.f32.mrb[0].mxu0
        %v1761 = vadd.f32 0.0, %v1760
        %v1762 = vpop.f32.mrb[0].mxu0
        %1763 = vmatprep.mubr.bf16.mxu0 0
        %1764 = vmatmul.mubr.bf16.gmra.mrb[0].mxu0 %v1547
        %v1765 = vpop.f32.mrb[0].mxu0
        %v1766 = vadd.f32 0.0, %v1765
        %v1767 = vpop.f32.mrb[0].mxu0
        %v1768 = vpop.f32.mrb[0].mxu0
        %v1769 = vadd.f32 0.0, %v1768
        %v1770 = vpop.f32.mrb[0].mxu0
        %1771 = vmatprep.mubr.bf16.mxu0 0
        %1772 = vmatmul.mubr.bf16.gmra.mrb[0].mxu0 %v1548
        %v1773 = vpop.f32.mrb[0].mxu0
        %v1774 = vadd.f32 0.0, %v1773
        %v1775 = vpop.f32.mrb[0].mxu0
        %v1776 = vpop.f32.mrb[0].mxu0
        %v1777 = vadd.f32 0.0, %v1776
        %v1778 = vpop.f32.mrb[0].mxu0
        %1779 = vmatprep.mubr.bf16.mxu0 0
        %1780 = vmatmul.mubr.bf16.gmra.mrb[0].mxu0 %v1549
        %v1781 = vpop.f32.mrb[0].mxu0
        %v1782 = vadd.f32 0.0, %v1781
        %v1783 = vpop.f32.mrb[0].mxu0
        %v1784 = vpop.f32.mrb[0].mxu0
        %v1785 = vadd.f32 0.0, %v1784
        %v1786 = vpop.f32.mrb[0].mxu0
        %1787 = vmatprep.mubr.bf16.mxu0 0
        %1788 = vmatmul.mubr.bf16.gmra.mrb[0].mxu0 %v1550
        %v1789 = vpop.f32.mrb[0].mxu0
        %v1790 = vadd.f32 0.0, %v1789
        %v1791 = vpop.f32.mrb[0].mxu0
        %v1792 = vpop.f32.mrb[0].mxu0
        %v1793 = vadd.f32 0.0, %v1792
        %v1794 = vpop.f32.mrb[0].mxu0
        %1795 = vmatprep.mubr.bf16.mxu0 0
        %1796 = vmatmul.mubr.bf16.gmra.mrb[0].mxu0 %v1551
        %v1797 = vpop.f32.mrb[0].mxu0
        %v1798 = vadd.f32 0.0, %v1797
        %v1799 = vpop.f32.mrb[0].mxu0
        %v1800 = vpop.f32.mrb[0].mxu0
        %v1801 = vadd.f32 0.0, %v1800
        %v1802 = vpop.f32.mrb[0].mxu0
        %1803 = vmatprep.mubr.bf16.mxu0 0
        %1804 = vmatmul.mubr.bf16.gmra.mrb[0].mxu0 %v1552
        %v1805 = vpop.f32.mrb[0].mxu0
        %v1806 = vadd.f32 0.0, %v1805
        %v1807 = vpop.f32.mrb[0].mxu0
        %v1808 = vpop.f32.mrb[0].mxu0
        %v1809 = vadd.f32 0.0, %v1808
        %v1810 = vpop.f32.mrb[0].mxu0
        %1811 = vmatprep.mubr.bf16.mxu0 0
        %1812 = vmatmul.mubr.bf16.gmra.mrb[0].mxu0 %v1553
        %v1813 = vpop.f32.mrb[0].mxu0
        %v1814 = vadd.f32 0.0, %v1813
        %v1815 = vpop.f32.mrb[0].mxu0
        %v1816 = vpop.f32.mrb[0].mxu0
        %v1817 = vadd.f32 0.0, %v1816
        %v1818 = vpop.f32.mrb[0].mxu0
        %1819 = vmatprep.mubr.bf16.mxu0 0
        %1820 = vmatmul.mubr.bf16.gmra.mrb[0].mxu0 %v1554
        %v1821 = vpop.f32.mrb[0].mxu0
        %v1822 = vadd.f32 0.0, %v1821
        %v1823 = vpop.f32.mrb[0].mxu0
        %v1824 = vpop.f32.mrb[0].mxu0
        %v1825 = vadd.f32 0.0, %v1824
        %v1826 = vpop.f32.mrb[0].mxu0
        %1827 = vmatprep.mubr.bf16.mxu0 0
        %1828 = vmatmul.mubr.bf16.gmra.mrb[0].mxu0 %v1555
        %v1829 = vpop.f32.mrb[0].mxu0
        %v1830 = vadd.f32 0.0, %v1829
        %v1831 = vpop.f32.mrb[0].mxu0
        %v1832 = vpop.f32.mrb[0].mxu0
        %v1833 = vadd.f32 0.0, %v1832
        %v1834 = vpop.f32.mrb[0].mxu0
        %1835 = vmatprep.mubr.bf16.mxu0 0
        %1836 = vmatmul.mubr.bf16.gmra.mrb[0].mxu0 %v1556
        %v1837 = vpop.f32.mrb[0].mxu0
        %v1838 = vadd.f32 0.0, %v1837
        %v1839 = vpop.f32.mrb[0].mxu0
        %v1840 = vpop.f32.mrb[0].mxu0
        %v1841 = vadd.f32 0.0, %v1840
        %v1842 = vpop.f32.mrb[0].mxu0
        %1843 = vmatprep.mubr.bf16.mxu0 0
        %1844 = vmatmul.mubr.bf16.gmra.mrb[0].mxu0 %v1557
        %v1845 = vpop.f32.mrb[0].mxu0
        %v1846 = vadd.f32 0.0, %v1845
        %v1847 = vpop.f32.mrb[0].mxu0
        %v1848 = vpop.f32.mrb[0].mxu0
        %v1849 = vadd.f32 0.0, %v1848
        %v1850 = vpop.f32.mrb[0].mxu0
        %1851 = vmatprep.mubr.bf16.mxu0 0
        %1852 = vmatmul.mubr.bf16.gmra.mrb[0].mxu0 %v1558
        %v1853 = vpop.f32.mrb[0].mxu0
        %v1854 = vadd.f32 0.0, %v1853
        %v1855 = vpop.f32.mrb[0].mxu0
        %v1856 = vpop.f32.mrb[0].mxu0
        %v1857 = vadd.f32 0.0, %v1856
        %v1858 = vpop.f32.mrb[0].mxu0
        %1859 = vmatprep.mubr.bf16.mxu0 0
        %1860 = vmatmul.mubr.bf16.gmra.mrb[0].mxu0 %v1559
        %v1861 = vpop.f32.mrb[0].mxu0
        %v1862 = vadd.f32 0.0, %v1861
        %v1863 = vpop.f32.mrb[0].mxu0
        %v1864 = vpop.f32.mrb[0].mxu0
        %v1865 = vadd.f32 0.0, %v1864
        %v1866 = vpop.f32.mrb[0].mxu0
        %1867 = vmatprep.mubr.bf16.mxu0 0
        %1868 = vmatmul.mubr.bf16.gmra.mrb[0].mxu0 %v1560
        %v1869 = vpop.f32.mrb[0].mxu0
        %v1870 = vadd.f32 0.0, %v1869
        %v1871 = vpop.f32.mrb[0].mxu0
        %v1872 = vpop.f32.mrb[0].mxu0
        %v1873 = vadd.f32 0.0, %v1872
        %v1874 = vpop.f32.mrb[0].mxu0
        %1875 = vmatprep.mubr.bf16.mxu0 0
        %1876 = vmatmul.mubr.bf16.gmra.mrb[0].mxu0 %v1561
        %v1877 = vpop.f32.mrb[0].mxu0
        %v1878 = vadd.f32 0.0, %v1877
        %v1879 = vpop.f32.mrb[0].mxu0
        %v1880 = vpop.f32.mrb[0].mxu0
        %v1881 = vadd.f32 0.0, %v1880
        %v1882 = vpop.f32.mrb[0].mxu0
        %1883 = vmatprep.mubr.bf16.mxu0 0
        %1884 = vmatmul.mubr.bf16.gmra.mrb[0].mxu0 %v1562
        %v1885 = vpop.f32.mrb[0].mxu0
        %v1886 = vadd.f32 0.0, %v1885
        %v1887 = vpop.f32.mrb[0].mxu0
        %v1888 = vpop.f32.mrb[0].mxu0
        %v1889 = vadd.f32 0.0, %v1888
        %v1890 = vpop.f32.mrb[0].mxu0
        %1891 = vmatprep.mubr.bf16.mxu0 0
        %1892 = vmatmul.mubr.bf16.gmra.mrb[0].mxu0 %v1563
        %v1893 = vpop.f32.mrb[0].mxu0
        %v1894 = vadd.f32 0.0, %v1893
        %v1895 = vpop.f32.mrb[0].mxu0
        %v1896 = vpop.f32.mrb[0].mxu0
        %v1897 = vadd.f32 0.0, %v1896
        %v1898 = vpop.f32.mrb[0].mxu0
        %1899 = vmatprep.mubr.bf16.mxu0 0
        %1900 = vmatmul.mubr.bf16.gmra.mrb[0].mxu0 %v1564
        %v1901 = vpop.f32.mrb[0].mxu0
        %v1902 = vadd.f32 0.0, %v1901
        %v1903 = vpop.f32.mrb[0].mxu0
        %v1904 = vpop.f32.mrb[0].mxu0
        %v1905 = vadd.f32 0.0, %v1904
        %v1906 = vpop.f32.mrb[0].mxu0
        %1907 = vmatprep.mubr.bf16.mxu0 0
        %1908 = vmatmul.mubr.bf16.gmra.mrb[0].mxu0 %v1565
        %v1909 = vpop.f32.mrb[0].mxu0
        %v1910 = vadd.f32 0.0, %v1909
        %v1911 = vpop.f32.mrb[0].mxu0
        %v1912 = vpop.f32.mrb[0].mxu0
        %v1913 = vadd.f32 0.0, %v1912
        %v1914 = vpop.f32.mrb[0].mxu0
        %1915 = vmatprep.mubr.bf16.mxu0 0
        %1916 = vmatmul.mubr.bf16.gmra.mrb[0].mxu0 %v1566
        %v1917 = vpop.f32.mrb[0].mxu0
        %v1918 = vadd.f32 0.0, %v1917
        %v1919 = vpop.f32.mrb[0].mxu0
        %v1920 = vpop.f32.mrb[0].mxu0
        %v1921 = vadd.f32 0.0, %v1920
        %v1922 = vpop.f32.mrb[0].mxu0
        %1923 = vmatprep.mubr.bf16.mxu0 0
        %1924 = vmatmul.mubr.bf16.gmra.mrb[0].mxu0 %v1567
        %v1925 = vpop.f32.mrb[0].mxu0
        %v1926 = vadd.f32 0.0, %v1925
        %v1927 = vpop.f32.mrb[0].mxu0
        %v1928 = vpop.f32.mrb[0].mxu0
        %v1929 = vadd.f32 0.0, %v1928
        %v1930 = vpop.f32.mrb[0].mxu0
        %1931 = vmatprep.mubr.bf16.mxu0 0
        %1932 = vmatmul.mubr.bf16.gmra.mrb[0].mxu0 %v1568
        %v1933 = vpop.f32.mrb[0].mxu0
        %v1934 = vadd.f32 0.0, %v1933
        %v1935 = vpop.f32.mrb[0].mxu0
        %v1936 = vpop.f32.mrb[0].mxu0
        %v1937 = vadd.f32 0.0, %v1936
        %v1938 = vpop.f32.mrb[0].mxu0
        %1939 = vmatprep.mubr.bf16.mxu0 0
        %1940 = vmatmul.mubr.bf16.gmra.mrb[0].mxu0 %v1569
        %v1941 = vpop.f32.mrb[0].mxu0
        %v1942 = vadd.f32 0.0, %v1941
        %v1943 = vpop.f32.mrb[0].mxu0
        %v1944 = vpop.f32.mrb[0].mxu0
        %v1945 = vadd.f32 0.0, %v1944
        %v1946 = vpop.f32.mrb[0].mxu0
        %1947 = vmatprep.mubr.bf16.mxu0 0
        %1948 = vmatmul.mubr.bf16.gmra.mrb[0].mxu0 %v1570
        %v1949 = vpop.f32.mrb[0].mxu0
        %v1950 = vadd.f32 0.0, %v1949
        %v1951 = vpop.f32.mrb[0].mxu0
        %v1952 = vpop.f32.mrb[0].mxu0
        %v1953 = vadd.f32 0.0, %v1952
        %v1954 = vpop.f32.mrb[0].mxu0
        %1955 = vmatprep.mubr.bf16.mxu0 0
        %1956 = vmatmul.mubr.bf16.gmra.mrb[0].mxu0 %v1571
        %v1957 = vpop.f32.mrb[0].mxu0
        %v1958 = vadd.f32 0.0, %v1957
        %v1959 = vpop.f32.mrb[0].mxu0
        %v1960 = vpop.f32.mrb[0].mxu0
        %v1961 = vadd.f32 0.0, %v1960
        %v1962 = vpop.f32.mrb[0].mxu0
        %1963 = vmatprep.mubr.bf16.mxu0 0
        %1964 = vmatmul.mubr.bf16.gmra.mrb[0].mxu0 %v1572
        %v1965 = vpop.f32.mrb[0].mxu0
        %v1966 = vadd.f32 0.0, %v1965
        %v1967 = vpop.f32.mrb[0].mxu0
        %v1968 = vpop.f32.mrb[0].mxu0
        %v1969 = vadd.f32 0.0, %v1968
        %v1970 = vpop.f32.mrb[0].mxu0
        %1971 = vmatprep.mubr.bf16.mxu0 0
        %1972 = vmatmul.mubr.bf16.gmra.mrb[0].mxu0 %v1573
        %v1973 = vpop.f32.mrb[0].mxu0
        %v1974 = vadd.f32 0.0, %v1973
        %v1975 = vpop.f32.mrb[0].mxu0
        %v1976 = vpop.f32.mrb[0].mxu0
        %v1977 = vadd.f32 0.0, %v1976
        %v1978 = vpop.f32.mrb[0].mxu0
        %1979 = vmatprep.mubr.bf16.mxu0 0
        %1980 = vmatmul.mubr.bf16.gmra.mrb[0].mxu0 %v1574
        %v1981 = vpop.f32.mrb[0].mxu0
        %v1982 = vadd.f32 0.0, %v1981
        %v1983 = vpop.f32.mrb[0].mxu0
        %v1984 = vpop.f32.mrb[0].mxu0
        %v1985 = vadd.f32 0.0, %v1984
        %v1986 = vpop.f32.mrb[0].mxu0
        %1987 = vmatprep.mubr.bf16.mxu0 0
        %1988 = vmatmul.mubr.bf16.gmra.mrb[0].mxu0 %v1575
        %v1989 = vpop.f32.mrb[0].mxu0
        %v1990 = vadd.f32 0.0, %v1989
        %v1991 = vpop.f32.mrb[0].mxu0
        %v1992 = vpop.f32.mrb[0].mxu0
        %v1993 = vadd.f32 0.0, %v1992
        %v1994 = vpop.f32.mrb[0].mxu0
        %1995 = vmatprep.mubr.bf16.mxu0 0
        %1996 = vmatmul.mubr.bf16.gmra.mrb[0].mxu0 %v1576
        %v1997 = vpop.f32.mrb[0].mxu0
        %v1998 = vadd.f32 0.0, %v1997
        %v1999 = vpop.f32.mrb[0].mxu0
        %v2000 = vpop.f32.mrb[0].mxu0
        %v2001 = vadd.f32 0.0, %v2000
        %v2002 = vpop.f32.mrb[0].mxu0
        %2003 = vmatprep.mubr.bf16.mxu0 0
        %2004 = vmatmul.mubr.bf16.gmra.mrb[0].mxu0 %v1577
        %v2005 = vpop.f32.mrb[0].mxu0
        %v2006 = vadd.f32 0.0, %v2005
        %v2007 = vpop.f32.mrb[0].mxu0
        %v2008 = vpop.f32.mrb[0].mxu0
        %v2009 = vadd.f32 0.0, %v2008
        %v2010 = vpop.f32.mrb[0].mxu0
        %2011 = vmatprep.mubr.bf16.mxu0 0
        %2012 = vmatmul.mubr.bf16.gmra.mrb[0].mxu0 %v1578
        %v2013 = vpop.f32.mrb[0].mxu0
        %v2014 = vadd.f32 0.0, %v2013
        %v2015 = vpop.f32.mrb[0].mxu0
        %v2016 = vpop.f32.mrb[0].mxu0
        %v2017 = vadd.f32 0.0, %v2016
        %v2018 = vpop.f32.mrb[0].mxu0
        %2019 = vmatprep.mubr.bf16.mxu0 0
        %2020 = vmatmul.mubr.bf16.gmra.mrb[0].mxu0 %v1579
        %v2021 = vpop.f32.mrb[0].mxu0
        %v2022 = vadd.f32 0.0, %v2021
        %v2023 = vpop.f32.mrb[0].mxu0
        %v2024 = vpop.f32.mrb[0].mxu0
        %v2025 = vadd.f32 0.0, %v2024
        %v2026 = vpop.f32.mrb[0].mxu0
        %2027 = vmatprep.mubr.bf16.mxu0 0
        %2028 = vmatmul.mubr.bf16.gmra.mrb[0].mxu0 %v1580
        %v2029 = vpop.f32.mrb[0].mxu0
        %v2030 = vadd.f32 0.0, %v2029
        %v2031 = vpop.f32.mrb[0].mxu0
        %v2032 = vpop.f32.mrb[0].mxu0
        %v2033 = vadd.f32 0.0, %v2032
        %v2034 = vpop.f32.mrb[0].mxu0
        %2035 = vmatprep.mubr.bf16.mxu0 0
        %2036 = vmatmul.mubr.bf16.gmra.mrb[0].mxu0 %v1581
        %v2037 = vpop.f32.mrb[0].mxu0
        %v2038 = vadd.f32 0.0, %v2037
        %v2039 = vpop.f32.mrb[0].mxu0
        %v2040 = vpop.f32.mrb[0].mxu0
        %v2041 = vadd.f32 0.0, %v2040
        %v2042 = vpop.f32.mrb[0].mxu0
        %2043 = vmatprep.mubr.bf16.mxu0 0
        %2044 = vmatmul.mubr.bf16.gmra.mrb[0].mxu0 %v1582
        %v2045 = vpop.f32.mrb[0].mxu0
        %v2046 = vadd.f32 0.0, %v2045
        %v2047 = vpop.f32.mrb[0].mxu0
        %v2048 = vpop.f32.mrb[0].mxu0
        %v2049 = vadd.f32 0.0, %v2048
        %v2050 = vpop.f32.mrb[0].mxu0
        %2051 = vmatprep.mubr.bf16.mxu0 0
        %2052 = vmatmul.mubr.bf16.gmra.mrb[0].mxu0 %v1583
        %v2053 = vpop.f32.mrb[0].mxu0
        %v2054 = vadd.f32 0.0, %v2053
        %v2055 = vpop.f32.mrb[0].mxu0
        %v2056 = vpop.f32.mrb[0].mxu0
        %v2057 = vadd.f32 0.0, %v2056
        %v2058 = vpop.f32.mrb[0].mxu0
        %2059 = vmatprep.mubr.bf16.mxu0 0
        %2060 = vmatmul.mubr.bf16.gmra.mrb[0].mxu0 %v1584
        %v2061 = vpop.f32.mrb[0].mxu0
        %v2062 = vadd.f32 0.0, %v2061
        %v2063 = vpop.f32.mrb[0].mxu0
        %v2064 = vpop.f32.mrb[0].mxu0
        %v2065 = vadd.f32 0.0, %v2064
        %v2066 = vpop.f32.mrb[0].mxu0
        %2067 = vmatprep.mubr.bf16.mxu0 0
        %2068 = vmatmul.mubr.bf16.gmra.mrb[0].mxu0 %v1585
        %v2069 = vpop.f32.mrb[0].mxu0
        %v2070 = vadd.f32 0.0, %v2069
        %v2071 = vpop.f32.mrb[0].mxu0
        %v2072 = vpop.f32.mrb[0].mxu0
        %v2073 = vadd.f32 0.0, %v2072
        %v2074 = vpop.f32.mrb[0].mxu0
        %2075 = vmatprep.mubr.bf16.mxu0 0
        %2076 = vmatmul.mubr.bf16.gmra.mrb[0].mxu0 %v1586
        %v2077 = vpop.f32.mrb[0].mxu0
        %v2078 = vadd.f32 0.0, %v2077
        %v2079 = vpop.f32.mrb[0].mxu0
        %v2080 = vpop.f32.mrb[0].mxu0
        %v2081 = vadd.f32 0.0, %v2080
        %v2082 = vpop.f32.mrb[0].mxu0
        %2083 = vmatprep.mubr.bf16.mxu0 0
        %2084 = vmatmul.mubr.bf16.gmra.mrb[0].mxu0 %v1587
        %v2085 = vpop.f32.mrb[0].mxu0
        %v2086 = vadd.f32 0.0, %v2085
        %v2087 = vpop.f32.mrb[0].mxu0
        %v2088 = vpop.f32.mrb[0].mxu0
        %v2089 = vadd.f32 0.0, %v2088
        %v2090 = vpop.f32.mrb[0].mxu0
        %2091 = vmatprep.mubr.bf16.mxu0 0
        %2092 = vmatmul.mubr.bf16.gmra.mrb[0].mxu0 %v1588
        %v2093 = vpop.f32.mrb[0].mxu0
        %v2094 = vadd.f32 0.0, %v2093
        %v2095 = vpop.f32.mrb[0].mxu0
        %v2096 = vpop.f32.mrb[0].mxu0
        %v2097 = vadd.f32 0.0, %v2096
        %v2098 = vpop.f32.mrb[0].mxu0
        %2099 = vmatprep.mubr.bf16.mxu0 0
        %2100 = vmatmul.mubr.bf16.gmra.mrb[0].mxu0 %v1589
        %v2101 = vpop.f32.mrb[0].mxu0
        %v2102 = vadd.f32 0.0, %v2101
        %v2103 = vpop.f32.mrb[0].mxu0
        %v2104 = vpop.f32.mrb[0].mxu0
        %v2105 = vadd.f32 0.0, %v2104
        %v2106 = vpop.f32.mrb[0].mxu0
        %2107 = vmatprep.mubr.bf16.mxu0 0
        %2108 = vmatmul.mubr.bf16.gmra.mrb[0].mxu0 %v1590
        %v2109 = vpop.f32.mrb[0].mxu0
        %v2110 = vadd.f32 0.0, %v2109
        %v2111 = vpop.f32.mrb[0].mxu0
        %v2112 = vpop.f32.mrb[0].mxu0
        %v2113 = vadd.f32 0.0, %v2112
        %v2114 = vpop.f32.mrb[0].mxu0
        %2115 = vmatprep.mubr.bf16.mxu0 0
        %2116 = vmatmul.mubr.bf16.gmra.mrb[0].mxu0 %v1591
        %v2117 = vpop.f32.mrb[0].mxu0
        %v2118 = vadd.f32 0.0, %v2117
        %v2119 = vpop.f32.mrb[0].mxu0
        %v2120 = vpop.f32.mrb[0].mxu0
        %v2121 = vadd.f32 0.0, %v2120
        %v2122 = vpop.f32.mrb[0].mxu0
        %2123 = vmatprep.mubr.bf16.mxu0 0
        %2124 = vmatmul.mubr.bf16.gmra.mrb[0].mxu0 %v1592
        %v2125 = vpop.f32.mrb[0].mxu0
        %v2126 = vadd.f32 0.0, %v2125
        %v2127 = vpop.f32.mrb[0].mxu0
        %v2128 = vpop.f32.mrb[0].mxu0
        %v2129 = vadd.f32 0.0, %v2128
        %v2130 = vpop.f32.mrb[0].mxu0
        %2131 = vmatprep.mubr.bf16.mxu0 0
        %2132 = vmatmul.mubr.bf16.gmra.mrb[0].mxu0 %v1593
        %v2133 = vpop.f32.mrb[0].mxu0
        %v2134 = vadd.f32 0.0, %v2133
        %v2135 = vpop.f32.mrb[0].mxu0
        %v2136 = vpop.f32.mrb[0].mxu0
        %v2137 = vadd.f32 0.0, %v2136
        %v2138 = vpop.f32.mrb[0].mxu0
        %2139 = vmatprep.mubr.bf16.mxu0 0
        %2140 = vmatmul.mubr.bf16.gmra.mrb[0].mxu0 %v1594
        %v2141 = vpop.f32.mrb[0].mxu0
        %v2142 = vadd.f32 0.0, %v2141
        %v2143 = vpop.f32.mrb[0].mxu0
        %v2144 = vpop.f32.mrb[0].mxu0
        %v2145 = vadd.f32 0.0, %v2144
        %v2146 = vpop.f32.mrb[0].mxu0
        %2147 = vmatprep.mubr.bf16.mxu0 0
        %2148 = vmatmul.mubr.bf16.gmra.mrb[0].mxu0 %v1595
        %v2149 = vpop.f32.mrb[0].mxu0
        %v2150 = vadd.f32 0.0, %v2149
        %v2151 = vpop.f32.mrb[0].mxu0
        %v2152 = vpop.f32.mrb[0].mxu0
        %v2153 = vadd.f32 0.0, %v2152
        %v2154 = vpop.f32.mrb[0].mxu0
        %2155 = vmatprep.mubr.bf16.mxu0 0
        %2156 = vmatmul.mubr.bf16.gmra.mrb[0].mxu0 %v1596
        %v2157 = vpop.f32.mrb[0].mxu0
        %v2158 = vadd.f32 0.0, %v2157
        %v2159 = vpop.f32.mrb[0].mxu0
        %v2160 = vpop.f32.mrb[0].mxu0
        %v2161 = vadd.f32 0.0, %v2160
        %v2162 = vpop.f32.mrb[0].mxu0
        %2163 = vmatprep.mubr.bf16.mxu0 0
        %2164 = vmatmul.mubr.bf16.gmra.mrb[0].mxu0 %v1597
        %v2165 = vpop.f32.mrb[0].mxu0
        %v2166 = vadd.f32 0.0, %v2165
        %v2167 = vpop.f32.mrb[0].mxu0
        %v2168 = vpop.f32.mrb[0].mxu0
        %v2169 = vadd.f32 0.0, %v2168
        %v2170 = vpop.f32.mrb[0].mxu0
        %2171 = vmatprep.mubr.bf16.mxu0 0
        %2172 = vmatmul.mubr.bf16.gmra.mrb[0].mxu0 %v1598
        %v2173 = vpop.f32.mrb[0].mxu0
        %v2174 = vadd.f32 0.0, %v2173
        %v2175 = vpop.f32.mrb[0].mxu0
        %v2176 = vpop.f32.mrb[0].mxu0
        %v2177 = vadd.f32 0.0, %v2176
        %v2178 = vpop.f32.mrb[0].mxu0
        %2179 = vmatprep.mubr.bf16.mxu0 0
        %2180 = vmatmul.mubr.bf16.gmra.mrb[0].mxu0 %v1599
        %v2181 = vpop.f32.mrb[0].mxu0
        %v2182 = vadd.f32 0.0, %v2181
        %v2183 = vpop.f32.mrb[0].mxu0
        %v2184 = vpop.f32.mrb[0].mxu0
        %v2185 = vadd.f32 0.0, %v2184
        %v2186 = vpop.f32.mrb[0].mxu0
        %2187 = vmatprep.mubr.bf16.mxu0 0
        %2188 = vmatmul.mubr.bf16.gmra.mrb[0].mxu0 %v1600
        %v2189 = vpop.f32.mrb[0].mxu0
        %v2190 = vadd.f32 0.0, %v2189
        %v2191 = vpop.f32.mrb[0].mxu0
        %v2192 = vpop.f32.mrb[0].mxu0
        %v2193 = vadd.f32 0.0, %v2192
        %v2194 = vpop.f32.mrb[0].mxu0
        %2195 = vmatprep.mubr.bf16.mxu0 0
        %2196 = vmatmul.mubr.bf16.gmra.mrb[0].mxu0 %v1601
        %v2197 = vpop.f32.mrb[0].mxu0
        %v2198 = vadd.f32 0.0, %v2197
        %v2199 = vpop.f32.mrb[0].mxu0
        %v2200 = vpop.f32.mrb[0].mxu0
        %v2201 = vadd.f32 0.0, %v2200
        %v2202 = vpop.f32.mrb[0].mxu0
        %2203 = vmatprep.mubr.bf16.mxu0 0
        %2204 = vmatmul.mubr.bf16.gmra.mrb[0].mxu0 %v1602
        %v2205 = vpop.f32.mrb[0].mxu0
        %v2206 = vadd.f32 0.0, %v2205
        %v2207 = vpop.f32.mrb[0].mxu0
        %v2208 = vpop.f32.mrb[0].mxu0
        %v2209 = vadd.f32 0.0, %v2208
        %v2210 = vpop.f32.mrb[0].mxu0
        %2211 = vdwg.mxu0
        %p2212 = scmp.ne.s32.totalorder %s31, 0
        // Predicated region
        $region85: #{tpu_custom_call.1} parent=71 // pred_check
          %p2213 = pneg %p2212
        $region86: #{tpu_custom_call.1} parent=71 // pred_check_branch
          %2215 = sbr.rel (%p2213) target = $region88
        $region87: #{tpu_custom_call.1} parent=71 // pred_region
          %v2216 = vld [vmem:[#allocation2] sm:$0xff]
          %v2217 = vld [vmem:[#allocation2 + $0x8] sm:$0xff]
          %v2218 = vld [vmem:[#allocation2 + $0x10] sm:$0xff]
          %v2219 = vld [vmem:[#allocation2 + $0x18] sm:$0xff]
          %v2220 = vld [vmem:[#allocation2 + $0x20] sm:$0xff]
          %v2221 = vld [vmem:[#allocation2 + $0x28] sm:$0xff]
          %v2222 = vld [vmem:[#allocation2 + $0x30] sm:$0xff]
          %v2223 = vld [vmem:[#allocation2 + $0x38] sm:$0xff]
          %v2224 = vld [vmem:[#allocation2 + $0x40] sm:$0xff]
          %v2225 = vld [vmem:[#allocation2 + $0x48] sm:$0xff]
          %v2226 = vld [vmem:[#allocation2 + $0x50] sm:$0xff]
          %v2227 = vld [vmem:[#allocation2 + $0x58] sm:$0xff]
          %v2228 = vld [vmem:[#allocation2 + $0x60] sm:$0xff]
          %v2229 = vld [vmem:[#allocation2 + $0x68] sm:$0xff]
          %v2230 = vld [vmem:[#allocation2 + $0x70] sm:$0xff]
          %v2231 = vld [vmem:[#allocation2 + $0x78] sm:$0xff]
          %v2232 = vld [vmem:[#allocation2 + $0x80] sm:$0xff]
          %v2233 = vld [vmem:[#allocation2 + $0x88] sm:$0xff]
          %v2234 = vld [vmem:[#allocation2 + $0x90] sm:$0xff]
          %v2235 = vld [vmem:[#allocation2 + $0x98] sm:$0xff]
          %v2236 = vld [vmem:[#allocation2 + $0xa0] sm:$0xff]
          %v2237 = vld [vmem:[#allocation2 + $0xa8] sm:$0xff]
          %v2238 = vld [vmem:[#allocation2 + $0xb0] sm:$0xff]
          %v2239 = vld [vmem:[#allocation2 + $0xb8] sm:$0xff]
          %v2240 = vld [vmem:[#allocation2 + $0xc0] sm:$0xff]
          %v2241 = vld [vmem:[#allocation2 + $0xc8] sm:$0xff]
          %v2242 = vld [vmem:[#allocation2 + $0xd0] sm:$0xff]
          %v2243 = vld [vmem:[#allocation2 + $0xd8] sm:$0xff]
          %v2244 = vld [vmem:[#allocation2 + $0xe0] sm:$0xff]
          %v2245 = vld [vmem:[#allocation2 + $0xe8] sm:$0xff]
          %v2246 = vld [vmem:[#allocation2 + $0xf0] sm:$0xff]
          %v2247 = vld [vmem:[#allocation2 + $0xf8] sm:$0xff]
          %v2248 = vld [vmem:[#allocation2 + $0x100] sm:$0xff]
          %v2249 = vld [vmem:[#allocation2 + $0x108] sm:$0xff]
          %v2250 = vld [vmem:[#allocation2 + $0x110] sm:$0xff]
          %v2251 = vld [vmem:[#allocation2 + $0x118] sm:$0xff]
          %v2252 = vld [vmem:[#allocation2 + $0x120] sm:$0xff]
          %v2253 = vld [vmem:[#allocation2 + $0x128] sm:$0xff]
          %v2254 = vld [vmem:[#allocation2 + $0x130] sm:$0xff]
          %v2255 = vld [vmem:[#allocation2 + $0x138] sm:$0xff]
          %v2256 = vld [vmem:[#allocation2 + $0x140] sm:$0xff]
          %v2257 = vld [vmem:[#allocation2 + $0x148] sm:$0xff]
          %v2258 = vld [vmem:[#allocation2 + $0x150] sm:$0xff]
          %v2259 = vld [vmem:[#allocation2 + $0x158] sm:$0xff]
          %v2260 = vld [vmem:[#allocation2 + $0x160] sm:$0xff]
          %v2261 = vld [vmem:[#allocation2 + $0x168] sm:$0xff]
          %v2262 = vld [vmem:[#allocation2 + $0x170] sm:$0xff]
          %v2263 = vld [vmem:[#allocation2 + $0x178] sm:$0xff]
          %v2264 = vld [vmem:[#allocation2 + $0x180] sm:$0xff]
          %v2265 = vld [vmem:[#allocation2 + $0x188] sm:$0xff]
          %v2266 = vld [vmem:[#allocation2 + $0x190] sm:$0xff]
          %v2267 = vld [vmem:[#allocation2 + $0x198] sm:$0xff]
          %v2268 = vld [vmem:[#allocation2 + $0x1a0] sm:$0xff]
          %v2269 = vld [vmem:[#allocation2 + $0x1a8] sm:$0xff]
          %v2270 = vld [vmem:[#allocation2 + $0x1b0] sm:$0xff]
          %v2271 = vld [vmem:[#allocation2 + $0x1b8] sm:$0xff]
          %v2272 = vld [vmem:[#allocation2 + $0x1c0] sm:$0xff]
          %v2273 = vld [vmem:[#allocation2 + $0x1c8] sm:$0xff]
          %v2274 = vld [vmem:[#allocation2 + $0x1d0] sm:$0xff]
          %v2275 = vld [vmem:[#allocation2 + $0x1d8] sm:$0xff]
          %v2276 = vld [vmem:[#allocation2 + $0x1e0] sm:$0xff]
          %v2277 = vld [vmem:[#allocation2 + $0x1e8] sm:$0xff]
          %v2278 = vld [vmem:[#allocation2 + $0x1f0] sm:$0xff]
          %v2279 = vld [vmem:[#allocation2 + $0x1f8] sm:$0xff]
          %v2280 = vld [vmem:[#allocation2 + $0x200] sm:$0xff]
          %v2281 = vld [vmem:[#allocation2 + $0x208] sm:$0xff]
          %v2282 = vld [vmem:[#allocation2 + $0x210] sm:$0xff]
          %v2283 = vld [vmem:[#allocation2 + $0x218] sm:$0xff]
          %v2284 = vld [vmem:[#allocation2 + $0x220] sm:$0xff]
          %v2285 = vld [vmem:[#allocation2 + $0x228] sm:$0xff]
          %v2286 = vld [vmem:[#allocation2 + $0x230] sm:$0xff]
          %v2287 = vld [vmem:[#allocation2 + $0x238] sm:$0xff]
          %v2288 = vld [vmem:[#allocation2 + $0x240] sm:$0xff]
          %v2289 = vld [vmem:[#allocation2 + $0x248] sm:$0xff]
          %v2290 = vld [vmem:[#allocation2 + $0x250] sm:$0xff]
          %v2291 = vld [vmem:[#allocation2 + $0x258] sm:$0xff]
          %v2292 = vld [vmem:[#allocation2 + $0x260] sm:$0xff]
          %v2293 = vld [vmem:[#allocation2 + $0x268] sm:$0xff]
          %v2294 = vld [vmem:[#allocation2 + $0x270] sm:$0xff]
          %v2295 = vld [vmem:[#allocation2 + $0x278] sm:$0xff]
          %v2296 = vld [vmem:[#allocation2 + $0x280] sm:$0xff]
          %v2297 = vld [vmem:[#allocation2 + $0x288] sm:$0xff]
          %v2298 = vld [vmem:[#allocation2 + $0x290] sm:$0xff]
          %v2299 = vld [vmem:[#allocation2 + $0x298] sm:$0xff]
          %v2300 = vld [vmem:[#allocation2 + $0x2a0] sm:$0xff]
          %v2301 = vld [vmem:[#allocation2 + $0x2a8] sm:$0xff]
          %v2302 = vld [vmem:[#allocation2 + $0x2b0] sm:$0xff]
          %v2303 = vld [vmem:[#allocation2 + $0x2b8] sm:$0xff]
          %v2304 = vld [vmem:[#allocation2 + $0x2c0] sm:$0xff]
          %v2305 = vld [vmem:[#allocation2 + $0x2c8] sm:$0xff]
          %v2306 = vld [vmem:[#allocation2 + $0x2d0] sm:$0xff]
          %v2307 = vld [vmem:[#allocation2 + $0x2d8] sm:$0xff]
          %v2308 = vld [vmem:[#allocation2 + $0x2e0] sm:$0xff]
          %v2309 = vld [vmem:[#allocation2 + $0x2e8] sm:$0xff]
          %v2310 = vld [vmem:[#allocation2 + $0x2f0] sm:$0xff]
          %v2311 = vld [vmem:[#allocation2 + $0x2f8] sm:$0xff]
          %v2312 = vld [vmem:[#allocation2 + $0x300] sm:$0xff]
          %v2313 = vld [vmem:[#allocation2 + $0x308] sm:$0xff]
          %v2314 = vld [vmem:[#allocation2 + $0x310] sm:$0xff]
          %v2315 = vld [vmem:[#allocation2 + $0x318] sm:$0xff]
          %v2316 = vld [vmem:[#allocation2 + $0x320] sm:$0xff]
          %v2317 = vld [vmem:[#allocation2 + $0x328] sm:$0xff]
          %v2318 = vld [vmem:[#allocation2 + $0x330] sm:$0xff]
          %v2319 = vld [vmem:[#allocation2 + $0x338] sm:$0xff]
          %v2320 = vld [vmem:[#allocation2 + $0x340] sm:$0xff]
          %v2321 = vld [vmem:[#allocation2 + $0x348] sm:$0xff]
          %v2322 = vld [vmem:[#allocation2 + $0x350] sm:$0xff]
          %v2323 = vld [vmem:[#allocation2 + $0x358] sm:$0xff]
          %v2324 = vld [vmem:[#allocation2 + $0x360] sm:$0xff]
          %v2325 = vld [vmem:[#allocation2 + $0x368] sm:$0xff]
          %v2326 = vld [vmem:[#allocation2 + $0x370] sm:$0xff]
          %v2327 = vld [vmem:[#allocation2 + $0x378] sm:$0xff]
          %v2328 = vld [vmem:[#allocation2 + $0x380] sm:$0xff]
          %v2329 = vld [vmem:[#allocation2 + $0x388] sm:$0xff]
          %v2330 = vld [vmem:[#allocation2 + $0x390] sm:$0xff]
          %v2331 = vld [vmem:[#allocation2 + $0x398] sm:$0xff]
          %v2332 = vld [vmem:[#allocation2 + $0x3a0] sm:$0xff]
          %v2333 = vld [vmem:[#allocation2 + $0x3a8] sm:$0xff]
          %v2334 = vld [vmem:[#allocation2 + $0x3b0] sm:$0xff]
          %v2335 = vld [vmem:[#allocation2 + $0x3b8] sm:$0xff]
          %v2336 = vld [vmem:[#allocation2 + $0x3c0] sm:$0xff]
          %v2337 = vld [vmem:[#allocation2 + $0x3c8] sm:$0xff]
          %v2338 = vld [vmem:[#allocation2 + $0x3d0] sm:$0xff]
          %v2339 = vld [vmem:[#allocation2 + $0x3d8] sm:$0xff]
          %v2340 = vld [vmem:[#allocation2 + $0x3e0] sm:$0xff]
          %v2341 = vld [vmem:[#allocation2 + $0x3e8] sm:$0xff]
          %v2342 = vld [vmem:[#allocation2 + $0x3f0] sm:$0xff]
          %v2343 = vld [vmem:[#allocation2 + $0x3f8] sm:$0xff]
          %v2344 = vmax.f32 %v2216, %v1702
          %v2345 = vmax.f32 %v2217, %v1705
          %v2346 = vmax.f32 %v2218, %v1710
          %v2347 = vmax.f32 %v2219, %v1713
          %v2348 = vmax.f32 %v2220, %v1718
          %v2349 = vmax.f32 %v2221, %v1721
          %v2350 = vmax.f32 %v2222, %v1726
          %v2351 = vmax.f32 %v2223, %v1729
          %v2352 = vmax.f32 %v2224, %v1734
          %v2353 = vmax.f32 %v2225, %v1737
          %v2354 = vmax.f32 %v2226, %v1742
          %v2355 = vmax.f32 %v2227, %v1745
          %v2356 = vmax.f32 %v2228, %v1750
          %v2357 = vmax.f32 %v2229, %v1753
          %v2358 = vmax.f32 %v2230, %v1758
          %v2359 = vmax.f32 %v2231, %v1761
          %v2360 = vmax.f32 %v2232, %v1766
          %v2361 = vmax.f32 %v2233, %v1769
          %v2362 = vmax.f32 %v2234, %v1774
          %v2363 = vmax.f32 %v2235, %v1777
          %v2364 = vmax.f32 %v2236, %v1782
          %v2365 = vmax.f32 %v2237, %v1785
          %v2366 = vmax.f32 %v2238, %v1790
          %v2367 = vmax.f32 %v2239, %v1793
          %v2368 = vmax.f32 %v2240, %v1798
          %v2369 = vmax.f32 %v2241, %v1801
          %v2370 = vmax.f32 %v2242, %v1806
          %v2371 = vmax.f32 %v2243, %v1809
          %v2372 = vmax.f32 %v2244, %v1814
          %v2373 = vmax.f32 %v2245, %v1817
          %v2374 = vmax.f32 %v2246, %v1822
          %v2375 = vmax.f32 %v2247, %v1825
          %v2376 = vmax.f32 %v2248, %v1830
          %v2377 = vmax.f32 %v2249, %v1833
          %v2378 = vmax.f32 %v2250, %v1838
          %v2379 = vmax.f32 %v2251, %v1841
          %v2380 = vmax.f32 %v2252, %v1846
          %v2381 = vmax.f32 %v2253, %v1849
          %v2382 = vmax.f32 %v2254, %v1854
          %v2383 = vmax.f32 %v2255, %v1857
          %v2384 = vmax.f32 %v2256, %v1862
          %v2385 = vmax.f32 %v2257, %v1865
          %v2386 = vmax.f32 %v2258, %v1870
          %v2387 = vmax.f32 %v2259, %v1873
          %v2388 = vmax.f32 %v2260, %v1878
          %v2389 = vmax.f32 %v2261, %v1881
          %v2390 = vmax.f32 %v2262, %v1886
          %v2391 = vmax.f32 %v2263, %v1889
          %v2392 = vmax.f32 %v2264, %v1894
          %v2393 = vmax.f32 %v2265, %v1897
          %v2394 = vmax.f32 %v2266, %v1902
          %v2395 = vmax.f32 %v2267, %v1905
          %v2396 = vmax.f32 %v2268, %v1910
          %v2397 = vmax.f32 %v2269, %v1913
          %v2398 = vmax.f32 %v2270, %v1918
          %v2399 = vmax.f32 %v2271, %v1921
          %v2400 = vmax.f32 %v2272, %v1926
          %v2401 = vmax.f32 %v2273, %v1929
          %v2402 = vmax.f32 %v2274, %v1934
          %v2403 = vmax.f32 %v2275, %v1937
          %v2404 = vmax.f32 %v2276, %v1942
          %v2405 = vmax.f32 %v2277, %v1945
          %v2406 = vmax.f32 %v2278, %v1950
          %v2407 = vmax.f32 %v2279, %v1953
          %v2408 = vmax.f32 %v2280, %v1958
          %v2409 = vmax.f32 %v2281, %v1961
          %v2410 = vmax.f32 %v2282, %v1966
          %v2411 = vmax.f32 %v2283, %v1969
          %v2412 = vmax.f32 %v2284, %v1974
          %v2413 = vmax.f32 %v2285, %v1977
          %v2414 = vmax.f32 %v2286, %v1982
          %v2415 = vmax.f32 %v2287, %v1985
          %v2416 = vmax.f32 %v2288, %v1990
          %v2417 = vmax.f32 %v2289, %v1993
          %v2418 = vmax.f32 %v2290, %v1998
          %v2419 = vmax.f32 %v2291, %v2001
          %v2420 = vmax.f32 %v2292, %v2006
          %v2421 = vmax.f32 %v2293, %v2009
          %v2422 = vmax.f32 %v2294, %v2014
          %v2423 = vmax.f32 %v2295, %v2017
          %v2424 = vmax.f32 %v2296, %v2022
          %v2425 = vmax.f32 %v2297, %v2025
          %v2426 = vmax.f32 %v2298, %v2030
          %v2427 = vmax.f32 %v2299, %v2033
          %v2428 = vmax.f32 %v2300, %v2038
          %v2429 = vmax.f32 %v2301, %v2041
          %v2430 = vmax.f32 %v2302, %v2046
          %v2431 = vmax.f32 %v2303, %v2049
          %v2432 = vmax.f32 %v2304, %v2054
          %v2433 = vmax.f32 %v2305, %v2057
          %v2434 = vmax.f32 %v2306, %v2062
          %v2435 = vmax.f32 %v2307, %v2065
          %v2436 = vmax.f32 %v2308, %v2070
          %v2437 = vmax.f32 %v2309, %v2073
          %v2438 = vmax.f32 %v2310, %v2078
          %v2439 = vmax.f32 %v2311, %v2081
          %v2440 = vmax.f32 %v2312, %v2086
          %v2441 = vmax.f32 %v2313, %v2089
          %v2442 = vmax.f32 %v2314, %v2094
          %v2443 = vmax.f32 %v2315, %v2097
          %v2444 = vmax.f32 %v2316, %v2102
          %v2445 = vmax.f32 %v2317, %v2105
          %v2446 = vmax.f32 %v2318, %v2110
          %v2447 = vmax.f32 %v2319, %v2113
          %v2448 = vmax.f32 %v2320, %v2118
          %v2449 = vmax.f32 %v2321, %v2121
          %v2450 = vmax.f32 %v2322, %v2126
          %v2451 = vmax.f32 %v2323, %v2129
          %v2452 = vmax.f32 %v2324, %v2134
          %v2453 = vmax.f32 %v2325, %v2137
          %v2454 = vmax.f32 %v2326, %v2142
          %v2455 = vmax.f32 %v2327, %v2145
          %v2456 = vmax.f32 %v2328, %v2150
          %v2457 = vmax.f32 %v2329, %v2153
          %v2458 = vmax.f32 %v2330, %v2158
          %v2459 = vmax.f32 %v2331, %v2161
          %v2460 = vmax.f32 %v2332, %v2166
          %v2461 = vmax.f32 %v2333, %v2169
          %v2462 = vmax.f32 %v2334, %v2174
          %v2463 = vmax.f32 %v2335, %v2177
          %v2464 = vmax.f32 %v2336, %v2182
          %v2465 = vmax.f32 %v2337, %v2185
          %v2466 = vmax.f32 %v2338, %v2190
          %v2467 = vmax.f32 %v2339, %v2193
          %v2468 = vmax.f32 %v2340, %v2198
          %v2469 = vmax.f32 %v2341, %v2201
          %v2470 = vmax.f32 %v2342, %v2206
          %v2471 = vmax.f32 %v2343, %v2209
          %2472 = vst [vmem:[#allocation2] sm:$0xff] %v2344
          %2473 = vst [vmem:[#allocation2 + $0x8] sm:$0xff] %v2345
          %2474 = vst [vmem:[#allocation2 + $0x10] sm:$0xff] %v2346
          %2475 = vst [vmem:[#allocation2 + $0x18] sm:$0xff] %v2347
          %2476 = vst [vmem:[#allocation2 + $0x20] sm:$0xff] %v2348
          %2477 = vst [vmem:[#allocation2 + $0x28] sm:$0xff] %v2349
          %2478 = vst [vmem:[#allocation2 + $0x30] sm:$0xff] %v2350
          %2479 = vst [vmem:[#allocation2 + $0x38] sm:$0xff] %v2351
          %2480 = vst [vmem:[#allocation2 + $0x40] sm:$0xff] %v2352
          %2481 = vst [vmem:[#allocation2 + $0x48] sm:$0xff] %v2353
          %2482 = vst [vmem:[#allocation2 + $0x50] sm:$0xff] %v2354
          %2483 = vst [vmem:[#allocation2 + $0x58] sm:$0xff] %v2355
          %2484 = vst [vmem:[#allocation2 + $0x60] sm:$0xff] %v2356
          %2485 = vst [vmem:[#allocation2 + $0x68] sm:$0xff] %v2357
          %2486 = vst [vmem:[#allocation2 + $0x70] sm:$0xff] %v2358
          %2487 = vst [vmem:[#allocation2 + $0x78] sm:$0xff] %v2359
          %2488 = vst [vmem:[#allocation2 + $0x80] sm:$0xff] %v2360
          %2489 = vst [vmem:[#allocation2 + $0x88] sm:$0xff] %v2361
          %2490 = vst [vmem:[#allocation2 + $0x90] sm:$0xff] %v2362
          %2491 = vst [vmem:[#allocation2 + $0x98] sm:$0xff] %v2363
          %2492 = vst [vmem:[#allocation2 + $0xa0] sm:$0xff] %v2364
          %2493 = vst [vmem:[#allocation2 + $0xa8] sm:$0xff] %v2365
          %2494 = vst [vmem:[#allocation2 + $0xb0] sm:$0xff] %v2366
          %2495 = vst [vmem:[#allocation2 + $0xb8] sm:$0xff] %v2367
          %2496 = vst [vmem:[#allocation2 + $0xc0] sm:$0xff] %v2368
          %2497 = vst [vmem:[#allocation2 + $0xc8] sm:$0xff] %v2369
          %2498 = vst [vmem:[#allocation2 + $0xd0] sm:$0xff] %v2370
          %2499 = vst [vmem:[#allocation2 + $0xd8] sm:$0xff] %v2371
          %2500 = vst [vmem:[#allocation2 + $0xe0] sm:$0xff] %v2372
          %2501 = vst [vmem:[#allocation2 + $0xe8] sm:$0xff] %v2373
          %2502 = vst [vmem:[#allocation2 + $0xf0] sm:$0xff] %v2374
          %2503 = vst [vmem:[#allocation2 + $0xf8] sm:$0xff] %v2375
          %2504 = vst [vmem:[#allocation2 + $0x100] sm:$0xff] %v2376
          %2505 = vst [vmem:[#allocation2 + $0x108] sm:$0xff] %v2377
          %2506 = vst [vmem:[#allocation2 + $0x110] sm:$0xff] %v2378
          %2507 = vst [vmem:[#allocation2 + $0x118] sm:$0xff] %v2379
          %2508 = vst [vmem:[#allocation2 + $0x120] sm:$0xff] %v2380
          %2509 = vst [vmem:[#allocation2 + $0x128] sm:$0xff] %v2381
          %2510 = vst [vmem:[#allocation2 + $0x130] sm:$0xff] %v2382
          %2511 = vst [vmem:[#allocation2 + $0x138] sm:$0xff] %v2383
          %2512 = vst [vmem:[#allocation2 + $0x140] sm:$0xff] %v2384
          %2513 = vst [vmem:[#allocation2 + $0x148] sm:$0xff] %v2385
          %2514 = vst [vmem:[#allocation2 + $0x150] sm:$0xff] %v2386
          %2515 = vst [vmem:[#allocation2 + $0x158] sm:$0xff] %v2387
          %2516 = vst [vmem:[#allocation2 + $0x160] sm:$0xff] %v2388
          %2517 = vst [vmem:[#allocation2 + $0x168] sm:$0xff] %v2389
          %2518 = vst [vmem:[#allocation2 + $0x170] sm:$0xff] %v2390
          %2519 = vst [vmem:[#allocation2 + $0x178] sm:$0xff] %v2391
          %2520 = vst [vmem:[#allocation2 + $0x180] sm:$0xff] %v2392
          %2521 = vst [vmem:[#allocation2 + $0x188] sm:$0xff] %v2393
          %2522 = vst [vmem:[#allocation2 + $0x190] sm:$0xff] %v2394
          %2523 = vst [vmem:[#allocation2 + $0x198] sm:$0xff] %v2395
          %2524 = vst [vmem:[#allocation2 + $0x1a0] sm:$0xff] %v2396
          %2525 = vst [vmem:[#allocation2 + $0x1a8] sm:$0xff] %v2397
          %2526 = vst [vmem:[#allocation2 + $0x1b0] sm:$0xff] %v2398
          %2527 = vst [vmem:[#allocation2 + $0x1b8] sm:$0xff] %v2399
          %2528 = vst [vmem:[#allocation2 + $0x1c0] sm:$0xff] %v2400
          %2529 = vst [vmem:[#allocation2 + $0x1c8] sm:$0xff] %v2401
          %2530 = vst [vmem:[#allocation2 + $0x1d0] sm:$0xff] %v2402
          %2531 = vst [vmem:[#allocation2 + $0x1d8] sm:$0xff] %v2403
          %2532 = vst [vmem:[#allocation2 + $0x1e0] sm:$0xff] %v2404
          %2533 = vst [vmem:[#allocation2 + $0x1e8] sm:$0xff] %v2405
          %2534 = vst [vmem:[#allocation2 + $0x1f0] sm:$0xff] %v2406
          %2535 = vst [vmem:[#allocation2 + $0x1f8] sm:$0xff] %v2407
          %2536 = vst [vmem:[#allocation2 + $0x200] sm:$0xff] %v2408
          %2537 = vst [vmem:[#allocation2 + $0x208] sm:$0xff] %v2409
          %2538 = vst [vmem:[#allocation2 + $0x210] sm:$0xff] %v2410
          %2539 = vst [vmem:[#allocation2 + $0x218] sm:$0xff] %v2411
          %2540 = vst [vmem:[#allocation2 + $0x220] sm:$0xff] %v2412
          %2541 = vst [vmem:[#allocation2 + $0x228] sm:$0xff] %v2413
          %2542 = vst [vmem:[#allocation2 + $0x230] sm:$0xff] %v2414
          %2543 = vst [vmem:[#allocation2 + $0x238] sm:$0xff] %v2415
          %2544 = vst [vmem:[#allocation2 + $0x240] sm:$0xff] %v2416
          %2545 = vst [vmem:[#allocation2 + $0x248] sm:$0xff] %v2417
          %2546 = vst [vmem:[#allocation2 + $0x250] sm:$0xff] %v2418
          %2547 = vst [vmem:[#allocation2 + $0x258] sm:$0xff] %v2419
          %2548 = vst [vmem:[#allocation2 + $0x260] sm:$0xff] %v2420
          %2549 = vst [vmem:[#allocation2 + $0x268] sm:$0xff] %v2421
          %2550 = vst [vmem:[#allocation2 + $0x270] sm:$0xff] %v2422
          %2551 = vst [vmem:[#allocation2 + $0x278] sm:$0xff] %v2423
          %2552 = vst [vmem:[#allocation2 + $0x280] sm:$0xff] %v2424
          %2553 = vst [vmem:[#allocation2 + $0x288] sm:$0xff] %v2425
          %2554 = vst [vmem:[#allocation2 + $0x290] sm:$0xff] %v2426
          %2555 = vst [vmem:[#allocation2 + $0x298] sm:$0xff] %v2427
          %2556 = vst [vmem:[#allocation2 + $0x2a0] sm:$0xff] %v2428
          %2557 = vst [vmem:[#allocation2 + $0x2a8] sm:$0xff] %v2429
          %2558 = vst [vmem:[#allocation2 + $0x2b0] sm:$0xff] %v2430
          %2559 = vst [vmem:[#allocation2 + $0x2b8] sm:$0xff] %v2431
          %2560 = vst [vmem:[#allocation2 + $0x2c0] sm:$0xff] %v2432
          %2561 = vst [vmem:[#allocation2 + $0x2c8] sm:$0xff] %v2433
          %2562 = vst [vmem:[#allocation2 + $0x2d0] sm:$0xff] %v2434
          %2563 = vst [vmem:[#allocation2 + $0x2d8] sm:$0xff] %v2435
          %2564 = vst [vmem:[#allocation2 + $0x2e0] sm:$0xff] %v2436
          %2565 = vst [vmem:[#allocation2 + $0x2e8] sm:$0xff] %v2437
          %2566 = vst [vmem:[#allocation2 + $0x2f0] sm:$0xff] %v2438
          %2567 = vst [vmem:[#allocation2 + $0x2f8] sm:$0xff] %v2439
          %2568 = vst [vmem:[#allocation2 + $0x300] sm:$0xff] %v2440
          %2569 = vst [vmem:[#allocation2 + $0x308] sm:$0xff] %v2441
          %2570 = vst [vmem:[#allocation2 + $0x310] sm:$0xff] %v2442
          %2571 = vst [vmem:[#allocation2 + $0x318] sm:$0xff] %v2443
          %2572 = vst [vmem:[#allocation2 + $0x320] sm:$0xff] %v2444
          %2573 = vst [vmem:[#allocation2 + $0x328] sm:$0xff] %v2445
          %2574 = vst [vmem:[#allocation2 + $0x330] sm:$0xff] %v2446
          %2575 = vst [vmem:[#allocation2 + $0x338] sm:$0xff] %v2447
          %2576 = vst [vmem:[#allocation2 + $0x340] sm:$0xff] %v2448
          %2577 = vst [vmem:[#allocation2 + $0x348] sm:$0xff] %v2449
          %2578 = vst [vmem:[#allocation2 + $0x350] sm:$0xff] %v2450
          %2579 = vst [vmem:[#allocation2 + $0x358] sm:$0xff] %v2451
          %2580 = vst [vmem:[#allocation2 + $0x360] sm:$0xff] %v2452
          %2581 = vst [vmem:[#allocation2 + $0x368] sm:$0xff] %v2453
          %2582 = vst [vmem:[#allocation2 + $0x370] sm:$0xff] %v2454
          %2583 = vst [vmem:[#allocation2 + $0x378] sm:$0xff] %v2455
          %2584 = vst [vmem:[#allocation2 + $0x380] sm:$0xff] %v2456
          %2585 = vst [vmem:[#allocation2 + $0x388] sm:$0xff] %v2457
          %2586 = vst [vmem:[#allocation2 + $0x390] sm:$0xff] %v2458
          %2587 = vst [vmem:[#allocation2 + $0x398] sm:$0xff] %v2459
          %2588 = vst [vmem:[#allocation2 + $0x3a0] sm:$0xff] %v2460
          %2589 = vst [vmem:[#allocation2 + $0x3a8] sm:$0xff] %v2461
          %2590 = vst [vmem:[#allocation2 + $0x3b0] sm:$0xff] %v2462
          %2591 = vst [vmem:[#allocation2 + $0x3b8] sm:$0xff] %v2463
          %2592 = vst [vmem:[#allocation2 + $0x3c0] sm:$0xff] %v2464
          %2593 = vst [vmem:[#allocation2 + $0x3c8] sm:$0xff] %v2465
          %2594 = vst [vmem:[#allocation2 + $0x3d0] sm:$0xff] %v2466
          %2595 = vst [vmem:[#allocation2 + $0x3d8] sm:$0xff] %v2467
          %2596 = vst [vmem:[#allocation2 + $0x3e0] sm:$0xff] %v2468
          %2597 = vst [vmem:[#allocation2 + $0x3e8] sm:$0xff] %v2469
          %2598 = vst [vmem:[#allocation2 + $0x3f0] sm:$0xff] %v2470
          %2599 = vst [vmem:[#allocation2 + $0x3f8] sm:$0xff] %v2471
        $region88: #{tpu_custom_call.1} parent=71 // pred_fallthru
          _
        // Predicated region
        $region89: #{tpu_custom_call.1} parent=71 // pred_check
          %p2600 = pneg %p492
        $region90: #{tpu_custom_call.1} parent=71 // pred_check_branch
          %2602 = sbr.rel (%p2600) target = $region92
        $region91: #{tpu_custom_call.1} parent=71 // pred_region
          %v2603 = vlaneseq
          %v2604 = vand.u32 %v2603, 127
          %vm2605 = vcmp.lt.s32.totalorder %v2604, 16
          %v2606 = vsel %vm2605, %v1702, -inf
          %v2607 = vsel %vm2605, %v1705, -inf
          %v2608 = vsel %vm2605, %v1710, -inf
          %v2609 = vsel %vm2605, %v1713, -inf
          %v2610 = vsel %vm2605, %v1718, -inf
          %v2611 = vsel %vm2605, %v1721, -inf
          %v2612 = vsel %vm2605, %v1726, -inf
          %v2613 = vsel %vm2605, %v1729, -inf
          %v2614 = vsel %vm2605, %v1734, -inf
          %v2615 = vsel %vm2605, %v1737, -inf
          %v2616 = vsel %vm2605, %v1742, -inf
          %v2617 = vsel %vm2605, %v1745, -inf
          %v2618 = vsel %vm2605, %v1750, -inf
          %v2619 = vsel %vm2605, %v1753, -inf
          %v2620 = vsel %vm2605, %v1758, -inf
          %v2621 = vsel %vm2605, %v1761, -inf
          %v2622 = vsel %vm2605, %v1766, -inf
          %v2623 = vsel %vm2605, %v1769, -inf
          %v2624 = vsel %vm2605, %v1774, -inf
          %v2625 = vsel %vm2605, %v1777, -inf
          %v2626 = vsel %vm2605, %v1782, -inf
          %v2627 = vsel %vm2605, %v1785, -inf
          %v2628 = vsel %vm2605, %v1790, -inf
          %v2629 = vsel %vm2605, %v1793, -inf
          %v2630 = vsel %vm2605, %v1798, -inf
          %v2631 = vsel %vm2605, %v1801, -inf
          %v2632 = vsel %vm2605, %v1806, -inf
          %v2633 = vsel %vm2605, %v1809, -inf
          %v2634 = vsel %vm2605, %v1814, -inf
          %v2635 = vsel %vm2605, %v1817, -inf
          %v2636 = vsel %vm2605, %v1822, -inf
          %v2637 = vsel %vm2605, %v1825, -inf
          %v2638 = vsel %vm2605, %v1830, -inf
          %v2639 = vsel %vm2605, %v1833, -inf
          %v2640 = vsel %vm2605, %v1838, -inf
          %v2641 = vsel %vm2605, %v1841, -inf
          %v2642 = vsel %vm2605, %v1846, -inf
          %v2643 = vsel %vm2605, %v1849, -inf
          %v2644 = vsel %vm2605, %v1854, -inf
          %v2645 = vsel %vm2605, %v1857, -inf
          %v2646 = vsel %vm2605, %v1862, -inf
          %v2647 = vsel %vm2605, %v1865, -inf
          %v2648 = vsel %vm2605, %v1870, -inf
          %v2649 = vsel %vm2605, %v1873, -inf
          %v2650 = vsel %vm2605, %v1878, -inf
          %v2651 = vsel %vm2605, %v1881, -inf
          %v2652 = vsel %vm2605, %v1886, -inf
          %v2653 = vsel %vm2605, %v1889, -inf
          %v2654 = vsel %vm2605, %v1894, -inf
          %v2655 = vsel %vm2605, %v1897, -inf
          %v2656 = vsel %vm2605, %v1902, -inf
          %v2657 = vsel %vm2605, %v1905, -inf
          %v2658 = vsel %vm2605, %v1910, -inf
          %v2659 = vsel %vm2605, %v1913, -inf
          %v2660 = vsel %vm2605, %v1918, -inf
          %v2661 = vsel %vm2605, %v1921, -inf
          %v2662 = vsel %vm2605, %v1926, -inf
          %v2663 = vsel %vm2605, %v1929, -inf
          %v2664 = vsel %vm2605, %v1934, -inf
          %v2665 = vsel %vm2605, %v1937, -inf
          %v2666 = vsel %vm2605, %v1942, -inf
          %v2667 = vsel %vm2605, %v1945, -inf
          %v2668 = vsel %vm2605, %v1950, -inf
          %v2669 = vsel %vm2605, %v1953, -inf
          %v2670 = vsel %vm2605, %v1958, -inf
          %v2671 = vsel %vm2605, %v1961, -inf
          %v2672 = vsel %vm2605, %v1966, -inf
          %v2673 = vsel %vm2605, %v1969, -inf
          %v2674 = vsel %vm2605, %v1974, -inf
          %v2675 = vsel %vm2605, %v1977, -inf
          %v2676 = vsel %vm2605, %v1982, -inf
          %v2677 = vsel %vm2605, %v1985, -inf
          %v2678 = vsel %vm2605, %v1990, -inf
          %v2679 = vsel %vm2605, %v1993, -inf
          %v2680 = vsel %vm2605, %v1998, -inf
          %v2681 = vsel %vm2605, %v2001, -inf
          %v2682 = vsel %vm2605, %v2006, -inf
          %v2683 = vsel %vm2605, %v2009, -inf
          %v2684 = vsel %vm2605, %v2014, -inf
          %v2685 = vsel %vm2605, %v2017, -inf
          %v2686 = vsel %vm2605, %v2022, -inf
          %v2687 = vsel %vm2605, %v2025, -inf
          %v2688 = vsel %vm2605, %v2030, -inf
          %v2689 = vsel %vm2605, %v2033, -inf
          %v2690 = vsel %vm2605, %v2038, -inf
          %v2691 = vsel %vm2605, %v2041, -inf
          %v2692 = vsel %vm2605, %v2046, -inf
          %v2693 = vsel %vm2605, %v2049, -inf
          %v2694 = vsel %vm2605, %v2054, -inf
          %v2695 = vsel %vm2605, %v2057, -inf
          %v2696 = vsel %vm2605, %v2062, -inf
          %v2697 = vsel %vm2605, %v2065, -inf
          %v2698 = vsel %vm2605, %v2070, -inf
          %v2699 = vsel %vm2605, %v2073, -inf
          %v2700 = vsel %vm2605, %v2078, -inf
          %v2701 = vsel %vm2605, %v2081, -inf
          %v2702 = vsel %vm2605, %v2086, -inf
          %v2703 = vsel %vm2605, %v2089, -inf
          %v2704 = vsel %vm2605, %v2094, -inf
          %v2705 = vsel %vm2605, %v2097, -inf
          %v2706 = vsel %vm2605, %v2102, -inf
          %v2707 = vsel %vm2605, %v2105, -inf
          %v2708 = vsel %vm2605, %v2110, -inf
          %v2709 = vsel %vm2605, %v2113, -inf
          %v2710 = vsel %vm2605, %v2118, -inf
          %v2711 = vsel %vm2605, %v2121, -inf
          %v2712 = vsel %vm2605, %v2126, -inf
          %v2713 = vsel %vm2605, %v2129, -inf
          %v2714 = vsel %vm2605, %v2134, -inf
          %v2715 = vsel %vm2605, %v2137, -inf
          %v2716 = vsel %vm2605, %v2142, -inf
          %v2717 = vsel %vm2605, %v2145, -inf
          %v2718 = vsel %vm2605, %v2150, -inf
          %v2719 = vsel %vm2605, %v2153, -inf
          %v2720 = vsel %vm2605, %v2158, -inf
          %v2721 = vsel %vm2605, %v2161, -inf
          %v2722 = vsel %vm2605, %v2166, -inf
          %v2723 = vsel %vm2605, %v2169, -inf
          %v2724 = vsel %vm2605, %v2174, -inf
          %v2725 = vsel %vm2605, %v2177, -inf
          %v2726 = vsel %vm2605, %v2182, -inf
          %v2727 = vsel %vm2605, %v2185, -inf
          %v2728 = vsel %vm2605, %v2190, -inf
          %v2729 = vsel %vm2605, %v2193, -inf
          %v2730 = vsel %vm2605, %v2198, -inf
          %v2731 = vsel %vm2605, %v2201, -inf
          %v2732 = vsel %vm2605, %v2206, -inf
          %v2733 = vsel %vm2605, %v2209, -inf
          %v2734 = vld [vmem:[#allocation2] sm:$0xff]
          %v2735 = vld [vmem:[#allocation2 + $0x8] sm:$0xff]
          %v2736 = vld [vmem:[#allocation2 + $0x10] sm:$0xff]
          %v2737 = vld [vmem:[#allocation2 + $0x18] sm:$0xff]
          %v2738 = vld [vmem:[#allocation2 + $0x20] sm:$0xff]
          %v2739 = vld [vmem:[#allocation2 + $0x28] sm:$0xff]
          %v2740 = vld [vmem:[#allocation2 + $0x30] sm:$0xff]
          %v2741 = vld [vmem:[#allocation2 + $0x38] sm:$0xff]
          %v2742 = vld [vmem:[#allocation2 + $0x40] sm:$0xff]
          %v2743 = vld [vmem:[#allocation2 + $0x48] sm:$0xff]
          %v2744 = vld [vmem:[#allocation2 + $0x50] sm:$0xff]
          %v2745 = vld [vmem:[#allocation2 + $0x58] sm:$0xff]
          %v2746 = vld [vmem:[#allocation2 + $0x60] sm:$0xff]
          %v2747 = vld [vmem:[#allocation2 + $0x68] sm:$0xff]
          %v2748 = vld [vmem:[#allocation2 + $0x70] sm:$0xff]
          %v2749 = vld [vmem:[#allocation2 + $0x78] sm:$0xff]
          %v2750 = vld [vmem:[#allocation2 + $0x80] sm:$0xff]
          %v2751 = vld [vmem:[#allocation2 + $0x88] sm:$0xff]
          %v2752 = vld [vmem:[#allocation2 + $0x90] sm:$0xff]
          %v2753 = vld [vmem:[#allocation2 + $0x98] sm:$0xff]
          %v2754 = vld [vmem:[#allocation2 + $0xa0] sm:$0xff]
          %v2755 = vld [vmem:[#allocation2 + $0xa8] sm:$0xff]
          %v2756 = vld [vmem:[#allocation2 + $0xb0] sm:$0xff]
          %v2757 = vld [vmem:[#allocation2 + $0xb8] sm:$0xff]
          %v2758 = vld [vmem:[#allocation2 + $0xc0] sm:$0xff]
          %v2759 = vld [vmem:[#allocation2 + $0xc8] sm:$0xff]
          %v2760 = vld [vmem:[#allocation2 + $0xd0] sm:$0xff]
          %v2761 = vld [vmem:[#allocation2 + $0xd8] sm:$0xff]
          %v2762 = vld [vmem:[#allocation2 + $0xe0] sm:$0xff]
          %v2763 = vld [vmem:[#allocation2 + $0xe8] sm:$0xff]
          %v2764 = vld [vmem:[#allocation2 + $0xf0] sm:$0xff]
          %v2765 = vld [vmem:[#allocation2 + $0xf8] sm:$0xff]
          %v2766 = vld [vmem:[#allocation2 + $0x100] sm:$0xff]
          %v2767 = vld [vmem:[#allocation2 + $0x108] sm:$0xff]
          %v2768 = vld [vmem:[#allocation2 + $0x110] sm:$0xff]
          %v2769 = vld [vmem:[#allocation2 + $0x118] sm:$0xff]
          %v2770 = vld [vmem:[#allocation2 + $0x120] sm:$0xff]
          %v2771 = vld [vmem:[#allocation2 + $0x128] sm:$0xff]
          %v2772 = vld [vmem:[#allocation2 + $0x130] sm:$0xff]
          %v2773 = vld [vmem:[#allocation2 + $0x138] sm:$0xff]
          %v2774 = vld [vmem:[#allocation2 + $0x140] sm:$0xff]
          %v2775 = vld [vmem:[#allocation2 + $0x148] sm:$0xff]
          %v2776 = vld [vmem:[#allocation2 + $0x150] sm:$0xff]
          %v2777 = vld [vmem:[#allocation2 + $0x158] sm:$0xff]
          %v2778 = vld [vmem:[#allocation2 + $0x160] sm:$0xff]
          %v2779 = vld [vmem:[#allocation2 + $0x168] sm:$0xff]
          %v2780 = vld [vmem:[#allocation2 + $0x170] sm:$0xff]
          %v2781 = vld [vmem:[#allocation2 + $0x178] sm:$0xff]
          %v2782 = vld [vmem:[#allocation2 + $0x180] sm:$0xff]
          %v2783 = vld [vmem:[#allocation2 + $0x188] sm:$0xff]
          %v2784 = vld [vmem:[#allocation2 + $0x190] sm:$0xff]
          %v2785 = vld [vmem:[#allocation2 + $0x198] sm:$0xff]
          %v2786 = vld [vmem:[#allocation2 + $0x1a0] sm:$0xff]
          %v2787 = vld [vmem:[#allocation2 + $0x1a8] sm:$0xff]
          %v2788 = vld [vmem:[#allocation2 + $0x1b0] sm:$0xff]
          %v2789 = vld [vmem:[#allocation2 + $0x1b8] sm:$0xff]
          %v2790 = vld [vmem:[#allocation2 + $0x1c0] sm:$0xff]
          %v2791 = vld [vmem:[#allocation2 + $0x1c8] sm:$0xff]
          %v2792 = vld [vmem:[#allocation2 + $0x1d0] sm:$0xff]
          %v2793 = vld [vmem:[#allocation2 + $0x1d8] sm:$0xff]
          %v2794 = vld [vmem:[#allocation2 + $0x1e0] sm:$0xff]
          %v2795 = vld [vmem:[#allocation2 + $0x1e8] sm:$0xff]
          %v2796 = vld [vmem:[#allocation2 + $0x1f0] sm:$0xff]
          %v2797 = vld [vmem:[#allocation2 + $0x1f8] sm:$0xff]
          %v2798 = vld [vmem:[#allocation2 + $0x200] sm:$0xff]
          %v2799 = vld [vmem:[#allocation2 + $0x208] sm:$0xff]
          %v2800 = vld [vmem:[#allocation2 + $0x210] sm:$0xff]
          %v2801 = vld [vmem:[#allocation2 + $0x218] sm:$0xff]
          %v2802 = vld [vmem:[#allocation2 + $0x220] sm:$0xff]
          %v2803 = vld [vmem:[#allocation2 + $0x228] sm:$0xff]
          %v2804 = vld [vmem:[#allocation2 + $0x230] sm:$0xff]
          %v2805 = vld [vmem:[#allocation2 + $0x238] sm:$0xff]
          %v2806 = vld [vmem:[#allocation2 + $0x240] sm:$0xff]
          %v2807 = vld [vmem:[#allocation2 + $0x248] sm:$0xff]
          %v2808 = vld [vmem:[#allocation2 + $0x250] sm:$0xff]
          %v2809 = vld [vmem:[#allocation2 + $0x258] sm:$0xff]
          %v2810 = vld [vmem:[#allocation2 + $0x260] sm:$0xff]
          %v2811 = vld [vmem:[#allocation2 + $0x268] sm:$0xff]
          %v2812 = vld [vmem:[#allocation2 + $0x270] sm:$0xff]
          %v2813 = vld [vmem:[#allocation2 + $0x278] sm:$0xff]
          %v2814 = vld [vmem:[#allocation2 + $0x280] sm:$0xff]
          %v2815 = vld [vmem:[#allocation2 + $0x288] sm:$0xff]
          %v2816 = vld [vmem:[#allocation2 + $0x290] sm:$0xff]
          %v2817 = vld [vmem:[#allocation2 + $0x298] sm:$0xff]
          %v2818 = vld [vmem:[#allocation2 + $0x2a0] sm:$0xff]
          %v2819 = vld [vmem:[#allocation2 + $0x2a8] sm:$0xff]
          %v2820 = vld [vmem:[#allocation2 + $0x2b0] sm:$0xff]
          %v2821 = vld [vmem:[#allocation2 + $0x2b8] sm:$0xff]
          %v2822 = vld [vmem:[#allocation2 + $0x2c0] sm:$0xff]
          %v2823 = vld [vmem:[#allocation2 + $0x2c8] sm:$0xff]
          %v2824 = vld [vmem:[#allocation2 + $0x2d0] sm:$0xff]
          %v2825 = vld [vmem:[#allocation2 + $0x2d8] sm:$0xff]
          %v2826 = vld [vmem:[#allocation2 + $0x2e0] sm:$0xff]
          %v2827 = vld [vmem:[#allocation2 + $0x2e8] sm:$0xff]
          %v2828 = vld [vmem:[#allocation2 + $0x2f0] sm:$0xff]
          %v2829 = vld [vmem:[#allocation2 + $0x2f8] sm:$0xff]
          %v2830 = vld [vmem:[#allocation2 + $0x300] sm:$0xff]
          %v2831 = vld [vmem:[#allocation2 + $0x308] sm:$0xff]
          %v2832 = vld [vmem:[#allocation2 + $0x310] sm:$0xff]
          %v2833 = vld [vmem:[#allocation2 + $0x318] sm:$0xff]
          %v2834 = vld [vmem:[#allocation2 + $0x320] sm:$0xff]
          %v2835 = vld [vmem:[#allocation2 + $0x328] sm:$0xff]
          %v2836 = vld [vmem:[#allocation2 + $0x330] sm:$0xff]
          %v2837 = vld [vmem:[#allocation2 + $0x338] sm:$0xff]
          %v2838 = vld [vmem:[#allocation2 + $0x340] sm:$0xff]
          %v2839 = vld [vmem:[#allocation2 + $0x348] sm:$0xff]
          %v2840 = vld [vmem:[#allocation2 + $0x350] sm:$0xff]
          %v2841 = vld [vmem:[#allocation2 + $0x358] sm:$0xff]
          %v2842 = vld [vmem:[#allocation2 + $0x360] sm:$0xff]
          %v2843 = vld [vmem:[#allocation2 + $0x368] sm:$0xff]
          %v2844 = vld [vmem:[#allocation2 + $0x370] sm:$0xff]
          %v2845 = vld [vmem:[#allocation2 + $0x378] sm:$0xff]
          %v2846 = vld [vmem:[#allocation2 + $0x380] sm:$0xff]
          %v2847 = vld [vmem:[#allocation2 + $0x388] sm:$0xff]
          %v2848 = vld [vmem:[#allocation2 + $0x390] sm:$0xff]
          %v2849 = vld [vmem:[#allocation2 + $0x398] sm:$0xff]
          %v2850 = vld [vmem:[#allocation2 + $0x3a0] sm:$0xff]
          %v2851 = vld [vmem:[#allocation2 + $0x3a8] sm:$0xff]
          %v2852 = vld [vmem:[#allocation2 + $0x3b0] sm:$0xff]
          %v2853 = vld [vmem:[#allocation2 + $0x3b8] sm:$0xff]
          %v2854 = vld [vmem:[#allocation2 + $0x3c0] sm:$0xff]
          %v2855 = vld [vmem:[#allocation2 + $0x3c8] sm:$0xff]
          %v2856 = vld [vmem:[#allocation2 + $0x3d0] sm:$0xff]
          %v2857 = vld [vmem:[#allocation2 + $0x3d8] sm:$0xff]
          %v2858 = vld [vmem:[#allocation2 + $0x3e0] sm:$0xff]
          %v2859 = vld [vmem:[#allocation2 + $0x3e8] sm:$0xff]
          %v2860 = vld [vmem:[#allocation2 + $0x3f0] sm:$0xff]
          %v2861 = vld [vmem:[#allocation2 + $0x3f8] sm:$0xff]
          %v2862 = vmax.f32 %v2734, %v2606
          %v2863 = vmax.f32 %v2735, %v2607
          %v2864 = vmax.f32 %v2736, %v2608
          %v2865 = vmax.f32 %v2737, %v2609
          %v2866 = vmax.f32 %v2738, %v2610
          %v2867 = vmax.f32 %v2739, %v2611
          %v2868 = vmax.f32 %v2740, %v2612
          %v2869 = vmax.f32 %v2741, %v2613
          %v2870 = vmax.f32 %v2742, %v2614
          %v2871 = vmax.f32 %v2743, %v2615
          %v2872 = vmax.f32 %v2744, %v2616
          %v2873 = vmax.f32 %v2745, %v2617
          %v2874 = vmax.f32 %v2746, %v2618
          %v2875 = vmax.f32 %v2747, %v2619
          %v2876 = vmax.f32 %v2748, %v2620
          %v2877 = vmax.f32 %v2749, %v2621
          %v2878 = vmax.f32 %v2750, %v2622
          %v2879 = vmax.f32 %v2751, %v2623
          %v2880 = vmax.f32 %v2752, %v2624
          %v2881 = vmax.f32 %v2753, %v2625
          %v2882 = vmax.f32 %v2754, %v2626
          %v2883 = vmax.f32 %v2755, %v2627
          %v2884 = vmax.f32 %v2756, %v2628
          %v2885 = vmax.f32 %v2757, %v2629
          %v2886 = vmax.f32 %v2758, %v2630
          %v2887 = vmax.f32 %v2759, %v2631
          %v2888 = vmax.f32 %v2760, %v2632
          %v2889 = vmax.f32 %v2761, %v2633
          %v2890 = vmax.f32 %v2762, %v2634
          %v2891 = vmax.f32 %v2763, %v2635
          %v2892 = vmax.f32 %v2764, %v2636
          %v2893 = vmax.f32 %v2765, %v2637
          %v2894 = vmax.f32 %v2766, %v2638
          %v2895 = vmax.f32 %v2767, %v2639
          %v2896 = vmax.f32 %v2768, %v2640
          %v2897 = vmax.f32 %v2769, %v2641
          %v2898 = vmax.f32 %v2770, %v2642
          %v2899 = vmax.f32 %v2771, %v2643
          %v2900 = vmax.f32 %v2772, %v2644
          %v2901 = vmax.f32 %v2773, %v2645
          %v2902 = vmax.f32 %v2774, %v2646
          %v2903 = vmax.f32 %v2775, %v2647
          %v2904 = vmax.f32 %v2776, %v2648
          %v2905 = vmax.f32 %v2777, %v2649
          %v2906 = vmax.f32 %v2778, %v2650
          %v2907 = vmax.f32 %v2779, %v2651
          %v2908 = vmax.f32 %v2780, %v2652
          %v2909 = vmax.f32 %v2781, %v2653
          %v2910 = vmax.f32 %v2782, %v2654
          %v2911 = vmax.f32 %v2783, %v2655
          %v2912 = vmax.f32 %v2784, %v2656
          %v2913 = vmax.f32 %v2785, %v2657
          %v2914 = vmax.f32 %v2786, %v2658
          %v2915 = vmax.f32 %v2787, %v2659
          %v2916 = vmax.f32 %v2788, %v2660
          %v2917 = vmax.f32 %v2789, %v2661
          %v2918 = vmax.f32 %v2790, %v2662
          %v2919 = vmax.f32 %v2791, %v2663
          %v2920 = vmax.f32 %v2792, %v2664
          %v2921 = vmax.f32 %v2793, %v2665
          %v2922 = vmax.f32 %v2794, %v2666
          %v2923 = vmax.f32 %v2795, %v2667
          %v2924 = vmax.f32 %v2796, %v2668
          %v2925 = vmax.f32 %v2797, %v2669
          %v2926 = vmax.f32 %v2798, %v2670
          %v2927 = vmax.f32 %v2799, %v2671
          %v2928 = vmax.f32 %v2800, %v2672
          %v2929 = vmax.f32 %v2801, %v2673
          %v2930 = vmax.f32 %v2802, %v2674
          %v2931 = vmax.f32 %v2803, %v2675
          %v2932 = vmax.f32 %v2804, %v2676
          %v2933 = vmax.f32 %v2805, %v2677
          %v2934 = vmax.f32 %v2806, %v2678
          %v2935 = vmax.f32 %v2807, %v2679
          %v2936 = vmax.f32 %v2808, %v2680
          %v2937 = vmax.f32 %v2809, %v2681
          %v2938 = vmax.f32 %v2810, %v2682
          %v2939 = vmax.f32 %v2811, %v2683
          %v2940 = vmax.f32 %v2812, %v2684
          %v2941 = vmax.f32 %v2813, %v2685
          %v2942 = vmax.f32 %v2814, %v2686
          %v2943 = vmax.f32 %v2815, %v2687
          %v2944 = vmax.f32 %v2816, %v2688
          %v2945 = vmax.f32 %v2817, %v2689
          %v2946 = vmax.f32 %v2818, %v2690
          %v2947 = vmax.f32 %v2819, %v2691
          %v2948 = vmax.f32 %v2820, %v2692
          %v2949 = vmax.f32 %v2821, %v2693
          %v2950 = vmax.f32 %v2822, %v2694
          %v2951 = vmax.f32 %v2823, %v2695
          %v2952 = vmax.f32 %v2824, %v2696
          %v2953 = vmax.f32 %v2825, %v2697
          %v2954 = vmax.f32 %v2826, %v2698
          %v2955 = vmax.f32 %v2827, %v2699
          %v2956 = vmax.f32 %v2828, %v2700
          %v2957 = vmax.f32 %v2829, %v2701
          %v2958 = vmax.f32 %v2830, %v2702
          %v2959 = vmax.f32 %v2831, %v2703
          %v2960 = vmax.f32 %v2832, %v2704
          %v2961 = vmax.f32 %v2833, %v2705
          %v2962 = vmax.f32 %v2834, %v2706
          %v2963 = vmax.f32 %v2835, %v2707
          %v2964 = vmax.f32 %v2836, %v2708
          %v2965 = vmax.f32 %v2837, %v2709
          %v2966 = vmax.f32 %v2838, %v2710
          %v2967 = vmax.f32 %v2839, %v2711
          %v2968 = vmax.f32 %v2840, %v2712
          %v2969 = vmax.f32 %v2841, %v2713
          %v2970 = vmax.f32 %v2842, %v2714
          %v2971 = vmax.f32 %v2843, %v2715
          %v2972 = vmax.f32 %v2844, %v2716
          %v2973 = vmax.f32 %v2845, %v2717
          %v2974 = vmax.f32 %v2846, %v2718
          %v2975 = vmax.f32 %v2847, %v2719
          %v2976 = vmax.f32 %v2848, %v2720
          %v2977 = vmax.f32 %v2849, %v2721
          %v2978 = vmax.f32 %v2850, %v2722
          %v2979 = vmax.f32 %v2851, %v2723
          %v2980 = vmax.f32 %v2852, %v2724
          %v2981 = vmax.f32 %v2853, %v2725
          %v2982 = vmax.f32 %v2854, %v2726
          %v2983 = vmax.f32 %v2855, %v2727
          %v2984 = vmax.f32 %v2856, %v2728
          %v2985 = vmax.f32 %v2857, %v2729
          %v2986 = vmax.f32 %v2858, %v2730
          %v2987 = vmax.f32 %v2859, %v2731
          %v2988 = vmax.f32 %v2860, %v2732
          %v2989 = vmax.f32 %v2861, %v2733
          %2990 = vst [vmem:[#allocation2] sm:$0xff] %v2862
          %2991 = vst [vmem:[#allocation2 + $0x8] sm:$0xff] %v2863
          %2992 = vst [vmem:[#allocation2 + $0x10] sm:$0xff] %v2864
          %2993 = vst [vmem:[#allocation2 + $0x18] sm:$0xff] %v2865
          %2994 = vst [vmem:[#allocation2 + $0x20] sm:$0xff] %v2866
          %2995 = vst [vmem:[#allocation2 + $0x28] sm:$0xff] %v2867
          %2996 = vst [vmem:[#allocation2 + $0x30] sm:$0xff] %v2868
          %2997 = vst [vmem:[#allocation2 + $0x38] sm:$0xff] %v2869
          %2998 = vst [vmem:[#allocation2 + $0x40] sm:$0xff] %v2870
          %2999 = vst [vmem:[#allocation2 + $0x48] sm:$0xff] %v2871
          %3000 = vst [vmem:[#allocation2 + $0x50] sm:$0xff] %v2872
          %3001 = vst [vmem:[#allocation2 + $0x58] sm:$0xff] %v2873
          %3002 = vst [vmem:[#allocation2 + $0x60] sm:$0xff] %v2874
          %3003 = vst [vmem:[#allocation2 + $0x68] sm:$0xff] %v2875
          %3004 = vst [vmem:[#allocation2 + $0x70] sm:$0xff] %v2876
          %3005 = vst [vmem:[#allocation2 + $0x78] sm:$0xff] %v2877
          %3006 = vst [vmem:[#allocation2 + $0x80] sm:$0xff] %v2878
          %3007 = vst [vmem:[#allocation2 + $0x88] sm:$0xff] %v2879
          %3008 = vst [vmem:[#allocation2 + $0x90] sm:$0xff] %v2880
          %3009 = vst [vmem:[#allocation2 + $0x98] sm:$0xff] %v2881
          %3010 = vst [vmem:[#allocation2 + $0xa0] sm:$0xff] %v2882
          %3011 = vst [vmem:[#allocation2 + $0xa8] sm:$0xff] %v2883
          %3012 = vst [vmem:[#allocation2 + $0xb0] sm:$0xff] %v2884
          %3013 = vst [vmem:[#allocation2 + $0xb8] sm:$0xff] %v2885
          %3014 = vst [vmem:[#allocation2 + $0xc0] sm:$0xff] %v2886
          %3015 = vst [vmem:[#allocation2 + $0xc8] sm:$0xff] %v2887
          %3016 = vst [vmem:[#allocation2 + $0xd0] sm:$0xff] %v2888
          %3017 = vst [vmem:[#allocation2 + $0xd8] sm:$0xff] %v2889
          %3018 = vst [vmem:[#allocation2 + $0xe0] sm:$0xff] %v2890
          %3019 = vst [vmem:[#allocation2 + $0xe8] sm:$0xff] %v2891
          %3020 = vst [vmem:[#allocation2 + $0xf0] sm:$0xff] %v2892
          %3021 = vst [vmem:[#allocation2 + $0xf8] sm:$0xff] %v2893
          %3022 = vst [vmem:[#allocation2 + $0x100] sm:$0xff] %v2894
          %3023 = vst [vmem:[#allocation2 + $0x108] sm:$0xff] %v2895
          %3024 = vst [vmem:[#allocation2 + $0x110] sm:$0xff] %v2896
          %3025 = vst [vmem:[#allocation2 + $0x118] sm:$0xff] %v2897
          %3026 = vst [vmem:[#allocation2 + $0x120] sm:$0xff] %v2898
          %3027 = vst [vmem:[#allocation2 + $0x128] sm:$0xff] %v2899
          %3028 = vst [vmem:[#allocation2 + $0x130] sm:$0xff] %v2900
          %3029 = vst [vmem:[#allocation2 + $0x138] sm:$0xff] %v2901
          %3030 = vst [vmem:[#allocation2 + $0x140] sm:$0xff] %v2902
          %3031 = vst [vmem:[#allocation2 + $0x148] sm:$0xff] %v2903
          %3032 = vst [vmem:[#allocation2 + $0x150] sm:$0xff] %v2904
          %3033 = vst [vmem:[#allocation2 + $0x158] sm:$0xff] %v2905
          %3034 = vst [vmem:[#allocation2 + $0x160] sm:$0xff] %v2906
          %3035 = vst [vmem:[#allocation2 + $0x168] sm:$0xff] %v2907
          %3036 = vst [vmem:[#allocation2 + $0x170] sm:$0xff] %v2908
          %3037 = vst [vmem:[#allocation2 + $0x178] sm:$0xff] %v2909
          %3038 = vst [vmem:[#allocation2 + $0x180] sm:$0xff] %v2910
          %3039 = vst [vmem:[#allocation2 + $0x188] sm:$0xff] %v2911
          %3040 = vst [vmem:[#allocation2 + $0x190] sm:$0xff] %v2912
          %3041 = vst [vmem:[#allocation2 + $0x198] sm:$0xff] %v2913
          %3042 = vst [vmem:[#allocation2 + $0x1a0] sm:$0xff] %v2914
          %3043 = vst [vmem:[#allocation2 + $0x1a8] sm:$0xff] %v2915
          %3044 = vst [vmem:[#allocation2 + $0x1b0] sm:$0xff] %v2916
          %3045 = vst [vmem:[#allocation2 + $0x1b8] sm:$0xff] %v2917
          %3046 = vst [vmem:[#allocation2 + $0x1c0] sm:$0xff] %v2918
          %3047 = vst [vmem:[#allocation2 + $0x1c8] sm:$0xff] %v2919
          %3048 = vst [vmem:[#allocation2 + $0x1d0] sm:$0xff] %v2920
          %3049 = vst [vmem:[#allocation2 + $0x1d8] sm:$0xff] %v2921
          %3050 = vst [vmem:[#allocation2 + $0x1e0] sm:$0xff] %v2922
          %3051 = vst [vmem:[#allocation2 + $0x1e8] sm:$0xff] %v2923
          %3052 = vst [vmem:[#allocation2 + $0x1f0] sm:$0xff] %v2924
          %3053 = vst [vmem:[#allocation2 + $0x1f8] sm:$0xff] %v2925
          %3054 = vst [vmem:[#allocation2 + $0x200] sm:$0xff] %v2926
          %3055 = vst [vmem:[#allocation2 + $0x208] sm:$0xff] %v2927
          %3056 = vst [vmem:[#allocation2 + $0x210] sm:$0xff] %v2928
          %3057 = vst [vmem:[#allocation2 + $0x218] sm:$0xff] %v2929
          %3058 = vst [vmem:[#allocation2 + $0x220] sm:$0xff] %v2930
          %3059 = vst [vmem:[#allocation2 + $0x228] sm:$0xff] %v2931
          %3060 = vst [vmem:[#allocation2 + $0x230] sm:$0xff] %v2932
          %3061 = vst [vmem:[#allocation2 + $0x238] sm:$0xff] %v2933
          %3062 = vst [vmem:[#allocation2 + $0x240] sm:$0xff] %v2934
          %3063 = vst [vmem:[#allocation2 + $0x248] sm:$0xff] %v2935
          %3064 = vst [vmem:[#allocation2 + $0x250] sm:$0xff] %v2936
          %3065 = vst [vmem:[#allocation2 + $0x258] sm:$0xff] %v2937
          %3066 = vst [vmem:[#allocation2 + $0x260] sm:$0xff] %v2938
          %3067 = vst [vmem:[#allocation2 + $0x268] sm:$0xff] %v2939
          %3068 = vst [vmem:[#allocation2 + $0x270] sm:$0xff] %v2940
          %3069 = vst [vmem:[#allocation2 + $0x278] sm:$0xff] %v2941
          %3070 = vst [vmem:[#allocation2 + $0x280] sm:$0xff] %v2942
          %3071 = vst [vmem:[#allocation2 + $0x288] sm:$0xff] %v2943
          %3072 = vst [vmem:[#allocation2 + $0x290] sm:$0xff] %v2944
          %3073 = vst [vmem:[#allocation2 + $0x298] sm:$0xff] %v2945
          %3074 = vst [vmem:[#allocation2 + $0x2a0] sm:$0xff] %v2946
          %3075 = vst [vmem:[#allocation2 + $0x2a8] sm:$0xff] %v2947
          %3076 = vst [vmem:[#allocation2 + $0x2b0] sm:$0xff] %v2948
          %3077 = vst [vmem:[#allocation2 + $0x2b8] sm:$0xff] %v2949
          %3078 = vst [vmem:[#allocation2 + $0x2c0] sm:$0xff] %v2950
          %3079 = vst [vmem:[#allocation2 + $0x2c8] sm:$0xff] %v2951
          %3080 = vst [vmem:[#allocation2 + $0x2d0] sm:$0xff] %v2952
          %3081 = vst [vmem:[#allocation2 + $0x2d8] sm:$0xff] %v2953
          %3082 = vst [vmem:[#allocation2 + $0x2e0] sm:$0xff] %v2954
          %3083 = vst [vmem:[#allocation2 + $0x2e8] sm:$0xff] %v2955
          %3084 = vst [vmem:[#allocation2 + $0x2f0] sm:$0xff] %v2956
          %3085 = vst [vmem:[#allocation2 + $0x2f8] sm:$0xff] %v2957
          %3086 = vst [vmem:[#allocation2 + $0x300] sm:$0xff] %v2958
          %3087 = vst [vmem:[#allocation2 + $0x308] sm:$0xff] %v2959
          %3088 = vst [vmem:[#allocation2 + $0x310] sm:$0xff] %v2960
          %3089 = vst [vmem:[#allocation2 + $0x318] sm:$0xff] %v2961
          %3090 = vst [vmem:[#allocation2 + $0x320] sm:$0xff] %v2962
          %3091 = vst [vmem:[#allocation2 + $0x328] sm:$0xff] %v2963
          %3092 = vst [vmem:[#allocation2 + $0x330] sm:$0xff] %v2964
          %3093 = vst [vmem:[#allocation2 + $0x338] sm:$0xff] %v2965
          %3094 = vst [vmem:[#allocation2 + $0x340] sm:$0xff] %v2966
          %3095 = vst [vmem:[#allocation2 + $0x348] sm:$0xff] %v2967
          %3096 = vst [vmem:[#allocation2 + $0x350] sm:$0xff] %v2968
          %3097 = vst [vmem:[#allocation2 + $0x358] sm:$0xff] %v2969
          %3098 = vst [vmem:[#allocation2 + $0x360] sm:$0xff] %v2970
          %3099 = vst [vmem:[#allocation2 + $0x368] sm:$0xff] %v2971
          %3100 = vst [vmem:[#allocation2 + $0x370] sm:$0xff] %v2972
          %3101 = vst [vmem:[#allocation2 + $0x378] sm:$0xff] %v2973
          %3102 = vst [vmem:[#allocation2 + $0x380] sm:$0xff] %v2974
          %3103 = vst [vmem:[#allocation2 + $0x388] sm:$0xff] %v2975
          %3104 = vst [vmem:[#allocation2 + $0x390] sm:$0xff] %v2976
          %3105 = vst [vmem:[#allocation2 + $0x398] sm:$0xff] %v2977
          %3106 = vst [vmem:[#allocation2 + $0x3a0] sm:$0xff] %v2978
          %3107 = vst [vmem:[#allocation2 + $0x3a8] sm:$0xff] %v2979
          %3108 = vst [vmem:[#allocation2 + $0x3b0] sm:$0xff] %v2980
          %3109 = vst [vmem:[#allocation2 + $0x3b8] sm:$0xff] %v2981
          %3110 = vst [vmem:[#allocation2 + $0x3c0] sm:$0xff] %v2982
          %3111 = vst [vmem:[#allocation2 + $0x3c8] sm:$0xff] %v2983
          %3112 = vst [vmem:[#allocation2 + $0x3d0] sm:$0xff] %v2984
          %3113 = vst [vmem:[#allocation2 + $0x3d8] sm:$0xff] %v2985
          %3114 = vst [vmem:[#allocation2 + $0x3e0] sm:$0xff] %v2986
          %3115 = vst [vmem:[#allocation2 + $0x3e8] sm:$0xff] %v2987
          %3116 = vst [vmem:[#allocation2 + $0x3f0] sm:$0xff] %v2988
          %3117 = vst [vmem:[#allocation2 + $0x3f8] sm:$0xff] %v2989
          %v3118 = vld [vmem:[#allocation2] sm:$0xff]
          %v3119 = vld [vmem:[#allocation2 + $0x8] sm:$0xff]
          %v3120 = vld [vmem:[#allocation2 + $0x10] sm:$0xff]
          %v3121 = vld [vmem:[#allocation2 + $0x18] sm:$0xff]
          %v3122 = vld [vmem:[#allocation2 + $0x20] sm:$0xff]
          %v3123 = vld [vmem:[#allocation2 + $0x28] sm:$0xff]
          %v3124 = vld [vmem:[#allocation2 + $0x30] sm:$0xff]
          %v3125 = vld [vmem:[#allocation2 + $0x38] sm:$0xff]
          %v3126 = vld [vmem:[#allocation2 + $0x40] sm:$0xff]
          %v3127 = vld [vmem:[#allocation2 + $0x48] sm:$0xff]
          %v3128 = vld [vmem:[#allocation2 + $0x50] sm:$0xff]
          %v3129 = vld [vmem:[#allocation2 + $0x58] sm:$0xff]
          %v3130 = vld [vmem:[#allocation2 + $0x60] sm:$0xff]
          %v3131 = vld [vmem:[#allocation2 + $0x68] sm:$0xff]
          %v3132 = vld [vmem:[#allocation2 + $0x70] sm:$0xff]
          %v3133 = vld [vmem:[#allocation2 + $0x78] sm:$0xff]
          %v3134 = vld [vmem:[#allocation2 + $0x80] sm:$0xff]
          %v3135 = vld [vmem:[#allocation2 + $0x88] sm:$0xff]
          %v3136 = vld [vmem:[#allocation2 + $0x90] sm:$0xff]
          %v3137 = vld [vmem:[#allocation2 + $0x98] sm:$0xff]
          %v3138 = vld [vmem:[#allocation2 + $0xa0] sm:$0xff]
          %v3139 = vld [vmem:[#allocation2 + $0xa8] sm:$0xff]
          %v3140 = vld [vmem:[#allocation2 + $0xb0] sm:$0xff]
          %v3141 = vld [vmem:[#allocation2 + $0xb8] sm:$0xff]
          %v3142 = vld [vmem:[#allocation2 + $0xc0] sm:$0xff]
          %v3143 = vld [vmem:[#allocation2 + $0xc8] sm:$0xff]
          %v3144 = vld [vmem:[#allocation2 + $0xd0] sm:$0xff]
          %v3145 = vld [vmem:[#allocation2 + $0xd8] sm:$0xff]
          %v3146 = vld [vmem:[#allocation2 + $0xe0] sm:$0xff]
          %v3147 = vld [vmem:[#allocation2 + $0xe8] sm:$0xff]
          %v3148 = vld [vmem:[#allocation2 + $0xf0] sm:$0xff]
          %v3149 = vld [vmem:[#allocation2 + $0xf8] sm:$0xff]
          %v3150 = vld [vmem:[#allocation2 + $0x100] sm:$0xff]
          %v3151 = vld [vmem:[#allocation2 + $0x108] sm:$0xff]
          %v3152 = vld [vmem:[#allocation2 + $0x110] sm:$0xff]
          %v3153 = vld [vmem:[#allocation2 + $0x118] sm:$0xff]
          %v3154 = vld [vmem:[#allocation2 + $0x120] sm:$0xff]
          %v3155 = vld [vmem:[#allocation2 + $0x128] sm:$0xff]
          %v3156 = vld [vmem:[#allocation2 + $0x130] sm:$0xff]
          %v3157 = vld [vmem:[#allocation2 + $0x138] sm:$0xff]
          %v3158 = vld [vmem:[#allocation2 + $0x140] sm:$0xff]
          %v3159 = vld [vmem:[#allocation2 + $0x148] sm:$0xff]
          %v3160 = vld [vmem:[#allocation2 + $0x150] sm:$0xff]
          %v3161 = vld [vmem:[#allocation2 + $0x158] sm:$0xff]
          %v3162 = vld [vmem:[#allocation2 + $0x160] sm:$0xff]
          %v3163 = vld [vmem:[#allocation2 + $0x168] sm:$0xff]
          %v3164 = vld [vmem:[#allocation2 + $0x170] sm:$0xff]
          %v3165 = vld [vmem:[#allocation2 + $0x178] sm:$0xff]
          %v3166 = vld [vmem:[#allocation2 + $0x180] sm:$0xff]
          %v3167 = vld [vmem:[#allocation2 + $0x188] sm:$0xff]
          %v3168 = vld [vmem:[#allocation2 + $0x190] sm:$0xff]
          %v3169 = vld [vmem:[#allocation2 + $0x198] sm:$0xff]
          %v3170 = vld [vmem:[#allocation2 + $0x1a0] sm:$0xff]
          %v3171 = vld [vmem:[#allocation2 + $0x1a8] sm:$0xff]
          %v3172 = vld [vmem:[#allocation2 + $0x1b0] sm:$0xff]
          %v3173 = vld [vmem:[#allocation2 + $0x1b8] sm:$0xff]
          %v3174 = vld [vmem:[#allocation2 + $0x1c0] sm:$0xff]
          %v3175 = vld [vmem:[#allocation2 + $0x1c8] sm:$0xff]
          %v3176 = vld [vmem:[#allocation2 + $0x1d0] sm:$0xff]
          %v3177 = vld [vmem:[#allocation2 + $0x1d8] sm:$0xff]
          %v3178 = vld [vmem:[#allocation2 + $0x1e0] sm:$0xff]
          %v3179 = vld [vmem:[#allocation2 + $0x1e8] sm:$0xff]
          %v3180 = vld [vmem:[#allocation2 + $0x1f0] sm:$0xff]
          %v3181 = vld [vmem:[#allocation2 + $0x1f8] sm:$0xff]
          %v3182 = vld [vmem:[#allocation2 + $0x200] sm:$0xff]
          %v3183 = vld [vmem:[#allocation2 + $0x208] sm:$0xff]
          %v3184 = vld [vmem:[#allocation2 + $0x210] sm:$0xff]
          %v3185 = vld [vmem:[#allocation2 + $0x218] sm:$0xff]
          %v3186 = vld [vmem:[#allocation2 + $0x220] sm:$0xff]
          %v3187 = vld [vmem:[#allocation2 + $0x228] sm:$0xff]
          %v3188 = vld [vmem:[#allocation2 + $0x230] sm:$0xff]
          %v3189 = vld [vmem:[#allocation2 + $0x238] sm:$0xff]
          %v3190 = vld [vmem:[#allocation2 + $0x240] sm:$0xff]
          %v3191 = vld [vmem:[#allocation2 + $0x248] sm:$0xff]
          %v3192 = vld [vmem:[#allocation2 + $0x250] sm:$0xff]
          %v3193 = vld [vmem:[#allocation2 + $0x258] sm:$0xff]
          %v3194 = vld [vmem:[#allocation2 + $0x260] sm:$0xff]
          %v3195 = vld [vmem:[#allocation2 + $0x268] sm:$0xff]
          %v3196 = vld [vmem:[#allocation2 + $0x270] sm:$0xff]
          %v3197 = vld [vmem:[#allocation2 + $0x278] sm:$0xff]
          %v3198 = vld [vmem:[#allocation2 + $0x280] sm:$0xff]
          %v3199 = vld [vmem:[#allocation2 + $0x288] sm:$0xff]
          %v3200 = vld [vmem:[#allocation2 + $0x290] sm:$0xff]
          %v3201 = vld [vmem:[#allocation2 + $0x298] sm:$0xff]
          %v3202 = vld [vmem:[#allocation2 + $0x2a0] sm:$0xff]
          %v3203 = vld [vmem:[#allocation2 + $0x2a8] sm:$0xff]
          %v3204 = vld [vmem:[#allocation2 + $0x2b0] sm:$0xff]
          %v3205 = vld [vmem:[#allocation2 + $0x2b8] sm:$0xff]
          %v3206 = vld [vmem:[#allocation2 + $0x2c0] sm:$0xff]
          %v3207 = vld [vmem:[#allocation2 + $0x2c8] sm:$0xff]
          %v3208 = vld [vmem:[#allocation2 + $0x2d0] sm:$0xff]
          %v3209 = vld [vmem:[#allocation2 + $0x2d8] sm:$0xff]
          %v3210 = vld [vmem:[#allocation2 + $0x2e0] sm:$0xff]
          %v3211 = vld [vmem:[#allocation2 + $0x2e8] sm:$0xff]
          %v3212 = vld [vmem:[#allocation2 + $0x2f0] sm:$0xff]
          %v3213 = vld [vmem:[#allocation2 + $0x2f8] sm:$0xff]
          %v3214 = vld [vmem:[#allocation2 + $0x300] sm:$0xff]
          %v3215 = vld [vmem:[#allocation2 + $0x308] sm:$0xff]
          %v3216 = vld [vmem:[#allocation2 + $0x310] sm:$0xff]
          %v3217 = vld [vmem:[#allocation2 + $0x318] sm:$0xff]
          %v3218 = vld [vmem:[#allocation2 + $0x320] sm:$0xff]
          %v3219 = vld [vmem:[#allocation2 + $0x328] sm:$0xff]
          %v3220 = vld [vmem:[#allocation2 + $0x330] sm:$0xff]
          %v3221 = vld [vmem:[#allocation2 + $0x338] sm:$0xff]
          %v3222 = vld [vmem:[#allocation2 + $0x340] sm:$0xff]
          %v3223 = vld [vmem:[#allocation2 + $0x348] sm:$0xff]
          %v3224 = vld [vmem:[#allocation2 + $0x350] sm:$0xff]
          %v3225 = vld [vmem:[#allocation2 + $0x358] sm:$0xff]
          %v3226 = vld [vmem:[#allocation2 + $0x360] sm:$0xff]
          %v3227 = vld [vmem:[#allocation2 + $0x368] sm:$0xff]
          %v3228 = vld [vmem:[#allocation2 + $0x370] sm:$0xff]
          %v3229 = vld [vmem:[#allocation2 + $0x378] sm:$0xff]
          %v3230 = vld [vmem:[#allocation2 + $0x380] sm:$0xff]
          %v3231 = vld [vmem:[#allocation2 + $0x388] sm:$0xff]
          %v3232 = vld [vmem:[#allocation2 + $0x390] sm:$0xff]
          %v3233 = vld [vmem:[#allocation2 + $0x398] sm:$0xff]
          %v3234 = vld [vmem:[#allocation2 + $0x3a0] sm:$0xff]
          %v3235 = vld [vmem:[#allocation2 + $0x3a8] sm:$0xff]
          %v3236 = vld [vmem:[#allocation2 + $0x3b0] sm:$0xff]
          %v3237 = vld [vmem:[#allocation2 + $0x3b8] sm:$0xff]
          %v3238 = vld [vmem:[#allocation2 + $0x3c0] sm:$0xff]
          %v3239 = vld [vmem:[#allocation2 + $0x3c8] sm:$0xff]
          %v3240 = vld [vmem:[#allocation2 + $0x3d0] sm:$0xff]
          %v3241 = vld [vmem:[#allocation2 + $0x3d8] sm:$0xff]
          %v3242 = vld [vmem:[#allocation2 + $0x3e0] sm:$0xff]
          %v3243 = vld [vmem:[#allocation2 + $0x3e8] sm:$0xff]
          %v3244 = vld [vmem:[#allocation2 + $0x3f0] sm:$0xff]
          %v3245 = vld [vmem:[#allocation2 + $0x3f8] sm:$0xff]
          %3246 = vmax.xlane.f32.xlu0 %v3118
          %v3247 = vpop.xlane.xlu0 %3246
          %3248 = vmax.xlane.f32.xlu0 %v3119
          %v3249 = vpop.xlane.xlu0 %3248
          %3250 = vmax.xlane.f32.xlu0 %v3120
          %v3251 = vpop.xlane.xlu0 %3250
          %3252 = vmax.xlane.f32.xlu0 %v3121
          %v3253 = vpop.xlane.xlu0 %3252
          %3254 = vmax.xlane.f32.xlu0 %v3122
          %v3255 = vpop.xlane.xlu0 %3254
          %3256 = vmax.xlane.f32.xlu0 %v3123
          %v3257 = vpop.xlane.xlu0 %3256
          %3258 = vmax.xlane.f32.xlu0 %v3124
          %v3259 = vpop.xlane.xlu0 %3258
          %3260 = vmax.xlane.f32.xlu0 %v3125
          %v3261 = vpop.xlane.xlu0 %3260
          %3262 = vmax.xlane.f32.xlu0 %v3126
          %v3263 = vpop.xlane.xlu0 %3262
          %3264 = vmax.xlane.f32.xlu0 %v3127
          %v3265 = vpop.xlane.xlu0 %3264
          %3266 = vmax.xlane.f32.xlu0 %v3128
          %v3267 = vpop.xlane.xlu0 %3266
          %3268 = vmax.xlane.f32.xlu0 %v3129
          %v3269 = vpop.xlane.xlu0 %3268
          %3270 = vmax.xlane.f32.xlu0 %v3130
          %v3271 = vpop.xlane.xlu0 %3270
          %3272 = vmax.xlane.f32.xlu0 %v3131
          %v3273 = vpop.xlane.xlu0 %3272
          %3274 = vmax.xlane.f32.xlu0 %v3132
          %v3275 = vpop.xlane.xlu0 %3274
          %3276 = vmax.xlane.f32.xlu0 %v3133
          %v3277 = vpop.xlane.xlu0 %3276
          %3278 = vmax.xlane.f32.xlu0 %v3134
          %v3279 = vpop.xlane.xlu0 %3278
          %3280 = vmax.xlane.f32.xlu0 %v3135
          %v3281 = vpop.xlane.xlu0 %3280
          %3282 = vmax.xlane.f32.xlu0 %v3136
          %v3283 = vpop.xlane.xlu0 %3282
          %3284 = vmax.xlane.f32.xlu0 %v3137
          %v3285 = vpop.xlane.xlu0 %3284
          %3286 = vmax.xlane.f32.xlu0 %v3138
          %v3287 = vpop.xlane.xlu0 %3286
          %3288 = vmax.xlane.f32.xlu0 %v3139
          %v3289 = vpop.xlane.xlu0 %3288
          %3290 = vmax.xlane.f32.xlu0 %v3140
          %v3291 = vpop.xlane.xlu0 %3290
          %3292 = vmax.xlane.f32.xlu0 %v3141
          %v3293 = vpop.xlane.xlu0 %3292
          %3294 = vmax.xlane.f32.xlu0 %v3142
          %v3295 = vpop.xlane.xlu0 %3294
          %3296 = vmax.xlane.f32.xlu0 %v3143
          %v3297 = vpop.xlane.xlu0 %3296
          %3298 = vmax.xlane.f32.xlu0 %v3144
          %v3299 = vpop.xlane.xlu0 %3298
          %3300 = vmax.xlane.f32.xlu0 %v3145
          %v3301 = vpop.xlane.xlu0 %3300
          %3302 = vmax.xlane.f32.xlu0 %v3146
          %v3303 = vpop.xlane.xlu0 %3302
          %3304 = vmax.xlane.f32.xlu0 %v3147
          %v3305 = vpop.xlane.xlu0 %3304
          %3306 = vmax.xlane.f32.xlu0 %v3148
          %v3307 = vpop.xlane.xlu0 %3306
          %3308 = vmax.xlane.f32.xlu0 %v3149
          %v3309 = vpop.xlane.xlu0 %3308
          %3310 = vmax.xlane.f32.xlu0 %v3150
          %v3311 = vpop.xlane.xlu0 %3310
          %3312 = vmax.xlane.f32.xlu0 %v3151
          %v3313 = vpop.xlane.xlu0 %3312
          %3314 = vmax.xlane.f32.xlu0 %v3152
          %v3315 = vpop.xlane.xlu0 %3314
          %3316 = vmax.xlane.f32.xlu0 %v3153
          %v3317 = vpop.xlane.xlu0 %3316
          %3318 = vmax.xlane.f32.xlu0 %v3154
          %v3319 = vpop.xlane.xlu0 %3318
          %3320 = vmax.xlane.f32.xlu0 %v3155
          %v3321 = vpop.xlane.xlu0 %3320
          %3322 = vmax.xlane.f32.xlu0 %v3156
          %v3323 = vpop.xlane.xlu0 %3322
          %3324 = vmax.xlane.f32.xlu0 %v3157
          %v3325 = vpop.xlane.xlu0 %3324
          %3326 = vmax.xlane.f32.xlu0 %v3158
          %v3327 = vpop.xlane.xlu0 %3326
          %3328 = vmax.xlane.f32.xlu0 %v3159
          %v3329 = vpop.xlane.xlu0 %3328
          %3330 = vmax.xlane.f32.xlu0 %v3160
          %v3331 = vpop.xlane.xlu0 %3330
          %3332 = vmax.xlane.f32.xlu0 %v3161
          %v3333 = vpop.xlane.xlu0 %3332
          %3334 = vmax.xlane.f32.xlu0 %v3162
          %v3335 = vpop.xlane.xlu0 %3334
          %3336 = vmax.xlane.f32.xlu0 %v3163
          %v3337 = vpop.xlane.xlu0 %3336
          %3338 = vmax.xlane.f32.xlu0 %v3164
          %v3339 = vpop.xlane.xlu0 %3338
          %3340 = vmax.xlane.f32.xlu0 %v3165
          %v3341 = vpop.xlane.xlu0 %3340
          %3342 = vmax.xlane.f32.xlu0 %v3166
          %v3343 = vpop.xlane.xlu0 %3342
          %3344 = vmax.xlane.f32.xlu0 %v3167
          %v3345 = vpop.xlane.xlu0 %3344
          %3346 = vmax.xlane.f32.xlu0 %v3168
          %v3347 = vpop.xlane.xlu0 %3346
          %3348 = vmax.xlane.f32.xlu0 %v3169
          %v3349 = vpop.xlane.xlu0 %3348
          %3350 = vmax.xlane.f32.xlu0 %v3170
          %v3351 = vpop.xlane.xlu0 %3350
          %3352 = vmax.xlane.f32.xlu0 %v3171
          %v3353 = vpop.xlane.xlu0 %3352
          %3354 = vmax.xlane.f32.xlu0 %v3172
          %v3355 = vpop.xlane.xlu0 %3354
          %3356 = vmax.xlane.f32.xlu0 %v3173
          %v3357 = vpop.xlane.xlu0 %3356
          %3358 = vmax.xlane.f32.xlu0 %v3174
          %v3359 = vpop.xlane.xlu0 %3358
          %3360 = vmax.xlane.f32.xlu0 %v3175
          %v3361 = vpop.xlane.xlu0 %3360
          %3362 = vmax.xlane.f32.xlu0 %v3176
          %v3363 = vpop.xlane.xlu0 %3362
          %3364 = vmax.xlane.f32.xlu0 %v3177
          %v3365 = vpop.xlane.xlu0 %3364
          %3366 = vmax.xlane.f32.xlu0 %v3178
          %v3367 = vpop.xlane.xlu0 %3366
          %3368 = vmax.xlane.f32.xlu0 %v3179
          %v3369 = vpop.xlane.xlu0 %3368
          %3370 = vmax.xlane.f32.xlu0 %v3180
          %v3371 = vpop.xlane.xlu0 %3370
          %3372 = vmax.xlane.f32.xlu0 %v3181
          %v3373 = vpop.xlane.xlu0 %3372
          %3374 = vmax.xlane.f32.xlu0 %v3182
          %v3375 = vpop.xlane.xlu0 %3374
          %3376 = vmax.xlane.f32.xlu0 %v3183
          %v3377 = vpop.xlane.xlu0 %3376
          %3378 = vmax.xlane.f32.xlu0 %v3184
          %v3379 = vpop.xlane.xlu0 %3378
          %3380 = vmax.xlane.f32.xlu0 %v3185
          %v3381 = vpop.xlane.xlu0 %3380
          %3382 = vmax.xlane.f32.xlu0 %v3186
          %v3383 = vpop.xlane.xlu0 %3382
          %3384 = vmax.xlane.f32.xlu0 %v3187
          %v3385 = vpop.xlane.xlu0 %3384
          %3386 = vmax.xlane.f32.xlu0 %v3188
          %v3387 = vpop.xlane.xlu0 %3386
          %3388 = vmax.xlane.f32.xlu0 %v3189
          %v3389 = vpop.xlane.xlu0 %3388
          %3390 = vmax.xlane.f32.xlu0 %v3190
          %v3391 = vpop.xlane.xlu0 %3390
          %3392 = vmax.xlane.f32.xlu0 %v3191
          %v3393 = vpop.xlane.xlu0 %3392
          %3394 = vmax.xlane.f32.xlu0 %v3192
          %v3395 = vpop.xlane.xlu0 %3394
          %3396 = vmax.xlane.f32.xlu0 %v3193
          %v3397 = vpop.xlane.xlu0 %3396
          %3398 = vmax.xlane.f32.xlu0 %v3194
          %v3399 = vpop.xlane.xlu0 %3398
          %3400 = vmax.xlane.f32.xlu0 %v3195
          %v3401 = vpop.xlane.xlu0 %3400
          %3402 = vmax.xlane.f32.xlu0 %v3196
          %v3403 = vpop.xlane.xlu0 %3402
          %3404 = vmax.xlane.f32.xlu0 %v3197
          %v3405 = vpop.xlane.xlu0 %3404
          %3406 = vmax.xlane.f32.xlu0 %v3198
          %v3407 = vpop.xlane.xlu0 %3406
          %3408 = vmax.xlane.f32.xlu0 %v3199
          %v3409 = vpop.xlane.xlu0 %3408
          %3410 = vmax.xlane.f32.xlu0 %v3200
          %v3411 = vpop.xlane.xlu0 %3410
          %3412 = vmax.xlane.f32.xlu0 %v3201
          %v3413 = vpop.xlane.xlu0 %3412
          %3414 = vmax.xlane.f32.xlu0 %v3202
          %v3415 = vpop.xlane.xlu0 %3414
          %3416 = vmax.xlane.f32.xlu0 %v3203
          %v3417 = vpop.xlane.xlu0 %3416
          %3418 = vmax.xlane.f32.xlu0 %v3204
          %v3419 = vpop.xlane.xlu0 %3418
          %3420 = vmax.xlane.f32.xlu0 %v3205
          %v3421 = vpop.xlane.xlu0 %3420
          %3422 = vmax.xlane.f32.xlu0 %v3206
          %v3423 = vpop.xlane.xlu0 %3422
          %3424 = vmax.xlane.f32.xlu0 %v3207
          %v3425 = vpop.xlane.xlu0 %3424
          %3426 = vmax.xlane.f32.xlu0 %v3208
          %v3427 = vpop.xlane.xlu0 %3426
          %3428 = vmax.xlane.f32.xlu0 %v3209
          %v3429 = vpop.xlane.xlu0 %3428
          %3430 = vmax.xlane.f32.xlu0 %v3210
          %v3431 = vpop.xlane.xlu0 %3430
          %3432 = vmax.xlane.f32.xlu0 %v3211
          %v3433 = vpop.xlane.xlu0 %3432
          %3434 = vmax.xlane.f32.xlu0 %v3212
          %v3435 = vpop.xlane.xlu0 %3434
          %3436 = vmax.xlane.f32.xlu0 %v3213
          %v3437 = vpop.xlane.xlu0 %3436
          %3438 = vmax.xlane.f32.xlu0 %v3214
          %v3439 = vpop.xlane.xlu0 %3438
          %3440 = vmax.xlane.f32.xlu0 %v3215
          %v3441 = vpop.xlane.xlu0 %3440
          %3442 = vmax.xlane.f32.xlu0 %v3216
          %v3443 = vpop.xlane.xlu0 %3442
          %3444 = vmax.xlane.f32.xlu0 %v3217
          %v3445 = vpop.xlane.xlu0 %3444
          %3446 = vmax.xlane.f32.xlu0 %v3218
          %v3447 = vpop.xlane.xlu0 %3446
          %3448 = vmax.xlane.f32.xlu0 %v3219
          %v3449 = vpop.xlane.xlu0 %3448
          %3450 = vmax.xlane.f32.xlu0 %v3220
          %v3451 = vpop.xlane.xlu0 %3450
          %3452 = vmax.xlane.f32.xlu0 %v3221
          %v3453 = vpop.xlane.xlu0 %3452
          %3454 = vmax.xlane.f32.xlu0 %v3222
          %v3455 = vpop.xlane.xlu0 %3454
          %3456 = vmax.xlane.f32.xlu0 %v3223
          %v3457 = vpop.xlane.xlu0 %3456
          %3458 = vmax.xlane.f32.xlu0 %v3224
          %v3459 = vpop.xlane.xlu0 %3458
          %3460 = vmax.xlane.f32.xlu0 %v3225
          %v3461 = vpop.xlane.xlu0 %3460
          %3462 = vmax.xlane.f32.xlu0 %v3226
          %v3463 = vpop.xlane.xlu0 %3462
          %3464 = vmax.xlane.f32.xlu0 %v3227
          %v3465 = vpop.xlane.xlu0 %3464
          %3466 = vmax.xlane.f32.xlu0 %v3228
          %v3467 = vpop.xlane.xlu0 %3466
          %3468 = vmax.xlane.f32.xlu0 %v3229
          %v3469 = vpop.xlane.xlu0 %3468
          %3470 = vmax.xlane.f32.xlu0 %v3230
          %v3471 = vpop.xlane.xlu0 %3470
          %3472 = vmax.xlane.f32.xlu0 %v3231
          %v3473 = vpop.xlane.xlu0 %3472
          %3474 = vmax.xlane.f32.xlu0 %v3232
          %v3475 = vpop.xlane.xlu0 %3474
          %3476 = vmax.xlane.f32.xlu0 %v3233
          %v3477 = vpop.xlane.xlu0 %3476
          %3478 = vmax.xlane.f32.xlu0 %v3234
          %v3479 = vpop.xlane.xlu0 %3478
          %3480 = vmax.xlane.f32.xlu0 %v3235
          %v3481 = vpop.xlane.xlu0 %3480
          %3482 = vmax.xlane.f32.xlu0 %v3236
          %v3483 = vpop.xlane.xlu0 %3482
          %3484 = vmax.xlane.f32.xlu0 %v3237
          %v3485 = vpop.xlane.xlu0 %3484
          %3486 = vmax.xlane.f32.xlu0 %v3238
          %v3487 = vpop.xlane.xlu0 %3486
          %3488 = vmax.xlane.f32.xlu0 %v3239
          %v3489 = vpop.xlane.xlu0 %3488
          %3490 = vmax.xlane.f32.xlu0 %v3240
          %v3491 = vpop.xlane.xlu0 %3490
          %3492 = vmax.xlane.f32.xlu0 %v3241
          %v3493 = vpop.xlane.xlu0 %3492
          %3494 = vmax.xlane.f32.xlu0 %v3242
          %v3495 = vpop.xlane.xlu0 %3494
          %3496 = vmax.xlane.f32.xlu0 %v3243
          %v3497 = vpop.xlane.xlu0 %3496
          %3498 = vmax.xlane.f32.xlu0 %v3244
          %v3499 = vpop.xlane.xlu0 %3498
          %3500 = vmax.xlane.f32.xlu0 %v3245
          %v3501 = vpop.xlane.xlu0 %3500
          %v3502 = vld [vmem:[%s6] sm:$0xff]
          %v3503 = vld [vmem:[%s6 + $0x8] sm:$0xff]
          %v3504 = vld [vmem:[%s6 + $0x10] sm:$0xff]
          %v3505 = vld [vmem:[%s6 + $0x18] sm:$0xff]
          %v3506 = vld [vmem:[%s6 + $0x20] sm:$0xff]
          %v3507 = vld [vmem:[%s6 + $0x28] sm:$0xff]
          %v3508 = vld [vmem:[%s6 + $0x30] sm:$0xff]
          %v3509 = vld [vmem:[%s6 + $0x38] sm:$0xff]
          %v3510 = vld [vmem:[%s6 + $0x40] sm:$0xff]
          %v3511 = vld [vmem:[%s6 + $0x48] sm:$0xff]
          %v3512 = vld [vmem:[%s6 + $0x50] sm:$0xff]
          %v3513 = vld [vmem:[%s6 + $0x58] sm:$0xff]
          %v3514 = vld [vmem:[%s6 + $0x60] sm:$0xff]
          %v3515 = vld [vmem:[%s6 + $0x68] sm:$0xff]
          %v3516 = vld [vmem:[%s6 + $0x70] sm:$0xff]
          %v3517 = vld [vmem:[%s6 + $0x78] sm:$0xff]
          %v3518 = vld [vmem:[%s6 + $0x80] sm:$0xff]
          %v3519 = vld [vmem:[%s6 + $0x88] sm:$0xff]
          %v3520 = vld [vmem:[%s6 + $0x90] sm:$0xff]
          %v3521 = vld [vmem:[%s6 + $0x98] sm:$0xff]
          %v3522 = vld [vmem:[%s6 + $0xa0] sm:$0xff]
          %v3523 = vld [vmem:[%s6 + $0xa8] sm:$0xff]
          %v3524 = vld [vmem:[%s6 + $0xb0] sm:$0xff]
          %v3525 = vld [vmem:[%s6 + $0xb8] sm:$0xff]
          %v3526 = vld [vmem:[%s6 + $0xc0] sm:$0xff]
          %v3527 = vld [vmem:[%s6 + $0xc8] sm:$0xff]
          %v3528 = vld [vmem:[%s6 + $0xd0] sm:$0xff]
          %v3529 = vld [vmem:[%s6 + $0xd8] sm:$0xff]
          %v3530 = vld [vmem:[%s6 + $0xe0] sm:$0xff]
          %v3531 = vld [vmem:[%s6 + $0xe8] sm:$0xff]
          %v3532 = vld [vmem:[%s6 + $0xf0] sm:$0xff]
          %v3533 = vld [vmem:[%s6 + $0xf8] sm:$0xff]
          %v3534 = vld [vmem:[%s6 + $0x100] sm:$0xff]
          %v3535 = vld [vmem:[%s6 + $0x108] sm:$0xff]
          %v3536 = vld [vmem:[%s6 + $0x110] sm:$0xff]
          %v3537 = vld [vmem:[%s6 + $0x118] sm:$0xff]
          %v3538 = vld [vmem:[%s6 + $0x120] sm:$0xff]
          %v3539 = vld [vmem:[%s6 + $0x128] sm:$0xff]
          %v3540 = vld [vmem:[%s6 + $0x130] sm:$0xff]
          %v3541 = vld [vmem:[%s6 + $0x138] sm:$0xff]
          %v3542 = vld [vmem:[%s6 + $0x140] sm:$0xff]
          %v3543 = vld [vmem:[%s6 + $0x148] sm:$0xff]
          %v3544 = vld [vmem:[%s6 + $0x150] sm:$0xff]
          %v3545 = vld [vmem:[%s6 + $0x158] sm:$0xff]
          %v3546 = vld [vmem:[%s6 + $0x160] sm:$0xff]
          %v3547 = vld [vmem:[%s6 + $0x168] sm:$0xff]
          %v3548 = vld [vmem:[%s6 + $0x170] sm:$0xff]
          %v3549 = vld [vmem:[%s6 + $0x178] sm:$0xff]
          %v3550 = vld [vmem:[%s6 + $0x180] sm:$0xff]
          %v3551 = vld [vmem:[%s6 + $0x188] sm:$0xff]
          %v3552 = vld [vmem:[%s6 + $0x190] sm:$0xff]
          %v3553 = vld [vmem:[%s6 + $0x198] sm:$0xff]
          %v3554 = vld [vmem:[%s6 + $0x1a0] sm:$0xff]
          %v3555 = vld [vmem:[%s6 + $0x1a8] sm:$0xff]
          %v3556 = vld [vmem:[%s6 + $0x1b0] sm:$0xff]
          %v3557 = vld [vmem:[%s6 + $0x1b8] sm:$0xff]
          %v3558 = vld [vmem:[%s6 + $0x1c0] sm:$0xff]
          %v3559 = vld [vmem:[%s6 + $0x1c8] sm:$0xff]
          %v3560 = vld [vmem:[%s6 + $0x1d0] sm:$0xff]
          %v3561 = vld [vmem:[%s6 + $0x1d8] sm:$0xff]
          %v3562 = vld [vmem:[%s6 + $0x1e0] sm:$0xff]
          %v3563 = vld [vmem:[%s6 + $0x1e8] sm:$0xff]
          %v3564 = vld [vmem:[%s6 + $0x1f0] sm:$0xff]
          %v3565 = vld [vmem:[%s6 + $0x1f8] sm:$0xff]
          %v3566 = vld [vmem:[%s6 + $0x200] sm:$0xff]
          %v3567 = vld [vmem:[%s6 + $0x208] sm:$0xff]
          %v3568 = vld [vmem:[%s6 + $0x210] sm:$0xff]
          %v3569 = vld [vmem:[%s6 + $0x218] sm:$0xff]
          %v3570 = vld [vmem:[%s6 + $0x220] sm:$0xff]
          %v3571 = vld [vmem:[%s6 + $0x228] sm:$0xff]
          %v3572 = vld [vmem:[%s6 + $0x230] sm:$0xff]
          %v3573 = vld [vmem:[%s6 + $0x238] sm:$0xff]
          %v3574 = vld [vmem:[%s6 + $0x240] sm:$0xff]
          %v3575 = vld [vmem:[%s6 + $0x248] sm:$0xff]
          %v3576 = vld [vmem:[%s6 + $0x250] sm:$0xff]
          %v3577 = vld [vmem:[%s6 + $0x258] sm:$0xff]
          %v3578 = vld [vmem:[%s6 + $0x260] sm:$0xff]
          %v3579 = vld [vmem:[%s6 + $0x268] sm:$0xff]
          %v3580 = vld [vmem:[%s6 + $0x270] sm:$0xff]
          %v3581 = vld [vmem:[%s6 + $0x278] sm:$0xff]
          %v3582 = vld [vmem:[%s6 + $0x280] sm:$0xff]
          %v3583 = vld [vmem:[%s6 + $0x288] sm:$0xff]
          %v3584 = vld [vmem:[%s6 + $0x290] sm:$0xff]
          %v3585 = vld [vmem:[%s6 + $0x298] sm:$0xff]
          %v3586 = vld [vmem:[%s6 + $0x2a0] sm:$0xff]
          %v3587 = vld [vmem:[%s6 + $0x2a8] sm:$0xff]
          %v3588 = vld [vmem:[%s6 + $0x2b0] sm:$0xff]
          %v3589 = vld [vmem:[%s6 + $0x2b8] sm:$0xff]
          %v3590 = vld [vmem:[%s6 + $0x2c0] sm:$0xff]
          %v3591 = vld [vmem:[%s6 + $0x2c8] sm:$0xff]
          %v3592 = vld [vmem:[%s6 + $0x2d0] sm:$0xff]
          %v3593 = vld [vmem:[%s6 + $0x2d8] sm:$0xff]
          %v3594 = vld [vmem:[%s6 + $0x2e0] sm:$0xff]
          %v3595 = vld [vmem:[%s6 + $0x2e8] sm:$0xff]
          %v3596 = vld [vmem:[%s6 + $0x2f0] sm:$0xff]
          %v3597 = vld [vmem:[%s6 + $0x2f8] sm:$0xff]
          %v3598 = vld [vmem:[%s6 + $0x300] sm:$0xff]
          %v3599 = vld [vmem:[%s6 + $0x308] sm:$0xff]
          %v3600 = vld [vmem:[%s6 + $0x310] sm:$0xff]
          %v3601 = vld [vmem:[%s6 + $0x318] sm:$0xff]
          %v3602 = vld [vmem:[%s6 + $0x320] sm:$0xff]
          %v3603 = vld [vmem:[%s6 + $0x328] sm:$0xff]
          %v3604 = vld [vmem:[%s6 + $0x330] sm:$0xff]
          %v3605 = vld [vmem:[%s6 + $0x338] sm:$0xff]
          %v3606 = vld [vmem:[%s6 + $0x340] sm:$0xff]
          %v3607 = vld [vmem:[%s6 + $0x348] sm:$0xff]
          %v3608 = vld [vmem:[%s6 + $0x350] sm:$0xff]
          %v3609 = vld [vmem:[%s6 + $0x358] sm:$0xff]
          %v3610 = vld [vmem:[%s6 + $0x360] sm:$0xff]
          %v3611 = vld [vmem:[%s6 + $0x368] sm:$0xff]
          %v3612 = vld [vmem:[%s6 + $0x370] sm:$0xff]
          %v3613 = vld [vmem:[%s6 + $0x378] sm:$0xff]
          %v3614 = vld [vmem:[%s6 + $0x380] sm:$0xff]
          %v3615 = vld [vmem:[%s6 + $0x388] sm:$0xff]
          %v3616 = vld [vmem:[%s6 + $0x390] sm:$0xff]
          %v3617 = vld [vmem:[%s6 + $0x398] sm:$0xff]
          %v3618 = vld [vmem:[%s6 + $0x3a0] sm:$0xff]
          %v3619 = vld [vmem:[%s6 + $0x3a8] sm:$0xff]
          %v3620 = vld [vmem:[%s6 + $0x3b0] sm:$0xff]
          %v3621 = vld [vmem:[%s6 + $0x3b8] sm:$0xff]
          %v3622 = vld [vmem:[%s6 + $0x3c0] sm:$0xff]
          %v3623 = vld [vmem:[%s6 + $0x3c8] sm:$0xff]
          %v3624 = vld [vmem:[%s6 + $0x3d0] sm:$0xff]
          %v3625 = vld [vmem:[%s6 + $0x3d8] sm:$0xff]
          %v3626 = vld [vmem:[%s6 + $0x3e0] sm:$0xff]
          %v3627 = vld [vmem:[%s6 + $0x3e8] sm:$0xff]
          %v3628 = vld [vmem:[%s6 + $0x3f0] sm:$0xff]
          %v3629 = vld [vmem:[%s6 + $0x3f8] sm:$0xff]
          %v3630 = vadd.f32 %v3247, %v3502
          %v3631 = vadd.f32 %v3249, %v3503
          %v3632 = vadd.f32 %v3251, %v3504
          %v3633 = vadd.f32 %v3253, %v3505
          %v3634 = vadd.f32 %v3255, %v3506
          %v3635 = vadd.f32 %v3257, %v3507
          %v3636 = vadd.f32 %v3259, %v3508
          %v3637 = vadd.f32 %v3261, %v3509
          %v3638 = vadd.f32 %v3263, %v3510
          %v3639 = vadd.f32 %v3265, %v3511
          %v3640 = vadd.f32 %v3267, %v3512
          %v3641 = vadd.f32 %v3269, %v3513
          %v3642 = vadd.f32 %v3271, %v3514
          %v3643 = vadd.f32 %v3273, %v3515
          %v3644 = vadd.f32 %v3275, %v3516
          %v3645 = vadd.f32 %v3277, %v3517
          %v3646 = vadd.f32 %v3279, %v3518
          %v3647 = vadd.f32 %v3281, %v3519
          %v3648 = vadd.f32 %v3283, %v3520
          %v3649 = vadd.f32 %v3285, %v3521
          %v3650 = vadd.f32 %v3287, %v3522
          %v3651 = vadd.f32 %v3289, %v3523
          %v3652 = vadd.f32 %v3291, %v3524
          %v3653 = vadd.f32 %v3293, %v3525
          %v3654 = vadd.f32 %v3295, %v3526
          %v3655 = vadd.f32 %v3297, %v3527
          %v3656 = vadd.f32 %v3299, %v3528
          %v3657 = vadd.f32 %v3301, %v3529
          %v3658 = vadd.f32 %v3303, %v3530
          %v3659 = vadd.f32 %v3305, %v3531
          %v3660 = vadd.f32 %v3307, %v3532
          %v3661 = vadd.f32 %v3309, %v3533
          %v3662 = vadd.f32 %v3311, %v3534
          %v3663 = vadd.f32 %v3313, %v3535
          %v3664 = vadd.f32 %v3315, %v3536
          %v3665 = vadd.f32 %v3317, %v3537
          %v3666 = vadd.f32 %v3319, %v3538
          %v3667 = vadd.f32 %v3321, %v3539
          %v3668 = vadd.f32 %v3323, %v3540
          %v3669 = vadd.f32 %v3325, %v3541
          %v3670 = vadd.f32 %v3327, %v3542
          %v3671 = vadd.f32 %v3329, %v3543
          %v3672 = vadd.f32 %v3331, %v3544
          %v3673 = vadd.f32 %v3333, %v3545
          %v3674 = vadd.f32 %v3335, %v3546
          %v3675 = vadd.f32 %v3337, %v3547
          %v3676 = vadd.f32 %v3339, %v3548
          %v3677 = vadd.f32 %v3341, %v3549
          %v3678 = vadd.f32 %v3343, %v3550
          %v3679 = vadd.f32 %v3345, %v3551
          %v3680 = vadd.f32 %v3347, %v3552
          %v3681 = vadd.f32 %v3349, %v3553
          %v3682 = vadd.f32 %v3351, %v3554
          %v3683 = vadd.f32 %v3353, %v3555
          %v3684 = vadd.f32 %v3355, %v3556
          %v3685 = vadd.f32 %v3357, %v3557
          %v3686 = vadd.f32 %v3359, %v3558
          %v3687 = vadd.f32 %v3361, %v3559
          %v3688 = vadd.f32 %v3363, %v3560
          %v3689 = vadd.f32 %v3365, %v3561
          %v3690 = vadd.f32 %v3367, %v3562
          %v3691 = vadd.f32 %v3369, %v3563
          %v3692 = vadd.f32 %v3371, %v3564
          %v3693 = vadd.f32 %v3373, %v3565
          %v3694 = vadd.f32 %v3375, %v3566
          %v3695 = vadd.f32 %v3377, %v3567
          %v3696 = vadd.f32 %v3379, %v3568
          %v3697 = vadd.f32 %v3381, %v3569
          %v3698 = vadd.f32 %v3383, %v3570
          %v3699 = vadd.f32 %v3385, %v3571
          %v3700 = vadd.f32 %v3387, %v3572
          %v3701 = vadd.f32 %v3389, %v3573
          %v3702 = vadd.f32 %v3391, %v3574
          %v3703 = vadd.f32 %v3393, %v3575
          %v3704 = vadd.f32 %v3395, %v3576
          %v3705 = vadd.f32 %v3397, %v3577
          %v3706 = vadd.f32 %v3399, %v3578
          %v3707 = vadd.f32 %v3401, %v3579
          %v3708 = vadd.f32 %v3403, %v3580
          %v3709 = vadd.f32 %v3405, %v3581
          %v3710 = vadd.f32 %v3407, %v3582
          %v3711 = vadd.f32 %v3409, %v3583
          %v3712 = vadd.f32 %v3411, %v3584
          %v3713 = vadd.f32 %v3413, %v3585
          %v3714 = vadd.f32 %v3415, %v3586
          %v3715 = vadd.f32 %v3417, %v3587
          %v3716 = vadd.f32 %v3419, %v3588
          %v3717 = vadd.f32 %v3421, %v3589
          %v3718 = vadd.f32 %v3423, %v3590
          %v3719 = vadd.f32 %v3425, %v3591
          %v3720 = vadd.f32 %v3427, %v3592
          %v3721 = vadd.f32 %v3429, %v3593
          %v3722 = vadd.f32 %v3431, %v3594
          %v3723 = vadd.f32 %v3433, %v3595
          %v3724 = vadd.f32 %v3435, %v3596
          %v3725 = vadd.f32 %v3437, %v3597
          %v3726 = vadd.f32 %v3439, %v3598
          %v3727 = vadd.f32 %v3441, %v3599
          %v3728 = vadd.f32 %v3443, %v3600
          %v3729 = vadd.f32 %v3445, %v3601
          %v3730 = vadd.f32 %v3447, %v3602
          %v3731 = vadd.f32 %v3449, %v3603
          %v3732 = vadd.f32 %v3451, %v3604
          %v3733 = vadd.f32 %v3453, %v3605
          %v3734 = vadd.f32 %v3455, %v3606
          %v3735 = vadd.f32 %v3457, %v3607
          %v3736 = vadd.f32 %v3459, %v3608
          %v3737 = vadd.f32 %v3461, %v3609
          %v3738 = vadd.f32 %v3463, %v3610
          %v3739 = vadd.f32 %v3465, %v3611
          %v3740 = vadd.f32 %v3467, %v3612
          %v3741 = vadd.f32 %v3469, %v3613
          %v3742 = vadd.f32 %v3471, %v3614
          %v3743 = vadd.f32 %v3473, %v3615
          %v3744 = vadd.f32 %v3475, %v3616
          %v3745 = vadd.f32 %v3477, %v3617
          %v3746 = vadd.f32 %v3479, %v3618
          %v3747 = vadd.f32 %v3481, %v3619
          %v3748 = vadd.f32 %v3483, %v3620
          %v3749 = vadd.f32 %v3485, %v3621
          %v3750 = vadd.f32 %v3487, %v3622
          %v3751 = vadd.f32 %v3489, %v3623
          %v3752 = vadd.f32 %v3491, %v3624
          %v3753 = vadd.f32 %v3493, %v3625
          %v3754 = vadd.f32 %v3495, %v3626
          %v3755 = vadd.f32 %v3497, %v3627
          %v3756 = vadd.f32 %v3499, %v3628
          %v3757 = vadd.f32 %v3501, %v3629
          %v3758 = vmax.f32 %v3630, 0.0
          %v3759 = vmax.f32 %v3631, 0.0
          %v3760 = vmax.f32 %v3632, 0.0
          %v3761 = vmax.f32 %v3633, 0.0
          %v3762 = vmax.f32 %v3634, 0.0
          %v3763 = vmax.f32 %v3635, 0.0
          %v3764 = vmax.f32 %v3636, 0.0
          %v3765 = vmax.f32 %v3637, 0.0
          %v3766 = vmax.f32 %v3638, 0.0
          %v3767 = vmax.f32 %v3639, 0.0
          %v3768 = vmax.f32 %v3640, 0.0
          %v3769 = vmax.f32 %v3641, 0.0
          %v3770 = vmax.f32 %v3642, 0.0
          %v3771 = vmax.f32 %v3643, 0.0
          %v3772 = vmax.f32 %v3644, 0.0
          %v3773 = vmax.f32 %v3645, 0.0
          %v3774 = vmax.f32 %v3646, 0.0
          %v3775 = vmax.f32 %v3647, 0.0
          %v3776 = vmax.f32 %v3648, 0.0
          %v3777 = vmax.f32 %v3649, 0.0
          %v3778 = vmax.f32 %v3650, 0.0
          %v3779 = vmax.f32 %v3651, 0.0
          %v3780 = vmax.f32 %v3652, 0.0
          %v3781 = vmax.f32 %v3653, 0.0
          %v3782 = vmax.f32 %v3654, 0.0
          %v3783 = vmax.f32 %v3655, 0.0
          %v3784 = vmax.f32 %v3656, 0.0
          %v3785 = vmax.f32 %v3657, 0.0
          %v3786 = vmax.f32 %v3658, 0.0
          %v3787 = vmax.f32 %v3659, 0.0
          %v3788 = vmax.f32 %v3660, 0.0
          %v3789 = vmax.f32 %v3661, 0.0
          %v3790 = vmax.f32 %v3662, 0.0
          %v3791 = vmax.f32 %v3663, 0.0
          %v3792 = vmax.f32 %v3664, 0.0
          %v3793 = vmax.f32 %v3665, 0.0
          %v3794 = vmax.f32 %v3666, 0.0
          %v3795 = vmax.f32 %v3667, 0.0
          %v3796 = vmax.f32 %v3668, 0.0
          %v3797 = vmax.f32 %v3669, 0.0
          %v3798 = vmax.f32 %v3670, 0.0
          %v3799 = vmax.f32 %v3671, 0.0
          %v3800 = vmax.f32 %v3672, 0.0
          %v3801 = vmax.f32 %v3673, 0.0
          %v3802 = vmax.f32 %v3674, 0.0
          %v3803 = vmax.f32 %v3675, 0.0
          %v3804 = vmax.f32 %v3676, 0.0
          %v3805 = vmax.f32 %v3677, 0.0
          %v3806 = vmax.f32 %v3678, 0.0
          %v3807 = vmax.f32 %v3679, 0.0
          %v3808 = vmax.f32 %v3680, 0.0
          %v3809 = vmax.f32 %v3681, 0.0
          %v3810 = vmax.f32 %v3682, 0.0
          %v3811 = vmax.f32 %v3683, 0.0
          %v3812 = vmax.f32 %v3684, 0.0
          %v3813 = vmax.f32 %v3685, 0.0
          %v3814 = vmax.f32 %v3686, 0.0
          %v3815 = vmax.f32 %v3687, 0.0
          %v3816 = vmax.f32 %v3688, 0.0
          %v3817 = vmax.f32 %v3689, 0.0
          %v3818 = vmax.f32 %v3690, 0.0
          %v3819 = vmax.f32 %v3691, 0.0
          %v3820 = vmax.f32 %v3692, 0.0
          %v3821 = vmax.f32 %v3693, 0.0
          %v3822 = vmax.f32 %v3694, 0.0
          %v3823 = vmax.f32 %v3695, 0.0
          %v3824 = vmax.f32 %v3696, 0.0
          %v3825 = vmax.f32 %v3697, 0.0
          %v3826 = vmax.f32 %v3698, 0.0
          %v3827 = vmax.f32 %v3699, 0.0
          %v3828 = vmax.f32 %v3700, 0.0
          %v3829 = vmax.f32 %v3701, 0.0
          %v3830 = vmax.f32 %v3702, 0.0
          %v3831 = vmax.f32 %v3703, 0.0
          %v3832 = vmax.f32 %v3704, 0.0
          %v3833 = vmax.f32 %v3705, 0.0
          %v3834 = vmax.f32 %v3706, 0.0
          %v3835 = vmax.f32 %v3707, 0.0
          %v3836 = vmax.f32 %v3708, 0.0
          %v3837 = vmax.f32 %v3709, 0.0
          %v3838 = vmax.f32 %v3710, 0.0
          %v3839 = vmax.f32 %v3711, 0.0
          %v3840 = vmax.f32 %v3712, 0.0
          %v3841 = vmax.f32 %v3713, 0.0
          %v3842 = vmax.f32 %v3714, 0.0
          %v3843 = vmax.f32 %v3715, 0.0
          %v3844 = vmax.f32 %v3716, 0.0
          %v3845 = vmax.f32 %v3717, 0.0
          %v3846 = vmax.f32 %v3718, 0.0
          %v3847 = vmax.f32 %v3719, 0.0
          %v3848 = vmax.f32 %v3720, 0.0
          %v3849 = vmax.f32 %v3721, 0.0
          %v3850 = vmax.f32 %v3722, 0.0
          %v3851 = vmax.f32 %v3723, 0.0
          %v3852 = vmax.f32 %v3724, 0.0
          %v3853 = vmax.f32 %v3725, 0.0
          %v3854 = vmax.f32 %v3726, 0.0
          %v3855 = vmax.f32 %v3727, 0.0
          %v3856 = vmax.f32 %v3728, 0.0
          %v3857 = vmax.f32 %v3729, 0.0
          %v3858 = vmax.f32 %v3730, 0.0
          %v3859 = vmax.f32 %v3731, 0.0
          %v3860 = vmax.f32 %v3732, 0.0
          %v3861 = vmax.f32 %v3733, 0.0
          %v3862 = vmax.f32 %v3734, 0.0
          %v3863 = vmax.f32 %v3735, 0.0
          %v3864 = vmax.f32 %v3736, 0.0
          %v3865 = vmax.f32 %v3737, 0.0
          %v3866 = vmax.f32 %v3738, 0.0
          %v3867 = vmax.f32 %v3739, 0.0
          %v3868 = vmax.f32 %v3740, 0.0
          %v3869 = vmax.f32 %v3741, 0.0
          %v3870 = vmax.f32 %v3742, 0.0
          %v3871 = vmax.f32 %v3743, 0.0
          %v3872 = vmax.f32 %v3744, 0.0
          %v3873 = vmax.f32 %v3745, 0.0
          %v3874 = vmax.f32 %v3746, 0.0
          %v3875 = vmax.f32 %v3747, 0.0
          %v3876 = vmax.f32 %v3748, 0.0
          %v3877 = vmax.f32 %v3749, 0.0
          %v3878 = vmax.f32 %v3750, 0.0
          %v3879 = vmax.f32 %v3751, 0.0
          %v3880 = vmax.f32 %v3752, 0.0
          %v3881 = vmax.f32 %v3753, 0.0
          %v3882 = vmax.f32 %v3754, 0.0
          %v3883 = vmax.f32 %v3755, 0.0
          %v3884 = vmax.f32 %v3756, 0.0
          %v3885 = vmax.f32 %v3757, 0.0
          %v3886 = vld [vmem:[%s7] sm:$0xff]
          %v3887 = vld [vmem:[%s7 + $0x8] sm:$0xff]
          %v3888 = vld [vmem:[%s7 + $0x10] sm:$0xff]
          %v3889 = vld [vmem:[%s7 + $0x18] sm:$0xff]
          %v3890 = vld [vmem:[%s7 + $0x20] sm:$0xff]
          %v3891 = vld [vmem:[%s7 + $0x28] sm:$0xff]
          %v3892 = vld [vmem:[%s7 + $0x30] sm:$0xff]
          %v3893 = vld [vmem:[%s7 + $0x38] sm:$0xff]
          %v3894 = vld [vmem:[%s7 + $0x40] sm:$0xff]
          %v3895 = vld [vmem:[%s7 + $0x48] sm:$0xff]
          %v3896 = vld [vmem:[%s7 + $0x50] sm:$0xff]
          %v3897 = vld [vmem:[%s7 + $0x58] sm:$0xff]
          %v3898 = vld [vmem:[%s7 + $0x60] sm:$0xff]
          %v3899 = vld [vmem:[%s7 + $0x68] sm:$0xff]
          %v3900 = vld [vmem:[%s7 + $0x70] sm:$0xff]
          %v3901 = vld [vmem:[%s7 + $0x78] sm:$0xff]
          %v3902 = vld [vmem:[%s7 + $0x80] sm:$0xff]
          %v3903 = vld [vmem:[%s7 + $0x88] sm:$0xff]
          %v3904 = vld [vmem:[%s7 + $0x90] sm:$0xff]
          %v3905 = vld [vmem:[%s7 + $0x98] sm:$0xff]
          %v3906 = vld [vmem:[%s7 + $0xa0] sm:$0xff]
          %v3907 = vld [vmem:[%s7 + $0xa8] sm:$0xff]
          %v3908 = vld [vmem:[%s7 + $0xb0] sm:$0xff]
          %v3909 = vld [vmem:[%s7 + $0xb8] sm:$0xff]
          %v3910 = vld [vmem:[%s7 + $0xc0] sm:$0xff]
          %v3911 = vld [vmem:[%s7 + $0xc8] sm:$0xff]
          %v3912 = vld [vmem:[%s7 + $0xd0] sm:$0xff]
          %v3913 = vld [vmem:[%s7 + $0xd8] sm:$0xff]
          %v3914 = vld [vmem:[%s7 + $0xe0] sm:$0xff]
          %v3915 = vld [vmem:[%s7 + $0xe8] sm:$0xff]
          %v3916 = vld [vmem:[%s7 + $0xf0] sm:$0xff]
          %v3917 = vld [vmem:[%s7 + $0xf8] sm:$0xff]
          %v3918 = vld [vmem:[%s7 + $0x100] sm:$0xff]
          %v3919 = vld [vmem:[%s7 + $0x108] sm:$0xff]
          %v3920 = vld [vmem:[%s7 + $0x110] sm:$0xff]
          %v3921 = vld [vmem:[%s7 + $0x118] sm:$0xff]
          %v3922 = vld [vmem:[%s7 + $0x120] sm:$0xff]
          %v3923 = vld [vmem:[%s7 + $0x128] sm:$0xff]
          %v3924 = vld [vmem:[%s7 + $0x130] sm:$0xff]
          %v3925 = vld [vmem:[%s7 + $0x138] sm:$0xff]
          %v3926 = vld [vmem:[%s7 + $0x140] sm:$0xff]
          %v3927 = vld [vmem:[%s7 + $0x148] sm:$0xff]
          %v3928 = vld [vmem:[%s7 + $0x150] sm:$0xff]
          %v3929 = vld [vmem:[%s7 + $0x158] sm:$0xff]
          %v3930 = vld [vmem:[%s7 + $0x160] sm:$0xff]
          %v3931 = vld [vmem:[%s7 + $0x168] sm:$0xff]
          %v3932 = vld [vmem:[%s7 + $0x170] sm:$0xff]
          %v3933 = vld [vmem:[%s7 + $0x178] sm:$0xff]
          %v3934 = vld [vmem:[%s7 + $0x180] sm:$0xff]
          %v3935 = vld [vmem:[%s7 + $0x188] sm:$0xff]
          %v3936 = vld [vmem:[%s7 + $0x190] sm:$0xff]
          %v3937 = vld [vmem:[%s7 + $0x198] sm:$0xff]
          %v3938 = vld [vmem:[%s7 + $0x1a0] sm:$0xff]
          %v3939 = vld [vmem:[%s7 + $0x1a8] sm:$0xff]
          %v3940 = vld [vmem:[%s7 + $0x1b0] sm:$0xff]
          %v3941 = vld [vmem:[%s7 + $0x1b8] sm:$0xff]
          %v3942 = vld [vmem:[%s7 + $0x1c0] sm:$0xff]
          %v3943 = vld [vmem:[%s7 + $0x1c8] sm:$0xff]
          %v3944 = vld [vmem:[%s7 + $0x1d0] sm:$0xff]
          %v3945 = vld [vmem:[%s7 + $0x1d8] sm:$0xff]
          %v3946 = vld [vmem:[%s7 + $0x1e0] sm:$0xff]
          %v3947 = vld [vmem:[%s7 + $0x1e8] sm:$0xff]
          %v3948 = vld [vmem:[%s7 + $0x1f0] sm:$0xff]
          %v3949 = vld [vmem:[%s7 + $0x1f8] sm:$0xff]
          %v3950 = vld [vmem:[%s7 + $0x200] sm:$0xff]
          %v3951 = vld [vmem:[%s7 + $0x208] sm:$0xff]
          %v3952 = vld [vmem:[%s7 + $0x210] sm:$0xff]
          %v3953 = vld [vmem:[%s7 + $0x218] sm:$0xff]
          %v3954 = vld [vmem:[%s7 + $0x220] sm:$0xff]
          %v3955 = vld [vmem:[%s7 + $0x228] sm:$0xff]
          %v3956 = vld [vmem:[%s7 + $0x230] sm:$0xff]
          %v3957 = vld [vmem:[%s7 + $0x238] sm:$0xff]
          %v3958 = vld [vmem:[%s7 + $0x240] sm:$0xff]
          %v3959 = vld [vmem:[%s7 + $0x248] sm:$0xff]
          %v3960 = vld [vmem:[%s7 + $0x250] sm:$0xff]
          %v3961 = vld [vmem:[%s7 + $0x258] sm:$0xff]
          %v3962 = vld [vmem:[%s7 + $0x260] sm:$0xff]
          %v3963 = vld [vmem:[%s7 + $0x268] sm:$0xff]
          %v3964 = vld [vmem:[%s7 + $0x270] sm:$0xff]
          %v3965 = vld [vmem:[%s7 + $0x278] sm:$0xff]
          %v3966 = vld [vmem:[%s7 + $0x280] sm:$0xff]
          %v3967 = vld [vmem:[%s7 + $0x288] sm:$0xff]
          %v3968 = vld [vmem:[%s7 + $0x290] sm:$0xff]
          %v3969 = vld [vmem:[%s7 + $0x298] sm:$0xff]
          %v3970 = vld [vmem:[%s7 + $0x2a0] sm:$0xff]
          %v3971 = vld [vmem:[%s7 + $0x2a8] sm:$0xff]
          %v3972 = vld [vmem:[%s7 + $0x2b0] sm:$0xff]
          %v3973 = vld [vmem:[%s7 + $0x2b8] sm:$0xff]
          %v3974 = vld [vmem:[%s7 + $0x2c0] sm:$0xff]
          %v3975 = vld [vmem:[%s7 + $0x2c8] sm:$0xff]
          %v3976 = vld [vmem:[%s7 + $0x2d0] sm:$0xff]
          %v3977 = vld [vmem:[%s7 + $0x2d8] sm:$0xff]
          %v3978 = vld [vmem:[%s7 + $0x2e0] sm:$0xff]
          %v3979 = vld [vmem:[%s7 + $0x2e8] sm:$0xff]
          %v3980 = vld [vmem:[%s7 + $0x2f0] sm:$0xff]
          %v3981 = vld [vmem:[%s7 + $0x2f8] sm:$0xff]
          %v3982 = vld [vmem:[%s7 + $0x300] sm:$0xff]
          %v3983 = vld [vmem:[%s7 + $0x308] sm:$0xff]
          %v3984 = vld [vmem:[%s7 + $0x310] sm:$0xff]
          %v3985 = vld [vmem:[%s7 + $0x318] sm:$0xff]
          %v3986 = vld [vmem:[%s7 + $0x320] sm:$0xff]
          %v3987 = vld [vmem:[%s7 + $0x328] sm:$0xff]
          %v3988 = vld [vmem:[%s7 + $0x330] sm:$0xff]
          %v3989 = vld [vmem:[%s7 + $0x338] sm:$0xff]
          %v3990 = vld [vmem:[%s7 + $0x340] sm:$0xff]
          %v3991 = vld [vmem:[%s7 + $0x348] sm:$0xff]
          %v3992 = vld [vmem:[%s7 + $0x350] sm:$0xff]
          %v3993 = vld [vmem:[%s7 + $0x358] sm:$0xff]
          %v3994 = vld [vmem:[%s7 + $0x360] sm:$0xff]
          %v3995 = vld [vmem:[%s7 + $0x368] sm:$0xff]
          %v3996 = vld [vmem:[%s7 + $0x370] sm:$0xff]
          %v3997 = vld [vmem:[%s7 + $0x378] sm:$0xff]
          %v3998 = vld [vmem:[%s7 + $0x380] sm:$0xff]
          %v3999 = vld [vmem:[%s7 + $0x388] sm:$0xff]
          %v4000 = vld [vmem:[%s7 + $0x390] sm:$0xff]
          %v4001 = vld [vmem:[%s7 + $0x398] sm:$0xff]
          %v4002 = vld [vmem:[%s7 + $0x3a0] sm:$0xff]
          %v4003 = vld [vmem:[%s7 + $0x3a8] sm:$0xff]
          %v4004 = vld [vmem:[%s7 + $0x3b0] sm:$0xff]
          %v4005 = vld [vmem:[%s7 + $0x3b8] sm:$0xff]
          %v4006 = vld [vmem:[%s7 + $0x3c0] sm:$0xff]
          %v4007 = vld [vmem:[%s7 + $0x3c8] sm:$0xff]
          %v4008 = vld [vmem:[%s7 + $0x3d0] sm:$0xff]
          %v4009 = vld [vmem:[%s7 + $0x3d8] sm:$0xff]
          %v4010 = vld [vmem:[%s7 + $0x3e0] sm:$0xff]
          %v4011 = vld [vmem:[%s7 + $0x3e8] sm:$0xff]
          %v4012 = vld [vmem:[%s7 + $0x3f0] sm:$0xff]
          %v4013 = vld [vmem:[%s7 + $0x3f8] sm:$0xff]
          %v4014 = vld [vmem:[%s7 + $0x400] sm:$0xff]
          %v4015 = vld [vmem:[%s7 + $0x408] sm:$0xff]
          %v4016 = vld [vmem:[%s7 + $0x410] sm:$0xff]
          %v4017 = vld [vmem:[%s7 + $0x418] sm:$0xff]
          %v4018 = vld [vmem:[%s7 + $0x420] sm:$0xff]
          %v4019 = vld [vmem:[%s7 + $0x428] sm:$0xff]
          %v4020 = vld [vmem:[%s7 + $0x430] sm:$0xff]
          %v4021 = vld [vmem:[%s7 + $0x438] sm:$0xff]
          %v4022 = vld [vmem:[%s7 + $0x440] sm:$0xff]
          %v4023 = vld [vmem:[%s7 + $0x448] sm:$0xff]
          %v4024 = vld [vmem:[%s7 + $0x450] sm:$0xff]
          %v4025 = vld [vmem:[%s7 + $0x458] sm:$0xff]
          %v4026 = vld [vmem:[%s7 + $0x460] sm:$0xff]
          %v4027 = vld [vmem:[%s7 + $0x468] sm:$0xff]
          %v4028 = vld [vmem:[%s7 + $0x470] sm:$0xff]
          %v4029 = vld [vmem:[%s7 + $0x478] sm:$0xff]
          %v4030 = vld [vmem:[%s7 + $0x480] sm:$0xff]
          %v4031 = vld [vmem:[%s7 + $0x488] sm:$0xff]
          %v4032 = vld [vmem:[%s7 + $0x490] sm:$0xff]
          %v4033 = vld [vmem:[%s7 + $0x498] sm:$0xff]
          %v4034 = vld [vmem:[%s7 + $0x4a0] sm:$0xff]
          %v4035 = vld [vmem:[%s7 + $0x4a8] sm:$0xff]
          %v4036 = vld [vmem:[%s7 + $0x4b0] sm:$0xff]
          %v4037 = vld [vmem:[%s7 + $0x4b8] sm:$0xff]
          %v4038 = vld [vmem:[%s7 + $0x4c0] sm:$0xff]
          %v4039 = vld [vmem:[%s7 + $0x4c8] sm:$0xff]
          %v4040 = vld [vmem:[%s7 + $0x4d0] sm:$0xff]
          %v4041 = vld [vmem:[%s7 + $0x4d8] sm:$0xff]
          %v4042 = vld [vmem:[%s7 + $0x4e0] sm:$0xff]
          %v4043 = vld [vmem:[%s7 + $0x4e8] sm:$0xff]
          %v4044 = vld [vmem:[%s7 + $0x4f0] sm:$0xff]
          %v4045 = vld [vmem:[%s7 + $0x4f8] sm:$0xff]
          %v4046 = vld [vmem:[%s7 + $0x500] sm:$0xff]
          %v4047 = vld [vmem:[%s7 + $0x508] sm:$0xff]
          %v4048 = vld [vmem:[%s7 + $0x510] sm:$0xff]
          %v4049 = vld [vmem:[%s7 + $0x518] sm:$0xff]
          %v4050 = vld [vmem:[%s7 + $0x520] sm:$0xff]
          %v4051 = vld [vmem:[%s7 + $0x528] sm:$0xff]
          %v4052 = vld [vmem:[%s7 + $0x530] sm:$0xff]
          %v4053 = vld [vmem:[%s7 + $0x538] sm:$0xff]
          %v4054 = vld [vmem:[%s7 + $0x540] sm:$0xff]
          %v4055 = vld [vmem:[%s7 + $0x548] sm:$0xff]
          %v4056 = vld [vmem:[%s7 + $0x550] sm:$0xff]
          %v4057 = vld [vmem:[%s7 + $0x558] sm:$0xff]
          %v4058 = vld [vmem:[%s7 + $0x560] sm:$0xff]
          %v4059 = vld [vmem:[%s7 + $0x568] sm:$0xff]
          %v4060 = vld [vmem:[%s7 + $0x570] sm:$0xff]
          %v4061 = vld [vmem:[%s7 + $0x578] sm:$0xff]
          %v4062 = vld [vmem:[%s7 + $0x580] sm:$0xff]
          %v4063 = vld [vmem:[%s7 + $0x588] sm:$0xff]
          %v4064 = vld [vmem:[%s7 + $0x590] sm:$0xff]
          %v4065 = vld [vmem:[%s7 + $0x598] sm:$0xff]
          %v4066 = vld [vmem:[%s7 + $0x5a0] sm:$0xff]
          %v4067 = vld [vmem:[%s7 + $0x5a8] sm:$0xff]
          %v4068 = vld [vmem:[%s7 + $0x5b0] sm:$0xff]
          %v4069 = vld [vmem:[%s7 + $0x5b8] sm:$0xff]
          %v4070 = vld [vmem:[%s7 + $0x5c0] sm:$0xff]
          %v4071 = vld [vmem:[%s7 + $0x5c8] sm:$0xff]
          %v4072 = vld [vmem:[%s7 + $0x5d0] sm:$0xff]
          %v4073 = vld [vmem:[%s7 + $0x5d8] sm:$0xff]
          %v4074 = vld [vmem:[%s7 + $0x5e0] sm:$0xff]
          %v4075 = vld [vmem:[%s7 + $0x5e8] sm:$0xff]
          %v4076 = vld [vmem:[%s7 + $0x5f0] sm:$0xff]
          %v4077 = vld [vmem:[%s7 + $0x5f8] sm:$0xff]
          %v4078 = vld [vmem:[%s7 + $0x600] sm:$0xff]
          %v4079 = vld [vmem:[%s7 + $0x608] sm:$0xff]
          %v4080 = vld [vmem:[%s7 + $0x610] sm:$0xff]
          %v4081 = vld [vmem:[%s7 + $0x618] sm:$0xff]
          %v4082 = vld [vmem:[%s7 + $0x620] sm:$0xff]
          %v4083 = vld [vmem:[%s7 + $0x628] sm:$0xff]
          %v4084 = vld [vmem:[%s7 + $0x630] sm:$0xff]
          %v4085 = vld [vmem:[%s7 + $0x638] sm:$0xff]
          %v4086 = vld [vmem:[%s7 + $0x640] sm:$0xff]
          %v4087 = vld [vmem:[%s7 + $0x648] sm:$0xff]
          %v4088 = vld [vmem:[%s7 + $0x650] sm:$0xff]
          %v4089 = vld [vmem:[%s7 + $0x658] sm:$0xff]
          %v4090 = vld [vmem:[%s7 + $0x660] sm:$0xff]
          %v4091 = vld [vmem:[%s7 + $0x668] sm:$0xff]
          %v4092 = vld [vmem:[%s7 + $0x670] sm:$0xff]
          %v4093 = vld [vmem:[%s7 + $0x678] sm:$0xff]
          %v4094 = vld [vmem:[%s7 + $0x680] sm:$0xff]
          %v4095 = vld [vmem:[%s7 + $0x688] sm:$0xff]
          %v4096 = vld [vmem:[%s7 + $0x690] sm:$0xff]
          %v4097 = vld [vmem:[%s7 + $0x698] sm:$0xff]
          %v4098 = vld [vmem:[%s7 + $0x6a0] sm:$0xff]
          %v4099 = vld [vmem:[%s7 + $0x6a8] sm:$0xff]
          %v4100 = vld [vmem:[%s7 + $0x6b0] sm:$0xff]
          %v4101 = vld [vmem:[%s7 + $0x6b8] sm:$0xff]
          %v4102 = vld [vmem:[%s7 + $0x6c0] sm:$0xff]
          %v4103 = vld [vmem:[%s7 + $0x6c8] sm:$0xff]
          %v4104 = vld [vmem:[%s7 + $0x6d0] sm:$0xff]
          %v4105 = vld [vmem:[%s7 + $0x6d8] sm:$0xff]
          %v4106 = vld [vmem:[%s7 + $0x6e0] sm:$0xff]
          %v4107 = vld [vmem:[%s7 + $0x6e8] sm:$0xff]
          %v4108 = vld [vmem:[%s7 + $0x6f0] sm:$0xff]
          %v4109 = vld [vmem:[%s7 + $0x6f8] sm:$0xff]
          %v4110 = vld [vmem:[%s7 + $0x700] sm:$0xff]
          %v4111 = vld [vmem:[%s7 + $0x708] sm:$0xff]
          %v4112 = vld [vmem:[%s7 + $0x710] sm:$0xff]
          %v4113 = vld [vmem:[%s7 + $0x718] sm:$0xff]
          %v4114 = vld [vmem:[%s7 + $0x720] sm:$0xff]
          %v4115 = vld [vmem:[%s7 + $0x728] sm:$0xff]
          %v4116 = vld [vmem:[%s7 + $0x730] sm:$0xff]
          %v4117 = vld [vmem:[%s7 + $0x738] sm:$0xff]
          %v4118 = vld [vmem:[%s7 + $0x740] sm:$0xff]
          %v4119 = vld [vmem:[%s7 + $0x748] sm:$0xff]
          %v4120 = vld [vmem:[%s7 + $0x750] sm:$0xff]
          %v4121 = vld [vmem:[%s7 + $0x758] sm:$0xff]
          %v4122 = vld [vmem:[%s7 + $0x760] sm:$0xff]
          %v4123 = vld [vmem:[%s7 + $0x768] sm:$0xff]
          %v4124 = vld [vmem:[%s7 + $0x770] sm:$0xff]
          %v4125 = vld [vmem:[%s7 + $0x778] sm:$0xff]
          %v4126 = vld [vmem:[%s7 + $0x780] sm:$0xff]
          %v4127 = vld [vmem:[%s7 + $0x788] sm:$0xff]
          %v4128 = vld [vmem:[%s7 + $0x790] sm:$0xff]
          %v4129 = vld [vmem:[%s7 + $0x798] sm:$0xff]
          %v4130 = vld [vmem:[%s7 + $0x7a0] sm:$0xff]
          %v4131 = vld [vmem:[%s7 + $0x7a8] sm:$0xff]
          %v4132 = vld [vmem:[%s7 + $0x7b0] sm:$0xff]
          %v4133 = vld [vmem:[%s7 + $0x7b8] sm:$0xff]
          %v4134 = vld [vmem:[%s7 + $0x7c0] sm:$0xff]
          %v4135 = vld [vmem:[%s7 + $0x7c8] sm:$0xff]
          %v4136 = vld [vmem:[%s7 + $0x7d0] sm:$0xff]
          %v4137 = vld [vmem:[%s7 + $0x7d8] sm:$0xff]
          %v4138 = vld [vmem:[%s7 + $0x7e0] sm:$0xff]
          %v4139 = vld [vmem:[%s7 + $0x7e8] sm:$0xff]
          %v4140 = vld [vmem:[%s7 + $0x7f0] sm:$0xff]
          %v4141 = vld [vmem:[%s7 + $0x7f8] sm:$0xff]
          %v4142 = vpack.c.bf16 %v3759, %v3758
          %v4143 = vpack.c.bf16 %v3761, %v3760
          %v4144 = vpack.c.bf16 %v3763, %v3762
          %v4145 = vpack.c.bf16 %v3765, %v3764
          %v4146 = vpack.c.bf16 %v3767, %v3766
          %v4147 = vpack.c.bf16 %v3769, %v3768
          %v4148 = vpack.c.bf16 %v3771, %v3770
          %v4149 = vpack.c.bf16 %v3773, %v3772
          %v4150 = vpack.c.bf16 %v3775, %v3774
          %v4151 = vpack.c.bf16 %v3777, %v3776
          %v4152 = vpack.c.bf16 %v3779, %v3778
          %v4153 = vpack.c.bf16 %v3781, %v3780
          %v4154 = vpack.c.bf16 %v3783, %v3782
          %v4155 = vpack.c.bf16 %v3785, %v3784
          %v4156 = vpack.c.bf16 %v3787, %v3786
          %v4157 = vpack.c.bf16 %v3789, %v3788
          %v4158 = vpack.c.bf16 %v3791, %v3790
          %v4159 = vpack.c.bf16 %v3793, %v3792
          %v4160 = vpack.c.bf16 %v3795, %v3794
          %v4161 = vpack.c.bf16 %v3797, %v3796
          %v4162 = vpack.c.bf16 %v3799, %v3798
          %v4163 = vpack.c.bf16 %v3801, %v3800
          %v4164 = vpack.c.bf16 %v3803, %v3802
          %v4165 = vpack.c.bf16 %v3805, %v3804
          %v4166 = vpack.c.bf16 %v3807, %v3806
          %v4167 = vpack.c.bf16 %v3809, %v3808
          %v4168 = vpack.c.bf16 %v3811, %v3810
          %v4169 = vpack.c.bf16 %v3813, %v3812
          %v4170 = vpack.c.bf16 %v3815, %v3814
          %v4171 = vpack.c.bf16 %v3817, %v3816
          %v4172 = vpack.c.bf16 %v3819, %v3818
          %v4173 = vpack.c.bf16 %v3821, %v3820
          %v4174 = vpack.c.bf16 %v3823, %v3822
          %v4175 = vpack.c.bf16 %v3825, %v3824
          %v4176 = vpack.c.bf16 %v3827, %v3826
          %v4177 = vpack.c.bf16 %v3829, %v3828
          %v4178 = vpack.c.bf16 %v3831, %v3830
          %v4179 = vpack.c.bf16 %v3833, %v3832
          %v4180 = vpack.c.bf16 %v3835, %v3834
          %v4181 = vpack.c.bf16 %v3837, %v3836
          %v4182 = vpack.c.bf16 %v3839, %v3838
          %v4183 = vpack.c.bf16 %v3841, %v3840
          %v4184 = vpack.c.bf16 %v3843, %v3842
          %v4185 = vpack.c.bf16 %v3845, %v3844
          %v4186 = vpack.c.bf16 %v3847, %v3846
          %v4187 = vpack.c.bf16 %v3849, %v3848
          %v4188 = vpack.c.bf16 %v3851, %v3850
          %v4189 = vpack.c.bf16 %v3853, %v3852
          %v4190 = vpack.c.bf16 %v3855, %v3854
          %v4191 = vpack.c.bf16 %v3857, %v3856
          %v4192 = vpack.c.bf16 %v3859, %v3858
          %v4193 = vpack.c.bf16 %v3861, %v3860
          %v4194 = vpack.c.bf16 %v3863, %v3862
          %v4195 = vpack.c.bf16 %v3865, %v3864
          %v4196 = vpack.c.bf16 %v3867, %v3866
          %v4197 = vpack.c.bf16 %v3869, %v3868
          %v4198 = vpack.c.bf16 %v3871, %v3870
          %v4199 = vpack.c.bf16 %v3873, %v3872
          %v4200 = vpack.c.bf16 %v3875, %v3874
          %v4201 = vpack.c.bf16 %v3877, %v3876
          %v4202 = vpack.c.bf16 %v3879, %v3878
          %v4203 = vpack.c.bf16 %v3881, %v3880
          %v4204 = vpack.c.bf16 %v3883, %v3882
          %v4205 = vpack.c.bf16 %v3885, %v3884
          %v4206 = vld [vmem:[%s8] sm:$0xff]
          %v4207 = vld [vmem:[%s8 + $0x8] sm:$0xff]
          %v4208 = vld [vmem:[%s8 + $0x10] sm:$0xff]
          %v4209 = vld [vmem:[%s8 + $0x18] sm:$0xff]
          %v4210 = vld [vmem:[%s8 + $0x20] sm:$0xff]
          %v4211 = vld [vmem:[%s8 + $0x28] sm:$0xff]
          %v4212 = vld [vmem:[%s8 + $0x30] sm:$0xff]
          %v4213 = vld [vmem:[%s8 + $0x38] sm:$0xff]
          %v4214 = vld [vmem:[%s8 + $0x40] sm:$0xff]
          %v4215 = vld [vmem:[%s8 + $0x48] sm:$0xff]
          %v4216 = vld [vmem:[%s8 + $0x50] sm:$0xff]
          %v4217 = vld [vmem:[%s8 + $0x58] sm:$0xff]
          %v4218 = vld [vmem:[%s8 + $0x60] sm:$0xff]
          %v4219 = vld [vmem:[%s8 + $0x68] sm:$0xff]
          %v4220 = vld [vmem:[%s8 + $0x70] sm:$0xff]
          %v4221 = vld [vmem:[%s8 + $0x78] sm:$0xff]
          %v4222 = vld [vmem:[%s8 + $0x80] sm:$0xff]
          %v4223 = vld [vmem:[%s8 + $0x88] sm:$0xff]
          %v4224 = vld [vmem:[%s8 + $0x90] sm:$0xff]
          %v4225 = vld [vmem:[%s8 + $0x98] sm:$0xff]
          %v4226 = vld [vmem:[%s8 + $0xa0] sm:$0xff]
          %v4227 = vld [vmem:[%s8 + $0xa8] sm:$0xff]
          %v4228 = vld [vmem:[%s8 + $0xb0] sm:$0xff]
          %v4229 = vld [vmem:[%s8 + $0xb8] sm:$0xff]
          %v4230 = vld [vmem:[%s8 + $0xc0] sm:$0xff]
          %v4231 = vld [vmem:[%s8 + $0xc8] sm:$0xff]
          %v4232 = vld [vmem:[%s8 + $0xd0] sm:$0xff]
          %v4233 = vld [vmem:[%s8 + $0xd8] sm:$0xff]
          %v4234 = vld [vmem:[%s8 + $0xe0] sm:$0xff]
          %v4235 = vld [vmem:[%s8 + $0xe8] sm:$0xff]
          %v4236 = vld [vmem:[%s8 + $0xf0] sm:$0xff]
          %v4237 = vld [vmem:[%s8 + $0xf8] sm:$0xff]
          %v4238 = vld [vmem:[%s8 + $0x100] sm:$0xff]
          %v4239 = vld [vmem:[%s8 + $0x108] sm:$0xff]
          %v4240 = vld [vmem:[%s8 + $0x110] sm:$0xff]
          %v4241 = vld [vmem:[%s8 + $0x118] sm:$0xff]
          %v4242 = vld [vmem:[%s8 + $0x120] sm:$0xff]
          %v4243 = vld [vmem:[%s8 + $0x128] sm:$0xff]
          %v4244 = vld [vmem:[%s8 + $0x130] sm:$0xff]
          %v4245 = vld [vmem:[%s8 + $0x138] sm:$0xff]
          %v4246 = vld [vmem:[%s8 + $0x140] sm:$0xff]
          %v4247 = vld [vmem:[%s8 + $0x148] sm:$0xff]
          %v4248 = vld [vmem:[%s8 + $0x150] sm:$0xff]
          %v4249 = vld [vmem:[%s8 + $0x158] sm:$0xff]
          %v4250 = vld [vmem:[%s8 + $0x160] sm:$0xff]
          %v4251 = vld [vmem:[%s8 + $0x168] sm:$0xff]
          %v4252 = vld [vmem:[%s8 + $0x170] sm:$0xff]
          %v4253 = vld [vmem:[%s8 + $0x178] sm:$0xff]
          %v4254 = vld [vmem:[%s8 + $0x180] sm:$0xff]
          %v4255 = vld [vmem:[%s8 + $0x188] sm:$0xff]
          %v4256 = vld [vmem:[%s8 + $0x190] sm:$0xff]
          %v4257 = vld [vmem:[%s8 + $0x198] sm:$0xff]
          %v4258 = vld [vmem:[%s8 + $0x1a0] sm:$0xff]
          %v4259 = vld [vmem:[%s8 + $0x1a8] sm:$0xff]
          %v4260 = vld [vmem:[%s8 + $0x1b0] sm:$0xff]
          %v4261 = vld [vmem:[%s8 + $0x1b8] sm:$0xff]
          %v4262 = vld [vmem:[%s8 + $0x1c0] sm:$0xff]
          %v4263 = vld [vmem:[%s8 + $0x1c8] sm:$0xff]
          %v4264 = vld [vmem:[%s8 + $0x1d0] sm:$0xff]
          %v4265 = vld [vmem:[%s8 + $0x1d8] sm:$0xff]
          %v4266 = vld [vmem:[%s8 + $0x1e0] sm:$0xff]
          %v4267 = vld [vmem:[%s8 + $0x1e8] sm:$0xff]
          %v4268 = vld [vmem:[%s8 + $0x1f0] sm:$0xff]
          %v4269 = vld [vmem:[%s8 + $0x1f8] sm:$0xff]
          %v4526 = vunpack.c.l.b16 %v3886
          %v4527 = vunpack.c.h.b16 %v3886
          %v4528 = vunpack.c.l.b16 %v3887
          %v4529 = vunpack.c.h.b16 %v3887
          %v4530 = vunpack.c.l.b16 %v3888
          %v4531 = vunpack.c.h.b16 %v3888
          %v4532 = vunpack.c.l.b16 %v3889
          %v4533 = vunpack.c.h.b16 %v3889
          %v4534 = vunpack.c.l.b16 %v3890
          %v4535 = vunpack.c.h.b16 %v3890
          %v4536 = vunpack.c.l.b16 %v3891
          %v4537 = vunpack.c.h.b16 %v3891
          %v4538 = vunpack.c.l.b16 %v3892
          %v4539 = vunpack.c.h.b16 %v3892
          %v4540 = vunpack.c.l.b16 %v3893
          %v4541 = vunpack.c.h.b16 %v3893
          %v4542 = vunpack.c.l.b16 %v3894
          %v4543 = vunpack.c.h.b16 %v3894
          %v4544 = vunpack.c.l.b16 %v3895
          %v4545 = vunpack.c.h.b16 %v3895
          %v4546 = vunpack.c.l.b16 %v3896
          %v4547 = vunpack.c.h.b16 %v3896
          %v4548 = vunpack.c.l.b16 %v3897
          %v4549 = vunpack.c.h.b16 %v3897
          %v4550 = vunpack.c.l.b16 %v3898
          %v4551 = vunpack.c.h.b16 %v3898
          %v4552 = vunpack.c.l.b16 %v3899
          %v4553 = vunpack.c.h.b16 %v3899
          %v4554 = vunpack.c.l.b16 %v3900
          %v4555 = vunpack.c.h.b16 %v3900
          %v4556 = vunpack.c.l.b16 %v3901
          %v4557 = vunpack.c.h.b16 %v3901
          %v4558 = vunpack.c.l.b16 %v3902
          %v4559 = vunpack.c.h.b16 %v3902
          %v4560 = vunpack.c.l.b16 %v3903
          %v4561 = vunpack.c.h.b16 %v3903
          %v4562 = vunpack.c.l.b16 %v3904
          %v4563 = vunpack.c.h.b16 %v3904
          %v4564 = vunpack.c.l.b16 %v3905
          %v4565 = vunpack.c.h.b16 %v3905
          %v4566 = vunpack.c.l.b16 %v3906
          %v4567 = vunpack.c.h.b16 %v3906
          %v4568 = vunpack.c.l.b16 %v3907
          %v4569 = vunpack.c.h.b16 %v3907
          %v4570 = vunpack.c.l.b16 %v3908
          %v4571 = vunpack.c.h.b16 %v3908
          %v4572 = vunpack.c.l.b16 %v3909
          %v4573 = vunpack.c.h.b16 %v3909
          %v4574 = vunpack.c.l.b16 %v3910
          %v4575 = vunpack.c.h.b16 %v3910
          %v4576 = vunpack.c.l.b16 %v3911
          %v4577 = vunpack.c.h.b16 %v3911
          %v4578 = vunpack.c.l.b16 %v3912
          %v4579 = vunpack.c.h.b16 %v3912
          %v4580 = vunpack.c.l.b16 %v3913
          %v4581 = vunpack.c.h.b16 %v3913
          %v4582 = vunpack.c.l.b16 %v3914
          %v4583 = vunpack.c.h.b16 %v3914
          %v4584 = vunpack.c.l.b16 %v3915
          %v4585 = vunpack.c.h.b16 %v3915
          %v4586 = vunpack.c.l.b16 %v3916
          %v4587 = vunpack.c.h.b16 %v3916
          %v4588 = vunpack.c.l.b16 %v3917
          %v4589 = vunpack.c.h.b16 %v3917
          %v4590 = vunpack.c.l.b16 %v3918
          %v4591 = vunpack.c.h.b16 %v3918
          %v4592 = vunpack.c.l.b16 %v3919
          %v4593 = vunpack.c.h.b16 %v3919
          %v4594 = vunpack.c.l.b16 %v3920
          %v4595 = vunpack.c.h.b16 %v3920
          %v4596 = vunpack.c.l.b16 %v3921
          %v4597 = vunpack.c.h.b16 %v3921
          %v4598 = vunpack.c.l.b16 %v3922
          %v4599 = vunpack.c.h.b16 %v3922
          %v4600 = vunpack.c.l.b16 %v3923
          %v4601 = vunpack.c.h.b16 %v3923
          %v4602 = vunpack.c.l.b16 %v3924
          %v4603 = vunpack.c.h.b16 %v3924
          %v4604 = vunpack.c.l.b16 %v3925
          %v4605 = vunpack.c.h.b16 %v3925
          %v4606 = vunpack.c.l.b16 %v3926
          %v4607 = vunpack.c.h.b16 %v3926
          %v4608 = vunpack.c.l.b16 %v3927
          %v4609 = vunpack.c.h.b16 %v3927
          %v4610 = vunpack.c.l.b16 %v3928
          %v4611 = vunpack.c.h.b16 %v3928
          %v4612 = vunpack.c.l.b16 %v3929
          %v4613 = vunpack.c.h.b16 %v3929
          %v4614 = vunpack.c.l.b16 %v3930
          %v4615 = vunpack.c.h.b16 %v3930
          %v4616 = vunpack.c.l.b16 %v3931
          %v4617 = vunpack.c.h.b16 %v3931
          %v4618 = vunpack.c.l.b16 %v3932
          %v4619 = vunpack.c.h.b16 %v3932
          %v4620 = vunpack.c.l.b16 %v3933
          %v4621 = vunpack.c.h.b16 %v3933
          %v4622 = vunpack.c.l.b16 %v3934
          %v4623 = vunpack.c.h.b16 %v3934
          %v4624 = vunpack.c.l.b16 %v3935
          %v4625 = vunpack.c.h.b16 %v3935
          %v4626 = vunpack.c.l.b16 %v3936
          %v4627 = vunpack.c.h.b16 %v3936
          %v4628 = vunpack.c.l.b16 %v3937
          %v4629 = vunpack.c.h.b16 %v3937
          %v4630 = vunpack.c.l.b16 %v3938
          %v4631 = vunpack.c.h.b16 %v3938
          %v4632 = vunpack.c.l.b16 %v3939
          %v4633 = vunpack.c.h.b16 %v3939
          %v4634 = vunpack.c.l.b16 %v3940
          %v4635 = vunpack.c.h.b16 %v3940
          %v4636 = vunpack.c.l.b16 %v3941
          %v4637 = vunpack.c.h.b16 %v3941
          %v4638 = vunpack.c.l.b16 %v3942
          %v4639 = vunpack.c.h.b16 %v3942
          %v4640 = vunpack.c.l.b16 %v3943
          %v4641 = vunpack.c.h.b16 %v3943
          %v4642 = vunpack.c.l.b16 %v3944
          %v4643 = vunpack.c.h.b16 %v3944
          %v4644 = vunpack.c.l.b16 %v3945
          %v4645 = vunpack.c.h.b16 %v3945
          %v4646 = vunpack.c.l.b16 %v3946
          %v4647 = vunpack.c.h.b16 %v3946
          %v4648 = vunpack.c.l.b16 %v3947
          %v4649 = vunpack.c.h.b16 %v3947
          %v4650 = vunpack.c.l.b16 %v3948
          %v4651 = vunpack.c.h.b16 %v3948
          %v4652 = vunpack.c.l.b16 %v3949
          %v4653 = vunpack.c.h.b16 %v3949
          %v4654 = vunpack.c.l.b16 %v3950
          %v4655 = vunpack.c.h.b16 %v3950
          %v4656 = vunpack.c.l.b16 %v3951
          %v4657 = vunpack.c.h.b16 %v3951
          %v4658 = vunpack.c.l.b16 %v3952
          %v4659 = vunpack.c.h.b16 %v3952
          %v4660 = vunpack.c.l.b16 %v3953
          %v4661 = vunpack.c.h.b16 %v3953
          %v4662 = vunpack.c.l.b16 %v3954
          %v4663 = vunpack.c.h.b16 %v3954
          %v4664 = vunpack.c.l.b16 %v3955
          %v4665 = vunpack.c.h.b16 %v3955
          %v4666 = vunpack.c.l.b16 %v3956
          %v4667 = vunpack.c.h.b16 %v3956
          %v4668 = vunpack.c.l.b16 %v3957
          %v4669 = vunpack.c.h.b16 %v3957
          %v4670 = vunpack.c.l.b16 %v3958
          %v4671 = vunpack.c.h.b16 %v3958
          %v4672 = vunpack.c.l.b16 %v3959
          %v4673 = vunpack.c.h.b16 %v3959
          %v4674 = vunpack.c.l.b16 %v3960
          %v4675 = vunpack.c.h.b16 %v3960
          %v4676 = vunpack.c.l.b16 %v3961
          %v4677 = vunpack.c.h.b16 %v3961
          %v4678 = vunpack.c.l.b16 %v3962
          %v4679 = vunpack.c.h.b16 %v3962
          %v4680 = vunpack.c.l.b16 %v3963
          %v4681 = vunpack.c.h.b16 %v3963
          %v4682 = vunpack.c.l.b16 %v3964
          %v4683 = vunpack.c.h.b16 %v3964
          %v4684 = vunpack.c.l.b16 %v3965
          %v4685 = vunpack.c.h.b16 %v3965
          %v4686 = vunpack.c.l.b16 %v3966
          %v4687 = vunpack.c.h.b16 %v3966
          %v4688 = vunpack.c.l.b16 %v3967
          %v4689 = vunpack.c.h.b16 %v3967
          %v4690 = vunpack.c.l.b16 %v3968
          %v4691 = vunpack.c.h.b16 %v3968
          %v4692 = vunpack.c.l.b16 %v3969
          %v4693 = vunpack.c.h.b16 %v3969
          %v4694 = vunpack.c.l.b16 %v3970
          %v4695 = vunpack.c.h.b16 %v3970
          %v4696 = vunpack.c.l.b16 %v3971
          %v4697 = vunpack.c.h.b16 %v3971
          %v4698 = vunpack.c.l.b16 %v3972
          %v4699 = vunpack.c.h.b16 %v3972
          %v4700 = vunpack.c.l.b16 %v3973
          %v4701 = vunpack.c.h.b16 %v3973
          %v4702 = vunpack.c.l.b16 %v3974
          %v4703 = vunpack.c.h.b16 %v3974
          %v4704 = vunpack.c.l.b16 %v3975
          %v4705 = vunpack.c.h.b16 %v3975
          %v4706 = vunpack.c.l.b16 %v3976
          %v4707 = vunpack.c.h.b16 %v3976
          %v4708 = vunpack.c.l.b16 %v3977
          %v4709 = vunpack.c.h.b16 %v3977
          %v4710 = vunpack.c.l.b16 %v3978
          %v4711 = vunpack.c.h.b16 %v3978
          %v4712 = vunpack.c.l.b16 %v3979
          %v4713 = vunpack.c.h.b16 %v3979
          %v4714 = vunpack.c.l.b16 %v3980
          %v4715 = vunpack.c.h.b16 %v3980
          %v4716 = vunpack.c.l.b16 %v3981
          %v4717 = vunpack.c.h.b16 %v3981
          %v4718 = vunpack.c.l.b16 %v3982
          %v4719 = vunpack.c.h.b16 %v3982
          %v4720 = vunpack.c.l.b16 %v3983
          %v4721 = vunpack.c.h.b16 %v3983
          %v4722 = vunpack.c.l.b16 %v3984
          %v4723 = vunpack.c.h.b16 %v3984
          %v4724 = vunpack.c.l.b16 %v3985
          %v4725 = vunpack.c.h.b16 %v3985
          %v4726 = vunpack.c.l.b16 %v3986
          %v4727 = vunpack.c.h.b16 %v3986
          %v4728 = vunpack.c.l.b16 %v3987
          %v4729 = vunpack.c.h.b16 %v3987
          %v4730 = vunpack.c.l.b16 %v3988
          %v4731 = vunpack.c.h.b16 %v3988
          %v4732 = vunpack.c.l.b16 %v3989
          %v4733 = vunpack.c.h.b16 %v3989
          %v4734 = vunpack.c.l.b16 %v3990
          %v4735 = vunpack.c.h.b16 %v3990
          %v4736 = vunpack.c.l.b16 %v3991
          %v4737 = vunpack.c.h.b16 %v3991
          %v4738 = vunpack.c.l.b16 %v3992
          %v4739 = vunpack.c.h.b16 %v3992
          %v4740 = vunpack.c.l.b16 %v3993
          %v4741 = vunpack.c.h.b16 %v3993
          %v4742 = vunpack.c.l.b16 %v3994
          %v4743 = vunpack.c.h.b16 %v3994
          %v4744 = vunpack.c.l.b16 %v3995
          %v4745 = vunpack.c.h.b16 %v3995
          %v4746 = vunpack.c.l.b16 %v3996
          %v4747 = vunpack.c.h.b16 %v3996
          %v4748 = vunpack.c.l.b16 %v3997
          %v4749 = vunpack.c.h.b16 %v3997
          %v4750 = vunpack.c.l.b16 %v3998
          %v4751 = vunpack.c.h.b16 %v3998
          %v4752 = vunpack.c.l.b16 %v3999
          %v4753 = vunpack.c.h.b16 %v3999
          %v4754 = vunpack.c.l.b16 %v4000
          %v4755 = vunpack.c.h.b16 %v4000
          %v4756 = vunpack.c.l.b16 %v4001
          %v4757 = vunpack.c.h.b16 %v4001
          %v4758 = vunpack.c.l.b16 %v4002
          %v4759 = vunpack.c.h.b16 %v4002
          %v4760 = vunpack.c.l.b16 %v4003
          %v4761 = vunpack.c.h.b16 %v4003
          %v4762 = vunpack.c.l.b16 %v4004
          %v4763 = vunpack.c.h.b16 %v4004
          %v4764 = vunpack.c.l.b16 %v4005
          %v4765 = vunpack.c.h.b16 %v4005
          %v4766 = vunpack.c.l.b16 %v4006
          %v4767 = vunpack.c.h.b16 %v4006
          %v4768 = vunpack.c.l.b16 %v4007
          %v4769 = vunpack.c.h.b16 %v4007
          %v4770 = vunpack.c.l.b16 %v4008
          %v4771 = vunpack.c.h.b16 %v4008
          %v4772 = vunpack.c.l.b16 %v4009
          %v4773 = vunpack.c.h.b16 %v4009
          %v4774 = vunpack.c.l.b16 %v4010
          %v4775 = vunpack.c.h.b16 %v4010
          %v4776 = vunpack.c.l.b16 %v4011
          %v4777 = vunpack.c.h.b16 %v4011
          %v4778 = vunpack.c.l.b16 %v4012
          %v4779 = vunpack.c.h.b16 %v4012
          %v4780 = vunpack.c.l.b16 %v4013
          %v4781 = vunpack.c.h.b16 %v4013
          %v4782 = vunpack.c.l.b16 %v4014
          %v4783 = vunpack.c.h.b16 %v4014
          %v4784 = vunpack.c.l.b16 %v4015
          %v4785 = vunpack.c.h.b16 %v4015
          %v4786 = vunpack.c.l.b16 %v4016
          %v4787 = vunpack.c.h.b16 %v4016
          %v4788 = vunpack.c.l.b16 %v4017
          %v4789 = vunpack.c.h.b16 %v4017
          %v4790 = vunpack.c.l.b16 %v4018
          %v4791 = vunpack.c.h.b16 %v4018
          %v4792 = vunpack.c.l.b16 %v4019
          %v4793 = vunpack.c.h.b16 %v4019
          %v4794 = vunpack.c.l.b16 %v4020
          %v4795 = vunpack.c.h.b16 %v4020
          %v4796 = vunpack.c.l.b16 %v4021
          %v4797 = vunpack.c.h.b16 %v4021
          %v4798 = vunpack.c.l.b16 %v4022
          %v4799 = vunpack.c.h.b16 %v4022
          %v4800 = vunpack.c.l.b16 %v4023
          %v4801 = vunpack.c.h.b16 %v4023
          %v4802 = vunpack.c.l.b16 %v4024
          %v4803 = vunpack.c.h.b16 %v4024
          %v4804 = vunpack.c.l.b16 %v4025
          %v4805 = vunpack.c.h.b16 %v4025
          %v4806 = vunpack.c.l.b16 %v4026
          %v4807 = vunpack.c.h.b16 %v4026
          %v4808 = vunpack.c.l.b16 %v4027
          %v4809 = vunpack.c.h.b16 %v4027
          %v4810 = vunpack.c.l.b16 %v4028
          %v4811 = vunpack.c.h.b16 %v4028
          %v4812 = vunpack.c.l.b16 %v4029
          %v4813 = vunpack.c.h.b16 %v4029
          %v4814 = vunpack.c.l.b16 %v4030
          %v4815 = vunpack.c.h.b16 %v4030
          %v4816 = vunpack.c.l.b16 %v4031
          %v4817 = vunpack.c.h.b16 %v4031
          %v4818 = vunpack.c.l.b16 %v4032
          %v4819 = vunpack.c.h.b16 %v4032
          %v4820 = vunpack.c.l.b16 %v4033
          %v4821 = vunpack.c.h.b16 %v4033
          %v4822 = vunpack.c.l.b16 %v4034
          %v4823 = vunpack.c.h.b16 %v4034
          %v4824 = vunpack.c.l.b16 %v4035
          %v4825 = vunpack.c.h.b16 %v4035
          %v4826 = vunpack.c.l.b16 %v4036
          %v4827 = vunpack.c.h.b16 %v4036
          %v4828 = vunpack.c.l.b16 %v4037
          %v4829 = vunpack.c.h.b16 %v4037
          %v4830 = vunpack.c.l.b16 %v4038
          %v4831 = vunpack.c.h.b16 %v4038
          %v4832 = vunpack.c.l.b16 %v4039
          %v4833 = vunpack.c.h.b16 %v4039
          %v4834 = vunpack.c.l.b16 %v4040
          %v4835 = vunpack.c.h.b16 %v4040
          %v4836 = vunpack.c.l.b16 %v4041
          %v4837 = vunpack.c.h.b16 %v4041
          %v4838 = vunpack.c.l.b16 %v4042
          %v4839 = vunpack.c.h.b16 %v4042
          %v4840 = vunpack.c.l.b16 %v4043
          %v4841 = vunpack.c.h.b16 %v4043
          %v4842 = vunpack.c.l.b16 %v4044
          %v4843 = vunpack.c.h.b16 %v4044
          %v4844 = vunpack.c.l.b16 %v4045
          %v4845 = vunpack.c.h.b16 %v4045
          %v4846 = vunpack.c.l.b16 %v4046
          %v4847 = vunpack.c.h.b16 %v4046
          %v4848 = vunpack.c.l.b16 %v4047
          %v4849 = vunpack.c.h.b16 %v4047
          %v4850 = vunpack.c.l.b16 %v4048
          %v4851 = vunpack.c.h.b16 %v4048
          %v4852 = vunpack.c.l.b16 %v4049
          %v4853 = vunpack.c.h.b16 %v4049
          %v4854 = vunpack.c.l.b16 %v4050
          %v4855 = vunpack.c.h.b16 %v4050
          %v4856 = vunpack.c.l.b16 %v4051
          %v4857 = vunpack.c.h.b16 %v4051
          %v4858 = vunpack.c.l.b16 %v4052
          %v4859 = vunpack.c.h.b16 %v4052
          %v4860 = vunpack.c.l.b16 %v4053
          %v4861 = vunpack.c.h.b16 %v4053
          %v4862 = vunpack.c.l.b16 %v4054
          %v4863 = vunpack.c.h.b16 %v4054
          %v4864 = vunpack.c.l.b16 %v4055
          %v4865 = vunpack.c.h.b16 %v4055
          %v4866 = vunpack.c.l.b16 %v4056
          %v4867 = vunpack.c.h.b16 %v4056
          %v4868 = vunpack.c.l.b16 %v4057
          %v4869 = vunpack.c.h.b16 %v4057
          %v4870 = vunpack.c.l.b16 %v4058
          %v4871 = vunpack.c.h.b16 %v4058
          %v4872 = vunpack.c.l.b16 %v4059
          %v4873 = vunpack.c.h.b16 %v4059
          %v4874 = vunpack.c.l.b16 %v4060
          %v4875 = vunpack.c.h.b16 %v4060
          %v4876 = vunpack.c.l.b16 %v4061
          %v4877 = vunpack.c.h.b16 %v4061
          %v4878 = vunpack.c.l.b16 %v4062
          %v4879 = vunpack.c.h.b16 %v4062
          %v4880 = vunpack.c.l.b16 %v4063
          %v4881 = vunpack.c.h.b16 %v4063
          %v4882 = vunpack.c.l.b16 %v4064
          %v4883 = vunpack.c.h.b16 %v4064
          %v4884 = vunpack.c.l.b16 %v4065
          %v4885 = vunpack.c.h.b16 %v4065
          %v4886 = vunpack.c.l.b16 %v4066
          %v4887 = vunpack.c.h.b16 %v4066
          %v4888 = vunpack.c.l.b16 %v4067
          %v4889 = vunpack.c.h.b16 %v4067
          %v4890 = vunpack.c.l.b16 %v4068
          %v4891 = vunpack.c.h.b16 %v4068
          %v4892 = vunpack.c.l.b16 %v4069
          %v4893 = vunpack.c.h.b16 %v4069
          %v4894 = vunpack.c.l.b16 %v4070
          %v4895 = vunpack.c.h.b16 %v4070
          %v4896 = vunpack.c.l.b16 %v4071
          %v4897 = vunpack.c.h.b16 %v4071
          %v4898 = vunpack.c.l.b16 %v4072
          %v4899 = vunpack.c.h.b16 %v4072
          %v4900 = vunpack.c.l.b16 %v4073
          %v4901 = vunpack.c.h.b16 %v4073
          %v4902 = vunpack.c.l.b16 %v4074
          %v4903 = vunpack.c.h.b16 %v4074
          %v4904 = vunpack.c.l.b16 %v4075
          %v4905 = vunpack.c.h.b16 %v4075
          %v4906 = vunpack.c.l.b16 %v4076
          %v4907 = vunpack.c.h.b16 %v4076
          %v4908 = vunpack.c.l.b16 %v4077
          %v4909 = vunpack.c.h.b16 %v4077
          %v4910 = vunpack.c.l.b16 %v4078
          %v4911 = vunpack.c.h.b16 %v4078
          %v4912 = vunpack.c.l.b16 %v4079
          %v4913 = vunpack.c.h.b16 %v4079
          %v4914 = vunpack.c.l.b16 %v4080
          %v4915 = vunpack.c.h.b16 %v4080
          %v4916 = vunpack.c.l.b16 %v4081
          %v4917 = vunpack.c.h.b16 %v4081
          %v4918 = vunpack.c.l.b16 %v4082
          %v4919 = vunpack.c.h.b16 %v4082
          %v4920 = vunpack.c.l.b16 %v4083
          %v4921 = vunpack.c.h.b16 %v4083
          %v4922 = vunpack.c.l.b16 %v4084
          %v4923 = vunpack.c.h.b16 %v4084
          %v4924 = vunpack.c.l.b16 %v4085
          %v4925 = vunpack.c.h.b16 %v4085
          %v4926 = vunpack.c.l.b16 %v4086
          %v4927 = vunpack.c.h.b16 %v4086
          %v4928 = vunpack.c.l.b16 %v4087
          %v4929 = vunpack.c.h.b16 %v4087
          %v4930 = vunpack.c.l.b16 %v4088
          %v4931 = vunpack.c.h.b16 %v4088
          %v4932 = vunpack.c.l.b16 %v4089
          %v4933 = vunpack.c.h.b16 %v4089
          %v4934 = vunpack.c.l.b16 %v4090
          %v4935 = vunpack.c.h.b16 %v4090
          %v4936 = vunpack.c.l.b16 %v4091
          %v4937 = vunpack.c.h.b16 %v4091
          %v4938 = vunpack.c.l.b16 %v4092
          %v4939 = vunpack.c.h.b16 %v4092
          %v4940 = vunpack.c.l.b16 %v4093
          %v4941 = vunpack.c.h.b16 %v4093
          %v4942 = vunpack.c.l.b16 %v4094
          %v4943 = vunpack.c.h.b16 %v4094
          %v4944 = vunpack.c.l.b16 %v4095
          %v4945 = vunpack.c.h.b16 %v4095
          %v4946 = vunpack.c.l.b16 %v4096
          %v4947 = vunpack.c.h.b16 %v4096
          %v4948 = vunpack.c.l.b16 %v4097
          %v4949 = vunpack.c.h.b16 %v4097
          %v4950 = vunpack.c.l.b16 %v4098
          %v4951 = vunpack.c.h.b16 %v4098
          %v4952 = vunpack.c.l.b16 %v4099
          %v4953 = vunpack.c.h.b16 %v4099
          %v4954 = vunpack.c.l.b16 %v4100
          %v4955 = vunpack.c.h.b16 %v4100
          %v4956 = vunpack.c.l.b16 %v4101
          %v4957 = vunpack.c.h.b16 %v4101
          %v4958 = vunpack.c.l.b16 %v4102
          %v4959 = vunpack.c.h.b16 %v4102
          %v4960 = vunpack.c.l.b16 %v4103
          %v4961 = vunpack.c.h.b16 %v4103
          %v4962 = vunpack.c.l.b16 %v4104
          %v4963 = vunpack.c.h.b16 %v4104
          %v4964 = vunpack.c.l.b16 %v4105
          %v4965 = vunpack.c.h.b16 %v4105
          %v4966 = vunpack.c.l.b16 %v4106
          %v4967 = vunpack.c.h.b16 %v4106
          %v4968 = vunpack.c.l.b16 %v4107
          %v4969 = vunpack.c.h.b16 %v4107
          %v4970 = vunpack.c.l.b16 %v4108
          %v4971 = vunpack.c.h.b16 %v4108
          %v4972 = vunpack.c.l.b16 %v4109
          %v4973 = vunpack.c.h.b16 %v4109
          %v4974 = vunpack.c.l.b16 %v4110
          %v4975 = vunpack.c.h.b16 %v4110
          %v4976 = vunpack.c.l.b16 %v4111
          %v4977 = vunpack.c.h.b16 %v4111
          %v4978 = vunpack.c.l.b16 %v4112
          %v4979 = vunpack.c.h.b16 %v4112
          %v4980 = vunpack.c.l.b16 %v4113
          %v4981 = vunpack.c.h.b16 %v4113
          %v4982 = vunpack.c.l.b16 %v4114
          %v4983 = vunpack.c.h.b16 %v4114
          %v4984 = vunpack.c.l.b16 %v4115
          %v4985 = vunpack.c.h.b16 %v4115
          %v4986 = vunpack.c.l.b16 %v4116
          %v4987 = vunpack.c.h.b16 %v4116
          %v4988 = vunpack.c.l.b16 %v4117
          %v4989 = vunpack.c.h.b16 %v4117
          %v4990 = vunpack.c.l.b16 %v4118
          %v4991 = vunpack.c.h.b16 %v4118
          %v4992 = vunpack.c.l.b16 %v4119
          %v4993 = vunpack.c.h.b16 %v4119
          %v4994 = vunpack.c.l.b16 %v4120
          %v4995 = vunpack.c.h.b16 %v4120
          %v4996 = vunpack.c.l.b16 %v4121
          %v4997 = vunpack.c.h.b16 %v4121
          %v4998 = vunpack.c.l.b16 %v4122
          %v4999 = vunpack.c.h.b16 %v4122
          %v5000 = vunpack.c.l.b16 %v4123
          %v5001 = vunpack.c.h.b16 %v4123
          %v5002 = vunpack.c.l.b16 %v4124
          %v5003 = vunpack.c.h.b16 %v4124
          %v5004 = vunpack.c.l.b16 %v4125
          %v5005 = vunpack.c.h.b16 %v4125
          %v5006 = vunpack.c.l.b16 %v4126
          %v5007 = vunpack.c.h.b16 %v4126
          %v5008 = vunpack.c.l.b16 %v4127
          %v5009 = vunpack.c.h.b16 %v4127
          %v5010 = vunpack.c.l.b16 %v4128
          %v5011 = vunpack.c.h.b16 %v4128
          %v5012 = vunpack.c.l.b16 %v4129
          %v5013 = vunpack.c.h.b16 %v4129
          %v5014 = vunpack.c.l.b16 %v4130
          %v5015 = vunpack.c.h.b16 %v4130
          %v5016 = vunpack.c.l.b16 %v4131
          %v5017 = vunpack.c.h.b16 %v4131
          %v5018 = vunpack.c.l.b16 %v4132
          %v5019 = vunpack.c.h.b16 %v4132
          %v5020 = vunpack.c.l.b16 %v4133
          %v5021 = vunpack.c.h.b16 %v4133
          %v5022 = vunpack.c.l.b16 %v4134
          %v5023 = vunpack.c.h.b16 %v4134
          %v5024 = vunpack.c.l.b16 %v4135
          %v5025 = vunpack.c.h.b16 %v4135
          %v5026 = vunpack.c.l.b16 %v4136
          %v5027 = vunpack.c.h.b16 %v4136
          %v5028 = vunpack.c.l.b16 %v4137
          %v5029 = vunpack.c.h.b16 %v4137
          %v5030 = vunpack.c.l.b16 %v4138
          %v5031 = vunpack.c.h.b16 %v4138
          %v5032 = vunpack.c.l.b16 %v4139
          %v5033 = vunpack.c.h.b16 %v4139
          %v5034 = vunpack.c.l.b16 %v4140
          %v5035 = vunpack.c.h.b16 %v4140
          %v5036 = vunpack.c.l.b16 %v4141
          %v5037 = vunpack.c.h.b16 %v4141
          %v5038 = vpack.c.b16 %v4534, %v4526
          %v5039 = vpack.c.b16 %v4535, %v4527
          %v5040 = vpack.c.b16 %v4536, %v4528
          %v5041 = vpack.c.b16 %v4537, %v4529
          %v5042 = vpack.c.b16 %v4538, %v4530
          %v5043 = vpack.c.b16 %v4539, %v4531
          %v5044 = vpack.c.b16 %v4540, %v4532
          %v5045 = vpack.c.b16 %v4541, %v4533
          %v5046 = vpack.c.b16 %v4550, %v4542
          %v5047 = vpack.c.b16 %v4551, %v4543
          %v5048 = vpack.c.b16 %v4552, %v4544
          %v5049 = vpack.c.b16 %v4553, %v4545
          %v5050 = vpack.c.b16 %v4554, %v4546
          %v5051 = vpack.c.b16 %v4555, %v4547
          %v5052 = vpack.c.b16 %v4556, %v4548
          %v5053 = vpack.c.b16 %v4557, %v4549
          %v5054 = vpack.c.b16 %v4566, %v4558
          %v5055 = vpack.c.b16 %v4567, %v4559
          %v5056 = vpack.c.b16 %v4568, %v4560
          %v5057 = vpack.c.b16 %v4569, %v4561
          %v5058 = vpack.c.b16 %v4570, %v4562
          %v5059 = vpack.c.b16 %v4571, %v4563
          %v5060 = vpack.c.b16 %v4572, %v4564
          %v5061 = vpack.c.b16 %v4573, %v4565
          %v5062 = vpack.c.b16 %v4582, %v4574
          %v5063 = vpack.c.b16 %v4583, %v4575
          %v5064 = vpack.c.b16 %v4584, %v4576
          %v5065 = vpack.c.b16 %v4585, %v4577
          %v5066 = vpack.c.b16 %v4586, %v4578
          %v5067 = vpack.c.b16 %v4587, %v4579
          %v5068 = vpack.c.b16 %v4588, %v4580
          %v5069 = vpack.c.b16 %v4589, %v4581
          %v5070 = vpack.c.b16 %v4598, %v4590
          %v5071 = vpack.c.b16 %v4599, %v4591
          %v5072 = vpack.c.b16 %v4600, %v4592
          %v5073 = vpack.c.b16 %v4601, %v4593
          %v5074 = vpack.c.b16 %v4602, %v4594
          %v5075 = vpack.c.b16 %v4603, %v4595
          %v5076 = vpack.c.b16 %v4604, %v4596
          %v5077 = vpack.c.b16 %v4605, %v4597
          %v5078 = vpack.c.b16 %v4614, %v4606
          %v5079 = vpack.c.b16 %v4615, %v4607
          %v5080 = vpack.c.b16 %v4616, %v4608
          %v5081 = vpack.c.b16 %v4617, %v4609
          %v5082 = vpack.c.b16 %v4618, %v4610
          %v5083 = vpack.c.b16 %v4619, %v4611
          %v5084 = vpack.c.b16 %v4620, %v4612
          %v5085 = vpack.c.b16 %v4621, %v4613
          %v5086 = vpack.c.b16 %v4630, %v4622
          %v5087 = vpack.c.b16 %v4631, %v4623
          %v5088 = vpack.c.b16 %v4632, %v4624
          %v5089 = vpack.c.b16 %v4633, %v4625
          %v5090 = vpack.c.b16 %v4634, %v4626
          %v5091 = vpack.c.b16 %v4635, %v4627
          %v5092 = vpack.c.b16 %v4636, %v4628
          %v5093 = vpack.c.b16 %v4637, %v4629
          %v5094 = vpack.c.b16 %v4646, %v4638
          %v5095 = vpack.c.b16 %v4647, %v4639
          %v5096 = vpack.c.b16 %v4648, %v4640
          %v5097 = vpack.c.b16 %v4649, %v4641
          %v5098 = vpack.c.b16 %v4650, %v4642
          %v5099 = vpack.c.b16 %v4651, %v4643
          %v5100 = vpack.c.b16 %v4652, %v4644
          %v5101 = vpack.c.b16 %v4653, %v4645
          %v5102 = vpack.c.b16 %v4662, %v4654
          %v5103 = vpack.c.b16 %v4663, %v4655
          %v5104 = vpack.c.b16 %v4664, %v4656
          %v5105 = vpack.c.b16 %v4665, %v4657
          %v5106 = vpack.c.b16 %v4666, %v4658
          %v5107 = vpack.c.b16 %v4667, %v4659
          %v5108 = vpack.c.b16 %v4668, %v4660
          %v5109 = vpack.c.b16 %v4669, %v4661
          %v5110 = vpack.c.b16 %v4678, %v4670
          %v5111 = vpack.c.b16 %v4679, %v4671
          %v5112 = vpack.c.b16 %v4680, %v4672
          %v5113 = vpack.c.b16 %v4681, %v4673
          %v5114 = vpack.c.b16 %v4682, %v4674
          %v5115 = vpack.c.b16 %v4683, %v4675
          %v5116 = vpack.c.b16 %v4684, %v4676
          %v5117 = vpack.c.b16 %v4685, %v4677
          %v5118 = vpack.c.b16 %v4694, %v4686
          %v5119 = vpack.c.b16 %v4695, %v4687
          %v5120 = vpack.c.b16 %v4696, %v4688
          %v5121 = vpack.c.b16 %v4697, %v4689
          %v5122 = vpack.c.b16 %v4698, %v4690
          %v5123 = vpack.c.b16 %v4699, %v4691
          %v5124 = vpack.c.b16 %v4700, %v4692
          %v5125 = vpack.c.b16 %v4701, %v4693
          %v5126 = vpack.c.b16 %v4710, %v4702
          %v5127 = vpack.c.b16 %v4711, %v4703
          %v5128 = vpack.c.b16 %v4712, %v4704
          %v5129 = vpack.c.b16 %v4713, %v4705
          %v5130 = vpack.c.b16 %v4714, %v4706
          %v5131 = vpack.c.b16 %v4715, %v4707
          %v5132 = vpack.c.b16 %v4716, %v4708
          %v5133 = vpack.c.b16 %v4717, %v4709
          %v5134 = vpack.c.b16 %v4726, %v4718
          %v5135 = vpack.c.b16 %v4727, %v4719
          %v5136 = vpack.c.b16 %v4728, %v4720
          %v5137 = vpack.c.b16 %v4729, %v4721
          %v5138 = vpack.c.b16 %v4730, %v4722
          %v5139 = vpack.c.b16 %v4731, %v4723
          %v5140 = vpack.c.b16 %v4732, %v4724
          %v5141 = vpack.c.b16 %v4733, %v4725
          %v5142 = vpack.c.b16 %v4742, %v4734
          %v5143 = vpack.c.b16 %v4743, %v4735
          %v5144 = vpack.c.b16 %v4744, %v4736
          %v5145 = vpack.c.b16 %v4745, %v4737
          %v5146 = vpack.c.b16 %v4746, %v4738
          %v5147 = vpack.c.b16 %v4747, %v4739
          %v5148 = vpack.c.b16 %v4748, %v4740
          %v5149 = vpack.c.b16 %v4749, %v4741
          %v5150 = vpack.c.b16 %v4758, %v4750
          %v5151 = vpack.c.b16 %v4759, %v4751
          %v5152 = vpack.c.b16 %v4760, %v4752
          %v5153 = vpack.c.b16 %v4761, %v4753
          %v5154 = vpack.c.b16 %v4762, %v4754
          %v5155 = vpack.c.b16 %v4763, %v4755
          %v5156 = vpack.c.b16 %v4764, %v4756
          %v5157 = vpack.c.b16 %v4765, %v4757
          %v5158 = vpack.c.b16 %v4774, %v4766
          %v5159 = vpack.c.b16 %v4775, %v4767
          %v5160 = vpack.c.b16 %v4776, %v4768
          %v5161 = vpack.c.b16 %v4777, %v4769
          %v5162 = vpack.c.b16 %v4778, %v4770
          %v5163 = vpack.c.b16 %v4779, %v4771
          %v5164 = vpack.c.b16 %v4780, %v4772
          %v5165 = vpack.c.b16 %v4781, %v4773
          %v5166 = vpack.c.b16 %v4790, %v4782
          %v5167 = vpack.c.b16 %v4791, %v4783
          %v5168 = vpack.c.b16 %v4792, %v4784
          %v5169 = vpack.c.b16 %v4793, %v4785
          %v5170 = vpack.c.b16 %v4794, %v4786
          %v5171 = vpack.c.b16 %v4795, %v4787
          %v5172 = vpack.c.b16 %v4796, %v4788
          %v5173 = vpack.c.b16 %v4797, %v4789
          %v5174 = vpack.c.b16 %v4806, %v4798
          %v5175 = vpack.c.b16 %v4807, %v4799
          %v5176 = vpack.c.b16 %v4808, %v4800
          %v5177 = vpack.c.b16 %v4809, %v4801
          %v5178 = vpack.c.b16 %v4810, %v4802
          %v5179 = vpack.c.b16 %v4811, %v4803
          %v5180 = vpack.c.b16 %v4812, %v4804
          %v5181 = vpack.c.b16 %v4813, %v4805
          %v5182 = vpack.c.b16 %v4822, %v4814
          %v5183 = vpack.c.b16 %v4823, %v4815
          %v5184 = vpack.c.b16 %v4824, %v4816
          %v5185 = vpack.c.b16 %v4825, %v4817
          %v5186 = vpack.c.b16 %v4826, %v4818
          %v5187 = vpack.c.b16 %v4827, %v4819
          %v5188 = vpack.c.b16 %v4828, %v4820
          %v5189 = vpack.c.b16 %v4829, %v4821
          %v5190 = vpack.c.b16 %v4838, %v4830
          %v5191 = vpack.c.b16 %v4839, %v4831
          %v5192 = vpack.c.b16 %v4840, %v4832
          %v5193 = vpack.c.b16 %v4841, %v4833
          %v5194 = vpack.c.b16 %v4842, %v4834
          %v5195 = vpack.c.b16 %v4843, %v4835
          %v5196 = vpack.c.b16 %v4844, %v4836
          %v5197 = vpack.c.b16 %v4845, %v4837
          %v5198 = vpack.c.b16 %v4854, %v4846
          %v5199 = vpack.c.b16 %v4855, %v4847
          %v5200 = vpack.c.b16 %v4856, %v4848
          %v5201 = vpack.c.b16 %v4857, %v4849
          %v5202 = vpack.c.b16 %v4858, %v4850
          %v5203 = vpack.c.b16 %v4859, %v4851
          %v5204 = vpack.c.b16 %v4860, %v4852
          %v5205 = vpack.c.b16 %v4861, %v4853
          %v5206 = vpack.c.b16 %v4870, %v4862
          %v5207 = vpack.c.b16 %v4871, %v4863
          %v5208 = vpack.c.b16 %v4872, %v4864
          %v5209 = vpack.c.b16 %v4873, %v4865
          %v5210 = vpack.c.b16 %v4874, %v4866
          %v5211 = vpack.c.b16 %v4875, %v4867
          %v5212 = vpack.c.b16 %v4876, %v4868
          %v5213 = vpack.c.b16 %v4877, %v4869
          %v5214 = vpack.c.b16 %v4886, %v4878
          %v5215 = vpack.c.b16 %v4887, %v4879
          %v5216 = vpack.c.b16 %v4888, %v4880
          %v5217 = vpack.c.b16 %v4889, %v4881
          %v5218 = vpack.c.b16 %v4890, %v4882
          %v5219 = vpack.c.b16 %v4891, %v4883
          %v5220 = vpack.c.b16 %v4892, %v4884
          %v5221 = vpack.c.b16 %v4893, %v4885
          %v5222 = vpack.c.b16 %v4902, %v4894
          %v5223 = vpack.c.b16 %v4903, %v4895
          %v5224 = vpack.c.b16 %v4904, %v4896
          %v5225 = vpack.c.b16 %v4905, %v4897
          %v5226 = vpack.c.b16 %v4906, %v4898
          %v5227 = vpack.c.b16 %v4907, %v4899
          %v5228 = vpack.c.b16 %v4908, %v4900
          %v5229 = vpack.c.b16 %v4909, %v4901
          %v5230 = vpack.c.b16 %v4918, %v4910
          %v5231 = vpack.c.b16 %v4919, %v4911
          %v5232 = vpack.c.b16 %v4920, %v4912
          %v5233 = vpack.c.b16 %v4921, %v4913
          %v5234 = vpack.c.b16 %v4922, %v4914
          %v5235 = vpack.c.b16 %v4923, %v4915
          %v5236 = vpack.c.b16 %v4924, %v4916
          %v5237 = vpack.c.b16 %v4925, %v4917
          %v5238 = vpack.c.b16 %v4934, %v4926
          %v5239 = vpack.c.b16 %v4935, %v4927
          %v5240 = vpack.c.b16 %v4936, %v4928
          %v5241 = vpack.c.b16 %v4937, %v4929
          %v5242 = vpack.c.b16 %v4938, %v4930
          %v5243 = vpack.c.b16 %v4939, %v4931
          %v5244 = vpack.c.b16 %v4940, %v4932
          %v5245 = vpack.c.b16 %v4941, %v4933
          %v5246 = vpack.c.b16 %v4950, %v4942
          %v5247 = vpack.c.b16 %v4951, %v4943
          %v5248 = vpack.c.b16 %v4952, %v4944
          %v5249 = vpack.c.b16 %v4953, %v4945
          %v5250 = vpack.c.b16 %v4954, %v4946
          %v5251 = vpack.c.b16 %v4955, %v4947
          %v5252 = vpack.c.b16 %v4956, %v4948
          %v5253 = vpack.c.b16 %v4957, %v4949
          %v5254 = vpack.c.b16 %v4966, %v4958
          %v5255 = vpack.c.b16 %v4967, %v4959
          %v5256 = vpack.c.b16 %v4968, %v4960
          %v5257 = vpack.c.b16 %v4969, %v4961
          %v5258 = vpack.c.b16 %v4970, %v4962
          %v5259 = vpack.c.b16 %v4971, %v4963
          %v5260 = vpack.c.b16 %v4972, %v4964
          %v5261 = vpack.c.b16 %v4973, %v4965
          %v5262 = vpack.c.b16 %v4982, %v4974
          %v5263 = vpack.c.b16 %v4983, %v4975
          %v5264 = vpack.c.b16 %v4984, %v4976
          %v5265 = vpack.c.b16 %v4985, %v4977
          %v5266 = vpack.c.b16 %v4986, %v4978
          %v5267 = vpack.c.b16 %v4987, %v4979
          %v5268 = vpack.c.b16 %v4988, %v4980
          %v5269 = vpack.c.b16 %v4989, %v4981
          %v5270 = vpack.c.b16 %v4998, %v4990
          %v5271 = vpack.c.b16 %v4999, %v4991
          %v5272 = vpack.c.b16 %v5000, %v4992
          %v5273 = vpack.c.b16 %v5001, %v4993
          %v5274 = vpack.c.b16 %v5002, %v4994
          %v5275 = vpack.c.b16 %v5003, %v4995
          %v5276 = vpack.c.b16 %v5004, %v4996
          %v5277 = vpack.c.b16 %v5005, %v4997
          %v5278 = vpack.c.b16 %v5014, %v5006
          %v5279 = vpack.c.b16 %v5015, %v5007
          %v5280 = vpack.c.b16 %v5016, %v5008
          %v5281 = vpack.c.b16 %v5017, %v5009
          %v5282 = vpack.c.b16 %v5018, %v5010
          %v5283 = vpack.c.b16 %v5019, %v5011
          %v5284 = vpack.c.b16 %v5020, %v5012
          %v5285 = vpack.c.b16 %v5021, %v5013
          %v5286 = vpack.c.b16 %v5030, %v5022
          %v5287 = vpack.c.b16 %v5031, %v5023
          %v5288 = vpack.c.b16 %v5032, %v5024
          %v5289 = vpack.c.b16 %v5033, %v5025
          %v5290 = vpack.c.b16 %v5034, %v5026
          %v5291 = vpack.c.b16 %v5035, %v5027
          %v5292 = vpack.c.b16 %v5036, %v5028
          %v5293 = vpack.c.b16 %v5037, %v5029
          %5550 = vmatprep.subr.bf16.mxu0 0
          %5551 = vmatpush1.bf16.msra.mxu0 %v4142
          %5552 = vmatprep.subr.bf16.mxu0 0
          %5553 = vmatpush1.bf16.msra.mxu0 %v4143
          %5554 = vmatprep.subr.bf16.mxu0 0
          %5555 = vmatpush1.bf16.msra.mxu0 %v4144
          %5556 = vmatprep.subr.bf16.mxu0 0
          %5557 = vmatpush1.bf16.msra.mxu0 %v4145
          %5558 = vmatprep.subr.bf16.mxu0 0
          %5559 = vmatpush1.bf16.msra.mxu0 %v4146
          %5560 = vmatprep.subr.bf16.mxu0 0
          %5561 = vmatpush1.bf16.msra.mxu0 %v4147
          %5562 = vmatprep.subr.bf16.mxu0 0
          %5563 = vmatpush1.bf16.msra.mxu0 %v4148
          %5564 = vmatprep.subr.bf16.mxu0 0
          %5565 = vmatpush1.bf16.msra.mxu0 %v4149
          %5566 = vmatprep.subr.bf16.mxu0 0
          %5567 = vmatpush1.bf16.msra.mxu0 %v4150
          %5568 = vmatprep.subr.bf16.mxu0 0
          %5569 = vmatpush1.bf16.msra.mxu0 %v4151
          %5570 = vmatprep.subr.bf16.mxu0 0
          %5571 = vmatpush1.bf16.msra.mxu0 %v4152
          %5572 = vmatprep.subr.bf16.mxu0 0
          %5573 = vmatpush1.bf16.msra.mxu0 %v4153
          %5574 = vmatprep.subr.bf16.mxu0 0
          %5575 = vmatpush1.bf16.msra.mxu0 %v4154
          %5576 = vmatprep.subr.bf16.mxu0 0
          %5577 = vmatpush1.bf16.msra.mxu0 %v4155
          %5578 = vmatprep.subr.bf16.mxu0 0
          %5579 = vmatpush1.bf16.msra.mxu0 %v4156
          %5580 = vmatprep.subr.bf16.mxu0 0
          %5581 = vmatpush1.bf16.msra.mxu0 %v4157
          %5582 = vmatprep.mubr.bf16.mxu0 %v5039
          %5583 = vmatmul.mubr.bf16.gmra.mrb[0].mxu0 %v5038
          %v5584 = vpop.f32.mrb[0].mxu0
          %v5585 = vadd.f32 %v4206, %v5584
          %v5586 = vpop.f32.mrb[0].mxu0
          %v5587 = vpop.f32.mrb[0].mxu0
          %v5588 = vadd.f32 %v4207, %v5587
          %v5589 = vpop.f32.mrb[0].mxu0
          %5590 = vmatprep.mubr.bf16.mxu0 %v5047
          %5591 = vmatmul.mubr.bf16.gmra.mrb[0].mxu0 %v5046
          %v5592 = vpop.f32.mrb[0].mxu0
          %v5593 = vadd.f32 %v4208, %v5592
          %v5594 = vpop.f32.mrb[0].mxu0
          %v5595 = vpop.f32.mrb[0].mxu0
          %v5596 = vadd.f32 %v4209, %v5595
          %v5597 = vpop.f32.mrb[0].mxu0
          %5598 = vmatprep.mubr.bf16.mxu0 %v5055
          %5599 = vmatmul.mubr.bf16.gmra.mrb[0].mxu0 %v5054
          %v5600 = vpop.f32.mrb[0].mxu0
          %v5601 = vadd.f32 %v4210, %v5600
          %v5602 = vpop.f32.mrb[0].mxu0
          %v5603 = vpop.f32.mrb[0].mxu0
          %v5604 = vadd.f32 %v4211, %v5603
          %v5605 = vpop.f32.mrb[0].mxu0
          %5606 = vmatprep.mubr.bf16.mxu0 %v5063
          %5607 = vmatmul.mubr.bf16.gmra.mrb[0].mxu0 %v5062
          %v5608 = vpop.f32.mrb[0].mxu0
          %v5609 = vadd.f32 %v4212, %v5608
          %v5610 = vpop.f32.mrb[0].mxu0
          %v5611 = vpop.f32.mrb[0].mxu0
          %v5612 = vadd.f32 %v4213, %v5611
          %v5613 = vpop.f32.mrb[0].mxu0
          %5614 = vmatprep.mubr.bf16.mxu0 %v5071
          %5615 = vmatmul.mubr.bf16.gmra.mrb[0].mxu0 %v5070
          %v5616 = vpop.f32.mrb[0].mxu0
          %v5617 = vadd.f32 %v4214, %v5616
          %v5618 = vpop.f32.mrb[0].mxu0
          %v5619 = vpop.f32.mrb[0].mxu0
          %v5620 = vadd.f32 %v4215, %v5619
          %v5621 = vpop.f32.mrb[0].mxu0
          %5622 = vmatprep.mubr.bf16.mxu0 %v5079
          %5623 = vmatmul.mubr.bf16.gmra.mrb[0].mxu0 %v5078
          %v5624 = vpop.f32.mrb[0].mxu0
          %v5625 = vadd.f32 %v4216, %v5624
          %v5626 = vpop.f32.mrb[0].mxu0
          %v5627 = vpop.f32.mrb[0].mxu0
          %v5628 = vadd.f32 %v4217, %v5627
          %v5629 = vpop.f32.mrb[0].mxu0
          %5630 = vmatprep.mubr.bf16.mxu0 %v5087
          %5631 = vmatmul.mubr.bf16.gmra.mrb[0].mxu0 %v5086
          %v5632 = vpop.f32.mrb[0].mxu0
          %v5633 = vadd.f32 %v4218, %v5632
          %v5634 = vpop.f32.mrb[0].mxu0
          %v5635 = vpop.f32.mrb[0].mxu0
          %v5636 = vadd.f32 %v4219, %v5635
          %v5637 = vpop.f32.mrb[0].mxu0
          %5638 = vmatprep.mubr.bf16.mxu0 %v5095
          %5639 = vmatmul.mubr.bf16.gmra.mrb[0].mxu0 %v5094
          %v5640 = vpop.f32.mrb[0].mxu0
          %v5641 = vadd.f32 %v4220, %v5640
          %v5642 = vpop.f32.mrb[0].mxu0
          %v5643 = vpop.f32.mrb[0].mxu0
          %v5644 = vadd.f32 %v4221, %v5643
          %v5645 = vpop.f32.mrb[0].mxu0
          %5646 = vmatprep.mubr.bf16.mxu0 %v5103
          %5647 = vmatmul.mubr.bf16.gmra.mrb[0].mxu0 %v5102
          %v5648 = vpop.f32.mrb[0].mxu0
          %v5649 = vadd.f32 %v4222, %v5648
          %v5650 = vpop.f32.mrb[0].mxu0
          %v5651 = vpop.f32.mrb[0].mxu0
          %v5652 = vadd.f32 %v4223, %v5651
          %v5653 = vpop.f32.mrb[0].mxu0
          %5654 = vmatprep.mubr.bf16.mxu0 %v5111
          %5655 = vmatmul.mubr.bf16.gmra.mrb[0].mxu0 %v5110
          %v5656 = vpop.f32.mrb[0].mxu0
          %v5657 = vadd.f32 %v4224, %v5656
          %v5658 = vpop.f32.mrb[0].mxu0
          %v5659 = vpop.f32.mrb[0].mxu0
          %v5660 = vadd.f32 %v4225, %v5659
          %v5661 = vpop.f32.mrb[0].mxu0
          %5662 = vmatprep.mubr.bf16.mxu0 %v5119
          %5663 = vmatmul.mubr.bf16.gmra.mrb[0].mxu0 %v5118
          %v5664 = vpop.f32.mrb[0].mxu0
          %v5665 = vadd.f32 %v4226, %v5664
          %v5666 = vpop.f32.mrb[0].mxu0
          %v5667 = vpop.f32.mrb[0].mxu0
          %v5668 = vadd.f32 %v4227, %v5667
          %v5669 = vpop.f32.mrb[0].mxu0
          %5670 = vmatprep.mubr.bf16.mxu0 %v5127
          %5671 = vmatmul.mubr.bf16.gmra.mrb[0].mxu0 %v5126
          %v5672 = vpop.f32.mrb[0].mxu0
          %v5673 = vadd.f32 %v4228, %v5672
          %v5674 = vpop.f32.mrb[0].mxu0
          %v5675 = vpop.f32.mrb[0].mxu0
          %v5676 = vadd.f32 %v4229, %v5675
          %v5677 = vpop.f32.mrb[0].mxu0
          %5678 = vmatprep.mubr.bf16.mxu0 %v5135
          %5679 = vmatmul.mubr.bf16.gmra.mrb[0].mxu0 %v5134
          %v5680 = vpop.f32.mrb[0].mxu0
          %v5681 = vadd.f32 %v4230, %v5680
          %v5682 = vpop.f32.mrb[0].mxu0
          %v5683 = vpop.f32.mrb[0].mxu0
          %v5684 = vadd.f32 %v4231, %v5683
          %v5685 = vpop.f32.mrb[0].mxu0
          %5686 = vmatprep.mubr.bf16.mxu0 %v5143
          %5687 = vmatmul.mubr.bf16.gmra.mrb[0].mxu0 %v5142
          %v5688 = vpop.f32.mrb[0].mxu0
          %v5689 = vadd.f32 %v4232, %v5688
          %v5690 = vpop.f32.mrb[0].mxu0
          %v5691 = vpop.f32.mrb[0].mxu0
          %v5692 = vadd.f32 %v4233, %v5691
          %v5693 = vpop.f32.mrb[0].mxu0
          %5694 = vmatprep.mubr.bf16.mxu0 %v5151
          %5695 = vmatmul.mubr.bf16.gmra.mrb[0].mxu0 %v5150
          %v5696 = vpop.f32.mrb[0].mxu0
          %v5697 = vadd.f32 %v4234, %v5696
          %v5698 = vpop.f32.mrb[0].mxu0
          %v5699 = vpop.f32.mrb[0].mxu0
          %v5700 = vadd.f32 %v4235, %v5699
          %v5701 = vpop.f32.mrb[0].mxu0
          %5702 = vmatprep.mubr.bf16.mxu0 %v5159
          %5703 = vmatmul.mubr.bf16.gmra.mrb[0].mxu0 %v5158
          %v5704 = vpop.f32.mrb[0].mxu0
          %v5705 = vadd.f32 %v4236, %v5704
          %v5706 = vpop.f32.mrb[0].mxu0
          %v5707 = vpop.f32.mrb[0].mxu0
          %v5708 = vadd.f32 %v4237, %v5707
          %v5709 = vpop.f32.mrb[0].mxu0
          %5710 = vmatprep.mubr.bf16.mxu0 %v5167
          %5711 = vmatmul.mubr.bf16.gmra.mrb[0].mxu0 %v5166
          %v5712 = vpop.f32.mrb[0].mxu0
          %v5713 = vadd.f32 %v4238, %v5712
          %v5714 = vpop.f32.mrb[0].mxu0
          %v5715 = vpop.f32.mrb[0].mxu0
          %v5716 = vadd.f32 %v4239, %v5715
          %v5717 = vpop.f32.mrb[0].mxu0
          %5718 = vmatprep.mubr.bf16.mxu0 %v5175
          %5719 = vmatmul.mubr.bf16.gmra.mrb[0].mxu0 %v5174
          %v5720 = vpop.f32.mrb[0].mxu0
          %v5721 = vadd.f32 %v4240, %v5720
          %v5722 = vpop.f32.mrb[0].mxu0
          %v5723 = vpop.f32.mrb[0].mxu0
          %v5724 = vadd.f32 %v4241, %v5723
          %v5725 = vpop.f32.mrb[0].mxu0
          %5726 = vmatprep.mubr.bf16.mxu0 %v5183
          %5727 = vmatmul.mubr.bf16.gmra.mrb[0].mxu0 %v5182
          %v5728 = vpop.f32.mrb[0].mxu0
          %v5729 = vadd.f32 %v4242, %v5728
          %v5730 = vpop.f32.mrb[0].mxu0
          %v5731 = vpop.f32.mrb[0].mxu0
          %v5732 = vadd.f32 %v4243, %v5731
          %v5733 = vpop.f32.mrb[0].mxu0
          %5734 = vmatprep.mubr.bf16.mxu0 %v5191
          %5735 = vmatmul.mubr.bf16.gmra.mrb[0].mxu0 %v5190
          %v5736 = vpop.f32.mrb[0].mxu0
          %v5737 = vadd.f32 %v4244, %v5736
          %v5738 = vpop.f32.mrb[0].mxu0
          %v5739 = vpop.f32.mrb[0].mxu0
          %v5740 = vadd.f32 %v4245, %v5739
          %v5741 = vpop.f32.mrb[0].mxu0
          %5742 = vmatprep.mubr.bf16.mxu0 %v5199
          %5743 = vmatmul.mubr.bf16.gmra.mrb[0].mxu0 %v5198
          %v5744 = vpop.f32.mrb[0].mxu0
          %v5745 = vadd.f32 %v4246, %v5744
          %v5746 = vpop.f32.mrb[0].mxu0
          %v5747 = vpop.f32.mrb[0].mxu0
          %v5748 = vadd.f32 %v4247, %v5747
          %v5749 = vpop.f32.mrb[0].mxu0
          %5750 = vmatprep.mubr.bf16.mxu0 %v5207
          %5751 = vmatmul.mubr.bf16.gmra.mrb[0].mxu0 %v5206
          %v5752 = vpop.f32.mrb[0].mxu0
          %v5753 = vadd.f32 %v4248, %v5752
          %v5754 = vpop.f32.mrb[0].mxu0
          %v5755 = vpop.f32.mrb[0].mxu0
          %v5756 = vadd.f32 %v4249, %v5755
          %v5757 = vpop.f32.mrb[0].mxu0
          %5758 = vmatprep.mubr.bf16.mxu0 %v5215
          %5759 = vmatmul.mubr.bf16.gmra.mrb[0].mxu0 %v5214
          %v5760 = vpop.f32.mrb[0].mxu0
          %v5761 = vadd.f32 %v4250, %v5760
          %v5762 = vpop.f32.mrb[0].mxu0
          %v5763 = vpop.f32.mrb[0].mxu0
          %v5764 = vadd.f32 %v4251, %v5763
          %v5765 = vpop.f32.mrb[0].mxu0
          %5766 = vmatprep.mubr.bf16.mxu0 %v5223
          %5767 = vmatmul.mubr.bf16.gmra.mrb[0].mxu0 %v5222
          %v5768 = vpop.f32.mrb[0].mxu0
          %v5769 = vadd.f32 %v4252, %v5768
          %v5770 = vpop.f32.mrb[0].mxu0
          %v5771 = vpop.f32.mrb[0].mxu0
          %v5772 = vadd.f32 %v4253, %v5771
          %v5773 = vpop.f32.mrb[0].mxu0
          %5774 = vmatprep.mubr.bf16.mxu0 %v5231
          %5775 = vmatmul.mubr.bf16.gmra.mrb[0].mxu0 %v5230
          %v5776 = vpop.f32.mrb[0].mxu0
          %v5777 = vadd.f32 %v4254, %v5776
          %v5778 = vpop.f32.mrb[0].mxu0
          %v5779 = vpop.f32.mrb[0].mxu0
          %v5780 = vadd.f32 %v4255, %v5779
          %v5781 = vpop.f32.mrb[0].mxu0
          %5782 = vmatprep.mubr.bf16.mxu0 %v5239
          %5783 = vmatmul.mubr.bf16.gmra.mrb[0].mxu0 %v5238
          %v5784 = vpop.f32.mrb[0].mxu0
          %v5785 = vadd.f32 %v4256, %v5784
          %v5786 = vpop.f32.mrb[0].mxu0
          %v5787 = vpop.f32.mrb[0].mxu0
          %v5788 = vadd.f32 %v4257, %v5787
          %v5789 = vpop.f32.mrb[0].mxu0
          %5790 = vmatprep.mubr.bf16.mxu0 %v5247
          %5791 = vmatmul.mubr.bf16.gmra.mrb[0].mxu0 %v5246
          %v5792 = vpop.f32.mrb[0].mxu0
          %v5793 = vadd.f32 %v4258, %v5792
          %v5794 = vpop.f32.mrb[0].mxu0
          %v5795 = vpop.f32.mrb[0].mxu0
          %v5796 = vadd.f32 %v4259, %v5795
          %v5797 = vpop.f32.mrb[0].mxu0
          %5798 = vmatprep.mubr.bf16.mxu0 %v5255
          %5799 = vmatmul.mubr.bf16.gmra.mrb[0].mxu0 %v5254
          %v5800 = vpop.f32.mrb[0].mxu0
          %v5801 = vadd.f32 %v4260, %v5800
          %v5802 = vpop.f32.mrb[0].mxu0
          %v5803 = vpop.f32.mrb[0].mxu0
          %v5804 = vadd.f32 %v4261, %v5803
          %v5805 = vpop.f32.mrb[0].mxu0
          %5806 = vmatprep.mubr.bf16.mxu0 %v5263
          %5807 = vmatmul.mubr.bf16.gmra.mrb[0].mxu0 %v5262
          %v5808 = vpop.f32.mrb[0].mxu0
          %v5809 = vadd.f32 %v4262, %v5808
          %v5810 = vpop.f32.mrb[0].mxu0
          %v5811 = vpop.f32.mrb[0].mxu0
          %v5812 = vadd.f32 %v4263, %v5811
          %v5813 = vpop.f32.mrb[0].mxu0
          %5814 = vmatprep.mubr.bf16.mxu0 %v5271
          %5815 = vmatmul.mubr.bf16.gmra.mrb[0].mxu0 %v5270
          %v5816 = vpop.f32.mrb[0].mxu0
          %v5817 = vadd.f32 %v4264, %v5816
          %v5818 = vpop.f32.mrb[0].mxu0
          %v5819 = vpop.f32.mrb[0].mxu0
          %v5820 = vadd.f32 %v4265, %v5819
          %v5821 = vpop.f32.mrb[0].mxu0
          %5822 = vmatprep.mubr.bf16.mxu0 %v5279
          %5823 = vmatmul.mubr.bf16.gmra.mrb[0].mxu0 %v5278
          %v5824 = vpop.f32.mrb[0].mxu0
          %v5825 = vadd.f32 %v4266, %v5824
          %v5826 = vpop.f32.mrb[0].mxu0
          %v5827 = vpop.f32.mrb[0].mxu0
          %v5828 = vadd.f32 %v4267, %v5827
          %v5829 = vpop.f32.mrb[0].mxu0
          %5830 = vmatprep.mubr.bf16.mxu0 %v5287
          %5831 = vmatmul.mubr.bf16.gmra.mrb[0].mxu0 %v5286
          %v5832 = vpop.f32.mrb[0].mxu0
          %v5833 = vadd.f32 %v4268, %v5832
          %v5834 = vpop.f32.mrb[0].mxu0
          %v5835 = vpop.f32.mrb[0].mxu0
          %v5836 = vadd.f32 %v4269, %v5835
          %v5837 = vpop.f32.mrb[0].mxu0
          %5838 = vdwg.mxu0
          %5839 = vmatprep.subr.bf16.mxu0 0
          %5840 = vmatpush1.bf16.msra.mxu0 %v4158
          %5841 = vmatprep.subr.bf16.mxu0 0
          %5842 = vmatpush1.bf16.msra.mxu0 %v4159
          %5843 = vmatprep.subr.bf16.mxu0 0
          %5844 = vmatpush1.bf16.msra.mxu0 %v4160
          %5845 = vmatprep.subr.bf16.mxu0 0
          %5846 = vmatpush1.bf16.msra.mxu0 %v4161
          %5847 = vmatprep.subr.bf16.mxu0 0
          %5848 = vmatpush1.bf16.msra.mxu0 %v4162
          %5849 = vmatprep.subr.bf16.mxu0 0
          %5850 = vmatpush1.bf16.msra.mxu0 %v4163
          %5851 = vmatprep.subr.bf16.mxu0 0
          %5852 = vmatpush1.bf16.msra.mxu0 %v4164
          %5853 = vmatprep.subr.bf16.mxu0 0
          %5854 = vmatpush1.bf16.msra.mxu0 %v4165
          %5855 = vmatprep.subr.bf16.mxu0 0
          %5856 = vmatpush1.bf16.msra.mxu0 %v4166
          %5857 = vmatprep.subr.bf16.mxu0 0
          %5858 = vmatpush1.bf16.msra.mxu0 %v4167
          %5859 = vmatprep.subr.bf16.mxu0 0
          %5860 = vmatpush1.bf16.msra.mxu0 %v4168
          %5861 = vmatprep.subr.bf16.mxu0 0
          %5862 = vmatpush1.bf16.msra.mxu0 %v4169
          %5863 = vmatprep.subr.bf16.mxu0 0
          %5864 = vmatpush1.bf16.msra.mxu0 %v4170
          %5865 = vmatprep.subr.bf16.mxu0 0
          %5866 = vmatpush1.bf16.msra.mxu0 %v4171
          %5867 = vmatprep.subr.bf16.mxu0 0
          %5868 = vmatpush1.bf16.msra.mxu0 %v4172
          %5869 = vmatprep.subr.bf16.mxu0 0
          %5870 = vmatpush1.bf16.msra.mxu0 %v4173
          %5871 = vmatprep.mubr.bf16.mxu0 %v5041
          %5872 = vmatmul.mubr.bf16.gmra.mrb[0].mxu0 %v5040
          %v5873 = vpop.f32.mrb[0].mxu0
          %v5874 = vadd.f32 %v5585, %v5873
          %v5875 = vpop.f32.mrb[0].mxu0
          %v5876 = vpop.f32.mrb[0].mxu0
          %v5877 = vadd.f32 %v5588, %v5876
          %v5878 = vpop.f32.mrb[0].mxu0
          %5879 = vmatprep.mubr.bf16.mxu0 %v5049
          %5880 = vmatmul.mubr.bf16.gmra.mrb[0].mxu0 %v5048
          %v5881 = vpop.f32.mrb[0].mxu0
          %v5882 = vadd.f32 %v5593, %v5881
          %v5883 = vpop.f32.mrb[0].mxu0
          %v5884 = vpop.f32.mrb[0].mxu0
          %v5885 = vadd.f32 %v5596, %v5884
          %v5886 = vpop.f32.mrb[0].mxu0
          %5887 = vmatprep.mubr.bf16.mxu0 %v5057
          %5888 = vmatmul.mubr.bf16.gmra.mrb[0].mxu0 %v5056
          %v5889 = vpop.f32.mrb[0].mxu0
          %v5890 = vadd.f32 %v5601, %v5889
          %v5891 = vpop.f32.mrb[0].mxu0
          %v5892 = vpop.f32.mrb[0].mxu0
          %v5893 = vadd.f32 %v5604, %v5892
          %v5894 = vpop.f32.mrb[0].mxu0
          %5895 = vmatprep.mubr.bf16.mxu0 %v5065
          %5896 = vmatmul.mubr.bf16.gmra.mrb[0].mxu0 %v5064
          %v5897 = vpop.f32.mrb[0].mxu0
          %v5898 = vadd.f32 %v5609, %v5897
          %v5899 = vpop.f32.mrb[0].mxu0
          %v5900 = vpop.f32.mrb[0].mxu0
          %v5901 = vadd.f32 %v5612, %v5900
          %v5902 = vpop.f32.mrb[0].mxu0
          %5903 = vmatprep.mubr.bf16.mxu0 %v5073
          %5904 = vmatmul.mubr.bf16.gmra.mrb[0].mxu0 %v5072
          %v5905 = vpop.f32.mrb[0].mxu0
          %v5906 = vadd.f32 %v5617, %v5905
          %v5907 = vpop.f32.mrb[0].mxu0
          %v5908 = vpop.f32.mrb[0].mxu0
          %v5909 = vadd.f32 %v5620, %v5908
          %v5910 = vpop.f32.mrb[0].mxu0
          %5911 = vmatprep.mubr.bf16.mxu0 %v5081
          %5912 = vmatmul.mubr.bf16.gmra.mrb[0].mxu0 %v5080
          %v5913 = vpop.f32.mrb[0].mxu0
          %v5914 = vadd.f32 %v5625, %v5913
          %v5915 = vpop.f32.mrb[0].mxu0
          %v5916 = vpop.f32.mrb[0].mxu0
          %v5917 = vadd.f32 %v5628, %v5916
          %v5918 = vpop.f32.mrb[0].mxu0
          %5919 = vmatprep.mubr.bf16.mxu0 %v5089
          %5920 = vmatmul.mubr.bf16.gmra.mrb[0].mxu0 %v5088
          %v5921 = vpop.f32.mrb[0].mxu0
          %v5922 = vadd.f32 %v5633, %v5921
          %v5923 = vpop.f32.mrb[0].mxu0
          %v5924 = vpop.f32.mrb[0].mxu0
          %v5925 = vadd.f32 %v5636, %v5924
          %v5926 = vpop.f32.mrb[0].mxu0
          %5927 = vmatprep.mubr.bf16.mxu0 %v5097
          %5928 = vmatmul.mubr.bf16.gmra.mrb[0].mxu0 %v5096
          %v5929 = vpop.f32.mrb[0].mxu0
          %v5930 = vadd.f32 %v5641, %v5929
          %v5931 = vpop.f32.mrb[0].mxu0
          %v5932 = vpop.f32.mrb[0].mxu0
          %v5933 = vadd.f32 %v5644, %v5932
          %v5934 = vpop.f32.mrb[0].mxu0
          %5935 = vmatprep.mubr.bf16.mxu0 %v5105
          %5936 = vmatmul.mubr.bf16.gmra.mrb[0].mxu0 %v5104
          %v5937 = vpop.f32.mrb[0].mxu0
          %v5938 = vadd.f32 %v5649, %v5937
          %v5939 = vpop.f32.mrb[0].mxu0
          %v5940 = vpop.f32.mrb[0].mxu0
          %v5941 = vadd.f32 %v5652, %v5940
          %v5942 = vpop.f32.mrb[0].mxu0
          %5943 = vmatprep.mubr.bf16.mxu0 %v5113
          %5944 = vmatmul.mubr.bf16.gmra.mrb[0].mxu0 %v5112
          %v5945 = vpop.f32.mrb[0].mxu0
          %v5946 = vadd.f32 %v5657, %v5945
          %v5947 = vpop.f32.mrb[0].mxu0
          %v5948 = vpop.f32.mrb[0].mxu0
          %v5949 = vadd.f32 %v5660, %v5948
          %v5950 = vpop.f32.mrb[0].mxu0
          %5951 = vmatprep.mubr.bf16.mxu0 %v5121
          %5952 = vmatmul.mubr.bf16.gmra.mrb[0].mxu0 %v5120
          %v5953 = vpop.f32.mrb[0].mxu0
          %v5954 = vadd.f32 %v5665, %v5953
          %v5955 = vpop.f32.mrb[0].mxu0
          %v5956 = vpop.f32.mrb[0].mxu0
          %v5957 = vadd.f32 %v5668, %v5956
          %v5958 = vpop.f32.mrb[0].mxu0
          %5959 = vmatprep.mubr.bf16.mxu0 %v5129
          %5960 = vmatmul.mubr.bf16.gmra.mrb[0].mxu0 %v5128
          %v5961 = vpop.f32.mrb[0].mxu0
          %v5962 = vadd.f32 %v5673, %v5961
          %v5963 = vpop.f32.mrb[0].mxu0
          %v5964 = vpop.f32.mrb[0].mxu0
          %v5965 = vadd.f32 %v5676, %v5964
          %v5966 = vpop.f32.mrb[0].mxu0
          %5967 = vmatprep.mubr.bf16.mxu0 %v5137
          %5968 = vmatmul.mubr.bf16.gmra.mrb[0].mxu0 %v5136
          %v5969 = vpop.f32.mrb[0].mxu0
          %v5970 = vadd.f32 %v5681, %v5969
          %v5971 = vpop.f32.mrb[0].mxu0
          %v5972 = vpop.f32.mrb[0].mxu0
          %v5973 = vadd.f32 %v5684, %v5972
          %v5974 = vpop.f32.mrb[0].mxu0
          %5975 = vmatprep.mubr.bf16.mxu0 %v5145
          %5976 = vmatmul.mubr.bf16.gmra.mrb[0].mxu0 %v5144
          %v5977 = vpop.f32.mrb[0].mxu0
          %v5978 = vadd.f32 %v5689, %v5977
          %v5979 = vpop.f32.mrb[0].mxu0
          %v5980 = vpop.f32.mrb[0].mxu0
          %v5981 = vadd.f32 %v5692, %v5980
          %v5982 = vpop.f32.mrb[0].mxu0
          %5983 = vmatprep.mubr.bf16.mxu0 %v5153
          %5984 = vmatmul.mubr.bf16.gmra.mrb[0].mxu0 %v5152
          %v5985 = vpop.f32.mrb[0].mxu0
          %v5986 = vadd.f32 %v5697, %v5985
          %v5987 = vpop.f32.mrb[0].mxu0
          %v5988 = vpop.f32.mrb[0].mxu0
          %v5989 = vadd.f32 %v5700, %v5988
          %v5990 = vpop.f32.mrb[0].mxu0
          %5991 = vmatprep.mubr.bf16.mxu0 %v5161
          %5992 = vmatmul.mubr.bf16.gmra.mrb[0].mxu0 %v5160
          %v5993 = vpop.f32.mrb[0].mxu0
          %v5994 = vadd.f32 %v5705, %v5993
          %v5995 = vpop.f32.mrb[0].mxu0
          %v5996 = vpop.f32.mrb[0].mxu0
          %v5997 = vadd.f32 %v5708, %v5996
          %v5998 = vpop.f32.mrb[0].mxu0
          %5999 = vmatprep.mubr.bf16.mxu0 %v5169
          %6000 = vmatmul.mubr.bf16.gmra.mrb[0].mxu0 %v5168
          %v6001 = vpop.f32.mrb[0].mxu0
          %v6002 = vadd.f32 %v5713, %v6001
          %v6003 = vpop.f32.mrb[0].mxu0
          %v6004 = vpop.f32.mrb[0].mxu0
          %v6005 = vadd.f32 %v5716, %v6004
          %v6006 = vpop.f32.mrb[0].mxu0
          %6007 = vmatprep.mubr.bf16.mxu0 %v5177
          %6008 = vmatmul.mubr.bf16.gmra.mrb[0].mxu0 %v5176
          %v6009 = vpop.f32.mrb[0].mxu0
          %v6010 = vadd.f32 %v5721, %v6009
          %v6011 = vpop.f32.mrb[0].mxu0
          %v6012 = vpop.f32.mrb[0].mxu0
          %v6013 = vadd.f32 %v5724, %v6012
          %v6014 = vpop.f32.mrb[0].mxu0
          %6015 = vmatprep.mubr.bf16.mxu0 %v5185
          %6016 = vmatmul.mubr.bf16.gmra.mrb[0].mxu0 %v5184
          %v6017 = vpop.f32.mrb[0].mxu0
          %v6018 = vadd.f32 %v5729, %v6017
          %v6019 = vpop.f32.mrb[0].mxu0
          %v6020 = vpop.f32.mrb[0].mxu0
          %v6021 = vadd.f32 %v5732, %v6020
          %v6022 = vpop.f32.mrb[0].mxu0
          %6023 = vmatprep.mubr.bf16.mxu0 %v5193
          %6024 = vmatmul.mubr.bf16.gmra.mrb[0].mxu0 %v5192
          %v6025 = vpop.f32.mrb[0].mxu0
          %v6026 = vadd.f32 %v5737, %v6025
          %v6027 = vpop.f32.mrb[0].mxu0
          %v6028 = vpop.f32.mrb[0].mxu0
          %v6029 = vadd.f32 %v5740, %v6028
          %v6030 = vpop.f32.mrb[0].mxu0
          %6031 = vmatprep.mubr.bf16.mxu0 %v5201
          %6032 = vmatmul.mubr.bf16.gmra.mrb[0].mxu0 %v5200
          %v6033 = vpop.f32.mrb[0].mxu0
          %v6034 = vadd.f32 %v5745, %v6033
          %v6035 = vpop.f32.mrb[0].mxu0
          %v6036 = vpop.f32.mrb[0].mxu0
          %v6037 = vadd.f32 %v5748, %v6036
          %v6038 = vpop.f32.mrb[0].mxu0
          %6039 = vmatprep.mubr.bf16.mxu0 %v5209
          %6040 = vmatmul.mubr.bf16.gmra.mrb[0].mxu0 %v5208
          %v6041 = vpop.f32.mrb[0].mxu0
          %v6042 = vadd.f32 %v5753, %v6041
          %v6043 = vpop.f32.mrb[0].mxu0
          %v6044 = vpop.f32.mrb[0].mxu0
          %v6045 = vadd.f32 %v5756, %v6044
          %v6046 = vpop.f32.mrb[0].mxu0
          %6047 = vmatprep.mubr.bf16.mxu0 %v5217
          %6048 = vmatmul.mubr.bf16.gmra.mrb[0].mxu0 %v5216
          %v6049 = vpop.f32.mrb[0].mxu0
          %v6050 = vadd.f32 %v5761, %v6049
          %v6051 = vpop.f32.mrb[0].mxu0
          %v6052 = vpop.f32.mrb[0].mxu0
          %v6053 = vadd.f32 %v5764, %v6052
          %v6054 = vpop.f32.mrb[0].mxu0
          %6055 = vmatprep.mubr.bf16.mxu0 %v5225
          %6056 = vmatmul.mubr.bf16.gmra.mrb[0].mxu0 %v5224
          %v6057 = vpop.f32.mrb[0].mxu0
          %v6058 = vadd.f32 %v5769, %v6057
          %v6059 = vpop.f32.mrb[0].mxu0
          %v6060 = vpop.f32.mrb[0].mxu0
          %v6061 = vadd.f32 %v5772, %v6060
          %v6062 = vpop.f32.mrb[0].mxu0
          %6063 = vmatprep.mubr.bf16.mxu0 %v5233
          %6064 = vmatmul.mubr.bf16.gmra.mrb[0].mxu0 %v5232
          %v6065 = vpop.f32.mrb[0].mxu0
          %v6066 = vadd.f32 %v5777, %v6065
          %v6067 = vpop.f32.mrb[0].mxu0
          %v6068 = vpop.f32.mrb[0].mxu0
          %v6069 = vadd.f32 %v5780, %v6068
          %v6070 = vpop.f32.mrb[0].mxu0
          %6071 = vmatprep.mubr.bf16.mxu0 %v5241
          %6072 = vmatmul.mubr.bf16.gmra.mrb[0].mxu0 %v5240
          %v6073 = vpop.f32.mrb[0].mxu0
          %v6074 = vadd.f32 %v5785, %v6073
          %v6075 = vpop.f32.mrb[0].mxu0
          %v6076 = vpop.f32.mrb[0].mxu0
          %v6077 = vadd.f32 %v5788, %v6076
          %v6078 = vpop.f32.mrb[0].mxu0
          %6079 = vmatprep.mubr.bf16.mxu0 %v5249
          %6080 = vmatmul.mubr.bf16.gmra.mrb[0].mxu0 %v5248
          %v6081 = vpop.f32.mrb[0].mxu0
          %v6082 = vadd.f32 %v5793, %v6081
          %v6083 = vpop.f32.mrb[0].mxu0
          %v6084 = vpop.f32.mrb[0].mxu0
          %v6085 = vadd.f32 %v5796, %v6084
          %v6086 = vpop.f32.mrb[0].mxu0
          %6087 = vmatprep.mubr.bf16.mxu0 %v5257
          %6088 = vmatmul.mubr.bf16.gmra.mrb[0].mxu0 %v5256
          %v6089 = vpop.f32.mrb[0].mxu0
          %v6090 = vadd.f32 %v5801, %v6089
          %v6091 = vpop.f32.mrb[0].mxu0
          %v6092 = vpop.f32.mrb[0].mxu0
          %v6093 = vadd.f32 %v5804, %v6092
          %v6094 = vpop.f32.mrb[0].mxu0
          %6095 = vmatprep.mubr.bf16.mxu0 %v5265
          %6096 = vmatmul.mubr.bf16.gmra.mrb[0].mxu0 %v5264
          %v6097 = vpop.f32.mrb[0].mxu0
          %v6098 = vadd.f32 %v5809, %v6097
          %v6099 = vpop.f32.mrb[0].mxu0
          %v6100 = vpop.f32.mrb[0].mxu0
          %v6101 = vadd.f32 %v5812, %v6100
          %v6102 = vpop.f32.mrb[0].mxu0
          %6103 = vmatprep.mubr.bf16.mxu0 %v5273
          %6104 = vmatmul.mubr.bf16.gmra.mrb[0].mxu0 %v5272
          %v6105 = vpop.f32.mrb[0].mxu0
          %v6106 = vadd.f32 %v5817, %v6105
          %v6107 = vpop.f32.mrb[0].mxu0
          %v6108 = vpop.f32.mrb[0].mxu0
          %v6109 = vadd.f32 %v5820, %v6108
          %v6110 = vpop.f32.mrb[0].mxu0
          %6111 = vmatprep.mubr.bf16.mxu0 %v5281
          %6112 = vmatmul.mubr.bf16.gmra.mrb[0].mxu0 %v5280
          %v6113 = vpop.f32.mrb[0].mxu0
          %v6114 = vadd.f32 %v5825, %v6113
          %v6115 = vpop.f32.mrb[0].mxu0
          %v6116 = vpop.f32.mrb[0].mxu0
          %v6117 = vadd.f32 %v5828, %v6116
          %v6118 = vpop.f32.mrb[0].mxu0
          %6119 = vmatprep.mubr.bf16.mxu0 %v5289
          %6120 = vmatmul.mubr.bf16.gmra.mrb[0].mxu0 %v5288
          %v6121 = vpop.f32.mrb[0].mxu0
          %v6122 = vadd.f32 %v5833, %v6121
          %v6123 = vpop.f32.mrb[0].mxu0
          %v6124 = vpop.f32.mrb[0].mxu0
          %v6125 = vadd.f32 %v5836, %v6124
          %v6126 = vpop.f32.mrb[0].mxu0
          %6127 = vdwg.mxu0
          %6128 = vmatprep.subr.bf16.mxu0 0
          %6129 = vmatpush1.bf16.msra.mxu0 %v4174
          %6130 = vmatprep.subr.bf16.mxu0 0
          %6131 = vmatpush1.bf16.msra.mxu0 %v4175
          %6132 = vmatprep.subr.bf16.mxu0 0
          %6133 = vmatpush1.bf16.msra.mxu0 %v4176
          %6134 = vmatprep.subr.bf16.mxu0 0
          %6135 = vmatpush1.bf16.msra.mxu0 %v4177
          %6136 = vmatprep.subr.bf16.mxu0 0
          %6137 = vmatpush1.bf16.msra.mxu0 %v4178
          %6138 = vmatprep.subr.bf16.mxu0 0
          %6139 = vmatpush1.bf16.msra.mxu0 %v4179
          %6140 = vmatprep.subr.bf16.mxu0 0
          %6141 = vmatpush1.bf16.msra.mxu0 %v4180
          %6142 = vmatprep.subr.bf16.mxu0 0
          %6143 = vmatpush1.bf16.msra.mxu0 %v4181
          %6144 = vmatprep.subr.bf16.mxu0 0
          %6145 = vmatpush1.bf16.msra.mxu0 %v4182
          %6146 = vmatprep.subr.bf16.mxu0 0
          %6147 = vmatpush1.bf16.msra.mxu0 %v4183
          %6148 = vmatprep.subr.bf16.mxu0 0
          %6149 = vmatpush1.bf16.msra.mxu0 %v4184
          %6150 = vmatprep.subr.bf16.mxu0 0
          %6151 = vmatpush1.bf16.msra.mxu0 %v4185
          %6152 = vmatprep.subr.bf16.mxu0 0
          %6153 = vmatpush1.bf16.msra.mxu0 %v4186
          %6154 = vmatprep.subr.bf16.mxu0 0
          %6155 = vmatpush1.bf16.msra.mxu0 %v4187
          %6156 = vmatprep.subr.bf16.mxu0 0
          %6157 = vmatpush1.bf16.msra.mxu0 %v4188
          %6158 = vmatprep.subr.bf16.mxu0 0
          %6159 = vmatpush1.bf16.msra.mxu0 %v4189
          %6160 = vmatprep.mubr.bf16.mxu0 %v5043
          %6161 = vmatmul.mubr.bf16.gmra.mrb[0].mxu0 %v5042
          %v6162 = vpop.f32.mrb[0].mxu0
          %v6163 = vadd.f32 %v5874, %v6162
          %v6164 = vpop.f32.mrb[0].mxu0
          %v6165 = vpop.f32.mrb[0].mxu0
          %v6166 = vadd.f32 %v5877, %v6165
          %v6167 = vpop.f32.mrb[0].mxu0
          %6168 = vmatprep.mubr.bf16.mxu0 %v5051
          %6169 = vmatmul.mubr.bf16.gmra.mrb[0].mxu0 %v5050
          %v6170 = vpop.f32.mrb[0].mxu0
          %v6171 = vadd.f32 %v5882, %v6170
          %v6172 = vpop.f32.mrb[0].mxu0
          %v6173 = vpop.f32.mrb[0].mxu0
          %v6174 = vadd.f32 %v5885, %v6173
          %v6175 = vpop.f32.mrb[0].mxu0
          %6176 = vmatprep.mubr.bf16.mxu0 %v5059
          %6177 = vmatmul.mubr.bf16.gmra.mrb[0].mxu0 %v5058
          %v6178 = vpop.f32.mrb[0].mxu0
          %v6179 = vadd.f32 %v5890, %v6178
          %v6180 = vpop.f32.mrb[0].mxu0
          %v6181 = vpop.f32.mrb[0].mxu0
          %v6182 = vadd.f32 %v5893, %v6181
          %v6183 = vpop.f32.mrb[0].mxu0
          %6184 = vmatprep.mubr.bf16.mxu0 %v5067
          %6185 = vmatmul.mubr.bf16.gmra.mrb[0].mxu0 %v5066
          %v6186 = vpop.f32.mrb[0].mxu0
          %v6187 = vadd.f32 %v5898, %v6186
          %v6188 = vpop.f32.mrb[0].mxu0
          %v6189 = vpop.f32.mrb[0].mxu0
          %v6190 = vadd.f32 %v5901, %v6189
          %v6191 = vpop.f32.mrb[0].mxu0
          %6192 = vmatprep.mubr.bf16.mxu0 %v5075
          %6193 = vmatmul.mubr.bf16.gmra.mrb[0].mxu0 %v5074
          %v6194 = vpop.f32.mrb[0].mxu0
          %v6195 = vadd.f32 %v5906, %v6194
          %v6196 = vpop.f32.mrb[0].mxu0
          %v6197 = vpop.f32.mrb[0].mxu0
          %v6198 = vadd.f32 %v5909, %v6197
          %v6199 = vpop.f32.mrb[0].mxu0
          %6200 = vmatprep.mubr.bf16.mxu0 %v5083
          %6201 = vmatmul.mubr.bf16.gmra.mrb[0].mxu0 %v5082
          %v6202 = vpop.f32.mrb[0].mxu0
          %v6203 = vadd.f32 %v5914, %v6202
          %v6204 = vpop.f32.mrb[0].mxu0
          %v6205 = vpop.f32.mrb[0].mxu0
          %v6206 = vadd.f32 %v5917, %v6205
          %v6207 = vpop.f32.mrb[0].mxu0
          %6208 = vmatprep.mubr.bf16.mxu0 %v5091
          %6209 = vmatmul.mubr.bf16.gmra.mrb[0].mxu0 %v5090
          %v6210 = vpop.f32.mrb[0].mxu0
          %v6211 = vadd.f32 %v5922, %v6210
          %v6212 = vpop.f32.mrb[0].mxu0
          %v6213 = vpop.f32.mrb[0].mxu0
          %v6214 = vadd.f32 %v5925, %v6213
          %v6215 = vpop.f32.mrb[0].mxu0
          %6216 = vmatprep.mubr.bf16.mxu0 %v5099
          %6217 = vmatmul.mubr.bf16.gmra.mrb[0].mxu0 %v5098
          %v6218 = vpop.f32.mrb[0].mxu0
          %v6219 = vadd.f32 %v5930, %v6218
          %v6220 = vpop.f32.mrb[0].mxu0
          %v6221 = vpop.f32.mrb[0].mxu0
          %v6222 = vadd.f32 %v5933, %v6221
          %v6223 = vpop.f32.mrb[0].mxu0
          %6224 = vmatprep.mubr.bf16.mxu0 %v5107
          %6225 = vmatmul.mubr.bf16.gmra.mrb[0].mxu0 %v5106
          %v6226 = vpop.f32.mrb[0].mxu0
          %v6227 = vadd.f32 %v5938, %v6226
          %v6228 = vpop.f32.mrb[0].mxu0
          %v6229 = vpop.f32.mrb[0].mxu0
          %v6230 = vadd.f32 %v5941, %v6229
          %v6231 = vpop.f32.mrb[0].mxu0
          %6232 = vmatprep.mubr.bf16.mxu0 %v5115
          %6233 = vmatmul.mubr.bf16.gmra.mrb[0].mxu0 %v5114
          %v6234 = vpop.f32.mrb[0].mxu0
          %v6235 = vadd.f32 %v5946, %v6234
          %v6236 = vpop.f32.mrb[0].mxu0
          %v6237 = vpop.f32.mrb[0].mxu0
          %v6238 = vadd.f32 %v5949, %v6237
          %v6239 = vpop.f32.mrb[0].mxu0
          %6240 = vmatprep.mubr.bf16.mxu0 %v5123
          %6241 = vmatmul.mubr.bf16.gmra.mrb[0].mxu0 %v5122
          %v6242 = vpop.f32.mrb[0].mxu0
          %v6243 = vadd.f32 %v5954, %v6242
          %v6244 = vpop.f32.mrb[0].mxu0
          %v6245 = vpop.f32.mrb[0].mxu0
          %v6246 = vadd.f32 %v5957, %v6245
          %v6247 = vpop.f32.mrb[0].mxu0
          %6248 = vmatprep.mubr.bf16.mxu0 %v5131
          %6249 = vmatmul.mubr.bf16.gmra.mrb[0].mxu0 %v5130
          %v6250 = vpop.f32.mrb[0].mxu0
          %v6251 = vadd.f32 %v5962, %v6250
          %v6252 = vpop.f32.mrb[0].mxu0
          %v6253 = vpop.f32.mrb[0].mxu0
          %v6254 = vadd.f32 %v5965, %v6253
          %v6255 = vpop.f32.mrb[0].mxu0
          %6256 = vmatprep.mubr.bf16.mxu0 %v5139
          %6257 = vmatmul.mubr.bf16.gmra.mrb[0].mxu0 %v5138
          %v6258 = vpop.f32.mrb[0].mxu0
          %v6259 = vadd.f32 %v5970, %v6258
          %v6260 = vpop.f32.mrb[0].mxu0
          %v6261 = vpop.f32.mrb[0].mxu0
          %v6262 = vadd.f32 %v5973, %v6261
          %v6263 = vpop.f32.mrb[0].mxu0
          %6264 = vmatprep.mubr.bf16.mxu0 %v5147
          %6265 = vmatmul.mubr.bf16.gmra.mrb[0].mxu0 %v5146
          %v6266 = vpop.f32.mrb[0].mxu0
          %v6267 = vadd.f32 %v5978, %v6266
          %v6268 = vpop.f32.mrb[0].mxu0
          %v6269 = vpop.f32.mrb[0].mxu0
          %v6270 = vadd.f32 %v5981, %v6269
          %v6271 = vpop.f32.mrb[0].mxu0
          %6272 = vmatprep.mubr.bf16.mxu0 %v5155
          %6273 = vmatmul.mubr.bf16.gmra.mrb[0].mxu0 %v5154
          %v6274 = vpop.f32.mrb[0].mxu0
          %v6275 = vadd.f32 %v5986, %v6274
          %v6276 = vpop.f32.mrb[0].mxu0
          %v6277 = vpop.f32.mrb[0].mxu0
          %v6278 = vadd.f32 %v5989, %v6277
          %v6279 = vpop.f32.mrb[0].mxu0
          %6280 = vmatprep.mubr.bf16.mxu0 %v5163
          %6281 = vmatmul.mubr.bf16.gmra.mrb[0].mxu0 %v5162
          %v6282 = vpop.f32.mrb[0].mxu0
          %v6283 = vadd.f32 %v5994, %v6282
          %v6284 = vpop.f32.mrb[0].mxu0
          %v6285 = vpop.f32.mrb[0].mxu0
          %v6286 = vadd.f32 %v5997, %v6285
          %v6287 = vpop.f32.mrb[0].mxu0
          %6288 = vmatprep.mubr.bf16.mxu0 %v5171
          %6289 = vmatmul.mubr.bf16.gmra.mrb[0].mxu0 %v5170
          %v6290 = vpop.f32.mrb[0].mxu0
          %v6291 = vadd.f32 %v6002, %v6290
          %v6292 = vpop.f32.mrb[0].mxu0
          %v6293 = vpop.f32.mrb[0].mxu0
          %v6294 = vadd.f32 %v6005, %v6293
          %v6295 = vpop.f32.mrb[0].mxu0
          %6296 = vmatprep.mubr.bf16.mxu0 %v5179
          %6297 = vmatmul.mubr.bf16.gmra.mrb[0].mxu0 %v5178
          %v6298 = vpop.f32.mrb[0].mxu0
          %v6299 = vadd.f32 %v6010, %v6298
          %v6300 = vpop.f32.mrb[0].mxu0
          %v6301 = vpop.f32.mrb[0].mxu0
          %v6302 = vadd.f32 %v6013, %v6301
          %v6303 = vpop.f32.mrb[0].mxu0
          %6304 = vmatprep.mubr.bf16.mxu0 %v5187
          %6305 = vmatmul.mubr.bf16.gmra.mrb[0].mxu0 %v5186
          %v6306 = vpop.f32.mrb[0].mxu0
          %v6307 = vadd.f32 %v6018, %v6306
          %v6308 = vpop.f32.mrb[0].mxu0
          %v6309 = vpop.f32.mrb[0].mxu0
          %v6310 = vadd.f32 %v6021, %v6309
          %v6311 = vpop.f32.mrb[0].mxu0
          %6312 = vmatprep.mubr.bf16.mxu0 %v5195
          %6313 = vmatmul.mubr.bf16.gmra.mrb[0].mxu0 %v5194
          %v6314 = vpop.f32.mrb[0].mxu0
          %v6315 = vadd.f32 %v6026, %v6314
          %v6316 = vpop.f32.mrb[0].mxu0
          %v6317 = vpop.f32.mrb[0].mxu0
          %v6318 = vadd.f32 %v6029, %v6317
          %v6319 = vpop.f32.mrb[0].mxu0
          %6320 = vmatprep.mubr.bf16.mxu0 %v5203
          %6321 = vmatmul.mubr.bf16.gmra.mrb[0].mxu0 %v5202
          %v6322 = vpop.f32.mrb[0].mxu0
          %v6323 = vadd.f32 %v6034, %v6322
          %v6324 = vpop.f32.mrb[0].mxu0
          %v6325 = vpop.f32.mrb[0].mxu0
          %v6326 = vadd.f32 %v6037, %v6325
          %v6327 = vpop.f32.mrb[0].mxu0
          %6328 = vmatprep.mubr.bf16.mxu0 %v5211
          %6329 = vmatmul.mubr.bf16.gmra.mrb[0].mxu0 %v5210
          %v6330 = vpop.f32.mrb[0].mxu0
          %v6331 = vadd.f32 %v6042, %v6330
          %v6332 = vpop.f32.mrb[0].mxu0
          %v6333 = vpop.f32.mrb[0].mxu0
          %v6334 = vadd.f32 %v6045, %v6333
          %v6335 = vpop.f32.mrb[0].mxu0
          %6336 = vmatprep.mubr.bf16.mxu0 %v5219
          %6337 = vmatmul.mubr.bf16.gmra.mrb[0].mxu0 %v5218
          %v6338 = vpop.f32.mrb[0].mxu0
          %v6339 = vadd.f32 %v6050, %v6338
          %v6340 = vpop.f32.mrb[0].mxu0
          %v6341 = vpop.f32.mrb[0].mxu0
          %v6342 = vadd.f32 %v6053, %v6341
          %v6343 = vpop.f32.mrb[0].mxu0
          %6344 = vmatprep.mubr.bf16.mxu0 %v5227
          %6345 = vmatmul.mubr.bf16.gmra.mrb[0].mxu0 %v5226
          %v6346 = vpop.f32.mrb[0].mxu0
          %v6347 = vadd.f32 %v6058, %v6346
          %v6348 = vpop.f32.mrb[0].mxu0
          %v6349 = vpop.f32.mrb[0].mxu0
          %v6350 = vadd.f32 %v6061, %v6349
          %v6351 = vpop.f32.mrb[0].mxu0
          %6352 = vmatprep.mubr.bf16.mxu0 %v5235
          %6353 = vmatmul.mubr.bf16.gmra.mrb[0].mxu0 %v5234
          %v6354 = vpop.f32.mrb[0].mxu0
          %v6355 = vadd.f32 %v6066, %v6354
          %v6356 = vpop.f32.mrb[0].mxu0
          %v6357 = vpop.f32.mrb[0].mxu0
          %v6358 = vadd.f32 %v6069, %v6357
          %v6359 = vpop.f32.mrb[0].mxu0
          %6360 = vmatprep.mubr.bf16.mxu0 %v5243
          %6361 = vmatmul.mubr.bf16.gmra.mrb[0].mxu0 %v5242
          %v6362 = vpop.f32.mrb[0].mxu0
          %v6363 = vadd.f32 %v6074, %v6362
          %v6364 = vpop.f32.mrb[0].mxu0
          %v6365 = vpop.f32.mrb[0].mxu0
          %v6366 = vadd.f32 %v6077, %v6365
          %v6367 = vpop.f32.mrb[0].mxu0
          %6368 = vmatprep.mubr.bf16.mxu0 %v5251
          %6369 = vmatmul.mubr.bf16.gmra.mrb[0].mxu0 %v5250
          %v6370 = vpop.f32.mrb[0].mxu0
          %v6371 = vadd.f32 %v6082, %v6370
          %v6372 = vpop.f32.mrb[0].mxu0
          %v6373 = vpop.f32.mrb[0].mxu0
          %v6374 = vadd.f32 %v6085, %v6373
          %v6375 = vpop.f32.mrb[0].mxu0
          %6376 = vmatprep.mubr.bf16.mxu0 %v5259
          %6377 = vmatmul.mubr.bf16.gmra.mrb[0].mxu0 %v5258
          %v6378 = vpop.f32.mrb[0].mxu0
          %v6379 = vadd.f32 %v6090, %v6378
          %v6380 = vpop.f32.mrb[0].mxu0
          %v6381 = vpop.f32.mrb[0].mxu0
          %v6382 = vadd.f32 %v6093, %v6381
          %v6383 = vpop.f32.mrb[0].mxu0
          %6384 = vmatprep.mubr.bf16.mxu0 %v5267
          %6385 = vmatmul.mubr.bf16.gmra.mrb[0].mxu0 %v5266
          %v6386 = vpop.f32.mrb[0].mxu0
          %v6387 = vadd.f32 %v6098, %v6386
          %v6388 = vpop.f32.mrb[0].mxu0
          %v6389 = vpop.f32.mrb[0].mxu0
          %v6390 = vadd.f32 %v6101, %v6389
          %v6391 = vpop.f32.mrb[0].mxu0
          %6392 = vmatprep.mubr.bf16.mxu0 %v5275
          %6393 = vmatmul.mubr.bf16.gmra.mrb[0].mxu0 %v5274
          %v6394 = vpop.f32.mrb[0].mxu0
          %v6395 = vadd.f32 %v6106, %v6394
          %v6396 = vpop.f32.mrb[0].mxu0
          %v6397 = vpop.f32.mrb[0].mxu0
          %v6398 = vadd.f32 %v6109, %v6397
          %v6399 = vpop.f32.mrb[0].mxu0
          %6400 = vmatprep.mubr.bf16.mxu0 %v5283
          %6401 = vmatmul.mubr.bf16.gmra.mrb[0].mxu0 %v5282
          %v6402 = vpop.f32.mrb[0].mxu0
          %v6403 = vadd.f32 %v6114, %v6402
          %v6404 = vpop.f32.mrb[0].mxu0
          %v6405 = vpop.f32.mrb[0].mxu0
          %v6406 = vadd.f32 %v6117, %v6405
          %v6407 = vpop.f32.mrb[0].mxu0
          %6408 = vmatprep.mubr.bf16.mxu0 %v5291
          %6409 = vmatmul.mubr.bf16.gmra.mrb[0].mxu0 %v5290
          %v6410 = vpop.f32.mrb[0].mxu0
          %v6411 = vadd.f32 %v6122, %v6410
          %v6412 = vpop.f32.mrb[0].mxu0
          %v6413 = vpop.f32.mrb[0].mxu0
          %v6414 = vadd.f32 %v6125, %v6413
          %v6415 = vpop.f32.mrb[0].mxu0
          %6416 = vdwg.mxu0
          %6417 = vmatprep.subr.bf16.mxu0 0
          %6418 = vmatpush1.bf16.msra.mxu0 %v4190
          %6419 = vmatprep.subr.bf16.mxu0 0
          %6420 = vmatpush1.bf16.msra.mxu0 %v4191
          %6421 = vmatprep.subr.bf16.mxu0 0
          %6422 = vmatpush1.bf16.msra.mxu0 %v4192
          %6423 = vmatprep.subr.bf16.mxu0 0
          %6424 = vmatpush1.bf16.msra.mxu0 %v4193
          %6425 = vmatprep.subr.bf16.mxu0 0
          %6426 = vmatpush1.bf16.msra.mxu0 %v4194
          %6427 = vmatprep.subr.bf16.mxu0 0
          %6428 = vmatpush1.bf16.msra.mxu0 %v4195
          %6429 = vmatprep.subr.bf16.mxu0 0
          %6430 = vmatpush1.bf16.msra.mxu0 %v4196
          %6431 = vmatprep.subr.bf16.mxu0 0
          %6432 = vmatpush1.bf16.msra.mxu0 %v4197
          %6433 = vmatprep.subr.bf16.mxu0 0
          %6434 = vmatpush1.bf16.msra.mxu0 %v4198
          %6435 = vmatprep.subr.bf16.mxu0 0
          %6436 = vmatpush1.bf16.msra.mxu0 %v4199
          %6437 = vmatprep.subr.bf16.mxu0 0
          %6438 = vmatpush1.bf16.msra.mxu0 %v4200
          %6439 = vmatprep.subr.bf16.mxu0 0
          %6440 = vmatpush1.bf16.msra.mxu0 %v4201
          %6441 = vmatprep.subr.bf16.mxu0 0
          %6442 = vmatpush1.bf16.msra.mxu0 %v4202
          %6443 = vmatprep.subr.bf16.mxu0 0
          %6444 = vmatpush1.bf16.msra.mxu0 %v4203
          %6445 = vmatprep.subr.bf16.mxu0 0
          %6446 = vmatpush1.bf16.msra.mxu0 %v4204
          %6447 = vmatprep.subr.bf16.mxu0 0
          %6448 = vmatpush1.bf16.msra.mxu0 %v4205
          %6449 = vmatprep.mubr.bf16.mxu0 %v5045
          %6450 = vmatmul.mubr.bf16.gmra.mrb[0].mxu0 %v5044
          %v6451 = vpop.f32.mrb[0].mxu0
          %v6452 = vadd.f32 %v6163, %v6451
          %v6453 = vpop.f32.mrb[0].mxu0
          %v6454 = vpop.f32.mrb[0].mxu0
          %v6455 = vadd.f32 %v6166, %v6454
          %v6456 = vpop.f32.mrb[0].mxu0
          %6457 = vmatprep.mubr.bf16.mxu0 %v5053
          %6458 = vmatmul.mubr.bf16.gmra.mrb[0].mxu0 %v5052
          %v6459 = vpop.f32.mrb[0].mxu0
          %v6460 = vadd.f32 %v6171, %v6459
          %v6461 = vpop.f32.mrb[0].mxu0
          %v6462 = vpop.f32.mrb[0].mxu0
          %v6463 = vadd.f32 %v6174, %v6462
          %v6464 = vpop.f32.mrb[0].mxu0
          %6465 = vmatprep.mubr.bf16.mxu0 %v5061
          %6466 = vmatmul.mubr.bf16.gmra.mrb[0].mxu0 %v5060
          %v6467 = vpop.f32.mrb[0].mxu0
          %v6468 = vadd.f32 %v6179, %v6467
          %v6469 = vpop.f32.mrb[0].mxu0
          %v6470 = vpop.f32.mrb[0].mxu0
          %v6471 = vadd.f32 %v6182, %v6470
          %v6472 = vpop.f32.mrb[0].mxu0
          %6473 = vmatprep.mubr.bf16.mxu0 %v5069
          %6474 = vmatmul.mubr.bf16.gmra.mrb[0].mxu0 %v5068
          %v6475 = vpop.f32.mrb[0].mxu0
          %v6476 = vadd.f32 %v6187, %v6475
          %v6477 = vpop.f32.mrb[0].mxu0
          %v6478 = vpop.f32.mrb[0].mxu0
          %v6479 = vadd.f32 %v6190, %v6478
          %v6480 = vpop.f32.mrb[0].mxu0
          %6481 = vmatprep.mubr.bf16.mxu0 %v5077
          %6482 = vmatmul.mubr.bf16.gmra.mrb[0].mxu0 %v5076
          %v6483 = vpop.f32.mrb[0].mxu0
          %v6484 = vadd.f32 %v6195, %v6483
          %v6485 = vpop.f32.mrb[0].mxu0
          %v6486 = vpop.f32.mrb[0].mxu0
          %v6487 = vadd.f32 %v6198, %v6486
          %v6488 = vpop.f32.mrb[0].mxu0
          %6489 = vmatprep.mubr.bf16.mxu0 %v5085
          %6490 = vmatmul.mubr.bf16.gmra.mrb[0].mxu0 %v5084
          %v6491 = vpop.f32.mrb[0].mxu0
          %v6492 = vadd.f32 %v6203, %v6491
          %v6493 = vpop.f32.mrb[0].mxu0
          %v6494 = vpop.f32.mrb[0].mxu0
          %v6495 = vadd.f32 %v6206, %v6494
          %v6496 = vpop.f32.mrb[0].mxu0
          %6497 = vmatprep.mubr.bf16.mxu0 %v5093
          %6498 = vmatmul.mubr.bf16.gmra.mrb[0].mxu0 %v5092
          %v6499 = vpop.f32.mrb[0].mxu0
          %v6500 = vadd.f32 %v6211, %v6499
          %v6501 = vpop.f32.mrb[0].mxu0
          %v6502 = vpop.f32.mrb[0].mxu0
          %v6503 = vadd.f32 %v6214, %v6502
          %v6504 = vpop.f32.mrb[0].mxu0
          %6505 = vmatprep.mubr.bf16.mxu0 %v5101
          %6506 = vmatmul.mubr.bf16.gmra.mrb[0].mxu0 %v5100
          %v6507 = vpop.f32.mrb[0].mxu0
          %v6508 = vadd.f32 %v6219, %v6507
          %v6509 = vpop.f32.mrb[0].mxu0
          %v6510 = vpop.f32.mrb[0].mxu0
          %v6511 = vadd.f32 %v6222, %v6510
          %v6512 = vpop.f32.mrb[0].mxu0
          %6513 = vmatprep.mubr.bf16.mxu0 %v5109
          %6514 = vmatmul.mubr.bf16.gmra.mrb[0].mxu0 %v5108
          %v6515 = vpop.f32.mrb[0].mxu0
          %v6516 = vadd.f32 %v6227, %v6515
          %v6517 = vpop.f32.mrb[0].mxu0
          %v6518 = vpop.f32.mrb[0].mxu0
          %v6519 = vadd.f32 %v6230, %v6518
          %v6520 = vpop.f32.mrb[0].mxu0
          %6521 = vmatprep.mubr.bf16.mxu0 %v5117
          %6522 = vmatmul.mubr.bf16.gmra.mrb[0].mxu0 %v5116
          %v6523 = vpop.f32.mrb[0].mxu0
          %v6524 = vadd.f32 %v6235, %v6523
          %v6525 = vpop.f32.mrb[0].mxu0
          %v6526 = vpop.f32.mrb[0].mxu0
          %v6527 = vadd.f32 %v6238, %v6526
          %v6528 = vpop.f32.mrb[0].mxu0
          %6529 = vmatprep.mubr.bf16.mxu0 %v5125
          %6530 = vmatmul.mubr.bf16.gmra.mrb[0].mxu0 %v5124
          %v6531 = vpop.f32.mrb[0].mxu0
          %v6532 = vadd.f32 %v6243, %v6531
          %v6533 = vpop.f32.mrb[0].mxu0
          %v6534 = vpop.f32.mrb[0].mxu0
          %v6535 = vadd.f32 %v6246, %v6534
          %v6536 = vpop.f32.mrb[0].mxu0
          %6537 = vmatprep.mubr.bf16.mxu0 %v5133
          %6538 = vmatmul.mubr.bf16.gmra.mrb[0].mxu0 %v5132
          %v6539 = vpop.f32.mrb[0].mxu0
          %v6540 = vadd.f32 %v6251, %v6539
          %v6541 = vpop.f32.mrb[0].mxu0
          %v6542 = vpop.f32.mrb[0].mxu0
          %v6543 = vadd.f32 %v6254, %v6542
          %v6544 = vpop.f32.mrb[0].mxu0
          %6545 = vmatprep.mubr.bf16.mxu0 %v5141
          %6546 = vmatmul.mubr.bf16.gmra.mrb[0].mxu0 %v5140
          %v6547 = vpop.f32.mrb[0].mxu0
          %v6548 = vadd.f32 %v6259, %v6547
          %v6549 = vpop.f32.mrb[0].mxu0
          %v6550 = vpop.f32.mrb[0].mxu0
          %v6551 = vadd.f32 %v6262, %v6550
          %v6552 = vpop.f32.mrb[0].mxu0
          %6553 = vmatprep.mubr.bf16.mxu0 %v5149
          %6554 = vmatmul.mubr.bf16.gmra.mrb[0].mxu0 %v5148
          %v6555 = vpop.f32.mrb[0].mxu0
          %v6556 = vadd.f32 %v6267, %v6555
          %v6557 = vpop.f32.mrb[0].mxu0
          %v6558 = vpop.f32.mrb[0].mxu0
          %v6559 = vadd.f32 %v6270, %v6558
          %v6560 = vpop.f32.mrb[0].mxu0
          %6561 = vmatprep.mubr.bf16.mxu0 %v5157
          %6562 = vmatmul.mubr.bf16.gmra.mrb[0].mxu0 %v5156
          %v6563 = vpop.f32.mrb[0].mxu0
          %v6564 = vadd.f32 %v6275, %v6563
          %v6565 = vpop.f32.mrb[0].mxu0
          %v6566 = vpop.f32.mrb[0].mxu0
          %v6567 = vadd.f32 %v6278, %v6566
          %v6568 = vpop.f32.mrb[0].mxu0
          %6569 = vmatprep.mubr.bf16.mxu0 %v5165
          %6570 = vmatmul.mubr.bf16.gmra.mrb[0].mxu0 %v5164
          %v6571 = vpop.f32.mrb[0].mxu0
          %v6572 = vadd.f32 %v6283, %v6571
          %v6573 = vpop.f32.mrb[0].mxu0
          %v6574 = vpop.f32.mrb[0].mxu0
          %v6575 = vadd.f32 %v6286, %v6574
          %v6576 = vpop.f32.mrb[0].mxu0
          %6577 = vmatprep.mubr.bf16.mxu0 %v5173
          %6578 = vmatmul.mubr.bf16.gmra.mrb[0].mxu0 %v5172
          %v6579 = vpop.f32.mrb[0].mxu0
          %v6580 = vadd.f32 %v6291, %v6579
          %v6581 = vpop.f32.mrb[0].mxu0
          %v6582 = vpop.f32.mrb[0].mxu0
          %v6583 = vadd.f32 %v6294, %v6582
          %v6584 = vpop.f32.mrb[0].mxu0
          %6585 = vmatprep.mubr.bf16.mxu0 %v5181
          %6586 = vmatmul.mubr.bf16.gmra.mrb[0].mxu0 %v5180
          %v6587 = vpop.f32.mrb[0].mxu0
          %v6588 = vadd.f32 %v6299, %v6587
          %v6589 = vpop.f32.mrb[0].mxu0
          %v6590 = vpop.f32.mrb[0].mxu0
          %v6591 = vadd.f32 %v6302, %v6590
          %v6592 = vpop.f32.mrb[0].mxu0
          %6593 = vmatprep.mubr.bf16.mxu0 %v5189
          %6594 = vmatmul.mubr.bf16.gmra.mrb[0].mxu0 %v5188
          %v6595 = vpop.f32.mrb[0].mxu0
          %v6596 = vadd.f32 %v6307, %v6595
          %v6597 = vpop.f32.mrb[0].mxu0
          %v6598 = vpop.f32.mrb[0].mxu0
          %v6599 = vadd.f32 %v6310, %v6598
          %v6600 = vpop.f32.mrb[0].mxu0
          %6601 = vmatprep.mubr.bf16.mxu0 %v5197
          %6602 = vmatmul.mubr.bf16.gmra.mrb[0].mxu0 %v5196
          %v6603 = vpop.f32.mrb[0].mxu0
          %v6604 = vadd.f32 %v6315, %v6603
          %v6605 = vpop.f32.mrb[0].mxu0
          %v6606 = vpop.f32.mrb[0].mxu0
          %v6607 = vadd.f32 %v6318, %v6606
          %v6608 = vpop.f32.mrb[0].mxu0
          %6609 = vmatprep.mubr.bf16.mxu0 %v5205
          %6610 = vmatmul.mubr.bf16.gmra.mrb[0].mxu0 %v5204
          %v6611 = vpop.f32.mrb[0].mxu0
          %v6612 = vadd.f32 %v6323, %v6611
          %v6613 = vpop.f32.mrb[0].mxu0
          %v6614 = vpop.f32.mrb[0].mxu0
          %v6615 = vadd.f32 %v6326, %v6614
          %v6616 = vpop.f32.mrb[0].mxu0
          %6617 = vmatprep.mubr.bf16.mxu0 %v5213
          %6618 = vmatmul.mubr.bf16.gmra.mrb[0].mxu0 %v5212
          %v6619 = vpop.f32.mrb[0].mxu0
          %v6620 = vadd.f32 %v6331, %v6619
          %v6621 = vpop.f32.mrb[0].mxu0
          %v6622 = vpop.f32.mrb[0].mxu0
          %v6623 = vadd.f32 %v6334, %v6622
          %v6624 = vpop.f32.mrb[0].mxu0
          %6625 = vmatprep.mubr.bf16.mxu0 %v5221
          %6626 = vmatmul.mubr.bf16.gmra.mrb[0].mxu0 %v5220
          %v6627 = vpop.f32.mrb[0].mxu0
          %v6628 = vadd.f32 %v6339, %v6627
          %v6629 = vpop.f32.mrb[0].mxu0
          %v6630 = vpop.f32.mrb[0].mxu0
          %v6631 = vadd.f32 %v6342, %v6630
          %v6632 = vpop.f32.mrb[0].mxu0
          %6633 = vmatprep.mubr.bf16.mxu0 %v5229
          %6634 = vmatmul.mubr.bf16.gmra.mrb[0].mxu0 %v5228
          %v6635 = vpop.f32.mrb[0].mxu0
          %v6636 = vadd.f32 %v6347, %v6635
          %v6637 = vpop.f32.mrb[0].mxu0
          %v6638 = vpop.f32.mrb[0].mxu0
          %v6639 = vadd.f32 %v6350, %v6638
          %v6640 = vpop.f32.mrb[0].mxu0
          %6641 = vmatprep.mubr.bf16.mxu0 %v5237
          %6642 = vmatmul.mubr.bf16.gmra.mrb[0].mxu0 %v5236
          %v6643 = vpop.f32.mrb[0].mxu0
          %v6644 = vadd.f32 %v6355, %v6643
          %v6645 = vpop.f32.mrb[0].mxu0
          %v6646 = vpop.f32.mrb[0].mxu0
          %v6647 = vadd.f32 %v6358, %v6646
          %v6648 = vpop.f32.mrb[0].mxu0
          %6649 = vmatprep.mubr.bf16.mxu0 %v5245
          %6650 = vmatmul.mubr.bf16.gmra.mrb[0].mxu0 %v5244
          %v6651 = vpop.f32.mrb[0].mxu0
          %v6652 = vadd.f32 %v6363, %v6651
          %v6653 = vpop.f32.mrb[0].mxu0
          %v6654 = vpop.f32.mrb[0].mxu0
          %v6655 = vadd.f32 %v6366, %v6654
          %v6656 = vpop.f32.mrb[0].mxu0
          %6657 = vmatprep.mubr.bf16.mxu0 %v5253
          %6658 = vmatmul.mubr.bf16.gmra.mrb[0].mxu0 %v5252
          %v6659 = vpop.f32.mrb[0].mxu0
          %v6660 = vadd.f32 %v6371, %v6659
          %v6661 = vpop.f32.mrb[0].mxu0
          %v6662 = vpop.f32.mrb[0].mxu0
          %v6663 = vadd.f32 %v6374, %v6662
          %v6664 = vpop.f32.mrb[0].mxu0
          %6665 = vmatprep.mubr.bf16.mxu0 %v5261
          %6666 = vmatmul.mubr.bf16.gmra.mrb[0].mxu0 %v5260
          %v6667 = vpop.f32.mrb[0].mxu0
          %v6668 = vadd.f32 %v6379, %v6667
          %v6669 = vpop.f32.mrb[0].mxu0
          %v6670 = vpop.f32.mrb[0].mxu0
          %v6671 = vadd.f32 %v6382, %v6670
          %v6672 = vpop.f32.mrb[0].mxu0
          %6673 = vmatprep.mubr.bf16.mxu0 %v5269
          %6674 = vmatmul.mubr.bf16.gmra.mrb[0].mxu0 %v5268
          %v6675 = vpop.f32.mrb[0].mxu0
          %v6676 = vadd.f32 %v6387, %v6675
          %v6677 = vpop.f32.mrb[0].mxu0
          %v6678 = vpop.f32.mrb[0].mxu0
          %v6679 = vadd.f32 %v6390, %v6678
          %v6680 = vpop.f32.mrb[0].mxu0
          %6681 = vmatprep.mubr.bf16.mxu0 %v5277
          %6682 = vmatmul.mubr.bf16.gmra.mrb[0].mxu0 %v5276
          %v6683 = vpop.f32.mrb[0].mxu0
          %v6684 = vadd.f32 %v6395, %v6683
          %v6685 = vpop.f32.mrb[0].mxu0
          %v6686 = vpop.f32.mrb[0].mxu0
          %v6687 = vadd.f32 %v6398, %v6686
          %v6688 = vpop.f32.mrb[0].mxu0
          %6689 = vmatprep.mubr.bf16.mxu0 %v5285
          %6690 = vmatmul.mubr.bf16.gmra.mrb[0].mxu0 %v5284
          %v6691 = vpop.f32.mrb[0].mxu0
          %v6692 = vadd.f32 %v6403, %v6691
          %v6693 = vpop.f32.mrb[0].mxu0
          %v6694 = vpop.f32.mrb[0].mxu0
          %v6695 = vadd.f32 %v6406, %v6694
          %v6696 = vpop.f32.mrb[0].mxu0
          %6697 = vmatprep.mubr.bf16.mxu0 %v5293
          %6698 = vmatmul.mubr.bf16.gmra.mrb[0].mxu0 %v5292
          %v6699 = vpop.f32.mrb[0].mxu0
          %v6700 = vadd.f32 %v6411, %v6699
          %v6701 = vpop.f32.mrb[0].mxu0
          %v6702 = vpop.f32.mrb[0].mxu0
          %v6703 = vadd.f32 %v6414, %v6702
          %v6704 = vpop.f32.mrb[0].mxu0
          %6705 = vdwg.mxu0
          %v6706 = vmax.f32 %v6452, 0.0
          %v6707 = vmax.f32 %v6455, 0.0
          %v6708 = vmax.f32 %v6460, 0.0
          %v6709 = vmax.f32 %v6463, 0.0
          %v6710 = vmax.f32 %v6468, 0.0
          %v6711 = vmax.f32 %v6471, 0.0
          %v6712 = vmax.f32 %v6476, 0.0
          %v6713 = vmax.f32 %v6479, 0.0
          %v6714 = vmax.f32 %v6484, 0.0
          %v6715 = vmax.f32 %v6487, 0.0
          %v6716 = vmax.f32 %v6492, 0.0
          %v6717 = vmax.f32 %v6495, 0.0
          %v6718 = vmax.f32 %v6500, 0.0
          %v6719 = vmax.f32 %v6503, 0.0
          %v6720 = vmax.f32 %v6508, 0.0
          %v6721 = vmax.f32 %v6511, 0.0
          %v6722 = vmax.f32 %v6516, 0.0
          %v6723 = vmax.f32 %v6519, 0.0
          %v6724 = vmax.f32 %v6524, 0.0
          %v6725 = vmax.f32 %v6527, 0.0
          %v6726 = vmax.f32 %v6532, 0.0
          %v6727 = vmax.f32 %v6535, 0.0
          %v6728 = vmax.f32 %v6540, 0.0
          %v6729 = vmax.f32 %v6543, 0.0
          %v6730 = vmax.f32 %v6548, 0.0
          %v6731 = vmax.f32 %v6551, 0.0
          %v6732 = vmax.f32 %v6556, 0.0
          %v6733 = vmax.f32 %v6559, 0.0
          %v6734 = vmax.f32 %v6564, 0.0
          %v6735 = vmax.f32 %v6567, 0.0
          %v6736 = vmax.f32 %v6572, 0.0
          %v6737 = vmax.f32 %v6575, 0.0
          %v6738 = vmax.f32 %v6580, 0.0
          %v6739 = vmax.f32 %v6583, 0.0
          %v6740 = vmax.f32 %v6588, 0.0
          %v6741 = vmax.f32 %v6591, 0.0
          %v6742 = vmax.f32 %v6596, 0.0
          %v6743 = vmax.f32 %v6599, 0.0
          %v6744 = vmax.f32 %v6604, 0.0
          %v6745 = vmax.f32 %v6607, 0.0
          %v6746 = vmax.f32 %v6612, 0.0
          %v6747 = vmax.f32 %v6615, 0.0
          %v6748 = vmax.f32 %v6620, 0.0
          %v6749 = vmax.f32 %v6623, 0.0
          %v6750 = vmax.f32 %v6628, 0.0
          %v6751 = vmax.f32 %v6631, 0.0
          %v6752 = vmax.f32 %v6636, 0.0
          %v6753 = vmax.f32 %v6639, 0.0
          %v6754 = vmax.f32 %v6644, 0.0
          %v6755 = vmax.f32 %v6647, 0.0
          %v6756 = vmax.f32 %v6652, 0.0
          %v6757 = vmax.f32 %v6655, 0.0
          %v6758 = vmax.f32 %v6660, 0.0
          %v6759 = vmax.f32 %v6663, 0.0
          %v6760 = vmax.f32 %v6668, 0.0
          %v6761 = vmax.f32 %v6671, 0.0
          %v6762 = vmax.f32 %v6676, 0.0
          %v6763 = vmax.f32 %v6679, 0.0
          %v6764 = vmax.f32 %v6684, 0.0
          %v6765 = vmax.f32 %v6687, 0.0
          %v6766 = vmax.f32 %v6692, 0.0
          %v6767 = vmax.f32 %v6695, 0.0
          %v6768 = vmax.f32 %v6700, 0.0
          %v6769 = vmax.f32 %v6703, 0.0
          %v6770 = vld [vmem:[#allocation5] sm:$0xff]
          %v6771 = vld [vmem:[#allocation5 + $0x8] sm:$0xff]
          %v6772 = vld [vmem:[#allocation5 + $0x10] sm:$0xff]
          %v6773 = vld [vmem:[#allocation5 + $0x18] sm:$0xff]
          %v6774 = vld [vmem:[#allocation5 + $0x20] sm:$0xff]
          %v6775 = vld [vmem:[#allocation5 + $0x28] sm:$0xff]
          %v6776 = vld [vmem:[#allocation5 + $0x30] sm:$0xff]
          %v6777 = vld [vmem:[#allocation5 + $0x38] sm:$0xff]
          %v6778 = vld [vmem:[#allocation5 + $0x40] sm:$0xff]
          %v6779 = vld [vmem:[#allocation5 + $0x48] sm:$0xff]
          %v6780 = vld [vmem:[#allocation5 + $0x50] sm:$0xff]
          %v6781 = vld [vmem:[#allocation5 + $0x58] sm:$0xff]
          %v6782 = vld [vmem:[#allocation5 + $0x60] sm:$0xff]
          %v6783 = vld [vmem:[#allocation5 + $0x68] sm:$0xff]
          %v6784 = vld [vmem:[#allocation5 + $0x70] sm:$0xff]
          %v6785 = vld [vmem:[#allocation5 + $0x78] sm:$0xff]
          %v6786 = vld [vmem:[#allocation5 + $0x80] sm:$0xff]
          %v6787 = vld [vmem:[#allocation5 + $0x88] sm:$0xff]
          %v6788 = vld [vmem:[#allocation5 + $0x90] sm:$0xff]
          %v6789 = vld [vmem:[#allocation5 + $0x98] sm:$0xff]
          %v6790 = vld [vmem:[#allocation5 + $0xa0] sm:$0xff]
          %v6791 = vld [vmem:[#allocation5 + $0xa8] sm:$0xff]
          %v6792 = vld [vmem:[#allocation5 + $0xb0] sm:$0xff]
          %v6793 = vld [vmem:[#allocation5 + $0xb8] sm:$0xff]
          %v6794 = vld [vmem:[#allocation5 + $0xc0] sm:$0xff]
          %v6795 = vld [vmem:[#allocation5 + $0xc8] sm:$0xff]
          %v6796 = vld [vmem:[#allocation5 + $0xd0] sm:$0xff]
          %v6797 = vld [vmem:[#allocation5 + $0xd8] sm:$0xff]
          %v6798 = vld [vmem:[#allocation5 + $0xe0] sm:$0xff]
          %v6799 = vld [vmem:[#allocation5 + $0xe8] sm:$0xff]
          %v6800 = vld [vmem:[#allocation5 + $0xf0] sm:$0xff]
          %v6801 = vld [vmem:[#allocation5 + $0xf8] sm:$0xff]
          %v6802 = vld [vmem:[#allocation5 + $0x100] sm:$0xff]
          %v6803 = vld [vmem:[#allocation5 + $0x108] sm:$0xff]
          %v6804 = vld [vmem:[#allocation5 + $0x110] sm:$0xff]
          %v6805 = vld [vmem:[#allocation5 + $0x118] sm:$0xff]
          %v6806 = vld [vmem:[#allocation5 + $0x120] sm:$0xff]
          %v6807 = vld [vmem:[#allocation5 + $0x128] sm:$0xff]
          %v6808 = vld [vmem:[#allocation5 + $0x130] sm:$0xff]
          %v6809 = vld [vmem:[#allocation5 + $0x138] sm:$0xff]
          %v6810 = vld [vmem:[#allocation5 + $0x140] sm:$0xff]
          %v6811 = vld [vmem:[#allocation5 + $0x148] sm:$0xff]
          %v6812 = vld [vmem:[#allocation5 + $0x150] sm:$0xff]
          %v6813 = vld [vmem:[#allocation5 + $0x158] sm:$0xff]
          %v6814 = vld [vmem:[#allocation5 + $0x160] sm:$0xff]
          %v6815 = vld [vmem:[#allocation5 + $0x168] sm:$0xff]
          %v6816 = vld [vmem:[#allocation5 + $0x170] sm:$0xff]
          %v6817 = vld [vmem:[#allocation5 + $0x178] sm:$0xff]
          %v6818 = vld [vmem:[#allocation5 + $0x180] sm:$0xff]
          %v6819 = vld [vmem:[#allocation5 + $0x188] sm:$0xff]
          %v6820 = vld [vmem:[#allocation5 + $0x190] sm:$0xff]
          %v6821 = vld [vmem:[#allocation5 + $0x198] sm:$0xff]
          %v6822 = vld [vmem:[#allocation5 + $0x1a0] sm:$0xff]
          %v6823 = vld [vmem:[#allocation5 + $0x1a8] sm:$0xff]
          %v6824 = vld [vmem:[#allocation5 + $0x1b0] sm:$0xff]
          %v6825 = vld [vmem:[#allocation5 + $0x1b8] sm:$0xff]
          %v6826 = vld [vmem:[#allocation5 + $0x1c0] sm:$0xff]
          %v6827 = vld [vmem:[#allocation5 + $0x1c8] sm:$0xff]
          %v6828 = vld [vmem:[#allocation5 + $0x1d0] sm:$0xff]
          %v6829 = vld [vmem:[#allocation5 + $0x1d8] sm:$0xff]
          %v6830 = vld [vmem:[#allocation5 + $0x1e0] sm:$0xff]
          %v6831 = vld [vmem:[#allocation5 + $0x1e8] sm:$0xff]
          %v6832 = vld [vmem:[#allocation5 + $0x1f0] sm:$0xff]
          %v6833 = vld [vmem:[#allocation5 + $0x1f8] sm:$0xff]
          %v6834 = vpack.c.bf16 %v6707, %v6706
          %v6835 = vpack.c.bf16 %v6709, %v6708
          %v6836 = vpack.c.bf16 %v6711, %v6710
          %v6837 = vpack.c.bf16 %v6713, %v6712
          %v6838 = vpack.c.bf16 %v6715, %v6714
          %v6839 = vpack.c.bf16 %v6717, %v6716
          %v6840 = vpack.c.bf16 %v6719, %v6718
          %v6841 = vpack.c.bf16 %v6721, %v6720
          %v6842 = vpack.c.bf16 %v6723, %v6722
          %v6843 = vpack.c.bf16 %v6725, %v6724
          %v6844 = vpack.c.bf16 %v6727, %v6726
          %v6845 = vpack.c.bf16 %v6729, %v6728
          %v6846 = vpack.c.bf16 %v6731, %v6730
          %v6847 = vpack.c.bf16 %v6733, %v6732
          %v6848 = vpack.c.bf16 %v6735, %v6734
          %v6849 = vpack.c.bf16 %v6737, %v6736
          %v6850 = vpack.c.bf16 %v6739, %v6738
          %v6851 = vpack.c.bf16 %v6741, %v6740
          %v6852 = vpack.c.bf16 %v6743, %v6742
          %v6853 = vpack.c.bf16 %v6745, %v6744
          %v6854 = vpack.c.bf16 %v6747, %v6746
          %v6855 = vpack.c.bf16 %v6749, %v6748
          %v6856 = vpack.c.bf16 %v6751, %v6750
          %v6857 = vpack.c.bf16 %v6753, %v6752
          %v6858 = vpack.c.bf16 %v6755, %v6754
          %v6859 = vpack.c.bf16 %v6757, %v6756
          %v6860 = vpack.c.bf16 %v6759, %v6758
          %v6861 = vpack.c.bf16 %v6761, %v6760
          %v6862 = vpack.c.bf16 %v6763, %v6762
          %v6863 = vpack.c.bf16 %v6765, %v6764
          %v6864 = vpack.c.bf16 %v6767, %v6766
          %v6865 = vpack.c.bf16 %v6769, %v6768
          %v6866 = vld [vmem:[%s10] sm:$0xff]
          %v6867 = vld [vmem:[%s10 + $0x8] sm:$0xff]
          %v6868 = vld [vmem:[%s10 + $0x10] sm:$0xff]
          %v6869 = vld [vmem:[%s10 + $0x18] sm:$0xff]
          %v6870 = vld [vmem:[%s10 + $0x20] sm:$0xff]
          %v6871 = vld [vmem:[%s10 + $0x28] sm:$0xff]
          %v6872 = vld [vmem:[%s10 + $0x30] sm:$0xff]
          %v6873 = vld [vmem:[%s10 + $0x38] sm:$0xff]
          %v6874 = vld [vmem:[%s10 + $0x40] sm:$0xff]
          %v6875 = vld [vmem:[%s10 + $0x48] sm:$0xff]
          %v6876 = vld [vmem:[%s10 + $0x50] sm:$0xff]
          %v6877 = vld [vmem:[%s10 + $0x58] sm:$0xff]
          %v6878 = vld [vmem:[%s10 + $0x60] sm:$0xff]
          %v6879 = vld [vmem:[%s10 + $0x68] sm:$0xff]
          %v6880 = vld [vmem:[%s10 + $0x70] sm:$0xff]
          %v6881 = vld [vmem:[%s10 + $0x78] sm:$0xff]
          %v6882 = vld [vmem:[%s10 + $0x80] sm:$0xff]
          %v6883 = vld [vmem:[%s10 + $0x88] sm:$0xff]
          %v6884 = vld [vmem:[%s10 + $0x90] sm:$0xff]
          %v6885 = vld [vmem:[%s10 + $0x98] sm:$0xff]
          %v6886 = vld [vmem:[%s10 + $0xa0] sm:$0xff]
          %v6887 = vld [vmem:[%s10 + $0xa8] sm:$0xff]
          %v6888 = vld [vmem:[%s10 + $0xb0] sm:$0xff]
          %v6889 = vld [vmem:[%s10 + $0xb8] sm:$0xff]
          %v6890 = vld [vmem:[%s10 + $0xc0] sm:$0xff]
          %v6891 = vld [vmem:[%s10 + $0xc8] sm:$0xff]
          %v6892 = vld [vmem:[%s10 + $0xd0] sm:$0xff]
          %v6893 = vld [vmem:[%s10 + $0xd8] sm:$0xff]
          %v6894 = vld [vmem:[%s10 + $0xe0] sm:$0xff]
          %v6895 = vld [vmem:[%s10 + $0xe8] sm:$0xff]
          %v6896 = vld [vmem:[%s10 + $0xf0] sm:$0xff]
          %v6897 = vld [vmem:[%s10 + $0xf8] sm:$0xff]
          %v6962 = vunpack.c.l.b16 %v6770
          %v6963 = vunpack.c.h.b16 %v6770
          %v6964 = vunpack.c.l.b16 %v6771
          %v6965 = vunpack.c.h.b16 %v6771
          %v6966 = vunpack.c.l.b16 %v6772
          %v6967 = vunpack.c.h.b16 %v6772
          %v6968 = vunpack.c.l.b16 %v6773
          %v6969 = vunpack.c.h.b16 %v6773
          %v6970 = vunpack.c.l.b16 %v6774
          %v6971 = vunpack.c.h.b16 %v6774
          %v6972 = vunpack.c.l.b16 %v6775
          %v6973 = vunpack.c.h.b16 %v6775
          %v6974 = vunpack.c.l.b16 %v6776
          %v6975 = vunpack.c.h.b16 %v6776
          %v6976 = vunpack.c.l.b16 %v6777
          %v6977 = vunpack.c.h.b16 %v6777
          %v6978 = vunpack.c.l.b16 %v6778
          %v6979 = vunpack.c.h.b16 %v6778
          %v6980 = vunpack.c.l.b16 %v6779
          %v6981 = vunpack.c.h.b16 %v6779
          %v6982 = vunpack.c.l.b16 %v6780
          %v6983 = vunpack.c.h.b16 %v6780
          %v6984 = vunpack.c.l.b16 %v6781
          %v6985 = vunpack.c.h.b16 %v6781
          %v6986 = vunpack.c.l.b16 %v6782
          %v6987 = vunpack.c.h.b16 %v6782
          %v6988 = vunpack.c.l.b16 %v6783
          %v6989 = vunpack.c.h.b16 %v6783
          %v6990 = vunpack.c.l.b16 %v6784
          %v6991 = vunpack.c.h.b16 %v6784
          %v6992 = vunpack.c.l.b16 %v6785
          %v6993 = vunpack.c.h.b16 %v6785
          %v6994 = vunpack.c.l.b16 %v6786
          %v6995 = vunpack.c.h.b16 %v6786
          %v6996 = vunpack.c.l.b16 %v6787
          %v6997 = vunpack.c.h.b16 %v6787
          %v6998 = vunpack.c.l.b16 %v6788
          %v6999 = vunpack.c.h.b16 %v6788
          %v7000 = vunpack.c.l.b16 %v6789
          %v7001 = vunpack.c.h.b16 %v6789
          %v7002 = vunpack.c.l.b16 %v6790
          %v7003 = vunpack.c.h.b16 %v6790
          %v7004 = vunpack.c.l.b16 %v6791
          %v7005 = vunpack.c.h.b16 %v6791
          %v7006 = vunpack.c.l.b16 %v6792
          %v7007 = vunpack.c.h.b16 %v6792
          %v7008 = vunpack.c.l.b16 %v6793
          %v7009 = vunpack.c.h.b16 %v6793
          %v7010 = vunpack.c.l.b16 %v6794
          %v7011 = vunpack.c.h.b16 %v6794
          %v7012 = vunpack.c.l.b16 %v6795
          %v7013 = vunpack.c.h.b16 %v6795
          %v7014 = vunpack.c.l.b16 %v6796
          %v7015 = vunpack.c.h.b16 %v6796
          %v7016 = vunpack.c.l.b16 %v6797
          %v7017 = vunpack.c.h.b16 %v6797
          %v7018 = vunpack.c.l.b16 %v6798
          %v7019 = vunpack.c.h.b16 %v6798
          %v7020 = vunpack.c.l.b16 %v6799
          %v7021 = vunpack.c.h.b16 %v6799
          %v7022 = vunpack.c.l.b16 %v6800
          %v7023 = vunpack.c.h.b16 %v6800
          %v7024 = vunpack.c.l.b16 %v6801
          %v7025 = vunpack.c.h.b16 %v6801
          %v7026 = vunpack.c.l.b16 %v6802
          %v7027 = vunpack.c.h.b16 %v6802
          %v7028 = vunpack.c.l.b16 %v6803
          %v7029 = vunpack.c.h.b16 %v6803
          %v7030 = vunpack.c.l.b16 %v6804
          %v7031 = vunpack.c.h.b16 %v6804
          %v7032 = vunpack.c.l.b16 %v6805
          %v7033 = vunpack.c.h.b16 %v6805
          %v7034 = vunpack.c.l.b16 %v6806
          %v7035 = vunpack.c.h.b16 %v6806
          %v7036 = vunpack.c.l.b16 %v6807
          %v7037 = vunpack.c.h.b16 %v6807
          %v7038 = vunpack.c.l.b16 %v6808
          %v7039 = vunpack.c.h.b16 %v6808
          %v7040 = vunpack.c.l.b16 %v6809
          %v7041 = vunpack.c.h.b16 %v6809
          %v7042 = vunpack.c.l.b16 %v6810
          %v7043 = vunpack.c.h.b16 %v6810
          %v7044 = vunpack.c.l.b16 %v6811
          %v7045 = vunpack.c.h.b16 %v6811
          %v7046 = vunpack.c.l.b16 %v6812
          %v7047 = vunpack.c.h.b16 %v6812
          %v7048 = vunpack.c.l.b16 %v6813
          %v7049 = vunpack.c.h.b16 %v6813
          %v7050 = vunpack.c.l.b16 %v6814
          %v7051 = vunpack.c.h.b16 %v6814
          %v7052 = vunpack.c.l.b16 %v6815
          %v7053 = vunpack.c.h.b16 %v6815
          %v7054 = vunpack.c.l.b16 %v6816
          %v7055 = vunpack.c.h.b16 %v6816
          %v7056 = vunpack.c.l.b16 %v6817
          %v7057 = vunpack.c.h.b16 %v6817
          %v7058 = vunpack.c.l.b16 %v6818
          %v7059 = vunpack.c.h.b16 %v6818
          %v7060 = vunpack.c.l.b16 %v6819
          %v7061 = vunpack.c.h.b16 %v6819
          %v7062 = vunpack.c.l.b16 %v6820
          %v7063 = vunpack.c.h.b16 %v6820
          %v7064 = vunpack.c.l.b16 %v6821
          %v7065 = vunpack.c.h.b16 %v6821
          %v7066 = vunpack.c.l.b16 %v6822
          %v7067 = vunpack.c.h.b16 %v6822
          %v7068 = vunpack.c.l.b16 %v6823
          %v7069 = vunpack.c.h.b16 %v6823
          %v7070 = vunpack.c.l.b16 %v6824
          %v7071 = vunpack.c.h.b16 %v6824
          %v7072 = vunpack.c.l.b16 %v6825
          %v7073 = vunpack.c.h.b16 %v6825
          %v7074 = vunpack.c.l.b16 %v6826
          %v7075 = vunpack.c.h.b16 %v6826
          %v7076 = vunpack.c.l.b16 %v6827
          %v7077 = vunpack.c.h.b16 %v6827
          %v7078 = vunpack.c.l.b16 %v6828
          %v7079 = vunpack.c.h.b16 %v6828
          %v7080 = vunpack.c.l.b16 %v6829
          %v7081 = vunpack.c.h.b16 %v6829
          %v7082 = vunpack.c.l.b16 %v6830
          %v7083 = vunpack.c.h.b16 %v6830
          %v7084 = vunpack.c.l.b16 %v6831
          %v7085 = vunpack.c.h.b16 %v6831
          %v7086 = vunpack.c.l.b16 %v6832
          %v7087 = vunpack.c.h.b16 %v6832
          %v7088 = vunpack.c.l.b16 %v6833
          %v7089 = vunpack.c.h.b16 %v6833
          %v7090 = vpack.c.b16 %v6966, %v6962
          %v7091 = vpack.c.b16 %v6967, %v6963
          %v7092 = vpack.c.b16 %v6968, %v6964
          %v7093 = vpack.c.b16 %v6969, %v6965
          %v7094 = vpack.c.b16 %v6974, %v6970
          %v7095 = vpack.c.b16 %v6975, %v6971
          %v7096 = vpack.c.b16 %v6976, %v6972
          %v7097 = vpack.c.b16 %v6977, %v6973
          %v7098 = vpack.c.b16 %v6982, %v6978
          %v7099 = vpack.c.b16 %v6983, %v6979
          %v7100 = vpack.c.b16 %v6984, %v6980
          %v7101 = vpack.c.b16 %v6985, %v6981
          %v7102 = vpack.c.b16 %v6990, %v6986
          %v7103 = vpack.c.b16 %v6991, %v6987
          %v7104 = vpack.c.b16 %v6992, %v6988
          %v7105 = vpack.c.b16 %v6993, %v6989
          %v7106 = vpack.c.b16 %v6998, %v6994
          %v7107 = vpack.c.b16 %v6999, %v6995
          %v7108 = vpack.c.b16 %v7000, %v6996
          %v7109 = vpack.c.b16 %v7001, %v6997
          %v7110 = vpack.c.b16 %v7006, %v7002
          %v7111 = vpack.c.b16 %v7007, %v7003
          %v7112 = vpack.c.b16 %v7008, %v7004
          %v7113 = vpack.c.b16 %v7009, %v7005
          %v7114 = vpack.c.b16 %v7014, %v7010
          %v7115 = vpack.c.b16 %v7015, %v7011
          %v7116 = vpack.c.b16 %v7016, %v7012
          %v7117 = vpack.c.b16 %v7017, %v7013
          %v7118 = vpack.c.b16 %v7022, %v7018
          %v7119 = vpack.c.b16 %v7023, %v7019
          %v7120 = vpack.c.b16 %v7024, %v7020
          %v7121 = vpack.c.b16 %v7025, %v7021
          %v7122 = vpack.c.b16 %v7030, %v7026
          %v7123 = vpack.c.b16 %v7031, %v7027
          %v7124 = vpack.c.b16 %v7032, %v7028
          %v7125 = vpack.c.b16 %v7033, %v7029
          %v7126 = vpack.c.b16 %v7038, %v7034
          %v7127 = vpack.c.b16 %v7039, %v7035
          %v7128 = vpack.c.b16 %v7040, %v7036
          %v7129 = vpack.c.b16 %v7041, %v7037
          %v7130 = vpack.c.b16 %v7046, %v7042
          %v7131 = vpack.c.b16 %v7047, %v7043
          %v7132 = vpack.c.b16 %v7048, %v7044
          %v7133 = vpack.c.b16 %v7049, %v7045
          %v7134 = vpack.c.b16 %v7054, %v7050
          %v7135 = vpack.c.b16 %v7055, %v7051
          %v7136 = vpack.c.b16 %v7056, %v7052
          %v7137 = vpack.c.b16 %v7057, %v7053
          %v7138 = vpack.c.b16 %v7062, %v7058
          %v7139 = vpack.c.b16 %v7063, %v7059
          %v7140 = vpack.c.b16 %v7064, %v7060
          %v7141 = vpack.c.b16 %v7065, %v7061
          %v7142 = vpack.c.b16 %v7070, %v7066
          %v7143 = vpack.c.b16 %v7071, %v7067
          %v7144 = vpack.c.b16 %v7072, %v7068
          %v7145 = vpack.c.b16 %v7073, %v7069
          %v7146 = vpack.c.b16 %v7078, %v7074
          %v7147 = vpack.c.b16 %v7079, %v7075
          %v7148 = vpack.c.b16 %v7080, %v7076
          %v7149 = vpack.c.b16 %v7081, %v7077
          %v7150 = vpack.c.b16 %v7086, %v7082
          %v7151 = vpack.c.b16 %v7087, %v7083
          %v7152 = vpack.c.b16 %v7088, %v7084
          %v7153 = vpack.c.b16 %v7089, %v7085
          %7218 = vmatprep.subr.bf16.mxu0 0
          %7219 = vmatpush1.bf16.msra.mxu0 %v6834
          %7220 = vmatprep.subr.bf16.mxu0 0
          %7221 = vmatpush1.bf16.msra.mxu0 %v6835
          %7222 = vmatprep.subr.bf16.mxu0 0
          %7223 = vmatpush1.bf16.msra.mxu0 %v6836
          %7224 = vmatprep.subr.bf16.mxu0 0
          %7225 = vmatpush1.bf16.msra.mxu0 %v6837
          %7226 = vmatprep.subr.bf16.mxu0 0
          %7227 = vmatpush1.bf16.msra.mxu0 %v6838
          %7228 = vmatprep.subr.bf16.mxu0 0
          %7229 = vmatpush1.bf16.msra.mxu0 %v6839
          %7230 = vmatprep.subr.bf16.mxu0 0
          %7231 = vmatpush1.bf16.msra.mxu0 %v6840
          %7232 = vmatprep.subr.bf16.mxu0 0
          %7233 = vmatpush1.bf16.msra.mxu0 %v6841
          %7234 = vmatprep.subr.bf16.mxu0 0
          %7235 = vmatpush1.bf16.msra.mxu0 %v6842
          %7236 = vmatprep.subr.bf16.mxu0 0
          %7237 = vmatpush1.bf16.msra.mxu0 %v6843
          %7238 = vmatprep.subr.bf16.mxu0 0
          %7239 = vmatpush1.bf16.msra.mxu0 %v6844
          %7240 = vmatprep.subr.bf16.mxu0 0
          %7241 = vmatpush1.bf16.msra.mxu0 %v6845
          %7242 = vmatprep.subr.bf16.mxu0 0
          %7243 = vmatpush1.bf16.msra.mxu0 %v6846
          %7244 = vmatprep.subr.bf16.mxu0 0
          %7245 = vmatpush1.bf16.msra.mxu0 %v6847
          %7246 = vmatprep.subr.bf16.mxu0 0
          %7247 = vmatpush1.bf16.msra.mxu0 %v6848
          %7248 = vmatprep.subr.bf16.mxu0 0
          %7249 = vmatpush1.bf16.msra.mxu0 %v6849
          %7250 = vmatprep.mubr.bf16.mxu0 %v7091
          %7251 = vmatmul.mubr.bf16.gmra.mrb[0].mxu0 %v7090
          %v7252 = vpop.f32.mrb[0].mxu0
          %v7253 = vadd.f32 %v6866, %v7252
          %v7254 = vpop.f32.mrb[0].mxu0
          %v7255 = vpop.f32.mrb[0].mxu0
          %v7256 = vadd.f32 %v6867, %v7255
          %v7257 = vpop.f32.mrb[0].mxu0
          %7258 = vmatprep.mubr.bf16.mxu0 %v7095
          %7259 = vmatmul.mubr.bf16.gmra.mrb[0].mxu0 %v7094
          %v7260 = vpop.f32.mrb[0].mxu0
          %v7261 = vadd.f32 %v6868, %v7260
          %v7262 = vpop.f32.mrb[0].mxu0
          %v7263 = vpop.f32.mrb[0].mxu0
          %v7264 = vadd.f32 %v6869, %v7263
          %v7265 = vpop.f32.mrb[0].mxu0
          %7266 = vmatprep.mubr.bf16.mxu0 %v7099
          %7267 = vmatmul.mubr.bf16.gmra.mrb[0].mxu0 %v7098
          %v7268 = vpop.f32.mrb[0].mxu0
          %v7269 = vadd.f32 %v6870, %v7268
          %v7270 = vpop.f32.mrb[0].mxu0
          %v7271 = vpop.f32.mrb[0].mxu0
          %v7272 = vadd.f32 %v6871, %v7271
          %v7273 = vpop.f32.mrb[0].mxu0
          %7274 = vmatprep.mubr.bf16.mxu0 %v7103
          %7275 = vmatmul.mubr.bf16.gmra.mrb[0].mxu0 %v7102
          %v7276 = vpop.f32.mrb[0].mxu0
          %v7277 = vadd.f32 %v6872, %v7276
          %v7278 = vpop.f32.mrb[0].mxu0
          %v7279 = vpop.f32.mrb[0].mxu0
          %v7280 = vadd.f32 %v6873, %v7279
          %v7281 = vpop.f32.mrb[0].mxu0
          %7282 = vmatprep.mubr.bf16.mxu0 %v7107
          %7283 = vmatmul.mubr.bf16.gmra.mrb[0].mxu0 %v7106
          %v7284 = vpop.f32.mrb[0].mxu0
          %v7285 = vadd.f32 %v6874, %v7284
          %v7286 = vpop.f32.mrb[0].mxu0
          %v7287 = vpop.f32.mrb[0].mxu0
          %v7288 = vadd.f32 %v6875, %v7287
          %v7289 = vpop.f32.mrb[0].mxu0
          %7290 = vmatprep.mubr.bf16.mxu0 %v7111
          %7291 = vmatmul.mubr.bf16.gmra.mrb[0].mxu0 %v7110
          %v7292 = vpop.f32.mrb[0].mxu0
          %v7293 = vadd.f32 %v6876, %v7292
          %v7294 = vpop.f32.mrb[0].mxu0
          %v7295 = vpop.f32.mrb[0].mxu0
          %v7296 = vadd.f32 %v6877, %v7295
          %v7297 = vpop.f32.mrb[0].mxu0
          %7298 = vmatprep.mubr.bf16.mxu0 %v7115
          %7299 = vmatmul.mubr.bf16.gmra.mrb[0].mxu0 %v7114
          %v7300 = vpop.f32.mrb[0].mxu0
          %v7301 = vadd.f32 %v6878, %v7300
          %v7302 = vpop.f32.mrb[0].mxu0
          %v7303 = vpop.f32.mrb[0].mxu0
          %v7304 = vadd.f32 %v6879, %v7303
          %v7305 = vpop.f32.mrb[0].mxu0
          %7306 = vmatprep.mubr.bf16.mxu0 %v7119
          %7307 = vmatmul.mubr.bf16.gmra.mrb[0].mxu0 %v7118
          %v7308 = vpop.f32.mrb[0].mxu0
          %v7309 = vadd.f32 %v6880, %v7308
          %v7310 = vpop.f32.mrb[0].mxu0
          %v7311 = vpop.f32.mrb[0].mxu0
          %v7312 = vadd.f32 %v6881, %v7311
          %v7313 = vpop.f32.mrb[0].mxu0
          %7314 = vmatprep.mubr.bf16.mxu0 %v7123
          %7315 = vmatmul.mubr.bf16.gmra.mrb[0].mxu0 %v7122
          %v7316 = vpop.f32.mrb[0].mxu0
          %v7317 = vadd.f32 %v6882, %v7316
          %v7318 = vpop.f32.mrb[0].mxu0
          %v7319 = vpop.f32.mrb[0].mxu0
          %v7320 = vadd.f32 %v6883, %v7319
          %v7321 = vpop.f32.mrb[0].mxu0
          %7322 = vmatprep.mubr.bf16.mxu0 %v7127
          %7323 = vmatmul.mubr.bf16.gmra.mrb[0].mxu0 %v7126
          %v7324 = vpop.f32.mrb[0].mxu0
          %v7325 = vadd.f32 %v6884, %v7324
          %v7326 = vpop.f32.mrb[0].mxu0
          %v7327 = vpop.f32.mrb[0].mxu0
          %v7328 = vadd.f32 %v6885, %v7327
          %v7329 = vpop.f32.mrb[0].mxu0
          %7330 = vmatprep.mubr.bf16.mxu0 %v7131
          %7331 = vmatmul.mubr.bf16.gmra.mrb[0].mxu0 %v7130
          %v7332 = vpop.f32.mrb[0].mxu0
          %v7333 = vadd.f32 %v6886, %v7332
          %v7334 = vpop.f32.mrb[0].mxu0
          %v7335 = vpop.f32.mrb[0].mxu0
          %v7336 = vadd.f32 %v6887, %v7335
          %v7337 = vpop.f32.mrb[0].mxu0
          %7338 = vmatprep.mubr.bf16.mxu0 %v7135
          %7339 = vmatmul.mubr.bf16.gmra.mrb[0].mxu0 %v7134
          %v7340 = vpop.f32.mrb[0].mxu0
          %v7341 = vadd.f32 %v6888, %v7340
          %v7342 = vpop.f32.mrb[0].mxu0
          %v7343 = vpop.f32.mrb[0].mxu0
          %v7344 = vadd.f32 %v6889, %v7343
          %v7345 = vpop.f32.mrb[0].mxu0
          %7346 = vmatprep.mubr.bf16.mxu0 %v7139
          %7347 = vmatmul.mubr.bf16.gmra.mrb[0].mxu0 %v7138
          %v7348 = vpop.f32.mrb[0].mxu0
          %v7349 = vadd.f32 %v6890, %v7348
          %v7350 = vpop.f32.mrb[0].mxu0
          %v7351 = vpop.f32.mrb[0].mxu0
          %v7352 = vadd.f32 %v6891, %v7351
          %v7353 = vpop.f32.mrb[0].mxu0
          %7354 = vmatprep.mubr.bf16.mxu0 %v7143
          %7355 = vmatmul.mubr.bf16.gmra.mrb[0].mxu0 %v7142
          %v7356 = vpop.f32.mrb[0].mxu0
          %v7357 = vadd.f32 %v6892, %v7356
          %v7358 = vpop.f32.mrb[0].mxu0
          %v7359 = vpop.f32.mrb[0].mxu0
          %v7360 = vadd.f32 %v6893, %v7359
          %v7361 = vpop.f32.mrb[0].mxu0
          %7362 = vmatprep.mubr.bf16.mxu0 %v7147
          %7363 = vmatmul.mubr.bf16.gmra.mrb[0].mxu0 %v7146
          %v7364 = vpop.f32.mrb[0].mxu0
          %v7365 = vadd.f32 %v6894, %v7364
          %v7366 = vpop.f32.mrb[0].mxu0
          %v7367 = vpop.f32.mrb[0].mxu0
          %v7368 = vadd.f32 %v6895, %v7367
          %v7369 = vpop.f32.mrb[0].mxu0
          %7370 = vmatprep.mubr.bf16.mxu0 %v7151
          %7371 = vmatmul.mubr.bf16.gmra.mrb[0].mxu0 %v7150
          %v7372 = vpop.f32.mrb[0].mxu0
          %v7373 = vadd.f32 %v6896, %v7372
          %v7374 = vpop.f32.mrb[0].mxu0
          %v7375 = vpop.f32.mrb[0].mxu0
          %v7376 = vadd.f32 %v6897, %v7375
          %v7377 = vpop.f32.mrb[0].mxu0
          %7378 = vdwg.mxu0
          %7379 = vmatprep.subr.bf16.mxu0 0
          %7380 = vmatpush1.bf16.msra.mxu0 %v6850
          %7381 = vmatprep.subr.bf16.mxu0 0
          %7382 = vmatpush1.bf16.msra.mxu0 %v6851
          %7383 = vmatprep.subr.bf16.mxu0 0
          %7384 = vmatpush1.bf16.msra.mxu0 %v6852
          %7385 = vmatprep.subr.bf16.mxu0 0
          %7386 = vmatpush1.bf16.msra.mxu0 %v6853
          %7387 = vmatprep.subr.bf16.mxu0 0
          %7388 = vmatpush1.bf16.msra.mxu0 %v6854
          %7389 = vmatprep.subr.bf16.mxu0 0
          %7390 = vmatpush1.bf16.msra.mxu0 %v6855
          %7391 = vmatprep.subr.bf16.mxu0 0
          %7392 = vmatpush1.bf16.msra.mxu0 %v6856
          %7393 = vmatprep.subr.bf16.mxu0 0
          %7394 = vmatpush1.bf16.msra.mxu0 %v6857
          %7395 = vmatprep.subr.bf16.mxu0 0
          %7396 = vmatpush1.bf16.msra.mxu0 %v6858
          %7397 = vmatprep.subr.bf16.mxu0 0
          %7398 = vmatpush1.bf16.msra.mxu0 %v6859
          %7399 = vmatprep.subr.bf16.mxu0 0
          %7400 = vmatpush1.bf16.msra.mxu0 %v6860
          %7401 = vmatprep.subr.bf16.mxu0 0
          %7402 = vmatpush1.bf16.msra.mxu0 %v6861
          %7403 = vmatprep.subr.bf16.mxu0 0
          %7404 = vmatpush1.bf16.msra.mxu0 %v6862
          %7405 = vmatprep.subr.bf16.mxu0 0
          %7406 = vmatpush1.bf16.msra.mxu0 %v6863
          %7407 = vmatprep.subr.bf16.mxu0 0
          %7408 = vmatpush1.bf16.msra.mxu0 %v6864
          %7409 = vmatprep.subr.bf16.mxu0 0
          %7410 = vmatpush1.bf16.msra.mxu0 %v6865
          %7411 = vmatprep.mubr.bf16.mxu0 %v7093
          %7412 = vmatmul.mubr.bf16.gmra.mrb[0].mxu0 %v7092
          %v7413 = vpop.f32.mrb[0].mxu0
          %v7414 = vadd.f32 %v7253, %v7413
          %v7415 = vpop.f32.mrb[0].mxu0
          %v7416 = vpop.f32.mrb[0].mxu0
          %v7417 = vadd.f32 %v7256, %v7416
          %v7418 = vpop.f32.mrb[0].mxu0
          %7419 = vmatprep.mubr.bf16.mxu0 %v7097
          %7420 = vmatmul.mubr.bf16.gmra.mrb[0].mxu0 %v7096
          %v7421 = vpop.f32.mrb[0].mxu0
          %v7422 = vadd.f32 %v7261, %v7421
          %v7423 = vpop.f32.mrb[0].mxu0
          %v7424 = vpop.f32.mrb[0].mxu0
          %v7425 = vadd.f32 %v7264, %v7424
          %v7426 = vpop.f32.mrb[0].mxu0
          %7427 = vmatprep.mubr.bf16.mxu0 %v7101
          %7428 = vmatmul.mubr.bf16.gmra.mrb[0].mxu0 %v7100
          %v7429 = vpop.f32.mrb[0].mxu0
          %v7430 = vadd.f32 %v7269, %v7429
          %v7431 = vpop.f32.mrb[0].mxu0
          %v7432 = vpop.f32.mrb[0].mxu0
          %v7433 = vadd.f32 %v7272, %v7432
          %v7434 = vpop.f32.mrb[0].mxu0
          %7435 = vmatprep.mubr.bf16.mxu0 %v7105
          %7436 = vmatmul.mubr.bf16.gmra.mrb[0].mxu0 %v7104
          %v7437 = vpop.f32.mrb[0].mxu0
          %v7438 = vadd.f32 %v7277, %v7437
          %v7439 = vpop.f32.mrb[0].mxu0
          %v7440 = vpop.f32.mrb[0].mxu0
          %v7441 = vadd.f32 %v7280, %v7440
          %v7442 = vpop.f32.mrb[0].mxu0
          %7443 = vmatprep.mubr.bf16.mxu0 %v7109
          %7444 = vmatmul.mubr.bf16.gmra.mrb[0].mxu0 %v7108
          %v7445 = vpop.f32.mrb[0].mxu0
          %v7446 = vadd.f32 %v7285, %v7445
          %v7447 = vpop.f32.mrb[0].mxu0
          %v7448 = vpop.f32.mrb[0].mxu0
          %v7449 = vadd.f32 %v7288, %v7448
          %v7450 = vpop.f32.mrb[0].mxu0
          %7451 = vmatprep.mubr.bf16.mxu0 %v7113
          %7452 = vmatmul.mubr.bf16.gmra.mrb[0].mxu0 %v7112
          %v7453 = vpop.f32.mrb[0].mxu0
          %v7454 = vadd.f32 %v7293, %v7453
          %v7455 = vpop.f32.mrb[0].mxu0
          %v7456 = vpop.f32.mrb[0].mxu0
          %v7457 = vadd.f32 %v7296, %v7456
          %v7458 = vpop.f32.mrb[0].mxu0
          %7459 = vmatprep.mubr.bf16.mxu0 %v7117
          %7460 = vmatmul.mubr.bf16.gmra.mrb[0].mxu0 %v7116
          %v7461 = vpop.f32.mrb[0].mxu0
          %v7462 = vadd.f32 %v7301, %v7461
          %v7463 = vpop.f32.mrb[0].mxu0
          %v7464 = vpop.f32.mrb[0].mxu0
          %v7465 = vadd.f32 %v7304, %v7464
          %v7466 = vpop.f32.mrb[0].mxu0
          %7467 = vmatprep.mubr.bf16.mxu0 %v7121
          %7468 = vmatmul.mubr.bf16.gmra.mrb[0].mxu0 %v7120
          %v7469 = vpop.f32.mrb[0].mxu0
          %v7470 = vadd.f32 %v7309, %v7469
          %v7471 = vpop.f32.mrb[0].mxu0
          %v7472 = vpop.f32.mrb[0].mxu0
          %v7473 = vadd.f32 %v7312, %v7472
          %v7474 = vpop.f32.mrb[0].mxu0
          %7475 = vmatprep.mubr.bf16.mxu0 %v7125
          %7476 = vmatmul.mubr.bf16.gmra.mrb[0].mxu0 %v7124
          %v7477 = vpop.f32.mrb[0].mxu0
          %v7478 = vadd.f32 %v7317, %v7477
          %v7479 = vpop.f32.mrb[0].mxu0
          %v7480 = vpop.f32.mrb[0].mxu0
          %v7481 = vadd.f32 %v7320, %v7480
          %v7482 = vpop.f32.mrb[0].mxu0
          %7483 = vmatprep.mubr.bf16.mxu0 %v7129
          %7484 = vmatmul.mubr.bf16.gmra.mrb[0].mxu0 %v7128
          %v7485 = vpop.f32.mrb[0].mxu0
          %v7486 = vadd.f32 %v7325, %v7485
          %v7487 = vpop.f32.mrb[0].mxu0
          %v7488 = vpop.f32.mrb[0].mxu0
          %v7489 = vadd.f32 %v7328, %v7488
          %v7490 = vpop.f32.mrb[0].mxu0
          %7491 = vmatprep.mubr.bf16.mxu0 %v7133
          %7492 = vmatmul.mubr.bf16.gmra.mrb[0].mxu0 %v7132
          %v7493 = vpop.f32.mrb[0].mxu0
          %v7494 = vadd.f32 %v7333, %v7493
          %v7495 = vpop.f32.mrb[0].mxu0
          %v7496 = vpop.f32.mrb[0].mxu0
          %v7497 = vadd.f32 %v7336, %v7496
          %v7498 = vpop.f32.mrb[0].mxu0
          %7499 = vmatprep.mubr.bf16.mxu0 %v7137
          %7500 = vmatmul.mubr.bf16.gmra.mrb[0].mxu0 %v7136
          %v7501 = vpop.f32.mrb[0].mxu0
          %v7502 = vadd.f32 %v7341, %v7501
          %v7503 = vpop.f32.mrb[0].mxu0
          %v7504 = vpop.f32.mrb[0].mxu0
          %v7505 = vadd.f32 %v7344, %v7504
          %v7506 = vpop.f32.mrb[0].mxu0
          %7507 = vmatprep.mubr.bf16.mxu0 %v7141
          %7508 = vmatmul.mubr.bf16.gmra.mrb[0].mxu0 %v7140
          %v7509 = vpop.f32.mrb[0].mxu0
          %v7510 = vadd.f32 %v7349, %v7509
          %v7511 = vpop.f32.mrb[0].mxu0
          %v7512 = vpop.f32.mrb[0].mxu0
          %v7513 = vadd.f32 %v7352, %v7512
          %v7514 = vpop.f32.mrb[0].mxu0
          %7515 = vmatprep.mubr.bf16.mxu0 %v7145
          %7516 = vmatmul.mubr.bf16.gmra.mrb[0].mxu0 %v7144
          %v7517 = vpop.f32.mrb[0].mxu0
          %v7518 = vadd.f32 %v7357, %v7517
          %v7519 = vpop.f32.mrb[0].mxu0
          %v7520 = vpop.f32.mrb[0].mxu0
          %v7521 = vadd.f32 %v7360, %v7520
          %v7522 = vpop.f32.mrb[0].mxu0
          %7523 = vmatprep.mubr.bf16.mxu0 %v7149
          %7524 = vmatmul.mubr.bf16.gmra.mrb[0].mxu0 %v7148
          %v7525 = vpop.f32.mrb[0].mxu0
          %v7526 = vadd.f32 %v7365, %v7525
          %v7527 = vpop.f32.mrb[0].mxu0
          %v7528 = vpop.f32.mrb[0].mxu0
          %v7529 = vadd.f32 %v7368, %v7528
          %v7530 = vpop.f32.mrb[0].mxu0
          %7531 = vmatprep.mubr.bf16.mxu0 %v7153
          %7532 = vmatmul.mubr.bf16.gmra.mrb[0].mxu0 %v7152
          %v7533 = vpop.f32.mrb[0].mxu0
          %v7534 = vadd.f32 %v7373, %v7533
          %v7535 = vpop.f32.mrb[0].mxu0
          %v7536 = vpop.f32.mrb[0].mxu0
          %v7537 = vadd.f32 %v7376, %v7536
          %v7538 = vpop.f32.mrb[0].mxu0
          %7539 = vdwg.mxu0
          %v7540 = vmax.f32 %v7414, 0.0
          %v7541 = vmax.f32 %v7417, 0.0
          %v7542 = vmax.f32 %v7422, 0.0
          %v7543 = vmax.f32 %v7425, 0.0
          %v7544 = vmax.f32 %v7430, 0.0
          %v7545 = vmax.f32 %v7433, 0.0
          %v7546 = vmax.f32 %v7438, 0.0
          %v7547 = vmax.f32 %v7441, 0.0
          %v7548 = vmax.f32 %v7446, 0.0
          %v7549 = vmax.f32 %v7449, 0.0
          %v7550 = vmax.f32 %v7454, 0.0
          %v7551 = vmax.f32 %v7457, 0.0
          %v7552 = vmax.f32 %v7462, 0.0
          %v7553 = vmax.f32 %v7465, 0.0
          %v7554 = vmax.f32 %v7470, 0.0
          %v7555 = vmax.f32 %v7473, 0.0
          %v7556 = vmax.f32 %v7478, 0.0
          %v7557 = vmax.f32 %v7481, 0.0
          %v7558 = vmax.f32 %v7486, 0.0
          %v7559 = vmax.f32 %v7489, 0.0
          %v7560 = vmax.f32 %v7494, 0.0
          %v7561 = vmax.f32 %v7497, 0.0
          %v7562 = vmax.f32 %v7502, 0.0
          %v7563 = vmax.f32 %v7505, 0.0
          %v7564 = vmax.f32 %v7510, 0.0
          %v7565 = vmax.f32 %v7513, 0.0
          %v7566 = vmax.f32 %v7518, 0.0
          %v7567 = vmax.f32 %v7521, 0.0
          %v7568 = vmax.f32 %v7526, 0.0
          %v7569 = vmax.f32 %v7529, 0.0
          %v7570 = vmax.f32 %v7534, 0.0
          %v7571 = vmax.f32 %v7537, 0.0
          %v7572 = vld [vmem:[%s11] sm:$0xff]
          %v7573 = vld [vmem:[%s11 + $0x8] sm:$0x11]
          %v7574 = vpack.c.bf16 %v7541, %v7540
          %v7575 = vpack.c.bf16 %v7543, %v7542
          %v7576 = vpack.c.bf16 %v7545, %v7544
          %v7577 = vpack.c.bf16 %v7547, %v7546
          %v7578 = vpack.c.bf16 %v7549, %v7548
          %v7579 = vpack.c.bf16 %v7551, %v7550
          %v7580 = vpack.c.bf16 %v7553, %v7552
          %v7581 = vpack.c.bf16 %v7555, %v7554
          %v7582 = vpack.c.bf16 %v7557, %v7556
          %v7583 = vpack.c.bf16 %v7559, %v7558
          %v7584 = vpack.c.bf16 %v7561, %v7560
          %v7585 = vpack.c.bf16 %v7563, %v7562
          %v7586 = vpack.c.bf16 %v7565, %v7564
          %v7587 = vpack.c.bf16 %v7567, %v7566
          %v7588 = vpack.c.bf16 %v7569, %v7568
          %v7589 = vpack.c.bf16 %v7571, %v7570
          %v7590 = vld [vmem:[%s12] sm:$0xff]
          %v7591 = vld [vmem:[%s12 + $0x8] sm:$0x1]
          %v7594 = vunpack.c.l.b16 %v7572
          %v7595 = vunpack.c.h.b16 %v7572
          %v7596 = vunpack.c.l.b16 %v7573
          %v7597 = vunpack.c.h.b16 %v7573
          %v7598 = vpack.c.b16 %v7596, %v7594
          %v7599 = vpack.c.b16 %v7597, %v7595
          %7602 = vmatprep.subr.bf16.mxu0 0
          %7603 = vmatpush1.bf16.msra.mxu0 %v7574
          %7604 = vmatprep.subr.bf16.mxu0 0
          %7605 = vmatpush1.bf16.msra.mxu0 %v7575
          %7606 = vmatprep.subr.bf16.mxu0 0
          %7607 = vmatpush1.bf16.msra.mxu0 %v7576
          %7608 = vmatprep.subr.bf16.mxu0 0
          %7609 = vmatpush1.bf16.msra.mxu0 %v7577
          %7610 = vmatprep.subr.bf16.mxu0 0
          %7611 = vmatpush1.bf16.msra.mxu0 %v7578
          %7612 = vmatprep.subr.bf16.mxu0 0
          %7613 = vmatpush1.bf16.msra.mxu0 %v7579
          %7614 = vmatprep.subr.bf16.mxu0 0
          %7615 = vmatpush1.bf16.msra.mxu0 %v7580
          %7616 = vmatprep.subr.bf16.mxu0 0
          %7617 = vmatpush1.bf16.msra.mxu0 %v7581
          %7618 = vmatprep.subr.bf16.mxu0 0
          %7619 = vmatpush1.bf16.msra.mxu0 %v7582
          %7620 = vmatprep.subr.bf16.mxu0 0
          %7621 = vmatpush1.bf16.msra.mxu0 %v7583
          %7622 = vmatprep.subr.bf16.mxu0 0
          %7623 = vmatpush1.bf16.msra.mxu0 %v7584
          %7624 = vmatprep.subr.bf16.mxu0 0
          %7625 = vmatpush1.bf16.msra.mxu0 %v7585
          %7626 = vmatprep.subr.bf16.mxu0 0
          %7627 = vmatpush1.bf16.msra.mxu0 %v7586
          %7628 = vmatprep.subr.bf16.mxu0 0
          %7629 = vmatpush1.bf16.msra.mxu0 %v7587
          %7630 = vmatprep.subr.bf16.mxu0 0
          %7631 = vmatpush1.bf16.msra.mxu0 %v7588
          %7632 = vmatprep.subr.bf16.mxu0 0
          %7633 = vmatpush1.bf16.msra.mxu0 %v7589
          %7634 = vmatprep.mubr.bf16.mxu0 %v7599
          %7635 = vmatmul.mubr.bf16.gmra.mrb[0].mxu0 %v7598
          %v7636 = vpop.f32.mrb[0].mxu0
          %v7637 = vadd.f32 %v7590, %v7636
          %v7638 = vpop.f32.mrb[0].mxu0
          %v7639 = vpop.f32.mrb[0].mxu0
          %v7640 = vadd.f32 %v7591, %v7639
          %v7641 = vpop.f32.mrb[0].mxu0
          %7642 = vdwg.mxu0
          %v7643 = vlaneseq
          %v7644 = vshrl.u32 %v7643, 7
          %v7645 = vadd.s32 %v7644, 8
          %vm7646 = vcmp.lt.s32.totalorder %v7644, 0
          %v7647 = vsub.s32 0, %v7644
          %v7648 = vsel %vm7646, %v7647, %v7644
          %v7649 = vshrl.u32 %v7648, 2
          %v7650 = vand.u32 %v7648, 3
          %v7651 = vsub.s32 0, %v7650
          %v7652 = vsel %vm7646, %v7651, %v7650
          %vm7653 = vcmp.lt.s32.totalorder %v7645, 0
          %v7654 = vsub.s32 0, %v7645
          %v7655 = vsel %vm7653, %v7654, %v7645
          %v7656 = vshrl.u32 %v7655, 2
          %v7657 = vand.u32 %v7655, 3
          %v7658 = vsub.s32 0, %v7657
          %v7659 = vsel %vm7653, %v7658, %v7657
          %vm7660 = vcmp.ne.s32.totalorder %v7652, 0
          %vm7661 = vcmp.ne.s32.totalorder %v7659, 0
          %vm7662 = vcmp.lt.s32.totalorder %v7652, 0
          %vm7663 = vcmp.lt.s32.totalorder %v7659, 0
          %vm7664 = vmand %vm7662, %vm7660
          %vm7665 = vmand %vm7663, %vm7661
          %v7666 = vadd.s32 %v7652, 4
          %v7667 = vadd.s32 %v7659, 4
          %v7668 = vsel %vm7664, %v7666, %v7652
          %v7669 = vsel %vm7665, %v7667, %v7659
          %vm7670 = vcmp.eq.s32.totalorder %v7668, 0
          %vm7671 = vcmp.eq.s32.totalorder %v7669, 0
          %v7672 = vsel %vm7670, 1.0, 0.0
          %v7673 = vsel %vm7671, 1.0, 0.0
          %v7674 = vadd.f32 %v7637, %v7672
          %v7675 = vadd.f32 %v7640, %v7673
          %vm7676 = vcmask 7168
          %7677 = vst.msk [vmem:[%s490] sm:$0xff] %vm7676, %v7674
          %vm7678 = vcmask 0
          %7679 = vst.msk [vmem:[%s490 + $0x8] sm:$0x1] %vm7678, %v7675
        $region92: #{tpu_custom_call.1} parent=71 // pred_fallthru
          _
        %p7680 = scmp.lt.s32.totalorder %s30, 1
        %s7681 = scalar_select %p7680, %s30, 1
        %s7682 = smul.addr %s7681, 2
        %s7683 = smul.addr %s7682, 8
        %s7684 = scalar_lea.vmem %s13, %s7683
        // Predicated region
        $region93: #{tpu_custom_call.1} parent=71 // pred_check
          %p7685 = pneg %p336
        $region94: #{tpu_custom_call.1} parent=71 // pred_check_branch
          %7687 = sbr.rel (%p7685) target = $region96
        $region95: #{tpu_custom_call.1} parent=71 // pred_region
          _
        $region96: #{tpu_custom_call.1} parent=71 // pred_fallthru
          _
      $region72: #{tpu_custom_call.1} parent=5 // pred_fallthru
        _
      %p7688 = scmp.le.s32.totalorder 2, %s21
      // Predicated region
      $region97: #{tpu_custom_call.1} parent=5 // pred_check
        %p7689 = pneg %p7688
      $region98: #{tpu_custom_call.1} parent=5 // pred_check_branch
        %7691 = sbr.rel (%p7689) target = $region100
      $region99: #{tpu_custom_call.1} parent=5 // pred_region
        %s7692 = ssub.s32 %s21, 2
        // Predicated region
        $region101: #{tpu_custom_call.1} parent=99 // pred_check
          %p7693 = pneg %p342
        $region102: #{tpu_custom_call.1} parent=99 // pred_check_branch
          %7695 = sbr.rel (%p7693) target = $region104
        $region103: #{tpu_custom_call.1} parent=99 // pred_region
          %p7696 = scmp.lt.s32.totalorder %s32, 1
          %s7697 = scalar_select %p7696, %s32, 1
          %s7698 = smul.addr %s7697, 2
          %s7699 = smul.addr %s7698, 8
          %s7700 = scalar_lea.vmem %s13, %s7699
        $region104: #{tpu_custom_call.1} parent=99 // pred_fallthru
          _
      $region100: #{tpu_custom_call.1} parent=5 // pred_fallthru
        _
    $region6: #{tpu_custom_call.1} parent=1 // loop_footer
      %s25 = sadd.s32 1, %s21
    $region7: #{tpu_custom_call.1} parent=1 // loop_footer_branch
      %20 = sbr.rel target = $region3
    $region8: #{tpu_custom_call.1} parent=1 // loop_exit
      _
    %7701 = vsyncpa [#allocation4], 1
    %s7702 = scalar_lea.sflag [#allocation4], 1
    %7703 = vsyncpa %s7702, 1
    %7704 = vsyncpa [#allocation6], 1

</llo_original>
